<compile_context>
chip_gen: v7x
topology: tpu7x:2x2x1
jax: 0.10.0
libtpu: 0.0.40
codegen_flags: <defaults>
</compile_context>

<pallas_src>
import functools

import jax
import jax.numpy as jnp
import numpy as np
from jax import lax
from jax.experimental import pallas as pl
from jax.experimental.pallas import tpu as pltpu

PAD = 0                       # stand-in for data_loader.PAD
NEG_INF = -1e30               # "minus infinity" that stays finite in f32
LANE = 128
SUBLANE = 8


# ----------------------------- helpers ---------------------------------------

def _round_up(x, m):
    return ((x + m - 1) // m) * m


def _largest_divisor_leq(n, cap, multiple=1):
    """Largest divisor of n that is <= cap and a multiple of `multiple`."""
    cap = max(min(n, cap), multiple)
    for d in range(cap, 0, -1):
        if n % d == 0 and d % multiple == 0:
            return d
    return n


def _vmem_limit_bytes():
    """~75% of physical VMEM: ~96 MiB on v5e/v6e (128 MiB), ~48 MiB on v7x (64 MiB)."""
    try:
        cap = int(pltpu.get_tpu_info().vmem_capacity_bytes)
    except Exception:
        cap = 64 * 1024 * 1024
    return max(16 * 1024 * 1024, (cap * 3) // 4)


# ----------------------------- kernels ---------------------------------------

def embedding_gather_kernel(ids_ref, table_ref, out_ref, copy_sem):
    """Row gather via manual DMA.
    ids_ref: [N] int32 in SMEM (scalar prefetch); table_ref: [V, Dp] in HBM (ANY);
    out_ref: [tile, Dp] VMEM block; copy_sem: single shared DMA semaphore.
    All `tile` row DMAs are started first, then waited in a second loop, so many
    row copies are in flight at once (descriptor cost amortized)."""
    tile = out_ref.shape[0]
    base = pl.program_id(0) * tile

    def row_copy(r):
        row = ids_ref[base + r]
        return pltpu.make_async_copy(table_ref.at[pl.ds(row, 1), :],
                                     out_ref.at[pl.ds(r, 1), :],
                                     copy_sem.at[0])

    for r in range(tile):
        row_copy(r).start()
    for r in range(tile):
        row_copy(r).wait()


def lstm_layer_kernel(x_ref, wih_hbm, whh_hbm, b_ref, out_ref,
                      wih_vmem, whh_vmem, h_sc, c_sc, gates_sc, wsem, *, batch):
    """One LSTM layer over a chunk of timesteps (grid axis streams T-chunks).
    x_ref:    [Tc*batch, Din_p] time-major rows of this chunk (VMEM block)
    wih_hbm:  [Din_p, 4Hp] in HBM,  whh_hbm: [Hp, 4Hp] in HBM (loaded once to scratch)
    b_ref:    [1, 4Hp] fused bias (b_ih + b_hh)
    out_ref:  [Tc*batch, Hp]; h_sc/c_sc: [batch, Hp] carry; gates_sc: [Tc*batch, 4Hp].
    Gate order = PyTorch (i, f, g, o)."""
    rows, _ = x_ref.shape
    H = whh_vmem.shape[0]
    Tc = rows // batch
    wd = wih_vmem.dtype

    @pl.when(pl.program_id(0) == 0)
    def _():
        h_sc[...] = jnp.zeros_like(h_sc)
        c_sc[...] = jnp.zeros_like(c_sc)
        # Single-buffered weight residency: load once, reuse for all time chunks.
        cih = pltpu.make_async_copy(wih_hbm, wih_vmem, wsem.at[0])
        chh = pltpu.make_async_copy(whh_hbm, whh_vmem, wsem.at[1])
        cih.start()
        chh.start()
        cih.wait()
        chh.wait()

    # Hoisted input projection: one MXU-friendly big-M matmul for the whole chunk.
    gates_sc[...] = (jnp.dot(x_ref[...].astype(wd), wih_vmem[...],
                             preferred_element_type=jnp.float32) + b_ref[...])

    def one_step(t, h, c):
        r0 = pl.multiple_of(t * batch, batch)
        g = gates_sc[pl.ds(r0, batch), :] + jnp.dot(
            h.astype(wd), whh_vmem[...], preferred_element_type=jnp.float32)
        i = jax.nn.sigmoid(g[:, 0 * H:1 * H])
        f = jax.nn.sigmoid(g[:, 1 * H:2 * H])
        gg = jnp.tanh(g[:, 2 * H:3 * H])
        o = jax.nn.sigmoid(g[:, 3 * H:4 * H])
        c_new = f * c + i * gg
        h_new = o * jnp.tanh(c_new)
        out_ref[pl.ds(r0, batch), :] = h_new
        return h_new, c_new

    # Unroll bounded by H so live (batch, 4H) gate slabs don't blow the vreg file.
    u = max(1, min(4, 2048 // max(H, 1)))
    while Tc % u:
        u -= 1

    def body(s, carry):
        h, c = carry
        for j in range(u):
            h, c = one_step(s * u + j, h, c)
        return h, c

    h, c = lax.fori_loop(0, Tc // u, body, (h_sc[...], c_sc[...]))
    h_sc[...] = h
    c_sc[...] = c


def proj_logsoftmax_kernel(h_ref, b_ref, w_hbm, out_ref, wbuf, wsem, *, tile_v):
    """Output projection + online LogSoftmax for one row tile, V streamed in tiles.
    h_ref: [tile_n, Hp] VMEM; b_ref: [1, Vp] VMEM; w_hbm: [n_vt, Hp, tile_v] in HBM;
    out_ref: [tile_n, Vp]; wbuf: [2, Hp, tile_v] double-buffered weight scratch."""
    rows = h_ref.shape[0]
    Vp = out_ref.shape[1]
    n_vt = Vp // tile_v
    wd = wbuf.dtype
    h = h_ref[...].astype(wd)

    def wcopy(j, slot):
        return pltpu.make_async_copy(w_hbm.at[j], wbuf.at[slot], wsem.at[slot])

    wcopy(0, 0).start()
    m = jnp.full((rows, 1), NEG_INF, jnp.float32)
    s = jnp.zeros((rows, 1), jnp.float32)
    for j in range(n_vt):                       # static V-tile loop -> static slices
        slot = j % 2
        wcopy(j, slot).wait()
        if j + 1 < n_vt:
            wcopy(j + 1, 1 - slot).start()      # prefetch next weight tile
        logits = (jnp.dot(h, wbuf[slot], preferred_element_type=jnp.float32)
                  + b_ref[:, j * tile_v:(j + 1) * tile_v])
        out_ref[:, j * tile_v:(j + 1) * tile_v] = logits
        t_max = jnp.max(logits, axis=-1, keepdims=True)
        m_new = jnp.maximum(m, t_max)
        s = s * jnp.exp(m - m_new) + jnp.sum(jnp.exp(logits - m_new),
                                             axis=-1, keepdims=True)
        m = m_new
    lse = m + jnp.log(s)
    out_ref[...] = out_ref[...] - lse


# ----------------------------- wrapper ----------------------------------------

def language_model_forward(ids, prepared, *, vocab_size, lstm_time_chunk=None):
    """ids: [B, T] int32 token ids. prepared: output of prepare_params().
    vocab_size: true (unpadded) vocabulary size (static)."""
    emb_table, layers, w_out_tiles, b_out = prepared
    B, T = ids.shape
    Dp = emb_table.shape[1]
    Hp = layers[-1][1].shape[0]
    n_vt, _, tile_v = w_out_tiles.shape
    Vp = n_vt * tile_v
    wbytes = jnp.dtype(layers[0][0].dtype).itemsize
    vmem_limit = _vmem_limit_bytes()

    # Pad batch to a sublane multiple; padded rows use PAD (zero embedding row).
    Bp = _round_up(B, SUBLANE)

    # ---- time-chunk selection (VMEM-budget-aware, never collapses) ----
    max_din = max([l[0].shape[0] for l in layers] + [Hp])
    if lstm_time_chunk is None:
        budget = int(vmem_limit * 0.6)
        fixed = (max_din + Hp) * 4 * Hp * wbytes          # single-buffered weights
        per_row = (2 * max_din + 6 * Hp) * 4              # x + out (x2) + gates
        rows_cap = max(Bp, (budget - fixed) // per_row)
        tile_t = max(1, rows_cap // Bp)
        if tile_t >= T:
            tile_t = T
        else:
            tile_t = 1 << (tile_t.bit_length() - 1)       # floor to a power of two
    else:
        tile_t = max(1, min(int(lstm_time_chunk), T))
    Tp = _round_up(T, tile_t)                             # pad T; no exact-divisor trap
    N = Tp * Bp

    ids_p = jnp.pad(ids.astype(jnp.int32), ((0, Bp - B), (0, Tp - T)),
                    constant_values=PAD)
    ids_tm = ids_p.T.reshape(N)                           # time-major flat (t, b) rows

    # 1) embedding: DMA row gather (no one-hot, no MXU)
    tile_e = _largest_divisor_leq(N, 256, SUBLANE)
    x = pl.pallas_call(
        embedding_gather_kernel,
        out_shape=jax.ShapeDtypeStruct((N, Dp), emb_table.dtype),
        grid_spec=pltpu.PrefetchScalarGridSpec(
            num_scalar_prefetch=1,
            grid=(N // tile_e,),
            in_specs=[pl.BlockSpec(memory_space=pl.ANY)],        # table stays in HBM
            out_specs=pl.BlockSpec((tile_e, Dp), lambda i, ids_ref: (i, 0)),
            scratch_shapes=[pltpu.SemaphoreType.DMA((1,))],
        ),
        compiler_params=pltpu.CompilerParams(
            dimension_semantics=("parallel",), vmem_limit_bytes=vmem_limit),
    )(ids_tm, emb_table)

    # 2) stacked LSTM: time-major [N, feat] rows end-to-end, T streamed in chunks
    for (wih_t, whh_t, bias) in layers:
        Din_p = wih_t.shape[0]
        Hl = whh_t.shape[0]
        rows_per_chunk = tile_t * Bp
        x = pl.pallas_call(
            functools.partial(lstm_layer_kernel, batch=Bp),
            out_shape=jax.ShapeDtypeStruct((N, Hl), jnp.float32),
            grid=(Tp // tile_t,),
            in_specs=[
                pl.BlockSpec((rows_per_chunk, Din_p), lambda tc: (tc, 0)),
                pl.BlockSpec(memory_space=pl.ANY),               # W_ih^T in HBM
                pl.BlockSpec(memory_space=pl.ANY),               # W_hh^T in HBM
                pl.BlockSpec((1, 4 * Hl), lambda tc: (0, 0)),
            ],
            out_specs=pl.BlockSpec((rows_per_chunk, Hl), lambda tc: (tc, 0)),
            scratch_shapes=[
                pltpu.VMEM((Din_p, 4 * Hl), wih_t.dtype),        # W_ih^T (single-buf)
                pltpu.VMEM((Hl, 4 * Hl), whh_t.dtype),           # W_hh^T (single-buf)
                pltpu.VMEM((Bp, Hl), jnp.float32),               # h carry
                pltpu.VMEM((Bp, Hl), jnp.float32),               # c carry
                pltpu.VMEM((rows_per_chunk, 4 * Hl), jnp.float32),  # hoisted gates
                pltpu.SemaphoreType.DMA((2,)),
            ],
            compiler_params=pltpu.CompilerParams(
                dimension_semantics=("arbitrary",), vmem_limit_bytes=vmem_limit),
        )(x, wih_t, whh_t, bias)

    # 3) relayout the SMALL [N, Hp] hidden states to batch-major row order, so the
    #    big [N, Vp] log-prob output is written directly batch-major (no N*V transpose)
    xb = x.reshape(Tp, Bp, Hp).transpose(1, 0, 2).reshape(N, Hp)

    # projection + log_softmax, V streamed in tiles, rows tiled with "parallel"
    budget_p = int(vmem_limit * 0.5)
    fixed_p = 2 * Hp * tile_v * wbytes + 2 * Vp * 4
    per_row_p = (2 * Hp + 2 * Vp) * 4
    cap_rows = max(SUBLANE, (budget_p - fixed_p) // per_row_p)
    tile_n = _largest_divisor_leq(N, min(cap_rows, 512), SUBLANE)

    y = pl.pallas_call(
        functools.partial(proj_logsoftmax_kernel, tile_v=tile_v),
        out_shape=jax.ShapeDtypeStruct((N, Vp), jnp.float32),
        grid=(N // tile_n,),
        in_specs=[
            pl.BlockSpec((tile_n, Hp), lambda i: (i, 0)),
            pl.BlockSpec((1, Vp), lambda i: (0, 0)),
            pl.BlockSpec(memory_space=pl.ANY),                   # [n_vt,Hp,tile_v] in HBM
        ],
        out_specs=pl.BlockSpec((tile_n, Vp), lambda i: (i, 0)),
        scratch_shapes=[
            pltpu.VMEM((2, Hp, tile_v), w_out_tiles.dtype),      # weight double-buffer
            pltpu.SemaphoreType.DMA((2,)),
        ],
        compiler_params=pltpu.CompilerParams(
            dimension_semantics=("parallel",), vmem_limit_bytes=vmem_limit),
    )(xb, b_out, w_out_tiles)

    # rows are batch-major (b, t): a free reshape gives [Bp, Tp, Vp]; drop padding.
    return y.reshape(Bp, Tp, Vp)[:B, :T, :vocab_size]


# ----------------------------- params -----------------------------------------

def init_params(key, vocab_size, word_vec_dim, hidden_size, n_layers):
    """PyTorch-layout parameters (used by the pure-JAX reference)."""
    keys = jax.random.split(key, 3 + 4 * n_layers)
    k = 0
    emb = 0.1 * jax.random.normal(keys[k], (vocab_size, word_vec_dim), jnp.float32); k += 1
    emb = emb.at[PAD].set(0.0)                        # padding_idx row is zero
    s = 1.0 / np.sqrt(hidden_size)
    lstm_params = []
    for layer in range(n_layers):
        din = word_vec_dim if layer == 0 else hidden_size
        w_ih = jax.random.uniform(keys[k], (4 * hidden_size, din), jnp.float32, -s, s); k += 1
        w_hh = jax.random.uniform(keys[k], (4 * hidden_size, hidden_size), jnp.float32, -s, s); k += 1
        b_ih = jax.random.uniform(keys[k], (4 * hidden_size,), jnp.float32, -s, s); k += 1
        b_hh = jax.random.uniform(keys[k], (4 * hidden_size,), jnp.float32, -s, s); k += 1
        lstm_params.append((w_ih, w_hh, b_ih, b_hh))
    w_out = jax.random.uniform(keys[k], (vocab_size, hidden_size), jnp.float32, -s, s); k += 1
    b_out = jax.random.uniform(keys[k], (vocab_size,), jnp.float32, -s, s); k += 1
    return emb, lstm_params, w_out, b_out


def prepare_params(params, matmul_dtype=jnp.float32):
    """One-time layout prep:
      * D/H/V padded to lane multiples (per-gate padding keeps exact semantics;
        padded vocab columns get a -1e30 bias so softmax is unaffected),
      * weights pre-transposed contracted-dim-major, LSTM biases fused,
      * output weight pre-sliced into contiguous [n_vt, Hp, tile_v] V-tiles for DMA,
      * optional reduced matmul dtype (bf16 on v6e/v7x) with f32 accumulation."""
    emb, lstm_params, w_out, b_out = params
    V, D = emb.shape
    H = lstm_params[0][1].shape[1]
    Dp = _round_up(D, LANE)
    Hp = _round_up(H, LANE)

    emb_p = jnp.pad(emb, ((0, 0), (0, Dp - D))).astype(jnp.float32)

    def pad_gate_w(w, in_dim, in_pad):
        # [4H, in_dim] -> [4Hp, in_pad] with per-gate row padding (PyTorch i,f,g,o order)
        w4 = w.reshape(4, H, in_dim)
        w4 = jnp.pad(w4, ((0, 0), (0, Hp - H), (0, in_pad - in_dim)))
        return w4.reshape(4 * Hp, in_pad)

    layers = []
    for (w_ih, w_hh, b_ih, b_hh) in lstm_params:
        din = w_ih.shape[1]
        din_p = _round_up(din, LANE)
        wih_p = pad_gate_w(w_ih, din, din_p)
        whh_p = pad_gate_w(w_hh, H, Hp)
        b = jnp.pad((b_ih + b_hh).reshape(4, H), ((0, 0), (0, Hp - H))).reshape(1, 4 * Hp)
        layers.append((jnp.asarray(wih_p.T, matmul_dtype),
                       jnp.asarray(whh_p.T, matmul_dtype),
                       b.astype(jnp.float32)))

    # Output projection: choose Vp / tile_v so the V-tile count stays moderate.
    if V > 512:
        Vp = _round_up(V, 512)
        tile_v = 512
    else:
        Vp = _round_up(V, LANE)
        tile_v = Vp
    w_out_p = jnp.pad(w_out, ((0, Vp - V), (0, Hp - H)))               # [Vp, Hp]
    w_out_t = jnp.asarray(w_out_p.T, matmul_dtype)                     # [Hp, Vp]
    w_out_tiles = w_out_t.reshape(Hp, Vp // tile_v, tile_v).transpose(1, 0, 2)
    b_out_p = jnp.pad(b_out, (0, Vp - V),
                      constant_values=NEG_INF).reshape(1, Vp).astype(jnp.float32)
    return (emb_p, layers, w_out_tiles, b_out_p)


# ----------------------------- reference ---------------------------------------

def forward_ref(ids, emb_table, lstm_params, w_out, b_out):
    """Pure-JAX reference matching PyTorch forward semantics (eval mode)."""
    x = emb_table[ids]                                # [B, T, D]
    B, T, _ = x.shape
    for (w_ih, w_hh, b_ih, b_hh) in lstm_params:
        H = w_hh.shape[1]
        h = jnp.zeros((B, H), jnp.float32)
        c = jnp.zeros((B, H), jnp.float32)
        outs = []
        for t in range(T):
            g = x[:, t] @ w_ih.T + b_ih + h @ w_hh.T + b_hh
            i, f, gg, o = jnp.split(g, 4, axis=-1)
            i, f, o = jax.nn.sigmoid(i), jax.nn.sigmoid(f), jax.nn.sigmoid(o)
            gg = jnp.tanh(gg)
            c = f * c + i * gg
            h = o * jnp.tanh(c)
            outs.append(h)
        x = jnp.stack(outs, axis=1)
    logits = x @ w_out.T + b_out
    return jax.nn.log_softmax(logits, axis=2)


# ----------------------------- main --------------------------------------------

if __name__ == "__main__":
    vocab_size, word_vec_dim, hidden_size, n_layers = 64, 32, 32, 2
    B, T = 2, 8

    key = jax.random.PRNGKey(0)
    pkey, ikey = jax.random.split(key)
    params = init_params(pkey, vocab_size, word_vec_dim, hidden_size, n_layers)
    ids = jax.random.randint(ikey, (B, T), 0, vocab_size, dtype=jnp.int32)

    prepared = prepare_params(params)                 # f32 MXU path for the self-test
    fwd = jax.jit(language_model_forward,
                  static_argnames=("vocab_size", "lstm_time_chunk"))
    # lstm_time_chunk=4 -> 2 time-chunks per layer, exercising the carried-state pipeline
    y = jax.block_until_ready(fwd(ids, prepared, vocab_size=vocab_size,
                                  lstm_time_chunk=4))
    assert y.shape == (B, T, vocab_size)

    y_ref = forward_ref(ids, *params)
    np.testing.assert_allclose(np.asarray(y), np.asarray(y_ref), atol=2e-4, rtol=2e-4)

    print("KERNEL_OK")
</pallas_src>

<mosaic_0001>
module attributes {stable_mosaic.version = 11 : i64} {
  func.func @embedding_gather_kernel(%arg0: i32, %arg1: memref<64xi32, #tpu.memory_space<smem>>, %arg2: memref<64x128xf32, #tpu.memory_space<any>>, %arg3: memref<64x128xf32, #tpu.memory_space<vmem>>, %arg4: memref<1x!tpu.dma_semaphore, #tpu.memory_space<semaphore_mem>>) attributes {dimension_semantics = [#tpu.dimension_semantics<parallel>], iteration_bounds = array<i64: 1>, scalar_prefetch = 1 : i64, scratch_operands = 1 : i64, tpu.core_type = #tpu.core_type<tc>, window_params = [{}, {transform_indices = @transform_1, window_bounds = array<i64: 64, 128>}]} {
    %c64_i32 = arith.constant 64 : i32
    %0 = arith.muli %arg0, %c64_i32 : i32
    %c0_i32 = arith.constant 0 : i32
    %1 = arith.addi %0, %c0_i32 : i32
    %2 = arith.index_cast %1 : i32 to index
    %3 = memref.load %arg1[%2] : memref<64xi32, #tpu.memory_space<smem>>
    %c0_i32_0 = arith.constant 0 : i32
    %c0_i32_1 = arith.constant 0 : i32
    %4 = tpu.memref_slice %arg2[%3, %c0_i32_1] : memref<64x128xf32, #tpu.memory_space<any>> -> memref<1x128xf32, #tpu.memory_space<any>>
    %c0_i32_2 = arith.constant 0 : i32
    %c0_i32_3 = arith.constant 0 : i32
    %5 = tpu.memref_slice %arg3[%c0_i32_2, %c0_i32_3] : memref<64x128xf32, #tpu.memory_space<vmem>> -> memref<1x128xf32, #tpu.memory_space<vmem>>
    %6 = tpu.memref_slice %arg4[%c0_i32_0] : memref<1x!tpu.dma_semaphore, #tpu.memory_space<semaphore_mem>> -> memref<1x!tpu.dma_semaphore, #tpu.memory_space<semaphore_mem>>
    %7 = tpu.memref_squeeze %6 : memref<1x!tpu.dma_semaphore, #tpu.memory_space<semaphore_mem>> -> memref<!tpu.dma_semaphore, #tpu.memory_space<semaphore_mem>>
    tpu.enqueue_dma source(%4 : memref<1x128xf32, #tpu.memory_space<any>>) target(%5 : memref<1x128xf32, #tpu.memory_space<vmem>>) target_semaphore(%7 : memref<!tpu.dma_semaphore, #tpu.memory_space<semaphore_mem>>)
    %c1_i32 = arith.constant 1 : i32
    %8 = arith.addi %0, %c1_i32 : i32
    %9 = arith.index_cast %8 : i32 to index
    %10 = memref.load %arg1[%9] : memref<64xi32, #tpu.memory_space<smem>>
    %c0_i32_4 = arith.constant 0 : i32
    %c0_i32_5 = arith.constant 0 : i32
    %11 = tpu.memref_slice %arg2[%10, %c0_i32_5] : memref<64x128xf32, #tpu.memory_space<any>> -> memref<1x128xf32, #tpu.memory_space<any>>
    %c1_i32_6 = arith.constant 1 : i32
    %c0_i32_7 = arith.constant 0 : i32
    %12 = tpu.memref_slice %arg3[%c1_i32_6, %c0_i32_7] : memref<64x128xf32, #tpu.memory_space<vmem>> -> memref<1x128xf32, #tpu.memory_space<vmem>>
    %13 = tpu.memref_slice %arg4[%c0_i32_4] : memref<1x!tpu.dma_semaphore, #tpu.memory_space<semaphore_mem>> -> memref<1x!tpu.dma_semaphore, #tpu.memory_space<semaphore_mem>>
    %14 = tpu.memref_squeeze %13 : memref<1x!tpu.dma_semaphore, #tpu.memory_space<semaphore_mem>> -> memref<!tpu.dma_semaphore, #tpu.memory_space<semaphore_mem>>
    tpu.enqueue_dma source(%11 : memref<1x128xf32, #tpu.memory_space<any>>) target(%12 : memref<1x128xf32, #tpu.memory_space<vmem>>) target_semaphore(%14 : memref<!tpu.dma_semaphore, #tpu.memory_space<semaphore_mem>>)
    %c2_i32 = arith.constant 2 : i32
    %15 = arith.addi %0, %c2_i32 : i32
    %16 = arith.index_cast %15 : i32 to index
    %17 = memref.load %arg1[%16] : memref<64xi32, #tpu.memory_space<smem>>
    %c0_i32_8 = arith.constant 0 : i32
    %c0_i32_9 = arith.constant 0 : i32
    %18 = tpu.memref_slice %arg2[%17, %c0_i32_9] : memref<64x128xf32, #tpu.memory_space<any>> -> memref<1x128xf32, #tpu.memory_space<any>>
    %c2_i32_10 = arith.constant 2 : i32
    %c0_i32_11 = arith.constant 0 : i32
    %19 = tpu.memref_slice %arg3[%c2_i32_10, %c0_i32_11] : memref<64x128xf32, #tpu.memory_space<vmem>> -> memref<1x128xf32, #tpu.memory_space<vmem>>
    %20 = tpu.memref_slice %arg4[%c0_i32_8] : memref<1x!tpu.dma_semaphore, #tpu.memory_space<semaphore_mem>> -> memref<1x!tpu.dma_semaphore, #tpu.memory_space<semaphore_mem>>
    %21 = tpu.memref_squeeze %20 : memref<1x!tpu.dma_semaphore, #tpu.memory_space<semaphore_mem>> -> memref<!tpu.dma_semaphore, #tpu.memory_space<semaphore_mem>>
    tpu.enqueue_dma source(%18 : memref<1x128xf32, #tpu.memory_space<any>>) target(%19 : memref<1x128xf32, #tpu.memory_space<vmem>>) target_semaphore(%21 : memref<!tpu.dma_semaphore, #tpu.memory_space<semaphore_mem>>)
    %c3_i32 = arith.constant 3 : i32
    %22 = arith.addi %0, %c3_i32 : i32
    %23 = arith.index_cast %22 : i32 to index
    %24 = memref.load %arg1[%23] : memref<64xi32, #tpu.memory_space<smem>>
    %c0_i32_12 = arith.constant 0 : i32
    %c0_i32_13 = arith.constant 0 : i32
    %25 = tpu.memref_slice %arg2[%24, %c0_i32_13] : memref<64x128xf32, #tpu.memory_space<any>> -> memref<1x128xf32, #tpu.memory_space<any>>
    %c3_i32_14 = arith.constant 3 : i32
    %c0_i32_15 = arith.constant 0 : i32
    %26 = tpu.memref_slice %arg3[%c3_i32_14, %c0_i32_15] : memref<64x128xf32, #tpu.memory_space<vmem>> -> memref<1x128xf32, #tpu.memory_space<vmem>>
    %27 = tpu.memref_slice %arg4[%c0_i32_12] : memref<1x!tpu.dma_semaphore, #tpu.memory_space<semaphore_mem>> -> memref<1x!tpu.dma_semaphore, #tpu.memory_space<semaphore_mem>>
    %28 = tpu.memref_squeeze %27 : memref<1x!tpu.dma_semaphore, #tpu.memory_space<semaphore_mem>> -> memref<!tpu.dma_semaphore, #tpu.memory_space<semaphore_mem>>
    tpu.enqueue_dma source(%25 : memref<1x128xf32, #tpu.memory_space<any>>) target(%26 : memref<1x128xf32, #tpu.memory_space<vmem>>) target_semaphore(%28 : memref<!tpu.dma_semaphore, #tpu.memory_space<semaphore_mem>>)
    %c4_i32 = arith.constant 4 : i32
    %29 = arith.addi %0, %c4_i32 : i32
    %30 = arith.index_cast %29 : i32 to index
    %31 = memref.load %arg1[%30] : memref<64xi32, #tpu.memory_space<smem>>
    %c0_i32_16 = arith.constant 0 : i32
    %c0_i32_17 = arith.constant 0 : i32
    %32 = tpu.memref_slice %arg2[%31, %c0_i32_17] : memref<64x128xf32, #tpu.memory_space<any>> -> memref<1x128xf32, #tpu.memory_space<any>>
    %c4_i32_18 = arith.constant 4 : i32
    %c0_i32_19 = arith.constant 0 : i32
    %33 = tpu.memref_slice %arg3[%c4_i32_18, %c0_i32_19] : memref<64x128xf32, #tpu.memory_space<vmem>> -> memref<1x128xf32, #tpu.memory_space<vmem>>
    %34 = tpu.memref_slice %arg4[%c0_i32_16] : memref<1x!tpu.dma_semaphore, #tpu.memory_space<semaphore_mem>> -> memref<1x!tpu.dma_semaphore, #tpu.memory_space<semaphore_mem>>
    %35 = tpu.memref_squeeze %34 : memref<1x!tpu.dma_semaphore, #tpu.memory_space<semaphore_mem>> -> memref<!tpu.dma_semaphore, #tpu.memory_space<semaphore_mem>>
    tpu.enqueue_dma source(%32 : memref<1x128xf32, #tpu.memory_space<any>>) target(%33 : memref<1x128xf32, #tpu.memory_space<vmem>>) target_semaphore(%35 : memref<!tpu.dma_semaphore, #tpu.memory_space<semaphore_mem>>)
    %c5_i32 = arith.constant 5 : i32
    %36 = arith.addi %0, %c5_i32 : i32
    %37 = arith.index_cast %36 : i32 to index
    %38 = memref.load %arg1[%37] : memref<64xi32, #tpu.memory_space<smem>>
    %c0_i32_20 = arith.constant 0 : i32
    %c0_i32_21 = arith.constant 0 : i32
    %39 = tpu.memref_slice %arg2[%38, %c0_i32_21] : memref<64x128xf32, #tpu.memory_space<any>> -> memref<1x128xf32, #tpu.memory_space<any>>
    %c5_i32_22 = arith.constant 5 : i32
    %c0_i32_23 = arith.constant 0 : i32
    %40 = tpu.memref_slice %arg3[%c5_i32_22, %c0_i32_23] : memref<64x128xf32, #tpu.memory_space<vmem>> -> memref<1x128xf32, #tpu.memory_space<vmem>>
    %41 = tpu.memref_slice %arg4[%c0_i32_20] : memref<1x!tpu.dma_semaphore, #tpu.memory_space<semaphore_mem>> -> memref<1x!tpu.dma_semaphore, #tpu.memory_space<semaphore_mem>>
    %42 = tpu.memref_squeeze %41 : memref<1x!tpu.dma_semaphore, #tpu.memory_space<semaphore_mem>> -> memref<!tpu.dma_semaphore, #tpu.memory_space<semaphore_mem>>
    tpu.enqueue_dma source(%39 : memref<1x128xf32, #tpu.memory_space<any>>) target(%40 : memref<1x128xf32, #tpu.memory_space<vmem>>) target_semaphore(%42 : memref<!tpu.dma_semaphore, #tpu.memory_space<semaphore_mem>>)
    %c6_i32 = arith.constant 6 : i32
    %43 = arith.addi %0, %c6_i32 : i32
    %44 = arith.index_cast %43 : i32 to index
    %45 = memref.load %arg1[%44] : memref<64xi32, #tpu.memory_space<smem>>
    %c0_i32_24 = arith.constant 0 : i32
    %c0_i32_25 = arith.constant 0 : i32
    %46 = tpu.memref_slice %arg2[%45, %c0_i32_25] : memref<64x128xf32, #tpu.memory_space<any>> -> memref<1x128xf32, #tpu.memory_space<any>>
    %c6_i32_26 = arith.constant 6 : i32
    %c0_i32_27 = arith.constant 0 : i32
    %47 = tpu.memref_slice %arg3[%c6_i32_26, %c0_i32_27] : memref<64x128xf32, #tpu.memory_space<vmem>> -> memref<1x128xf32, #tpu.memory_space<vmem>>
    %48 = tpu.memref_slice %arg4[%c0_i32_24] : memref<1x!tpu.dma_semaphore, #tpu.memory_space<semaphore_mem>> -> memref<1x!tpu.dma_semaphore, #tpu.memory_space<semaphore_mem>>
    %49 = tpu.memref_squeeze %48 : memref<1x!tpu.dma_semaphore, #tpu.memory_space<semaphore_mem>> -> memref<!tpu.dma_semaphore, #tpu.memory_space<semaphore_mem>>
    tpu.enqueue_dma source(%46 : memref<1x128xf32, #tpu.memory_space<any>>) target(%47 : memref<1x128xf32, #tpu.memory_space<vmem>>) target_semaphore(%49 : memref<!tpu.dma_semaphore, #tpu.memory_space<semaphore_mem>>)
    %c7_i32 = arith.constant 7 : i32
    %50 = arith.addi %0, %c7_i32 : i32
    %51 = arith.index_cast %50 : i32 to index
    %52 = memref.load %arg1[%51] : memref<64xi32, #tpu.memory_space<smem>>
    %c0_i32_28 = arith.constant 0 : i32
    %c0_i32_29 = arith.constant 0 : i32
    %53 = tpu.memref_slice %arg2[%52, %c0_i32_29] : memref<64x128xf32, #tpu.memory_space<any>> -> memref<1x128xf32, #tpu.memory_space<any>>
    %c7_i32_30 = arith.constant 7 : i32
    %c0_i32_31 = arith.constant 0 : i32
    %54 = tpu.memref_slice %arg3[%c7_i32_30, %c0_i32_31] : memref<64x128xf32, #tpu.memory_space<vmem>> -> memref<1x128xf32, #tpu.memory_space<vmem>>
    %55 = tpu.memref_slice %arg4[%c0_i32_28] : memref<1x!tpu.dma_semaphore, #tpu.memory_space<semaphore_mem>> -> memref<1x!tpu.dma_semaphore, #tpu.memory_space<semaphore_mem>>
    %56 = tpu.memref_squeeze %55 : memref<1x!tpu.dma_semaphore, #tpu.memory_space<semaphore_mem>> -> memref<!tpu.dma_semaphore, #tpu.memory_space<semaphore_mem>>
    tpu.enqueue_dma source(%53 : memref<1x128xf32, #tpu.memory_space<any>>) target(%54 : memref<1x128xf32, #tpu.memory_space<vmem>>) target_semaphore(%56 : memref<!tpu.dma_semaphore, #tpu.memory_space<semaphore_mem>>)
    %c8_i32 = arith.constant 8 : i32
    %57 = arith.addi %0, %c8_i32 : i32
    %58 = arith.index_cast %57 : i32 to index
    %59 = memref.load %arg1[%58] : memref<64xi32, #tpu.memory_space<smem>>
    %c0_i32_32 = arith.constant 0 : i32
    %c0_i32_33 = arith.constant 0 : i32
    %60 = tpu.memref_slice %arg2[%59, %c0_i32_33] : memref<64x128xf32, #tpu.memory_space<any>> -> memref<1x128xf32, #tpu.memory_space<any>>
    %c8_i32_34 = arith.constant 8 : i32
    %c0_i32_35 = arith.constant 0 : i32
    %61 = tpu.memref_slice %arg3[%c8_i32_34, %c0_i32_35] : memref<64x128xf32, #tpu.memory_space<vmem>> -> memref<1x128xf32, #tpu.memory_space<vmem>>
    %62 = tpu.memref_slice %arg4[%c0_i32_32] : memref<1x!tpu.dma_semaphore, #tpu.memory_space<semaphore_mem>> -> memref<1x!tpu.dma_semaphore, #tpu.memory_space<semaphore_mem>>
    %63 = tpu.memref_squeeze %62 : memref<1x!tpu.dma_semaphore, #tpu.memory_space<semaphore_mem>> -> memref<!tpu.dma_semaphore, #tpu.memory_space<semaphore_mem>>
    tpu.enqueue_dma source(%60 : memref<1x128xf32, #tpu.memory_space<any>>) target(%61 : memref<1x128xf32, #tpu.memory_space<vmem>>) target_semaphore(%63 : memref<!tpu.dma_semaphore, #tpu.memory_space<semaphore_mem>>)
    %c9_i32 = arith.constant 9 : i32
    %64 = arith.addi %0, %c9_i32 : i32
    %65 = arith.index_cast %64 : i32 to index
    %66 = memref.load %arg1[%65] : memref<64xi32, #tpu.memory_space<smem>>
    %c0_i32_36 = arith.constant 0 : i32
    %c0_i32_37 = arith.constant 0 : i32
    %67 = tpu.memref_slice %arg2[%66, %c0_i32_37] : memref<64x128xf32, #tpu.memory_space<any>> -> memref<1x128xf32, #tpu.memory_space<any>>
    %c9_i32_38 = arith.constant 9 : i32
    %c0_i32_39 = arith.constant 0 : i32
    %68 = tpu.memref_slice %arg3[%c9_i32_38, %c0_i32_39] : memref<64x128xf32, #tpu.memory_space<vmem>> -> memref<1x128xf32, #tpu.memory_space<vmem>>
    %69 = tpu.memref_slice %arg4[%c0_i32_36] : memref<1x!tpu.dma_semaphore, #tpu.memory_space<semaphore_mem>> -> memref<1x!tpu.dma_semaphore, #tpu.memory_space<semaphore_mem>>
    %70 = tpu.memref_squeeze %69 : memref<1x!tpu.dma_semaphore, #tpu.memory_space<semaphore_mem>> -> memref<!tpu.dma_semaphore, #tpu.memory_space<semaphore_mem>>
    tpu.enqueue_dma source(%67 : memref<1x128xf32, #tpu.memory_space<any>>) target(%68 : memref<1x128xf32, #tpu.memory_space<vmem>>) target_semaphore(%70 : memref<!tpu.dma_semaphore, #tpu.memory_space<semaphore_mem>>)
    %c10_i32 = arith.constant 10 : i32
    %71 = arith.addi %0, %c10_i32 : i32
    %72 = arith.index_cast %71 : i32 to index
    %73 = memref.load %arg1[%72] : memref<64xi32, #tpu.memory_space<smem>>
    %c0_i32_40 = arith.constant 0 : i32
    %c0_i32_41 = arith.constant 0 : i32
    %74 = tpu.memref_slice %arg2[%73, %c0_i32_41] : memref<64x128xf32, #tpu.memory_space<any>> -> memref<1x128xf32, #tpu.memory_space<any>>
    %c10_i32_42 = arith.constant 10 : i32
    %c0_i32_43 = arith.constant 0 : i32
    %75 = tpu.memref_slice %arg3[%c10_i32_42, %c0_i32_43] : memref<64x128xf32, #tpu.memory_space<vmem>> -> memref<1x128xf32, #tpu.memory_space<vmem>>
    %76 = tpu.memref_slice %arg4[%c0_i32_40] : memref<1x!tpu.dma_semaphore, #tpu.memory_space<semaphore_mem>> -> memref<1x!tpu.dma_semaphore, #tpu.memory_space<semaphore_mem>>
    %77 = tpu.memref_squeeze %76 : memref<1x!tpu.dma_semaphore, #tpu.memory_space<semaphore_mem>> -> memref<!tpu.dma_semaphore, #tpu.memory_space<semaphore_mem>>
    tpu.enqueue_dma source(%74 : memref<1x128xf32, #tpu.memory_space<any>>) target(%75 : memref<1x128xf32, #tpu.memory_space<vmem>>) target_semaphore(%77 : memref<!tpu.dma_semaphore, #tpu.memory_space<semaphore_mem>>)
    %c11_i32 = arith.constant 11 : i32
    %78 = arith.addi %0, %c11_i32 : i32
    %79 = arith.index_cast %78 : i32 to index
    %80 = memref.load %arg1[%79] : memref<64xi32, #tpu.memory_space<smem>>
    %c0_i32_44 = arith.constant 0 : i32
    %c0_i32_45 = arith.constant 0 : i32
    %81 = tpu.memref_slice %arg2[%80, %c0_i32_45] : memref<64x128xf32, #tpu.memory_space<any>> -> memref<1x128xf32, #tpu.memory_space<any>>
    %c11_i32_46 = arith.constant 11 : i32
    %c0_i32_47 = arith.constant 0 : i32
    %82 = tpu.memref_slice %arg3[%c11_i32_46, %c0_i32_47] : memref<64x128xf32, #tpu.memory_space<vmem>> -> memref<1x128xf32, #tpu.memory_space<vmem>>
    %83 = tpu.memref_slice %arg4[%c0_i32_44] : memref<1x!tpu.dma_semaphore, #tpu.memory_space<semaphore_mem>> -> memref<1x!tpu.dma_semaphore, #tpu.memory_space<semaphore_mem>>
    %84 = tpu.memref_squeeze %83 : memref<1x!tpu.dma_semaphore, #tpu.memory_space<semaphore_mem>> -> memref<!tpu.dma_semaphore, #tpu.memory_space<semaphore_mem>>
    tpu.enqueue_dma source(%81 : memref<1x128xf32, #tpu.memory_space<any>>) target(%82 : memref<1x128xf32, #tpu.memory_space<vmem>>) target_semaphore(%84 : memref<!tpu.dma_semaphore, #tpu.memory_space<semaphore_mem>>)
    %c12_i32 = arith.constant 12 : i32
    %85 = arith.addi %0, %c12_i32 : i32
    %86 = arith.index_cast %85 : i32 to index
    %87 = memref.load %arg1[%86] : memref<64xi32, #tpu.memory_space<smem>>
    %c0_i32_48 = arith.constant 0 : i32
    %c0_i32_49 = arith.constant 0 : i32
    %88 = tpu.memref_slice %arg2[%87, %c0_i32_49] : memref<64x128xf32, #tpu.memory_space<any>> -> memref<1x128xf32, #tpu.memory_space<any>>
    %c12_i32_50 = arith.constant 12 : i32
    %c0_i32_51 = arith.constant 0 : i32
    %89 = tpu.memref_slice %arg3[%c12_i32_50, %c0_i32_51] : memref<64x128xf32, #tpu.memory_space<vmem>> -> memref<1x128xf32, #tpu.memory_space<vmem>>
    %90 = tpu.memref_slice %arg4[%c0_i32_48] : memref<1x!tpu.dma_semaphore, #tpu.memory_space<semaphore_mem>> -> memref<1x!tpu.dma_semaphore, #tpu.memory_space<semaphore_mem>>
    %91 = tpu.memref_squeeze %90 : memref<1x!tpu.dma_semaphore, #tpu.memory_space<semaphore_mem>> -> memref<!tpu.dma_semaphore, #tpu.memory_space<semaphore_mem>>
    tpu.enqueue_dma source(%88 : memref<1x128xf32, #tpu.memory_space<any>>) target(%89 : memref<1x128xf32, #tpu.memory_space<vmem>>) target_semaphore(%91 : memref<!tpu.dma_semaphore, #tpu.memory_space<semaphore_mem>>)
    %c13_i32 = arith.constant 13 : i32
    %92 = arith.addi %0, %c13_i32 : i32
    %93 = arith.index_cast %92 : i32 to index
    %94 = memref.load %arg1[%93] : memref<64xi32, #tpu.memory_space<smem>>
    %c0_i32_52 = arith.constant 0 : i32
    %c0_i32_53 = arith.constant 0 : i32
    %95 = tpu.memref_slice %arg2[%94, %c0_i32_53] : memref<64x128xf32, #tpu.memory_space<any>> -> memref<1x128xf32, #tpu.memory_space<any>>
    %c13_i32_54 = arith.constant 13 : i32
    %c0_i32_55 = arith.constant 0 : i32
    %96 = tpu.memref_slice %arg3[%c13_i32_54, %c0_i32_55] : memref<64x128xf32, #tpu.memory_space<vmem>> -> memref<1x128xf32, #tpu.memory_space<vmem>>
    %97 = tpu.memref_slice %arg4[%c0_i32_52] : memref<1x!tpu.dma_semaphore, #tpu.memory_space<semaphore_mem>> -> memref<1x!tpu.dma_semaphore, #tpu.memory_space<semaphore_mem>>
    %98 = tpu.memref_squeeze %97 : memref<1x!tpu.dma_semaphore, #tpu.memory_space<semaphore_mem>> -> memref<!tpu.dma_semaphore, #tpu.memory_space<semaphore_mem>>
    tpu.enqueue_dma source(%95 : memref<1x128xf32, #tpu.memory_space<any>>) target(%96 : memref<1x128xf32, #tpu.memory_space<vmem>>) target_semaphore(%98 : memref<!tpu.dma_semaphore, #tpu.memory_space<semaphore_mem>>)
    %c14_i32 = arith.constant 14 : i32
    %99 = arith.addi %0, %c14_i32 : i32
    %100 = arith.index_cast %99 : i32 to index
    %101 = memref.load %arg1[%100] : memref<64xi32, #tpu.memory_space<smem>>
    %c0_i32_56 = arith.constant 0 : i32
    %c0_i32_57 = arith.constant 0 : i32
    %102 = tpu.memref_slice %arg2[%101, %c0_i32_57] : memref<64x128xf32, #tpu.memory_space<any>> -> memref<1x128xf32, #tpu.memory_space<any>>
    %c14_i32_58 = arith.constant 14 : i32
    %c0_i32_59 = arith.constant 0 : i32
    %103 = tpu.memref_slice %arg3[%c14_i32_58, %c0_i32_59] : memref<64x128xf32, #tpu.memory_space<vmem>> -> memref<1x128xf32, #tpu.memory_space<vmem>>
    %104 = tpu.memref_slice %arg4[%c0_i32_56] : memref<1x!tpu.dma_semaphore, #tpu.memory_space<semaphore_mem>> -> memref<1x!tpu.dma_semaphore, #tpu.memory_space<semaphore_mem>>
    %105 = tpu.memref_squeeze %104 : memref<1x!tpu.dma_semaphore, #tpu.memory_space<semaphore_mem>> -> memref<!tpu.dma_semaphore, #tpu.memory_space<semaphore_mem>>
    tpu.enqueue_dma source(%102 : memref<1x128xf32, #tpu.memory_space<any>>) target(%103 : memref<1x128xf32, #tpu.memory_space<vmem>>) target_semaphore(%105 : memref<!tpu.dma_semaphore, #tpu.memory_space<semaphore_mem>>)
    %c15_i32 = arith.constant 15 : i32
    %106 = arith.addi %0, %c15_i32 : i32
    %107 = arith.index_cast %106 : i32 to index
    %108 = memref.load %arg1[%107] : memref<64xi32, #tpu.memory_space<smem>>
    %c0_i32_60 = arith.constant 0 : i32
    %c0_i32_61 = arith.constant 0 : i32
    %109 = tpu.memref_slice %arg2[%108, %c0_i32_61] : memref<64x128xf32, #tpu.memory_space<any>> -> memref<1x128xf32, #tpu.memory_space<any>>
    %c15_i32_62 = arith.constant 15 : i32
    %c0_i32_63 = arith.constant 0 : i32
    %110 = tpu.memref_slice %arg3[%c15_i32_62, %c0_i32_63] : memref<64x128xf32, #tpu.memory_space<vmem>> -> memref<1x128xf32, #tpu.memory_space<vmem>>
    %111 = tpu.memref_slice %arg4[%c0_i32_60] : memref<1x!tpu.dma_semaphore, #tpu.memory_space<semaphore_mem>> -> memref<1x!tpu.dma_semaphore, #tpu.memory_space<semaphore_mem>>
    %112 = tpu.memref_squeeze %111 : memref<1x!tpu.dma_semaphore, #tpu.memory_space<semaphore_mem>> -> memref<!tpu.dma_semaphore, #tpu.memory_space<semaphore_mem>>
    tpu.enqueue_dma source(%109 : memref<1x128xf32, #tpu.memory_space<any>>) target(%110 : memref<1x128xf32, #tpu.memory_space<vmem>>) target_semaphore(%112 : memref<!tpu.dma_semaphore, #tpu.memory_space<semaphore_mem>>)
    %c16_i32 = arith.constant 16 : i32
    %113 = arith.addi %0, %c16_i32 : i32
    %114 = arith.index_cast %113 : i32 to index
    %115 = memref.load %arg1[%114] : memref<64xi32, #tpu.memory_space<smem>>
    %c0_i32_64 = arith.constant 0 : i32
    %c0_i32_65 = arith.constant 0 : i32
    %116 = tpu.memref_slice %arg2[%115, %c0_i32_65] : memref<64x128xf32, #tpu.memory_space<any>> -> memref<1x128xf32, #tpu.memory_space<any>>
    %c16_i32_66 = arith.constant 16 : i32
    %c0_i32_67 = arith.constant 0 : i32
    %117 = tpu.memref_slice %arg3[%c16_i32_66, %c0_i32_67] : memref<64x128xf32, #tpu.memory_space<vmem>> -> memref<1x128xf32, #tpu.memory_space<vmem>>
    %118 = tpu.memref_slice %arg4[%c0_i32_64] : memref<1x!tpu.dma_semaphore, #tpu.memory_space<semaphore_mem>> -> memref<1x!tpu.dma_semaphore, #tpu.memory_space<semaphore_mem>>
    %119 = tpu.memref_squeeze %118 : memref<1x!tpu.dma_semaphore, #tpu.memory_space<semaphore_mem>> -> memref<!tpu.dma_semaphore, #tpu.memory_space<semaphore_mem>>
    tpu.enqueue_dma source(%116 : memref<1x128xf32, #tpu.memory_space<any>>) target(%117 : memref<1x128xf32, #tpu.memory_space<vmem>>) target_semaphore(%119 : memref<!tpu.dma_semaphore, #tpu.memory_space<semaphore_mem>>)
    %c17_i32 = arith.constant 17 : i32
    %120 = arith.addi %0, %c17_i32 : i32
    %121 = arith.index_cast %120 : i32 to index
    %122 = memref.load %arg1[%121] : memref<64xi32, #tpu.memory_space<smem>>
    %c0_i32_68 = arith.constant 0 : i32
    %c0_i32_69 = arith.constant 0 : i32
    %123 = tpu.memref_slice %arg2[%122, %c0_i32_69] : memref<64x128xf32, #tpu.memory_space<any>> -> memref<1x128xf32, #tpu.memory_space<any>>
    %c17_i32_70 = arith.constant 17 : i32
    %c0_i32_71 = arith.constant 0 : i32
    %124 = tpu.memref_slice %arg3[%c17_i32_70, %c0_i32_71] : memref<64x128xf32, #tpu.memory_space<vmem>> -> memref<1x128xf32, #tpu.memory_space<vmem>>
    %125 = tpu.memref_slice %arg4[%c0_i32_68] : memref<1x!tpu.dma_semaphore, #tpu.memory_space<semaphore_mem>> -> memref<1x!tpu.dma_semaphore, #tpu.memory_space<semaphore_mem>>
    %126 = tpu.memref_squeeze %125 : memref<1x!tpu.dma_semaphore, #tpu.memory_space<semaphore_mem>> -> memref<!tpu.dma_semaphore, #tpu.memory_space<semaphore_mem>>
    tpu.enqueue_dma source(%123 : memref<1x128xf32, #tpu.memory_space<any>>) target(%124 : memref<1x128xf32, #tpu.memory_space<vmem>>) target_semaphore(%126 : memref<!tpu.dma_semaphore, #tpu.memory_space<semaphore_mem>>)
    %c18_i32 = arith.constant 18 : i32
    %127 = arith.addi %0, %c18_i32 : i32
    %128 = arith.index_cast %127 : i32 to index
    %129 = memref.load %arg1[%128] : memref<64xi32, #tpu.memory_space<smem>>
    %c0_i32_72 = arith.constant 0 : i32
    %c0_i32_73 = arith.constant 0 : i32
    %130 = tpu.memref_slice %arg2[%129, %c0_i32_73] : memref<64x128xf32, #tpu.memory_space<any>> -> memref<1x128xf32, #tpu.memory_space<any>>
    %c18_i32_74 = arith.constant 18 : i32
    %c0_i32_75 = arith.constant 0 : i32
    %131 = tpu.memref_slice %arg3[%c18_i32_74, %c0_i32_75] : memref<64x128xf32, #tpu.memory_space<vmem>> -> memref<1x128xf32, #tpu.memory_space<vmem>>
    %132 = tpu.memref_slice %arg4[%c0_i32_72] : memref<1x!tpu.dma_semaphore, #tpu.memory_space<semaphore_mem>> -> memref<1x!tpu.dma_semaphore, #tpu.memory_space<semaphore_mem>>
    %133 = tpu.memref_squeeze %132 : memref<1x!tpu.dma_semaphore, #tpu.memory_space<semaphore_mem>> -> memref<!tpu.dma_semaphore, #tpu.memory_space<semaphore_mem>>
    tpu.enqueue_dma source(%130 : memref<1x128xf32, #tpu.memory_space<any>>) target(%131 : memref<1x128xf32, #tpu.memory_space<vmem>>) target_semaphore(%133 : memref<!tpu.dma_semaphore, #tpu.memory_space<semaphore_mem>>)
    %c19_i32 = arith.constant 19 : i32
    %134 = arith.addi %0, %c19_i32 : i32
    %135 = arith.index_cast %134 : i32 to index
    %136 = memref.load %arg1[%135] : memref<64xi32, #tpu.memory_space<smem>>
    %c0_i32_76 = arith.constant 0 : i32
    %c0_i32_77 = arith.constant 0 : i32
    %137 = tpu.memref_slice %arg2[%136, %c0_i32_77] : memref<64x128xf32, #tpu.memory_space<any>> -> memref<1x128xf32, #tpu.memory_space<any>>
    %c19_i32_78 = arith.constant 19 : i32
    %c0_i32_79 = arith.constant 0 : i32
    %138 = tpu.memref_slice %arg3[%c19_i32_78, %c0_i32_79] : memref<64x128xf32, #tpu.memory_space<vmem>> -> memref<1x128xf32, #tpu.memory_space<vmem>>
    %139 = tpu.memref_slice %arg4[%c0_i32_76] : memref<1x!tpu.dma_semaphore, #tpu.memory_space<semaphore_mem>> -> memref<1x!tpu.dma_semaphore, #tpu.memory_space<semaphore_mem>>
    %140 = tpu.memref_squeeze %139 : memref<1x!tpu.dma_semaphore, #tpu.memory_space<semaphore_mem>> -> memref<!tpu.dma_semaphore, #tpu.memory_space<semaphore_mem>>
    tpu.enqueue_dma source(%137 : memref<1x128xf32, #tpu.memory_space<any>>) target(%138 : memref<1x128xf32, #tpu.memory_space<vmem>>) target_semaphore(%140 : memref<!tpu.dma_semaphore, #tpu.memory_space<semaphore_mem>>)
    %c20_i32 = arith.constant 20 : i32
    %141 = arith.addi %0, %c20_i32 : i32
    %142 = arith.index_cast %141 : i32 to index
    %143 = memref.load %arg1[%142] : memref<64xi32, #tpu.memory_space<smem>>
    %c0_i32_80 = arith.constant 0 : i32
    %c0_i32_81 = arith.constant 0 : i32
    %144 = tpu.memref_slice %arg2[%143, %c0_i32_81] : memref<64x128xf32, #tpu.memory_space<any>> -> memref<1x128xf32, #tpu.memory_space<any>>
    %c20_i32_82 = arith.constant 20 : i32
    %c0_i32_83 = arith.constant 0 : i32
    %145 = tpu.memref_slice %arg3[%c20_i32_82, %c0_i32_83] : memref<64x128xf32, #tpu.memory_space<vmem>> -> memref<1x128xf32, #tpu.memory_space<vmem>>
    %146 = tpu.memref_slice %arg4[%c0_i32_80] : memref<1x!tpu.dma_semaphore, #tpu.memory_space<semaphore_mem>> -> memref<1x!tpu.dma_semaphore, #tpu.memory_space<semaphore_mem>>
    %147 = tpu.memref_squeeze %146 : memref<1x!tpu.dma_semaphore, #tpu.memory_space<semaphore_mem>> -> memref<!tpu.dma_semaphore, #tpu.memory_space<semaphore_mem>>
    tpu.enqueue_dma source(%144 : memref<1x128xf32, #tpu.memory_space<any>>) target(%145 : memref<1x128xf32, #tpu.memory_space<vmem>>) target_semaphore(%147 : memref<!tpu.dma_semaphore, #tpu.memory_space<semaphore_mem>>)
    %c21_i32 = arith.constant 21 : i32
    %148 = arith.addi %0, %c21_i32 : i32
    %149 = arith.index_cast %148 : i32 to index
    %150 = memref.load %arg1[%149] : memref<64xi32, #tpu.memory_space<smem>>
    %c0_i32_84 = arith.constant 0 : i32
    %c0_i32_85 = arith.constant 0 : i32
    %151 = tpu.memref_slice %arg2[%150, %c0_i32_85] : memref<64x128xf32, #tpu.memory_space<any>> -> memref<1x128xf32, #tpu.memory_space<any>>
    %c21_i32_86 = arith.constant 21 : i32
    %c0_i32_87 = arith.constant 0 : i32
    %152 = tpu.memref_slice %arg3[%c21_i32_86, %c0_i32_87] : memref<64x128xf32, #tpu.memory_space<vmem>> -> memref<1x128xf32, #tpu.memory_space<vmem>>
    %153 = tpu.memref_slice %arg4[%c0_i32_84] : memref<1x!tpu.dma_semaphore, #tpu.memory_space<semaphore_mem>> -> memref<1x!tpu.dma_semaphore, #tpu.memory_space<semaphore_mem>>
    %154 = tpu.memref_squeeze %153 : memref<1x!tpu.dma_semaphore, #tpu.memory_space<semaphore_mem>> -> memref<!tpu.dma_semaphore, #tpu.memory_space<semaphore_mem>>
    tpu.enqueue_dma source(%151 : memref<1x128xf32, #tpu.memory_space<any>>) target(%152 : memref<1x128xf32, #tpu.memory_space<vmem>>) target_semaphore(%154 : memref<!tpu.dma_semaphore, #tpu.memory_space<semaphore_mem>>)
    %c22_i32 = arith.constant 22 : i32
    %155 = arith.addi %0, %c22_i32 : i32
    %156 = arith.index_cast %155 : i32 to index
    %157 = memref.load %arg1[%156] : memref<64xi32, #tpu.memory_space<smem>>
    %c0_i32_88 = arith.constant 0 : i32
    %c0_i32_89 = arith.constant 0 : i32
    %158 = tpu.memref_slice %arg2[%157, %c0_i32_89] : memref<64x128xf32, #tpu.memory_space<any>> -> memref<1x128xf32, #tpu.memory_space<any>>
    %c22_i32_90 = arith.constant 22 : i32
    %c0_i32_91 = arith.constant 0 : i32
    %159 = tpu.memref_slice %arg3[%c22_i32_90, %c0_i32_91] : memref<64x128xf32, #tpu.memory_space<vmem>> -> memref<1x128xf32, #tpu.memory_space<vmem>>
    %160 = tpu.memref_slice %arg4[%c0_i32_88] : memref<1x!tpu.dma_semaphore, #tpu.memory_space<semaphore_mem>> -> memref<1x!tpu.dma_semaphore, #tpu.memory_space<semaphore_mem>>
    %161 = tpu.memref_squeeze %160 : memref<1x!tpu.dma_semaphore, #tpu.memory_space<semaphore_mem>> -> memref<!tpu.dma_semaphore, #tpu.memory_space<semaphore_mem>>
    tpu.enqueue_dma source(%158 : memref<1x128xf32, #tpu.memory_space<any>>) target(%159 : memref<1x128xf32, #tpu.memory_space<vmem>>) target_semaphore(%161 : memref<!tpu.dma_semaphore, #tpu.memory_space<semaphore_mem>>)
    %c23_i32 = arith.constant 23 : i32
    %162 = arith.addi %0, %c23_i32 : i32
    %163 = arith.index_cast %162 : i32 to index
    %164 = memref.load %arg1[%163] : memref<64xi32, #tpu.memory_space<smem>>
    %c0_i32_92 = arith.constant 0 : i32
    %c0_i32_93 = arith.constant 0 : i32
    %165 = tpu.memref_slice %arg2[%164, %c0_i32_93] : memref<64x128xf32, #tpu.memory_space<any>> -> memref<1x128xf32, #tpu.memory_space<any>>
    %c23_i32_94 = arith.constant 23 : i32
    %c0_i32_95 = arith.constant 0 : i32
    %166 = tpu.memref_slice %arg3[%c23_i32_94, %c0_i32_95] : memref<64x128xf32, #tpu.memory_space<vmem>> -> memref<1x128xf32, #tpu.memory_space<vmem>>
    %167 = tpu.memref_slice %arg4[%c0_i32_92] : memref<1x!tpu.dma_semaphore, #tpu.memory_space<semaphore_mem>> -> memref<1x!tpu.dma_semaphore, #tpu.memory_space<semaphore_mem>>
    %168 = tpu.memref_squeeze %167 : memref<1x!tpu.dma_semaphore, #tpu.memory_space<semaphore_mem>> -> memref<!tpu.dma_semaphore, #tpu.memory_space<semaphore_mem>>
    tpu.enqueue_dma source(%165 : memref<1x128xf32, #tpu.memory_space<any>>) target(%166 : memref<1x128xf32, #tpu.memory_space<vmem>>) target_semaphore(%168 : memref<!tpu.dma_semaphore, #tpu.memory_space<semaphore_mem>>)
    %c24_i32 = arith.constant 24 : i32
    %169 = arith.addi %0, %c24_i32 : i32
    %170 = arith.index_cast %169 : i32 to index
    %171 = memref.load %arg1[%170] : memref<64xi32, #tpu.memory_space<smem>>
    %c0_i32_96 = arith.constant 0 : i32
    %c0_i32_97 = arith.constant 0 : i32
    %172 = tpu.memref_slice %arg2[%171, %c0_i32_97] : memref<64x128xf32, #tpu.memory_space<any>> -> memref<1x128xf32, #tpu.memory_space<any>>
    %c24_i32_98 = arith.constant 24 : i32
    %c0_i32_99 = arith.constant 0 : i32
    %173 = tpu.memref_slice %arg3[%c24_i32_98, %c0_i32_99] : memref<64x128xf32, #tpu.memory_space<vmem>> -> memref<1x128xf32, #tpu.memory_space<vmem>>
    %174 = tpu.memref_slice %arg4[%c0_i32_96] : memref<1x!tpu.dma_semaphore, #tpu.memory_space<semaphore_mem>> -> memref<1x!tpu.dma_semaphore, #tpu.memory_space<semaphore_mem>>
    %175 = tpu.memref_squeeze %174 : memref<1x!tpu.dma_semaphore, #tpu.memory_space<semaphore_mem>> -> memref<!tpu.dma_semaphore, #tpu.memory_space<semaphore_mem>>
    tpu.enqueue_dma source(%172 : memref<1x128xf32, #tpu.memory_space<any>>) target(%173 : memref<1x128xf32, #tpu.memory_space<vmem>>) target_semaphore(%175 : memref<!tpu.dma_semaphore, #tpu.memory_space<semaphore_mem>>)
    %c25_i32 = arith.constant 25 : i32
    %176 = arith.addi %0, %c25_i32 : i32
    %177 = arith.index_cast %176 : i32 to index
    %178 = memref.load %arg1[%177] : memref<64xi32, #tpu.memory_space<smem>>
    %c0_i32_100 = arith.constant 0 : i32
    %c0_i32_101 = arith.constant 0 : i32
    %179 = tpu.memref_slice %arg2[%178, %c0_i32_101] : memref<64x128xf32, #tpu.memory_space<any>> -> memref<1x128xf32, #tpu.memory_space<any>>
    %c25_i32_102 = arith.constant 25 : i32
    %c0_i32_103 = arith.constant 0 : i32
    %180 = tpu.memref_slice %arg3[%c25_i32_102, %c0_i32_103] : memref<64x128xf32, #tpu.memory_space<vmem>> -> memref<1x128xf32, #tpu.memory_space<vmem>>
    %181 = tpu.memref_slice %arg4[%c0_i32_100] : memref<1x!tpu.dma_semaphore, #tpu.memory_space<semaphore_mem>> -> memref<1x!tpu.dma_semaphore, #tpu.memory_space<semaphore_mem>>
    %182 = tpu.memref_squeeze %181 : memref<1x!tpu.dma_semaphore, #tpu.memory_space<semaphore_mem>> -> memref<!tpu.dma_semaphore, #tpu.memory_space<semaphore_mem>>
    tpu.enqueue_dma source(%179 : memref<1x128xf32, #tpu.memory_space<any>>) target(%180 : memref<1x128xf32, #tpu.memory_space<vmem>>) target_semaphore(%182 : memref<!tpu.dma_semaphore, #tpu.memory_space<semaphore_mem>>)
    %c26_i32 = arith.constant 26 : i32
    %183 = arith.addi %0, %c26_i32 : i32
    %184 = arith.index_cast %183 : i32 to index
    %185 = memref.load %arg1[%184] : memref<64xi32, #tpu.memory_space<smem>>
    %c0_i32_104 = arith.constant 0 : i32
    %c0_i32_105 = arith.constant 0 : i32
    %186 = tpu.memref_slice %arg2[%185, %c0_i32_105] : memref<64x128xf32, #tpu.memory_space<any>> -> memref<1x128xf32, #tpu.memory_space<any>>
    %c26_i32_106 = arith.constant 26 : i32
    %c0_i32_107 = arith.constant 0 : i32
    %187 = tpu.memref_slice %arg3[%c26_i32_106, %c0_i32_107] : memref<64x128xf32, #tpu.memory_space<vmem>> -> memref<1x128xf32, #tpu.memory_space<vmem>>
    %188 = tpu.memref_slice %arg4[%c0_i32_104] : memref<1x!tpu.dma_semaphore, #tpu.memory_space<semaphore_mem>> -> memref<1x!tpu.dma_semaphore, #tpu.memory_space<semaphore_mem>>
    %189 = tpu.memref_squeeze %188 : memref<1x!tpu.dma_semaphore, #tpu.memory_space<semaphore_mem>> -> memref<!tpu.dma_semaphore, #tpu.memory_space<semaphore_mem>>
    tpu.enqueue_dma source(%186 : memref<1x128xf32, #tpu.memory_space<any>>) target(%187 : memref<1x128xf32, #tpu.memory_space<vmem>>) target_semaphore(%189 : memref<!tpu.dma_semaphore, #tpu.memory_space<semaphore_mem>>)
    %c27_i32 = arith.constant 27 : i32
    %190 = arith.addi %0, %c27_i32 : i32
    %191 = arith.index_cast %190 : i32 to index
    %192 = memref.load %arg1[%191] : memref<64xi32, #tpu.memory_space<smem>>
    %c0_i32_108 = arith.constant 0 : i32
    %c0_i32_109 = arith.constant 0 : i32
    %193 = tpu.memref_slice %arg2[%192, %c0_i32_109] : memref<64x128xf32, #tpu.memory_space<any>> -> memref<1x128xf32, #tpu.memory_space<any>>
    %c27_i32_110 = arith.constant 27 : i32
    %c0_i32_111 = arith.constant 0 : i32
    %194 = tpu.memref_slice %arg3[%c27_i32_110, %c0_i32_111] : memref<64x128xf32, #tpu.memory_space<vmem>> -> memref<1x128xf32, #tpu.memory_space<vmem>>
    %195 = tpu.memref_slice %arg4[%c0_i32_108] : memref<1x!tpu.dma_semaphore, #tpu.memory_space<semaphore_mem>> -> memref<1x!tpu.dma_semaphore, #tpu.memory_space<semaphore_mem>>
    %196 = tpu.memref_squeeze %195 : memref<1x!tpu.dma_semaphore, #tpu.memory_space<semaphore_mem>> -> memref<!tpu.dma_semaphore, #tpu.memory_space<semaphore_mem>>
    tpu.enqueue_dma source(%193 : memref<1x128xf32, #tpu.memory_space<any>>) target(%194 : memref<1x128xf32, #tpu.memory_space<vmem>>) target_semaphore(%196 : memref<!tpu.dma_semaphore, #tpu.memory_space<semaphore_mem>>)
    %c28_i32 = arith.constant 28 : i32
    %197 = arith.addi %0, %c28_i32 : i32
    %198 = arith.index_cast %197 : i32 to index
    %199 = memref.load %arg1[%198] : memref<64xi32, #tpu.memory_space<smem>>
    %c0_i32_112 = arith.constant 0 : i32
    %c0_i32_113 = arith.constant 0 : i32
    %200 = tpu.memref_slice %arg2[%199, %c0_i32_113] : memref<64x128xf32, #tpu.memory_space<any>> -> memref<1x128xf32, #tpu.memory_space<any>>
    %c28_i32_114 = arith.constant 28 : i32
    %c0_i32_115 = arith.constant 0 : i32
    %201 = tpu.memref_slice %arg3[%c28_i32_114, %c0_i32_115] : memref<64x128xf32, #tpu.memory_space<vmem>> -> memref<1x128xf32, #tpu.memory_space<vmem>>
    %202 = tpu.memref_slice %arg4[%c0_i32_112] : memref<1x!tpu.dma_semaphore, #tpu.memory_space<semaphore_mem>> -> memref<1x!tpu.dma_semaphore, #tpu.memory_space<semaphore_mem>>
    %203 = tpu.memref_squeeze %202 : memref<1x!tpu.dma_semaphore, #tpu.memory_space<semaphore_mem>> -> memref<!tpu.dma_semaphore, #tpu.memory_space<semaphore_mem>>
    tpu.enqueue_dma source(%200 : memref<1x128xf32, #tpu.memory_space<any>>) target(%201 : memref<1x128xf32, #tpu.memory_space<vmem>>) target_semaphore(%203 : memref<!tpu.dma_semaphore, #tpu.memory_space<semaphore_mem>>)
    %c29_i32 = arith.constant 29 : i32
    %204 = arith.addi %0, %c29_i32 : i32
    %205 = arith.index_cast %204 : i32 to index
    %206 = memref.load %arg1[%205] : memref<64xi32, #tpu.memory_space<smem>>
    %c0_i32_116 = arith.constant 0 : i32
    %c0_i32_117 = arith.constant 0 : i32
    %207 = tpu.memref_slice %arg2[%206, %c0_i32_117] : memref<64x128xf32, #tpu.memory_space<any>> -> memref<1x128xf32, #tpu.memory_space<any>>
    %c29_i32_118 = arith.constant 29 : i32
    %c0_i32_119 = arith.constant 0 : i32
    %208 = tpu.memref_slice %arg3[%c29_i32_118, %c0_i32_119] : memref<64x128xf32, #tpu.memory_space<vmem>> -> memref<1x128xf32, #tpu.memory_space<vmem>>
    %209 = tpu.memref_slice %arg4[%c0_i32_116] : memref<1x!tpu.dma_semaphore, #tpu.memory_space<semaphore_mem>> -> memref<1x!tpu.dma_semaphore, #tpu.memory_space<semaphore_mem>>
    %210 = tpu.memref_squeeze %209 : memref<1x!tpu.dma_semaphore, #tpu.memory_space<semaphore_mem>> -> memref<!tpu.dma_semaphore, #tpu.memory_space<semaphore_mem>>
    tpu.enqueue_dma source(%207 : memref<1x128xf32, #tpu.memory_space<any>>) target(%208 : memref<1x128xf32, #tpu.memory_space<vmem>>) target_semaphore(%210 : memref<!tpu.dma_semaphore, #tpu.memory_space<semaphore_mem>>)
    %c30_i32 = arith.constant 30 : i32
    %211 = arith.addi %0, %c30_i32 : i32
    %212 = arith.index_cast %211 : i32 to index
    %213 = memref.load %arg1[%212] : memref<64xi32, #tpu.memory_space<smem>>
    %c0_i32_120 = arith.constant 0 : i32
    %c0_i32_121 = arith.constant 0 : i32
    %214 = tpu.memref_slice %arg2[%213, %c0_i32_121] : memref<64x128xf32, #tpu.memory_space<any>> -> memref<1x128xf32, #tpu.memory_space<any>>
    %c30_i32_122 = arith.constant 30 : i32
    %c0_i32_123 = arith.constant 0 : i32
    %215 = tpu.memref_slice %arg3[%c30_i32_122, %c0_i32_123] : memref<64x128xf32, #tpu.memory_space<vmem>> -> memref<1x128xf32, #tpu.memory_space<vmem>>
    %216 = tpu.memref_slice %arg4[%c0_i32_120] : memref<1x!tpu.dma_semaphore, #tpu.memory_space<semaphore_mem>> -> memref<1x!tpu.dma_semaphore, #tpu.memory_space<semaphore_mem>>
    %217 = tpu.memref_squeeze %216 : memref<1x!tpu.dma_semaphore, #tpu.memory_space<semaphore_mem>> -> memref<!tpu.dma_semaphore, #tpu.memory_space<semaphore_mem>>
    tpu.enqueue_dma source(%214 : memref<1x128xf32, #tpu.memory_space<any>>) target(%215 : memref<1x128xf32, #tpu.memory_space<vmem>>) target_semaphore(%217 : memref<!tpu.dma_semaphore, #tpu.memory_space<semaphore_mem>>)
    %c31_i32 = arith.constant 31 : i32
    %218 = arith.addi %0, %c31_i32 : i32
    %219 = arith.index_cast %218 : i32 to index
    %220 = memref.load %arg1[%219] : memref<64xi32, #tpu.memory_space<smem>>
    %c0_i32_124 = arith.constant 0 : i32
    %c0_i32_125 = arith.constant 0 : i32
    %221 = tpu.memref_slice %arg2[%220, %c0_i32_125] : memref<64x128xf32, #tpu.memory_space<any>> -> memref<1x128xf32, #tpu.memory_space<any>>
    %c31_i32_126 = arith.constant 31 : i32
    %c0_i32_127 = arith.constant 0 : i32
    %222 = tpu.memref_slice %arg3[%c31_i32_126, %c0_i32_127] : memref<64x128xf32, #tpu.memory_space<vmem>> -> memref<1x128xf32, #tpu.memory_space<vmem>>
    %223 = tpu.memref_slice %arg4[%c0_i32_124] : memref<1x!tpu.dma_semaphore, #tpu.memory_space<semaphore_mem>> -> memref<1x!tpu.dma_semaphore, #tpu.memory_space<semaphore_mem>>
    %224 = tpu.memref_squeeze %223 : memref<1x!tpu.dma_semaphore, #tpu.memory_space<semaphore_mem>> -> memref<!tpu.dma_semaphore, #tpu.memory_space<semaphore_mem>>
    tpu.enqueue_dma source(%221 : memref<1x128xf32, #tpu.memory_space<any>>) target(%222 : memref<1x128xf32, #tpu.memory_space<vmem>>) target_semaphore(%224 : memref<!tpu.dma_semaphore, #tpu.memory_space<semaphore_mem>>)
    %c32_i32 = arith.constant 32 : i32
    %225 = arith.addi %0, %c32_i32 : i32
    %226 = arith.index_cast %225 : i32 to index
    %227 = memref.load %arg1[%226] : memref<64xi32, #tpu.memory_space<smem>>
    %c0_i32_128 = arith.constant 0 : i32
    %c0_i32_129 = arith.constant 0 : i32
    %228 = tpu.memref_slice %arg2[%227, %c0_i32_129] : memref<64x128xf32, #tpu.memory_space<any>> -> memref<1x128xf32, #tpu.memory_space<any>>
    %c32_i32_130 = arith.constant 32 : i32
    %c0_i32_131 = arith.constant 0 : i32
    %229 = tpu.memref_slice %arg3[%c32_i32_130, %c0_i32_131] : memref<64x128xf32, #tpu.memory_space<vmem>> -> memref<1x128xf32, #tpu.memory_space<vmem>>
    %230 = tpu.memref_slice %arg4[%c0_i32_128] : memref<1x!tpu.dma_semaphore, #tpu.memory_space<semaphore_mem>> -> memref<1x!tpu.dma_semaphore, #tpu.memory_space<semaphore_mem>>
    %231 = tpu.memref_squeeze %230 : memref<1x!tpu.dma_semaphore, #tpu.memory_space<semaphore_mem>> -> memref<!tpu.dma_semaphore, #tpu.memory_space<semaphore_mem>>
    tpu.enqueue_dma source(%228 : memref<1x128xf32, #tpu.memory_space<any>>) target(%229 : memref<1x128xf32, #tpu.memory_space<vmem>>) target_semaphore(%231 : memref<!tpu.dma_semaphore, #tpu.memory_space<semaphore_mem>>)
    %c33_i32 = arith.constant 33 : i32
    %232 = arith.addi %0, %c33_i32 : i32
    %233 = arith.index_cast %232 : i32 to index
    %234 = memref.load %arg1[%233] : memref<64xi32, #tpu.memory_space<smem>>
    %c0_i32_132 = arith.constant 0 : i32
    %c0_i32_133 = arith.constant 0 : i32
    %235 = tpu.memref_slice %arg2[%234, %c0_i32_133] : memref<64x128xf32, #tpu.memory_space<any>> -> memref<1x128xf32, #tpu.memory_space<any>>
    %c33_i32_134 = arith.constant 33 : i32
    %c0_i32_135 = arith.constant 0 : i32
    %236 = tpu.memref_slice %arg3[%c33_i32_134, %c0_i32_135] : memref<64x128xf32, #tpu.memory_space<vmem>> -> memref<1x128xf32, #tpu.memory_space<vmem>>
    %237 = tpu.memref_slice %arg4[%c0_i32_132] : memref<1x!tpu.dma_semaphore, #tpu.memory_space<semaphore_mem>> -> memref<1x!tpu.dma_semaphore, #tpu.memory_space<semaphore_mem>>
    %238 = tpu.memref_squeeze %237 : memref<1x!tpu.dma_semaphore, #tpu.memory_space<semaphore_mem>> -> memref<!tpu.dma_semaphore, #tpu.memory_space<semaphore_mem>>
    tpu.enqueue_dma source(%235 : memref<1x128xf32, #tpu.memory_space<any>>) target(%236 : memref<1x128xf32, #tpu.memory_space<vmem>>) target_semaphore(%238 : memref<!tpu.dma_semaphore, #tpu.memory_space<semaphore_mem>>)
    %c34_i32 = arith.constant 34 : i32
    %239 = arith.addi %0, %c34_i32 : i32
    %240 = arith.index_cast %239 : i32 to index
    %241 = memref.load %arg1[%240] : memref<64xi32, #tpu.memory_space<smem>>
    %c0_i32_136 = arith.constant 0 : i32
    %c0_i32_137 = arith.constant 0 : i32
    %242 = tpu.memref_slice %arg2[%241, %c0_i32_137] : memref<64x128xf32, #tpu.memory_space<any>> -> memref<1x128xf32, #tpu.memory_space<any>>
    %c34_i32_138 = arith.constant 34 : i32
    %c0_i32_139 = arith.constant 0 : i32
    %243 = tpu.memref_slice %arg3[%c34_i32_138, %c0_i32_139] : memref<64x128xf32, #tpu.memory_space<vmem>> -> memref<1x128xf32, #tpu.memory_space<vmem>>
    %244 = tpu.memref_slice %arg4[%c0_i32_136] : memref<1x!tpu.dma_semaphore, #tpu.memory_space<semaphore_mem>> -> memref<1x!tpu.dma_semaphore, #tpu.memory_space<semaphore_mem>>
    %245 = tpu.memref_squeeze %244 : memref<1x!tpu.dma_semaphore, #tpu.memory_space<semaphore_mem>> -> memref<!tpu.dma_semaphore, #tpu.memory_space<semaphore_mem>>
    tpu.enqueue_dma source(%242 : memref<1x128xf32, #tpu.memory_space<any>>) target(%243 : memref<1x128xf32, #tpu.memory_space<vmem>>) target_semaphore(%245 : memref<!tpu.dma_semaphore, #tpu.memory_space<semaphore_mem>>)
    %c35_i32 = arith.constant 35 : i32
    %246 = arith.addi %0, %c35_i32 : i32
    %247 = arith.index_cast %246 : i32 to index
    %248 = memref.load %arg1[%247] : memref<64xi32, #tpu.memory_space<smem>>
    %c0_i32_140 = arith.constant 0 : i32
    %c0_i32_141 = arith.constant 0 : i32
    %249 = tpu.memref_slice %arg2[%248, %c0_i32_141] : memref<64x128xf32, #tpu.memory_space<any>> -> memref<1x128xf32, #tpu.memory_space<any>>
    %c35_i32_142 = arith.constant 35 : i32
    %c0_i32_143 = arith.constant 0 : i32
    %250 = tpu.memref_slice %arg3[%c35_i32_142, %c0_i32_143] : memref<64x128xf32, #tpu.memory_space<vmem>> -> memref<1x128xf32, #tpu.memory_space<vmem>>
    %251 = tpu.memref_slice %arg4[%c0_i32_140] : memref<1x!tpu.dma_semaphore, #tpu.memory_space<semaphore_mem>> -> memref<1x!tpu.dma_semaphore, #tpu.memory_space<semaphore_mem>>
    %252 = tpu.memref_squeeze %251 : memref<1x!tpu.dma_semaphore, #tpu.memory_space<semaphore_mem>> -> memref<!tpu.dma_semaphore, #tpu.memory_space<semaphore_mem>>
    tpu.enqueue_dma source(%249 : memref<1x128xf32, #tpu.memory_space<any>>) target(%250 : memref<1x128xf32, #tpu.memory_space<vmem>>) target_semaphore(%252 : memref<!tpu.dma_semaphore, #tpu.memory_space<semaphore_mem>>)
    %c36_i32 = arith.constant 36 : i32
    %253 = arith.addi %0, %c36_i32 : i32
    %254 = arith.index_cast %253 : i32 to index
    %255 = memref.load %arg1[%254] : memref<64xi32, #tpu.memory_space<smem>>
    %c0_i32_144 = arith.constant 0 : i32
    %c0_i32_145 = arith.constant 0 : i32
    %256 = tpu.memref_slice %arg2[%255, %c0_i32_145] : memref<64x128xf32, #tpu.memory_space<any>> -> memref<1x128xf32, #tpu.memory_space<any>>
    %c36_i32_146 = arith.constant 36 : i32
    %c0_i32_147 = arith.constant 0 : i32
    %257 = tpu.memref_slice %arg3[%c36_i32_146, %c0_i32_147] : memref<64x128xf32, #tpu.memory_space<vmem>> -> memref<1x128xf32, #tpu.memory_space<vmem>>
    %258 = tpu.memref_slice %arg4[%c0_i32_144] : memref<1x!tpu.dma_semaphore, #tpu.memory_space<semaphore_mem>> -> memref<1x!tpu.dma_semaphore, #tpu.memory_space<semaphore_mem>>
    %259 = tpu.memref_squeeze %258 : memref<1x!tpu.dma_semaphore, #tpu.memory_space<semaphore_mem>> -> memref<!tpu.dma_semaphore, #tpu.memory_space<semaphore_mem>>
    tpu.enqueue_dma source(%256 : memref<1x128xf32, #tpu.memory_space<any>>) target(%257 : memref<1x128xf32, #tpu.memory_space<vmem>>) target_semaphore(%259 : memref<!tpu.dma_semaphore, #tpu.memory_space<semaphore_mem>>)
    %c37_i32 = arith.constant 37 : i32
    %260 = arith.addi %0, %c37_i32 : i32
    %261 = arith.index_cast %260 : i32 to index
    %262 = memref.load %arg1[%261] : memref<64xi32, #tpu.memory_space<smem>>
    %c0_i32_148 = arith.constant 0 : i32
    %c0_i32_149 = arith.constant 0 : i32
    %263 = tpu.memref_slice %arg2[%262, %c0_i32_149] : memref<64x128xf32, #tpu.memory_space<any>> -> memref<1x128xf32, #tpu.memory_space<any>>
    %c37_i32_150 = arith.constant 37 : i32
    %c0_i32_151 = arith.constant 0 : i32
    %264 = tpu.memref_slice %arg3[%c37_i32_150, %c0_i32_151] : memref<64x128xf32, #tpu.memory_space<vmem>> -> memref<1x128xf32, #tpu.memory_space<vmem>>
    %265 = tpu.memref_slice %arg4[%c0_i32_148] : memref<1x!tpu.dma_semaphore, #tpu.memory_space<semaphore_mem>> -> memref<1x!tpu.dma_semaphore, #tpu.memory_space<semaphore_mem>>
    %266 = tpu.memref_squeeze %265 : memref<1x!tpu.dma_semaphore, #tpu.memory_space<semaphore_mem>> -> memref<!tpu.dma_semaphore, #tpu.memory_space<semaphore_mem>>
    tpu.enqueue_dma source(%263 : memref<1x128xf32, #tpu.memory_space<any>>) target(%264 : memref<1x128xf32, #tpu.memory_space<vmem>>) target_semaphore(%266 : memref<!tpu.dma_semaphore, #tpu.memory_space<semaphore_mem>>)
    %c38_i32 = arith.constant 38 : i32
    %267 = arith.addi %0, %c38_i32 : i32
    %268 = arith.index_cast %267 : i32 to index
    %269 = memref.load %arg1[%268] : memref<64xi32, #tpu.memory_space<smem>>
    %c0_i32_152 = arith.constant 0 : i32
    %c0_i32_153 = arith.constant 0 : i32
    %270 = tpu.memref_slice %arg2[%269, %c0_i32_153] : memref<64x128xf32, #tpu.memory_space<any>> -> memref<1x128xf32, #tpu.memory_space<any>>
    %c38_i32_154 = arith.constant 38 : i32
    %c0_i32_155 = arith.constant 0 : i32
    %271 = tpu.memref_slice %arg3[%c38_i32_154, %c0_i32_155] : memref<64x128xf32, #tpu.memory_space<vmem>> -> memref<1x128xf32, #tpu.memory_space<vmem>>
    %272 = tpu.memref_slice %arg4[%c0_i32_152] : memref<1x!tpu.dma_semaphore, #tpu.memory_space<semaphore_mem>> -> memref<1x!tpu.dma_semaphore, #tpu.memory_space<semaphore_mem>>
    %273 = tpu.memref_squeeze %272 : memref<1x!tpu.dma_semaphore, #tpu.memory_space<semaphore_mem>> -> memref<!tpu.dma_semaphore, #tpu.memory_space<semaphore_mem>>
    tpu.enqueue_dma source(%270 : memref<1x128xf32, #tpu.memory_space<any>>) target(%271 : memref<1x128xf32, #tpu.memory_space<vmem>>) target_semaphore(%273 : memref<!tpu.dma_semaphore, #tpu.memory_space<semaphore_mem>>)
    %c39_i32 = arith.constant 39 : i32
    %274 = arith.addi %0, %c39_i32 : i32
    %275 = arith.index_cast %274 : i32 to index
    %276 = memref.load %arg1[%275] : memref<64xi32, #tpu.memory_space<smem>>
    %c0_i32_156 = arith.constant 0 : i32
    %c0_i32_157 = arith.constant 0 : i32
    %277 = tpu.memref_slice %arg2[%276, %c0_i32_157] : memref<64x128xf32, #tpu.memory_space<any>> -> memref<1x128xf32, #tpu.memory_space<any>>
    %c39_i32_158 = arith.constant 39 : i32
    %c0_i32_159 = arith.constant 0 : i32
    %278 = tpu.memref_slice %arg3[%c39_i32_158, %c0_i32_159] : memref<64x128xf32, #tpu.memory_space<vmem>> -> memref<1x128xf32, #tpu.memory_space<vmem>>
    %279 = tpu.memref_slice %arg4[%c0_i32_156] : memref<1x!tpu.dma_semaphore, #tpu.memory_space<semaphore_mem>> -> memref<1x!tpu.dma_semaphore, #tpu.memory_space<semaphore_mem>>
    %280 = tpu.memref_squeeze %279 : memref<1x!tpu.dma_semaphore, #tpu.memory_space<semaphore_mem>> -> memref<!tpu.dma_semaphore, #tpu.memory_space<semaphore_mem>>
    tpu.enqueue_dma source(%277 : memref<1x128xf32, #tpu.memory_space<any>>) target(%278 : memref<1x128xf32, #tpu.memory_space<vmem>>) target_semaphore(%280 : memref<!tpu.dma_semaphore, #tpu.memory_space<semaphore_mem>>)
    %c40_i32 = arith.constant 40 : i32
    %281 = arith.addi %0, %c40_i32 : i32
    %282 = arith.index_cast %281 : i32 to index
    %283 = memref.load %arg1[%282] : memref<64xi32, #tpu.memory_space<smem>>
    %c0_i32_160 = arith.constant 0 : i32
    %c0_i32_161 = arith.constant 0 : i32
    %284 = tpu.memref_slice %arg2[%283, %c0_i32_161] : memref<64x128xf32, #tpu.memory_space<any>> -> memref<1x128xf32, #tpu.memory_space<any>>
    %c40_i32_162 = arith.constant 40 : i32
    %c0_i32_163 = arith.constant 0 : i32
    %285 = tpu.memref_slice %arg3[%c40_i32_162, %c0_i32_163] : memref<64x128xf32, #tpu.memory_space<vmem>> -> memref<1x128xf32, #tpu.memory_space<vmem>>
    %286 = tpu.memref_slice %arg4[%c0_i32_160] : memref<1x!tpu.dma_semaphore, #tpu.memory_space<semaphore_mem>> -> memref<1x!tpu.dma_semaphore, #tpu.memory_space<semaphore_mem>>
    %287 = tpu.memref_squeeze %286 : memref<1x!tpu.dma_semaphore, #tpu.memory_space<semaphore_mem>> -> memref<!tpu.dma_semaphore, #tpu.memory_space<semaphore_mem>>
    tpu.enqueue_dma source(%284 : memref<1x128xf32, #tpu.memory_space<any>>) target(%285 : memref<1x128xf32, #tpu.memory_space<vmem>>) target_semaphore(%287 : memref<!tpu.dma_semaphore, #tpu.memory_space<semaphore_mem>>)
    %c41_i32 = arith.constant 41 : i32
    %288 = arith.addi %0, %c41_i32 : i32
    %289 = arith.index_cast %288 : i32 to index
    %290 = memref.load %arg1[%289] : memref<64xi32, #tpu.memory_space<smem>>
    %c0_i32_164 = arith.constant 0 : i32
    %c0_i32_165 = arith.constant 0 : i32
    %291 = tpu.memref_slice %arg2[%290, %c0_i32_165] : memref<64x128xf32, #tpu.memory_space<any>> -> memref<1x128xf32, #tpu.memory_space<any>>
    %c41_i32_166 = arith.constant 41 : i32
    %c0_i32_167 = arith.constant 0 : i32
    %292 = tpu.memref_slice %arg3[%c41_i32_166, %c0_i32_167] : memref<64x128xf32, #tpu.memory_space<vmem>> -> memref<1x128xf32, #tpu.memory_space<vmem>>
    %293 = tpu.memref_slice %arg4[%c0_i32_164] : memref<1x!tpu.dma_semaphore, #tpu.memory_space<semaphore_mem>> -> memref<1x!tpu.dma_semaphore, #tpu.memory_space<semaphore_mem>>
    %294 = tpu.memref_squeeze %293 : memref<1x!tpu.dma_semaphore, #tpu.memory_space<semaphore_mem>> -> memref<!tpu.dma_semaphore, #tpu.memory_space<semaphore_mem>>
    tpu.enqueue_dma source(%291 : memref<1x128xf32, #tpu.memory_space<any>>) target(%292 : memref<1x128xf32, #tpu.memory_space<vmem>>) target_semaphore(%294 : memref<!tpu.dma_semaphore, #tpu.memory_space<semaphore_mem>>)
    %c42_i32 = arith.constant 42 : i32
    %295 = arith.addi %0, %c42_i32 : i32
    %296 = arith.index_cast %295 : i32 to index
    %297 = memref.load %arg1[%296] : memref<64xi32, #tpu.memory_space<smem>>
    %c0_i32_168 = arith.constant 0 : i32
    %c0_i32_169 = arith.constant 0 : i32
    %298 = tpu.memref_slice %arg2[%297, %c0_i32_169] : memref<64x128xf32, #tpu.memory_space<any>> -> memref<1x128xf32, #tpu.memory_space<any>>
    %c42_i32_170 = arith.constant 42 : i32
    %c0_i32_171 = arith.constant 0 : i32
    %299 = tpu.memref_slice %arg3[%c42_i32_170, %c0_i32_171] : memref<64x128xf32, #tpu.memory_space<vmem>> -> memref<1x128xf32, #tpu.memory_space<vmem>>
    %300 = tpu.memref_slice %arg4[%c0_i32_168] : memref<1x!tpu.dma_semaphore, #tpu.memory_space<semaphore_mem>> -> memref<1x!tpu.dma_semaphore, #tpu.memory_space<semaphore_mem>>
    %301 = tpu.memref_squeeze %300 : memref<1x!tpu.dma_semaphore, #tpu.memory_space<semaphore_mem>> -> memref<!tpu.dma_semaphore, #tpu.memory_space<semaphore_mem>>
    tpu.enqueue_dma source(%298 : memref<1x128xf32, #tpu.memory_space<any>>) target(%299 : memref<1x128xf32, #tpu.memory_space<vmem>>) target_semaphore(%301 : memref<!tpu.dma_semaphore, #tpu.memory_space<semaphore_mem>>)
    %c43_i32 = arith.constant 43 : i32
    %302 = arith.addi %0, %c43_i32 : i32
    %303 = arith.index_cast %302 : i32 to index
    %304 = memref.load %arg1[%303] : memref<64xi32, #tpu.memory_space<smem>>
    %c0_i32_172 = arith.constant 0 : i32
    %c0_i32_173 = arith.constant 0 : i32
    %305 = tpu.memref_slice %arg2[%304, %c0_i32_173] : memref<64x128xf32, #tpu.memory_space<any>> -> memref<1x128xf32, #tpu.memory_space<any>>
    %c43_i32_174 = arith.constant 43 : i32
    %c0_i32_175 = arith.constant 0 : i32
    %306 = tpu.memref_slice %arg3[%c43_i32_174, %c0_i32_175] : memref<64x128xf32, #tpu.memory_space<vmem>> -> memref<1x128xf32, #tpu.memory_space<vmem>>
    %307 = tpu.memref_slice %arg4[%c0_i32_172] : memref<1x!tpu.dma_semaphore, #tpu.memory_space<semaphore_mem>> -> memref<1x!tpu.dma_semaphore, #tpu.memory_space<semaphore_mem>>
    %308 = tpu.memref_squeeze %307 : memref<1x!tpu.dma_semaphore, #tpu.memory_space<semaphore_mem>> -> memref<!tpu.dma_semaphore, #tpu.memory_space<semaphore_mem>>
    tpu.enqueue_dma source(%305 : memref<1x128xf32, #tpu.memory_space<any>>) target(%306 : memref<1x128xf32, #tpu.memory_space<vmem>>) target_semaphore(%308 : memref<!tpu.dma_semaphore, #tpu.memory_space<semaphore_mem>>)
    %c44_i32 = arith.constant 44 : i32
    %309 = arith.addi %0, %c44_i32 : i32
    %310 = arith.index_cast %309 : i32 to index
    %311 = memref.load %arg1[%310] : memref<64xi32, #tpu.memory_space<smem>>
    %c0_i32_176 = arith.constant 0 : i32
    %c0_i32_177 = arith.constant 0 : i32
    %312 = tpu.memref_slice %arg2[%311, %c0_i32_177] : memref<64x128xf32, #tpu.memory_space<any>> -> memref<1x128xf32, #tpu.memory_space<any>>
    %c44_i32_178 = arith.constant 44 : i32
    %c0_i32_179 = arith.constant 0 : i32
    %313 = tpu.memref_slice %arg3[%c44_i32_178, %c0_i32_179] : memref<64x128xf32, #tpu.memory_space<vmem>> -> memref<1x128xf32, #tpu.memory_space<vmem>>
    %314 = tpu.memref_slice %arg4[%c0_i32_176] : memref<1x!tpu.dma_semaphore, #tpu.memory_space<semaphore_mem>> -> memref<1x!tpu.dma_semaphore, #tpu.memory_space<semaphore_mem>>
    %315 = tpu.memref_squeeze %314 : memref<1x!tpu.dma_semaphore, #tpu.memory_space<semaphore_mem>> -> memref<!tpu.dma_semaphore, #tpu.memory_space<semaphore_mem>>
    tpu.enqueue_dma source(%312 : memref<1x128xf32, #tpu.memory_space<any>>) target(%313 : memref<1x128xf32, #tpu.memory_space<vmem>>) target_semaphore(%315 : memref<!tpu.dma_semaphore, #tpu.memory_space<semaphore_mem>>)
    %c45_i32 = arith.constant 45 : i32
    %316 = arith.addi %0, %c45_i32 : i32
    %317 = arith.index_cast %316 : i32 to index
    %318 = memref.load %arg1[%317] : memref<64xi32, #tpu.memory_space<smem>>
    %c0_i32_180 = arith.constant 0 : i32
    %c0_i32_181 = arith.constant 0 : i32
    %319 = tpu.memref_slice %arg2[%318, %c0_i32_181] : memref<64x128xf32, #tpu.memory_space<any>> -> memref<1x128xf32, #tpu.memory_space<any>>
    %c45_i32_182 = arith.constant 45 : i32
    %c0_i32_183 = arith.constant 0 : i32
    %320 = tpu.memref_slice %arg3[%c45_i32_182, %c0_i32_183] : memref<64x128xf32, #tpu.memory_space<vmem>> -> memref<1x128xf32, #tpu.memory_space<vmem>>
    %321 = tpu.memref_slice %arg4[%c0_i32_180] : memref<1x!tpu.dma_semaphore, #tpu.memory_space<semaphore_mem>> -> memref<1x!tpu.dma_semaphore, #tpu.memory_space<semaphore_mem>>
    %322 = tpu.memref_squeeze %321 : memref<1x!tpu.dma_semaphore, #tpu.memory_space<semaphore_mem>> -> memref<!tpu.dma_semaphore, #tpu.memory_space<semaphore_mem>>
    tpu.enqueue_dma source(%319 : memref<1x128xf32, #tpu.memory_space<any>>) target(%320 : memref<1x128xf32, #tpu.memory_space<vmem>>) target_semaphore(%322 : memref<!tpu.dma_semaphore, #tpu.memory_space<semaphore_mem>>)
    %c46_i32 = arith.constant 46 : i32
    %323 = arith.addi %0, %c46_i32 : i32
    %324 = arith.index_cast %323 : i32 to index
    %325 = memref.load %arg1[%324] : memref<64xi32, #tpu.memory_space<smem>>
    %c0_i32_184 = arith.constant 0 : i32
    %c0_i32_185 = arith.constant 0 : i32
    %326 = tpu.memref_slice %arg2[%325, %c0_i32_185] : memref<64x128xf32, #tpu.memory_space<any>> -> memref<1x128xf32, #tpu.memory_space<any>>
    %c46_i32_186 = arith.constant 46 : i32
    %c0_i32_187 = arith.constant 0 : i32
    %327 = tpu.memref_slice %arg3[%c46_i32_186, %c0_i32_187] : memref<64x128xf32, #tpu.memory_space<vmem>> -> memref<1x128xf32, #tpu.memory_space<vmem>>
    %328 = tpu.memref_slice %arg4[%c0_i32_184] : memref<1x!tpu.dma_semaphore, #tpu.memory_space<semaphore_mem>> -> memref<1x!tpu.dma_semaphore, #tpu.memory_space<semaphore_mem>>
    %329 = tpu.memref_squeeze %328 : memref<1x!tpu.dma_semaphore, #tpu.memory_space<semaphore_mem>> -> memref<!tpu.dma_semaphore, #tpu.memory_space<semaphore_mem>>
    tpu.enqueue_dma source(%326 : memref<1x128xf32, #tpu.memory_space<any>>) target(%327 : memref<1x128xf32, #tpu.memory_space<vmem>>) target_semaphore(%329 : memref<!tpu.dma_semaphore, #tpu.memory_space<semaphore_mem>>)
    %c47_i32 = arith.constant 47 : i32
    %330 = arith.addi %0, %c47_i32 : i32
    %331 = arith.index_cast %330 : i32 to index
    %332 = memref.load %arg1[%331] : memref<64xi32, #tpu.memory_space<smem>>
    %c0_i32_188 = arith.constant 0 : i32
    %c0_i32_189 = arith.constant 0 : i32
    %333 = tpu.memref_slice %arg2[%332, %c0_i32_189] : memref<64x128xf32, #tpu.memory_space<any>> -> memref<1x128xf32, #tpu.memory_space<any>>
    %c47_i32_190 = arith.constant 47 : i32
    %c0_i32_191 = arith.constant 0 : i32
    %334 = tpu.memref_slice %arg3[%c47_i32_190, %c0_i32_191] : memref<64x128xf32, #tpu.memory_space<vmem>> -> memref<1x128xf32, #tpu.memory_space<vmem>>
    %335 = tpu.memref_slice %arg4[%c0_i32_188] : memref<1x!tpu.dma_semaphore, #tpu.memory_space<semaphore_mem>> -> memref<1x!tpu.dma_semaphore, #tpu.memory_space<semaphore_mem>>
    %336 = tpu.memref_squeeze %335 : memref<1x!tpu.dma_semaphore, #tpu.memory_space<semaphore_mem>> -> memref<!tpu.dma_semaphore, #tpu.memory_space<semaphore_mem>>
    tpu.enqueue_dma source(%333 : memref<1x128xf32, #tpu.memory_space<any>>) target(%334 : memref<1x128xf32, #tpu.memory_space<vmem>>) target_semaphore(%336 : memref<!tpu.dma_semaphore, #tpu.memory_space<semaphore_mem>>)
    %c48_i32 = arith.constant 48 : i32
    %337 = arith.addi %0, %c48_i32 : i32
    %338 = arith.index_cast %337 : i32 to index
    %339 = memref.load %arg1[%338] : memref<64xi32, #tpu.memory_space<smem>>
    %c0_i32_192 = arith.constant 0 : i32
    %c0_i32_193 = arith.constant 0 : i32
    %340 = tpu.memref_slice %arg2[%339, %c0_i32_193] : memref<64x128xf32, #tpu.memory_space<any>> -> memref<1x128xf32, #tpu.memory_space<any>>
    %c48_i32_194 = arith.constant 48 : i32
    %c0_i32_195 = arith.constant 0 : i32
    %341 = tpu.memref_slice %arg3[%c48_i32_194, %c0_i32_195] : memref<64x128xf32, #tpu.memory_space<vmem>> -> memref<1x128xf32, #tpu.memory_space<vmem>>
    %342 = tpu.memref_slice %arg4[%c0_i32_192] : memref<1x!tpu.dma_semaphore, #tpu.memory_space<semaphore_mem>> -> memref<1x!tpu.dma_semaphore, #tpu.memory_space<semaphore_mem>>
    %343 = tpu.memref_squeeze %342 : memref<1x!tpu.dma_semaphore, #tpu.memory_space<semaphore_mem>> -> memref<!tpu.dma_semaphore, #tpu.memory_space<semaphore_mem>>
    tpu.enqueue_dma source(%340 : memref<1x128xf32, #tpu.memory_space<any>>) target(%341 : memref<1x128xf32, #tpu.memory_space<vmem>>) target_semaphore(%343 : memref<!tpu.dma_semaphore, #tpu.memory_space<semaphore_mem>>)
    %c49_i32 = arith.constant 49 : i32
    %344 = arith.addi %0, %c49_i32 : i32
    %345 = arith.index_cast %344 : i32 to index
    %346 = memref.load %arg1[%345] : memref<64xi32, #tpu.memory_space<smem>>
    %c0_i32_196 = arith.constant 0 : i32
    %c0_i32_197 = arith.constant 0 : i32
    %347 = tpu.memref_slice %arg2[%346, %c0_i32_197] : memref<64x128xf32, #tpu.memory_space<any>> -> memref<1x128xf32, #tpu.memory_space<any>>
    %c49_i32_198 = arith.constant 49 : i32
    %c0_i32_199 = arith.constant 0 : i32
    %348 = tpu.memref_slice %arg3[%c49_i32_198, %c0_i32_199] : memref<64x128xf32, #tpu.memory_space<vmem>> -> memref<1x128xf32, #tpu.memory_space<vmem>>
    %349 = tpu.memref_slice %arg4[%c0_i32_196] : memref<1x!tpu.dma_semaphore, #tpu.memory_space<semaphore_mem>> -> memref<1x!tpu.dma_semaphore, #tpu.memory_space<semaphore_mem>>
    %350 = tpu.memref_squeeze %349 : memref<1x!tpu.dma_semaphore, #tpu.memory_space<semaphore_mem>> -> memref<!tpu.dma_semaphore, #tpu.memory_space<semaphore_mem>>
    tpu.enqueue_dma source(%347 : memref<1x128xf32, #tpu.memory_space<any>>) target(%348 : memref<1x128xf32, #tpu.memory_space<vmem>>) target_semaphore(%350 : memref<!tpu.dma_semaphore, #tpu.memory_space<semaphore_mem>>)
    %c50_i32 = arith.constant 50 : i32
    %351 = arith.addi %0, %c50_i32 : i32
    %352 = arith.index_cast %351 : i32 to index
    %353 = memref.load %arg1[%352] : memref<64xi32, #tpu.memory_space<smem>>
    %c0_i32_200 = arith.constant 0 : i32
    %c0_i32_201 = arith.constant 0 : i32
    %354 = tpu.memref_slice %arg2[%353, %c0_i32_201] : memref<64x128xf32, #tpu.memory_space<any>> -> memref<1x128xf32, #tpu.memory_space<any>>
    %c50_i32_202 = arith.constant 50 : i32
    %c0_i32_203 = arith.constant 0 : i32
    %355 = tpu.memref_slice %arg3[%c50_i32_202, %c0_i32_203] : memref<64x128xf32, #tpu.memory_space<vmem>> -> memref<1x128xf32, #tpu.memory_space<vmem>>
    %356 = tpu.memref_slice %arg4[%c0_i32_200] : memref<1x!tpu.dma_semaphore, #tpu.memory_space<semaphore_mem>> -> memref<1x!tpu.dma_semaphore, #tpu.memory_space<semaphore_mem>>
    %357 = tpu.memref_squeeze %356 : memref<1x!tpu.dma_semaphore, #tpu.memory_space<semaphore_mem>> -> memref<!tpu.dma_semaphore, #tpu.memory_space<semaphore_mem>>
    tpu.enqueue_dma source(%354 : memref<1x128xf32, #tpu.memory_space<any>>) target(%355 : memref<1x128xf32, #tpu.memory_space<vmem>>) target_semaphore(%357 : memref<!tpu.dma_semaphore, #tpu.memory_space<semaphore_mem>>)
    %c51_i32 = arith.constant 51 : i32
    %358 = arith.addi %0, %c51_i32 : i32
    %359 = arith.index_cast %358 : i32 to index
    %360 = memref.load %arg1[%359] : memref<64xi32, #tpu.memory_space<smem>>
    %c0_i32_204 = arith.constant 0 : i32
    %c0_i32_205 = arith.constant 0 : i32
    %361 = tpu.memref_slice %arg2[%360, %c0_i32_205] : memref<64x128xf32, #tpu.memory_space<any>> -> memref<1x128xf32, #tpu.memory_space<any>>
    %c51_i32_206 = arith.constant 51 : i32
    %c0_i32_207 = arith.constant 0 : i32
    %362 = tpu.memref_slice %arg3[%c51_i32_206, %c0_i32_207] : memref<64x128xf32, #tpu.memory_space<vmem>> -> memref<1x128xf32, #tpu.memory_space<vmem>>
    %363 = tpu.memref_slice %arg4[%c0_i32_204] : memref<1x!tpu.dma_semaphore, #tpu.memory_space<semaphore_mem>> -> memref<1x!tpu.dma_semaphore, #tpu.memory_space<semaphore_mem>>
    %364 = tpu.memref_squeeze %363 : memref<1x!tpu.dma_semaphore, #tpu.memory_space<semaphore_mem>> -> memref<!tpu.dma_semaphore, #tpu.memory_space<semaphore_mem>>
    tpu.enqueue_dma source(%361 : memref<1x128xf32, #tpu.memory_space<any>>) target(%362 : memref<1x128xf32, #tpu.memory_space<vmem>>) target_semaphore(%364 : memref<!tpu.dma_semaphore, #tpu.memory_space<semaphore_mem>>)
    %c52_i32 = arith.constant 52 : i32
    %365 = arith.addi %0, %c52_i32 : i32
    %366 = arith.index_cast %365 : i32 to index
    %367 = memref.load %arg1[%366] : memref<64xi32, #tpu.memory_space<smem>>
    %c0_i32_208 = arith.constant 0 : i32
    %c0_i32_209 = arith.constant 0 : i32
    %368 = tpu.memref_slice %arg2[%367, %c0_i32_209] : memref<64x128xf32, #tpu.memory_space<any>> -> memref<1x128xf32, #tpu.memory_space<any>>
    %c52_i32_210 = arith.constant 52 : i32
    %c0_i32_211 = arith.constant 0 : i32
    %369 = tpu.memref_slice %arg3[%c52_i32_210, %c0_i32_211] : memref<64x128xf32, #tpu.memory_space<vmem>> -> memref<1x128xf32, #tpu.memory_space<vmem>>
    %370 = tpu.memref_slice %arg4[%c0_i32_208] : memref<1x!tpu.dma_semaphore, #tpu.memory_space<semaphore_mem>> -> memref<1x!tpu.dma_semaphore, #tpu.memory_space<semaphore_mem>>
    %371 = tpu.memref_squeeze %370 : memref<1x!tpu.dma_semaphore, #tpu.memory_space<semaphore_mem>> -> memref<!tpu.dma_semaphore, #tpu.memory_space<semaphore_mem>>
    tpu.enqueue_dma source(%368 : memref<1x128xf32, #tpu.memory_space<any>>) target(%369 : memref<1x128xf32, #tpu.memory_space<vmem>>) target_semaphore(%371 : memref<!tpu.dma_semaphore, #tpu.memory_space<semaphore_mem>>)
    %c53_i32 = arith.constant 53 : i32
    %372 = arith.addi %0, %c53_i32 : i32
    %373 = arith.index_cast %372 : i32 to index
    %374 = memref.load %arg1[%373] : memref<64xi32, #tpu.memory_space<smem>>
    %c0_i32_212 = arith.constant 0 : i32
    %c0_i32_213 = arith.constant 0 : i32
    %375 = tpu.memref_slice %arg2[%374, %c0_i32_213] : memref<64x128xf32, #tpu.memory_space<any>> -> memref<1x128xf32, #tpu.memory_space<any>>
    %c53_i32_214 = arith.constant 53 : i32
    %c0_i32_215 = arith.constant 0 : i32
    %376 = tpu.memref_slice %arg3[%c53_i32_214, %c0_i32_215] : memref<64x128xf32, #tpu.memory_space<vmem>> -> memref<1x128xf32, #tpu.memory_space<vmem>>
    %377 = tpu.memref_slice %arg4[%c0_i32_212] : memref<1x!tpu.dma_semaphore, #tpu.memory_space<semaphore_mem>> -> memref<1x!tpu.dma_semaphore, #tpu.memory_space<semaphore_mem>>
    %378 = tpu.memref_squeeze %377 : memref<1x!tpu.dma_semaphore, #tpu.memory_space<semaphore_mem>> -> memref<!tpu.dma_semaphore, #tpu.memory_space<semaphore_mem>>
    tpu.enqueue_dma source(%375 : memref<1x128xf32, #tpu.memory_space<any>>) target(%376 : memref<1x128xf32, #tpu.memory_space<vmem>>) target_semaphore(%378 : memref<!tpu.dma_semaphore, #tpu.memory_space<semaphore_mem>>)
    %c54_i32 = arith.constant 54 : i32
    %379 = arith.addi %0, %c54_i32 : i32
    %380 = arith.index_cast %379 : i32 to index
    %381 = memref.load %arg1[%380] : memref<64xi32, #tpu.memory_space<smem>>
    %c0_i32_216 = arith.constant 0 : i32
    %c0_i32_217 = arith.constant 0 : i32
    %382 = tpu.memref_slice %arg2[%381, %c0_i32_217] : memref<64x128xf32, #tpu.memory_space<any>> -> memref<1x128xf32, #tpu.memory_space<any>>
    %c54_i32_218 = arith.constant 54 : i32
    %c0_i32_219 = arith.constant 0 : i32
    %383 = tpu.memref_slice %arg3[%c54_i32_218, %c0_i32_219] : memref<64x128xf32, #tpu.memory_space<vmem>> -> memref<1x128xf32, #tpu.memory_space<vmem>>
    %384 = tpu.memref_slice %arg4[%c0_i32_216] : memref<1x!tpu.dma_semaphore, #tpu.memory_space<semaphore_mem>> -> memref<1x!tpu.dma_semaphore, #tpu.memory_space<semaphore_mem>>
    %385 = tpu.memref_squeeze %384 : memref<1x!tpu.dma_semaphore, #tpu.memory_space<semaphore_mem>> -> memref<!tpu.dma_semaphore, #tpu.memory_space<semaphore_mem>>
    tpu.enqueue_dma source(%382 : memref<1x128xf32, #tpu.memory_space<any>>) target(%383 : memref<1x128xf32, #tpu.memory_space<vmem>>) target_semaphore(%385 : memref<!tpu.dma_semaphore, #tpu.memory_space<semaphore_mem>>)
    %c55_i32 = arith.constant 55 : i32
    %386 = arith.addi %0, %c55_i32 : i32
    %387 = arith.index_cast %386 : i32 to index
    %388 = memref.load %arg1[%387] : memref<64xi32, #tpu.memory_space<smem>>
    %c0_i32_220 = arith.constant 0 : i32
    %c0_i32_221 = arith.constant 0 : i32
    %389 = tpu.memref_slice %arg2[%388, %c0_i32_221] : memref<64x128xf32, #tpu.memory_space<any>> -> memref<1x128xf32, #tpu.memory_space<any>>
    %c55_i32_222 = arith.constant 55 : i32
    %c0_i32_223 = arith.constant 0 : i32
    %390 = tpu.memref_slice %arg3[%c55_i32_222, %c0_i32_223] : memref<64x128xf32, #tpu.memory_space<vmem>> -> memref<1x128xf32, #tpu.memory_space<vmem>>
    %391 = tpu.memref_slice %arg4[%c0_i32_220] : memref<1x!tpu.dma_semaphore, #tpu.memory_space<semaphore_mem>> -> memref<1x!tpu.dma_semaphore, #tpu.memory_space<semaphore_mem>>
    %392 = tpu.memref_squeeze %391 : memref<1x!tpu.dma_semaphore, #tpu.memory_space<semaphore_mem>> -> memref<!tpu.dma_semaphore, #tpu.memory_space<semaphore_mem>>
    tpu.enqueue_dma source(%389 : memref<1x128xf32, #tpu.memory_space<any>>) target(%390 : memref<1x128xf32, #tpu.memory_space<vmem>>) target_semaphore(%392 : memref<!tpu.dma_semaphore, #tpu.memory_space<semaphore_mem>>)
    %c56_i32 = arith.constant 56 : i32
    %393 = arith.addi %0, %c56_i32 : i32
    %394 = arith.index_cast %393 : i32 to index
    %395 = memref.load %arg1[%394] : memref<64xi32, #tpu.memory_space<smem>>
    %c0_i32_224 = arith.constant 0 : i32
    %c0_i32_225 = arith.constant 0 : i32
    %396 = tpu.memref_slice %arg2[%395, %c0_i32_225] : memref<64x128xf32, #tpu.memory_space<any>> -> memref<1x128xf32, #tpu.memory_space<any>>
    %c56_i32_226 = arith.constant 56 : i32
    %c0_i32_227 = arith.constant 0 : i32
    %397 = tpu.memref_slice %arg3[%c56_i32_226, %c0_i32_227] : memref<64x128xf32, #tpu.memory_space<vmem>> -> memref<1x128xf32, #tpu.memory_space<vmem>>
    %398 = tpu.memref_slice %arg4[%c0_i32_224] : memref<1x!tpu.dma_semaphore, #tpu.memory_space<semaphore_mem>> -> memref<1x!tpu.dma_semaphore, #tpu.memory_space<semaphore_mem>>
    %399 = tpu.memref_squeeze %398 : memref<1x!tpu.dma_semaphore, #tpu.memory_space<semaphore_mem>> -> memref<!tpu.dma_semaphore, #tpu.memory_space<semaphore_mem>>
    tpu.enqueue_dma source(%396 : memref<1x128xf32, #tpu.memory_space<any>>) target(%397 : memref<1x128xf32, #tpu.memory_space<vmem>>) target_semaphore(%399 : memref<!tpu.dma_semaphore, #tpu.memory_space<semaphore_mem>>)
    %c57_i32 = arith.constant 57 : i32
    %400 = arith.addi %0, %c57_i32 : i32
    %401 = arith.index_cast %400 : i32 to index
    %402 = memref.load %arg1[%401] : memref<64xi32, #tpu.memory_space<smem>>
    %c0_i32_228 = arith.constant 0 : i32
    %c0_i32_229 = arith.constant 0 : i32
    %403 = tpu.memref_slice %arg2[%402, %c0_i32_229] : memref<64x128xf32, #tpu.memory_space<any>> -> memref<1x128xf32, #tpu.memory_space<any>>
    %c57_i32_230 = arith.constant 57 : i32
    %c0_i32_231 = arith.constant 0 : i32
    %404 = tpu.memref_slice %arg3[%c57_i32_230, %c0_i32_231] : memref<64x128xf32, #tpu.memory_space<vmem>> -> memref<1x128xf32, #tpu.memory_space<vmem>>
    %405 = tpu.memref_slice %arg4[%c0_i32_228] : memref<1x!tpu.dma_semaphore, #tpu.memory_space<semaphore_mem>> -> memref<1x!tpu.dma_semaphore, #tpu.memory_space<semaphore_mem>>
    %406 = tpu.memref_squeeze %405 : memref<1x!tpu.dma_semaphore, #tpu.memory_space<semaphore_mem>> -> memref<!tpu.dma_semaphore, #tpu.memory_space<semaphore_mem>>
    tpu.enqueue_dma source(%403 : memref<1x128xf32, #tpu.memory_space<any>>) target(%404 : memref<1x128xf32, #tpu.memory_space<vmem>>) target_semaphore(%406 : memref<!tpu.dma_semaphore, #tpu.memory_space<semaphore_mem>>)
    %c58_i32 = arith.constant 58 : i32
    %407 = arith.addi %0, %c58_i32 : i32
    %408 = arith.index_cast %407 : i32 to index
    %409 = memref.load %arg1[%408] : memref<64xi32, #tpu.memory_space<smem>>
    %c0_i32_232 = arith.constant 0 : i32
    %c0_i32_233 = arith.constant 0 : i32
    %410 = tpu.memref_slice %arg2[%409, %c0_i32_233] : memref<64x128xf32, #tpu.memory_space<any>> -> memref<1x128xf32, #tpu.memory_space<any>>
    %c58_i32_234 = arith.constant 58 : i32
    %c0_i32_235 = arith.constant 0 : i32
    %411 = tpu.memref_slice %arg3[%c58_i32_234, %c0_i32_235] : memref<64x128xf32, #tpu.memory_space<vmem>> -> memref<1x128xf32, #tpu.memory_space<vmem>>
    %412 = tpu.memref_slice %arg4[%c0_i32_232] : memref<1x!tpu.dma_semaphore, #tpu.memory_space<semaphore_mem>> -> memref<1x!tpu.dma_semaphore, #tpu.memory_space<semaphore_mem>>
    %413 = tpu.memref_squeeze %412 : memref<1x!tpu.dma_semaphore, #tpu.memory_space<semaphore_mem>> -> memref<!tpu.dma_semaphore, #tpu.memory_space<semaphore_mem>>
    tpu.enqueue_dma source(%410 : memref<1x128xf32, #tpu.memory_space<any>>) target(%411 : memref<1x128xf32, #tpu.memory_space<vmem>>) target_semaphore(%413 : memref<!tpu.dma_semaphore, #tpu.memory_space<semaphore_mem>>)
    %c59_i32 = arith.constant 59 : i32
    %414 = arith.addi %0, %c59_i32 : i32
    %415 = arith.index_cast %414 : i32 to index
    %416 = memref.load %arg1[%415] : memref<64xi32, #tpu.memory_space<smem>>
    %c0_i32_236 = arith.constant 0 : i32
    %c0_i32_237 = arith.constant 0 : i32
    %417 = tpu.memref_slice %arg2[%416, %c0_i32_237] : memref<64x128xf32, #tpu.memory_space<any>> -> memref<1x128xf32, #tpu.memory_space<any>>
    %c59_i32_238 = arith.constant 59 : i32
    %c0_i32_239 = arith.constant 0 : i32
    %418 = tpu.memref_slice %arg3[%c59_i32_238, %c0_i32_239] : memref<64x128xf32, #tpu.memory_space<vmem>> -> memref<1x128xf32, #tpu.memory_space<vmem>>
    %419 = tpu.memref_slice %arg4[%c0_i32_236] : memref<1x!tpu.dma_semaphore, #tpu.memory_space<semaphore_mem>> -> memref<1x!tpu.dma_semaphore, #tpu.memory_space<semaphore_mem>>
    %420 = tpu.memref_squeeze %419 : memref<1x!tpu.dma_semaphore, #tpu.memory_space<semaphore_mem>> -> memref<!tpu.dma_semaphore, #tpu.memory_space<semaphore_mem>>
    tpu.enqueue_dma source(%417 : memref<1x128xf32, #tpu.memory_space<any>>) target(%418 : memref<1x128xf32, #tpu.memory_space<vmem>>) target_semaphore(%420 : memref<!tpu.dma_semaphore, #tpu.memory_space<semaphore_mem>>)
    %c60_i32 = arith.constant 60 : i32
    %421 = arith.addi %0, %c60_i32 : i32
    %422 = arith.index_cast %421 : i32 to index
    %423 = memref.load %arg1[%422] : memref<64xi32, #tpu.memory_space<smem>>
    %c0_i32_240 = arith.constant 0 : i32
    %c0_i32_241 = arith.constant 0 : i32
    %424 = tpu.memref_slice %arg2[%423, %c0_i32_241] : memref<64x128xf32, #tpu.memory_space<any>> -> memref<1x128xf32, #tpu.memory_space<any>>
    %c60_i32_242 = arith.constant 60 : i32
    %c0_i32_243 = arith.constant 0 : i32
    %425 = tpu.memref_slice %arg3[%c60_i32_242, %c0_i32_243] : memref<64x128xf32, #tpu.memory_space<vmem>> -> memref<1x128xf32, #tpu.memory_space<vmem>>
    %426 = tpu.memref_slice %arg4[%c0_i32_240] : memref<1x!tpu.dma_semaphore, #tpu.memory_space<semaphore_mem>> -> memref<1x!tpu.dma_semaphore, #tpu.memory_space<semaphore_mem>>
    %427 = tpu.memref_squeeze %426 : memref<1x!tpu.dma_semaphore, #tpu.memory_space<semaphore_mem>> -> memref<!tpu.dma_semaphore, #tpu.memory_space<semaphore_mem>>
    tpu.enqueue_dma source(%424 : memref<1x128xf32, #tpu.memory_space<any>>) target(%425 : memref<1x128xf32, #tpu.memory_space<vmem>>) target_semaphore(%427 : memref<!tpu.dma_semaphore, #tpu.memory_space<semaphore_mem>>)
    %c61_i32 = arith.constant 61 : i32
    %428 = arith.addi %0, %c61_i32 : i32
    %429 = arith.index_cast %428 : i32 to index
    %430 = memref.load %arg1[%429] : memref<64xi32, #tpu.memory_space<smem>>
    %c0_i32_244 = arith.constant 0 : i32
    %c0_i32_245 = arith.constant 0 : i32
    %431 = tpu.memref_slice %arg2[%430, %c0_i32_245] : memref<64x128xf32, #tpu.memory_space<any>> -> memref<1x128xf32, #tpu.memory_space<any>>
    %c61_i32_246 = arith.constant 61 : i32
    %c0_i32_247 = arith.constant 0 : i32
    %432 = tpu.memref_slice %arg3[%c61_i32_246, %c0_i32_247] : memref<64x128xf32, #tpu.memory_space<vmem>> -> memref<1x128xf32, #tpu.memory_space<vmem>>
    %433 = tpu.memref_slice %arg4[%c0_i32_244] : memref<1x!tpu.dma_semaphore, #tpu.memory_space<semaphore_mem>> -> memref<1x!tpu.dma_semaphore, #tpu.memory_space<semaphore_mem>>
    %434 = tpu.memref_squeeze %433 : memref<1x!tpu.dma_semaphore, #tpu.memory_space<semaphore_mem>> -> memref<!tpu.dma_semaphore, #tpu.memory_space<semaphore_mem>>
    tpu.enqueue_dma source(%431 : memref<1x128xf32, #tpu.memory_space<any>>) target(%432 : memref<1x128xf32, #tpu.memory_space<vmem>>) target_semaphore(%434 : memref<!tpu.dma_semaphore, #tpu.memory_space<semaphore_mem>>)
    %c62_i32 = arith.constant 62 : i32
    %435 = arith.addi %0, %c62_i32 : i32
    %436 = arith.index_cast %435 : i32 to index
    %437 = memref.load %arg1[%436] : memref<64xi32, #tpu.memory_space<smem>>
    %c0_i32_248 = arith.constant 0 : i32
    %c0_i32_249 = arith.constant 0 : i32
    %438 = tpu.memref_slice %arg2[%437, %c0_i32_249] : memref<64x128xf32, #tpu.memory_space<any>> -> memref<1x128xf32, #tpu.memory_space<any>>
    %c62_i32_250 = arith.constant 62 : i32
    %c0_i32_251 = arith.constant 0 : i32
    %439 = tpu.memref_slice %arg3[%c62_i32_250, %c0_i32_251] : memref<64x128xf32, #tpu.memory_space<vmem>> -> memref<1x128xf32, #tpu.memory_space<vmem>>
    %440 = tpu.memref_slice %arg4[%c0_i32_248] : memref<1x!tpu.dma_semaphore, #tpu.memory_space<semaphore_mem>> -> memref<1x!tpu.dma_semaphore, #tpu.memory_space<semaphore_mem>>
    %441 = tpu.memref_squeeze %440 : memref<1x!tpu.dma_semaphore, #tpu.memory_space<semaphore_mem>> -> memref<!tpu.dma_semaphore, #tpu.memory_space<semaphore_mem>>
    tpu.enqueue_dma source(%438 : memref<1x128xf32, #tpu.memory_space<any>>) target(%439 : memref<1x128xf32, #tpu.memory_space<vmem>>) target_semaphore(%441 : memref<!tpu.dma_semaphore, #tpu.memory_space<semaphore_mem>>)
    %c63_i32 = arith.constant 63 : i32
    %442 = arith.addi %0, %c63_i32 : i32
    %443 = arith.index_cast %442 : i32 to index
    %444 = memref.load %arg1[%443] : memref<64xi32, #tpu.memory_space<smem>>
    %c0_i32_252 = arith.constant 0 : i32
    %c0_i32_253 = arith.constant 0 : i32
    %445 = tpu.memref_slice %arg2[%444, %c0_i32_253] : memref<64x128xf32, #tpu.memory_space<any>> -> memref<1x128xf32, #tpu.memory_space<any>>
    %c63_i32_254 = arith.constant 63 : i32
    %c0_i32_255 = arith.constant 0 : i32
    %446 = tpu.memref_slice %arg3[%c63_i32_254, %c0_i32_255] : memref<64x128xf32, #tpu.memory_space<vmem>> -> memref<1x128xf32, #tpu.memory_space<vmem>>
    %447 = tpu.memref_slice %arg4[%c0_i32_252] : memref<1x!tpu.dma_semaphore, #tpu.memory_space<semaphore_mem>> -> memref<1x!tpu.dma_semaphore, #tpu.memory_space<semaphore_mem>>
    %448 = tpu.memref_squeeze %447 : memref<1x!tpu.dma_semaphore, #tpu.memory_space<semaphore_mem>> -> memref<!tpu.dma_semaphore, #tpu.memory_space<semaphore_mem>>
    tpu.enqueue_dma source(%445 : memref<1x128xf32, #tpu.memory_space<any>>) target(%446 : memref<1x128xf32, #tpu.memory_space<vmem>>) target_semaphore(%448 : memref<!tpu.dma_semaphore, #tpu.memory_space<semaphore_mem>>)
    %c0_i32_256 = arith.constant 0 : i32
    %449 = arith.addi %0, %c0_i32_256 : i32
    %450 = arith.index_cast %449 : i32 to index
    %451 = memref.load %arg1[%450] : memref<64xi32, #tpu.memory_space<smem>>
    %c0_i32_257 = arith.constant 0 : i32
    %c0_i32_258 = arith.constant 0 : i32
    %452 = tpu.memref_slice %arg2[%451, %c0_i32_258] : memref<64x128xf32, #tpu.memory_space<any>> -> memref<1x128xf32, #tpu.memory_space<any>>
    %c0_i32_259 = arith.constant 0 : i32
    %c0_i32_260 = arith.constant 0 : i32
    %453 = tpu.memref_slice %arg3[%c0_i32_259, %c0_i32_260] : memref<64x128xf32, #tpu.memory_space<vmem>> -> memref<1x128xf32, #tpu.memory_space<vmem>>
    %454 = tpu.memref_slice %arg4[%c0_i32_257] : memref<1x!tpu.dma_semaphore, #tpu.memory_space<semaphore_mem>> -> memref<1x!tpu.dma_semaphore, #tpu.memory_space<semaphore_mem>>
    %455 = tpu.memref_squeeze %454 : memref<1x!tpu.dma_semaphore, #tpu.memory_space<semaphore_mem>> -> memref<!tpu.dma_semaphore, #tpu.memory_space<semaphore_mem>>
    tpu.wait_dma2 semaphore(%455 : memref<!tpu.dma_semaphore, #tpu.memory_space<semaphore_mem>>) src(%452 : memref<1x128xf32, #tpu.memory_space<any>>) dst(%453 : memref<1x128xf32, #tpu.memory_space<vmem>>)
    %c1_i32_261 = arith.constant 1 : i32
    %456 = arith.addi %0, %c1_i32_261 : i32
    %457 = arith.index_cast %456 : i32 to index
    %458 = memref.load %arg1[%457] : memref<64xi32, #tpu.memory_space<smem>>
    %c0_i32_262 = arith.constant 0 : i32
    %c0_i32_263 = arith.constant 0 : i32
    %459 = tpu.memref_slice %arg2[%458, %c0_i32_263] : memref<64x128xf32, #tpu.memory_space<any>> -> memref<1x128xf32, #tpu.memory_space<any>>
    %c1_i32_264 = arith.constant 1 : i32
    %c0_i32_265 = arith.constant 0 : i32
    %460 = tpu.memref_slice %arg3[%c1_i32_264, %c0_i32_265] : memref<64x128xf32, #tpu.memory_space<vmem>> -> memref<1x128xf32, #tpu.memory_space<vmem>>
    %461 = tpu.memref_slice %arg4[%c0_i32_262] : memref<1x!tpu.dma_semaphore, #tpu.memory_space<semaphore_mem>> -> memref<1x!tpu.dma_semaphore, #tpu.memory_space<semaphore_mem>>
    %462 = tpu.memref_squeeze %461 : memref<1x!tpu.dma_semaphore, #tpu.memory_space<semaphore_mem>> -> memref<!tpu.dma_semaphore, #tpu.memory_space<semaphore_mem>>
    tpu.wait_dma2 semaphore(%462 : memref<!tpu.dma_semaphore, #tpu.memory_space<semaphore_mem>>) src(%459 : memref<1x128xf32, #tpu.memory_space<any>>) dst(%460 : memref<1x128xf32, #tpu.memory_space<vmem>>)
    %c2_i32_266 = arith.constant 2 : i32
    %463 = arith.addi %0, %c2_i32_266 : i32
    %464 = arith.index_cast %463 : i32 to index
    %465 = memref.load %arg1[%464] : memref<64xi32, #tpu.memory_space<smem>>
    %c0_i32_267 = arith.constant 0 : i32
    %c0_i32_268 = arith.constant 0 : i32
    %466 = tpu.memref_slice %arg2[%465, %c0_i32_268] : memref<64x128xf32, #tpu.memory_space<any>> -> memref<1x128xf32, #tpu.memory_space<any>>
    %c2_i32_269 = arith.constant 2 : i32
    %c0_i32_270 = arith.constant 0 : i32
    %467 = tpu.memref_slice %arg3[%c2_i32_269, %c0_i32_270] : memref<64x128xf32, #tpu.memory_space<vmem>> -> memref<1x128xf32, #tpu.memory_space<vmem>>
    %468 = tpu.memref_slice %arg4[%c0_i32_267] : memref<1x!tpu.dma_semaphore, #tpu.memory_space<semaphore_mem>> -> memref<1x!tpu.dma_semaphore, #tpu.memory_space<semaphore_mem>>
    %469 = tpu.memref_squeeze %468 : memref<1x!tpu.dma_semaphore, #tpu.memory_space<semaphore_mem>> -> memref<!tpu.dma_semaphore, #tpu.memory_space<semaphore_mem>>
    tpu.wait_dma2 semaphore(%469 : memref<!tpu.dma_semaphore, #tpu.memory_space<semaphore_mem>>) src(%466 : memref<1x128xf32, #tpu.memory_space<any>>) dst(%467 : memref<1x128xf32, #tpu.memory_space<vmem>>)
    %c3_i32_271 = arith.constant 3 : i32
    %470 = arith.addi %0, %c3_i32_271 : i32
    %471 = arith.index_cast %470 : i32 to index
    %472 = memref.load %arg1[%471] : memref<64xi32, #tpu.memory_space<smem>>
    %c0_i32_272 = arith.constant 0 : i32
    %c0_i32_273 = arith.constant 0 : i32
    %473 = tpu.memref_slice %arg2[%472, %c0_i32_273] : memref<64x128xf32, #tpu.memory_space<any>> -> memref<1x128xf32, #tpu.memory_space<any>>
    %c3_i32_274 = arith.constant 3 : i32
    %c0_i32_275 = arith.constant 0 : i32
    %474 = tpu.memref_slice %arg3[%c3_i32_274, %c0_i32_275] : memref<64x128xf32, #tpu.memory_space<vmem>> -> memref<1x128xf32, #tpu.memory_space<vmem>>
    %475 = tpu.memref_slice %arg4[%c0_i32_272] : memref<1x!tpu.dma_semaphore, #tpu.memory_space<semaphore_mem>> -> memref<1x!tpu.dma_semaphore, #tpu.memory_space<semaphore_mem>>
    %476 = tpu.memref_squeeze %475 : memref<1x!tpu.dma_semaphore, #tpu.memory_space<semaphore_mem>> -> memref<!tpu.dma_semaphore, #tpu.memory_space<semaphore_mem>>
    tpu.wait_dma2 semaphore(%476 : memref<!tpu.dma_semaphore, #tpu.memory_space<semaphore_mem>>) src(%473 : memref<1x128xf32, #tpu.memory_space<any>>) dst(%474 : memref<1x128xf32, #tpu.memory_space<vmem>>)
    %c4_i32_276 = arith.constant 4 : i32
    %477 = arith.addi %0, %c4_i32_276 : i32
    %478 = arith.index_cast %477 : i32 to index
    %479 = memref.load %arg1[%478] : memref<64xi32, #tpu.memory_space<smem>>
    %c0_i32_277 = arith.constant 0 : i32
    %c0_i32_278 = arith.constant 0 : i32
    %480 = tpu.memref_slice %arg2[%479, %c0_i32_278] : memref<64x128xf32, #tpu.memory_space<any>> -> memref<1x128xf32, #tpu.memory_space<any>>
    %c4_i32_279 = arith.constant 4 : i32
    %c0_i32_280 = arith.constant 0 : i32
    %481 = tpu.memref_slice %arg3[%c4_i32_279, %c0_i32_280] : memref<64x128xf32, #tpu.memory_space<vmem>> -> memref<1x128xf32, #tpu.memory_space<vmem>>
    %482 = tpu.memref_slice %arg4[%c0_i32_277] : memref<1x!tpu.dma_semaphore, #tpu.memory_space<semaphore_mem>> -> memref<1x!tpu.dma_semaphore, #tpu.memory_space<semaphore_mem>>
    %483 = tpu.memref_squeeze %482 : memref<1x!tpu.dma_semaphore, #tpu.memory_space<semaphore_mem>> -> memref<!tpu.dma_semaphore, #tpu.memory_space<semaphore_mem>>
    tpu.wait_dma2 semaphore(%483 : memref<!tpu.dma_semaphore, #tpu.memory_space<semaphore_mem>>) src(%480 : memref<1x128xf32, #tpu.memory_space<any>>) dst(%481 : memref<1x128xf32, #tpu.memory_space<vmem>>)
    %c5_i32_281 = arith.constant 5 : i32
    %484 = arith.addi %0, %c5_i32_281 : i32
    %485 = arith.index_cast %484 : i32 to index
    %486 = memref.load %arg1[%485] : memref<64xi32, #tpu.memory_space<smem>>
    %c0_i32_282 = arith.constant 0 : i32
    %c0_i32_283 = arith.constant 0 : i32
    %487 = tpu.memref_slice %arg2[%486, %c0_i32_283] : memref<64x128xf32, #tpu.memory_space<any>> -> memref<1x128xf32, #tpu.memory_space<any>>
    %c5_i32_284 = arith.constant 5 : i32
    %c0_i32_285 = arith.constant 0 : i32
    %488 = tpu.memref_slice %arg3[%c5_i32_284, %c0_i32_285] : memref<64x128xf32, #tpu.memory_space<vmem>> -> memref<1x128xf32, #tpu.memory_space<vmem>>
    %489 = tpu.memref_slice %arg4[%c0_i32_282] : memref<1x!tpu.dma_semaphore, #tpu.memory_space<semaphore_mem>> -> memref<1x!tpu.dma_semaphore, #tpu.memory_space<semaphore_mem>>
    %490 = tpu.memref_squeeze %489 : memref<1x!tpu.dma_semaphore, #tpu.memory_space<semaphore_mem>> -> memref<!tpu.dma_semaphore, #tpu.memory_space<semaphore_mem>>
    tpu.wait_dma2 semaphore(%490 : memref<!tpu.dma_semaphore, #tpu.memory_space<semaphore_mem>>) src(%487 : memref<1x128xf32, #tpu.memory_space<any>>) dst(%488 : memref<1x128xf32, #tpu.memory_space<vmem>>)
    %c6_i32_286 = arith.constant 6 : i32
    %491 = arith.addi %0, %c6_i32_286 : i32
    %492 = arith.index_cast %491 : i32 to index
    %493 = memref.load %arg1[%492] : memref<64xi32, #tpu.memory_space<smem>>
    %c0_i32_287 = arith.constant 0 : i32
    %c0_i32_288 = arith.constant 0 : i32
    %494 = tpu.memref_slice %arg2[%493, %c0_i32_288] : memref<64x128xf32, #tpu.memory_space<any>> -> memref<1x128xf32, #tpu.memory_space<any>>
    %c6_i32_289 = arith.constant 6 : i32
    %c0_i32_290 = arith.constant 0 : i32
    %495 = tpu.memref_slice %arg3[%c6_i32_289, %c0_i32_290] : memref<64x128xf32, #tpu.memory_space<vmem>> -> memref<1x128xf32, #tpu.memory_space<vmem>>
    %496 = tpu.memref_slice %arg4[%c0_i32_287] : memref<1x!tpu.dma_semaphore, #tpu.memory_space<semaphore_mem>> -> memref<1x!tpu.dma_semaphore, #tpu.memory_space<semaphore_mem>>
    %497 = tpu.memref_squeeze %496 : memref<1x!tpu.dma_semaphore, #tpu.memory_space<semaphore_mem>> -> memref<!tpu.dma_semaphore, #tpu.memory_space<semaphore_mem>>
    tpu.wait_dma2 semaphore(%497 : memref<!tpu.dma_semaphore, #tpu.memory_space<semaphore_mem>>) src(%494 : memref<1x128xf32, #tpu.memory_space<any>>) dst(%495 : memref<1x128xf32, #tpu.memory_space<vmem>>)
    %c7_i32_291 = arith.constant 7 : i32
    %498 = arith.addi %0, %c7_i32_291 : i32
    %499 = arith.index_cast %498 : i32 to index
    %500 = memref.load %arg1[%499] : memref<64xi32, #tpu.memory_space<smem>>
    %c0_i32_292 = arith.constant 0 : i32
    %c0_i32_293 = arith.constant 0 : i32
    %501 = tpu.memref_slice %arg2[%500, %c0_i32_293] : memref<64x128xf32, #tpu.memory_space<any>> -> memref<1x128xf32, #tpu.memory_space<any>>
    %c7_i32_294 = arith.constant 7 : i32
    %c0_i32_295 = arith.constant 0 : i32
    %502 = tpu.memref_slice %arg3[%c7_i32_294, %c0_i32_295] : memref<64x128xf32, #tpu.memory_space<vmem>> -> memref<1x128xf32, #tpu.memory_space<vmem>>
    %503 = tpu.memref_slice %arg4[%c0_i32_292] : memref<1x!tpu.dma_semaphore, #tpu.memory_space<semaphore_mem>> -> memref<1x!tpu.dma_semaphore, #tpu.memory_space<semaphore_mem>>
    %504 = tpu.memref_squeeze %503 : memref<1x!tpu.dma_semaphore, #tpu.memory_space<semaphore_mem>> -> memref<!tpu.dma_semaphore, #tpu.memory_space<semaphore_mem>>
    tpu.wait_dma2 semaphore(%504 : memref<!tpu.dma_semaphore, #tpu.memory_space<semaphore_mem>>) src(%501 : memref<1x128xf32, #tpu.memory_space<any>>) dst(%502 : memref<1x128xf32, #tpu.memory_space<vmem>>)
    %c8_i32_296 = arith.constant 8 : i32
    %505 = arith.addi %0, %c8_i32_296 : i32
    %506 = arith.index_cast %505 : i32 to index
    %507 = memref.load %arg1[%506] : memref<64xi32, #tpu.memory_space<smem>>
    %c0_i32_297 = arith.constant 0 : i32
    %c0_i32_298 = arith.constant 0 : i32
    %508 = tpu.memref_slice %arg2[%507, %c0_i32_298] : memref<64x128xf32, #tpu.memory_space<any>> -> memref<1x128xf32, #tpu.memory_space<any>>
    %c8_i32_299 = arith.constant 8 : i32
    %c0_i32_300 = arith.constant 0 : i32
    %509 = tpu.memref_slice %arg3[%c8_i32_299, %c0_i32_300] : memref<64x128xf32, #tpu.memory_space<vmem>> -> memref<1x128xf32, #tpu.memory_space<vmem>>
    %510 = tpu.memref_slice %arg4[%c0_i32_297] : memref<1x!tpu.dma_semaphore, #tpu.memory_space<semaphore_mem>> -> memref<1x!tpu.dma_semaphore, #tpu.memory_space<semaphore_mem>>
    %511 = tpu.memref_squeeze %510 : memref<1x!tpu.dma_semaphore, #tpu.memory_space<semaphore_mem>> -> memref<!tpu.dma_semaphore, #tpu.memory_space<semaphore_mem>>
    tpu.wait_dma2 semaphore(%511 : memref<!tpu.dma_semaphore, #tpu.memory_space<semaphore_mem>>) src(%508 : memref<1x128xf32, #tpu.memory_space<any>>) dst(%509 : memref<1x128xf32, #tpu.memory_space<vmem>>)
    %c9_i32_301 = arith.constant 9 : i32
    %512 = arith.addi %0, %c9_i32_301 : i32
    %513 = arith.index_cast %512 : i32 to index
    %514 = memref.load %arg1[%513] : memref<64xi32, #tpu.memory_space<smem>>
    %c0_i32_302 = arith.constant 0 : i32
    %c0_i32_303 = arith.constant 0 : i32
    %515 = tpu.memref_slice %arg2[%514, %c0_i32_303] : memref<64x128xf32, #tpu.memory_space<any>> -> memref<1x128xf32, #tpu.memory_space<any>>
    %c9_i32_304 = arith.constant 9 : i32
    %c0_i32_305 = arith.constant 0 : i32
    %516 = tpu.memref_slice %arg3[%c9_i32_304, %c0_i32_305] : memref<64x128xf32, #tpu.memory_space<vmem>> -> memref<1x128xf32, #tpu.memory_space<vmem>>
    %517 = tpu.memref_slice %arg4[%c0_i32_302] : memref<1x!tpu.dma_semaphore, #tpu.memory_space<semaphore_mem>> -> memref<1x!tpu.dma_semaphore, #tpu.memory_space<semaphore_mem>>
    %518 = tpu.memref_squeeze %517 : memref<1x!tpu.dma_semaphore, #tpu.memory_space<semaphore_mem>> -> memref<!tpu.dma_semaphore, #tpu.memory_space<semaphore_mem>>
    tpu.wait_dma2 semaphore(%518 : memref<!tpu.dma_semaphore, #tpu.memory_space<semaphore_mem>>) src(%515 : memref<1x128xf32, #tpu.memory_space<any>>) dst(%516 : memref<1x128xf32, #tpu.memory_space<vmem>>)
    %c10_i32_306 = arith.constant 10 : i32
    %519 = arith.addi %0, %c10_i32_306 : i32
    %520 = arith.index_cast %519 : i32 to index
    %521 = memref.load %arg1[%520] : memref<64xi32, #tpu.memory_space<smem>>
    %c0_i32_307 = arith.constant 0 : i32
    %c0_i32_308 = arith.constant 0 : i32
    %522 = tpu.memref_slice %arg2[%521, %c0_i32_308] : memref<64x128xf32, #tpu.memory_space<any>> -> memref<1x128xf32, #tpu.memory_space<any>>
    %c10_i32_309 = arith.constant 10 : i32
    %c0_i32_310 = arith.constant 0 : i32
    %523 = tpu.memref_slice %arg3[%c10_i32_309, %c0_i32_310] : memref<64x128xf32, #tpu.memory_space<vmem>> -> memref<1x128xf32, #tpu.memory_space<vmem>>
    %524 = tpu.memref_slice %arg4[%c0_i32_307] : memref<1x!tpu.dma_semaphore, #tpu.memory_space<semaphore_mem>> -> memref<1x!tpu.dma_semaphore, #tpu.memory_space<semaphore_mem>>
    %525 = tpu.memref_squeeze %524 : memref<1x!tpu.dma_semaphore, #tpu.memory_space<semaphore_mem>> -> memref<!tpu.dma_semaphore, #tpu.memory_space<semaphore_mem>>
    tpu.wait_dma2 semaphore(%525 : memref<!tpu.dma_semaphore, #tpu.memory_space<semaphore_mem>>) src(%522 : memref<1x128xf32, #tpu.memory_space<any>>) dst(%523 : memref<1x128xf32, #tpu.memory_space<vmem>>)
    %c11_i32_311 = arith.constant 11 : i32
    %526 = arith.addi %0, %c11_i32_311 : i32
    %527 = arith.index_cast %526 : i32 to index
    %528 = memref.load %arg1[%527] : memref<64xi32, #tpu.memory_space<smem>>
    %c0_i32_312 = arith.constant 0 : i32
    %c0_i32_313 = arith.constant 0 : i32
    %529 = tpu.memref_slice %arg2[%528, %c0_i32_313] : memref<64x128xf32, #tpu.memory_space<any>> -> memref<1x128xf32, #tpu.memory_space<any>>
    %c11_i32_314 = arith.constant 11 : i32
    %c0_i32_315 = arith.constant 0 : i32
    %530 = tpu.memref_slice %arg3[%c11_i32_314, %c0_i32_315] : memref<64x128xf32, #tpu.memory_space<vmem>> -> memref<1x128xf32, #tpu.memory_space<vmem>>
    %531 = tpu.memref_slice %arg4[%c0_i32_312] : memref<1x!tpu.dma_semaphore, #tpu.memory_space<semaphore_mem>> -> memref<1x!tpu.dma_semaphore, #tpu.memory_space<semaphore_mem>>
    %532 = tpu.memref_squeeze %531 : memref<1x!tpu.dma_semaphore, #tpu.memory_space<semaphore_mem>> -> memref<!tpu.dma_semaphore, #tpu.memory_space<semaphore_mem>>
    tpu.wait_dma2 semaphore(%532 : memref<!tpu.dma_semaphore, #tpu.memory_space<semaphore_mem>>) src(%529 : memref<1x128xf32, #tpu.memory_space<any>>) dst(%530 : memref<1x128xf32, #tpu.memory_space<vmem>>)
    %c12_i32_316 = arith.constant 12 : i32
    %533 = arith.addi %0, %c12_i32_316 : i32
    %534 = arith.index_cast %533 : i32 to index
    %535 = memref.load %arg1[%534] : memref<64xi32, #tpu.memory_space<smem>>
    %c0_i32_317 = arith.constant 0 : i32
    %c0_i32_318 = arith.constant 0 : i32
    %536 = tpu.memref_slice %arg2[%535, %c0_i32_318] : memref<64x128xf32, #tpu.memory_space<any>> -> memref<1x128xf32, #tpu.memory_space<any>>
    %c12_i32_319 = arith.constant 12 : i32
    %c0_i32_320 = arith.constant 0 : i32
    %537 = tpu.memref_slice %arg3[%c12_i32_319, %c0_i32_320] : memref<64x128xf32, #tpu.memory_space<vmem>> -> memref<1x128xf32, #tpu.memory_space<vmem>>
    %538 = tpu.memref_slice %arg4[%c0_i32_317] : memref<1x!tpu.dma_semaphore, #tpu.memory_space<semaphore_mem>> -> memref<1x!tpu.dma_semaphore, #tpu.memory_space<semaphore_mem>>
    %539 = tpu.memref_squeeze %538 : memref<1x!tpu.dma_semaphore, #tpu.memory_space<semaphore_mem>> -> memref<!tpu.dma_semaphore, #tpu.memory_space<semaphore_mem>>
    tpu.wait_dma2 semaphore(%539 : memref<!tpu.dma_semaphore, #tpu.memory_space<semaphore_mem>>) src(%536 : memref<1x128xf32, #tpu.memory_space<any>>) dst(%537 : memref<1x128xf32, #tpu.memory_space<vmem>>)
    %c13_i32_321 = arith.constant 13 : i32
    %540 = arith.addi %0, %c13_i32_321 : i32
    %541 = arith.index_cast %540 : i32 to index
    %542 = memref.load %arg1[%541] : memref<64xi32, #tpu.memory_space<smem>>
    %c0_i32_322 = arith.constant 0 : i32
    %c0_i32_323 = arith.constant 0 : i32
    %543 = tpu.memref_slice %arg2[%542, %c0_i32_323] : memref<64x128xf32, #tpu.memory_space<any>> -> memref<1x128xf32, #tpu.memory_space<any>>
    %c13_i32_324 = arith.constant 13 : i32
    %c0_i32_325 = arith.constant 0 : i32
    %544 = tpu.memref_slice %arg3[%c13_i32_324, %c0_i32_325] : memref<64x128xf32, #tpu.memory_space<vmem>> -> memref<1x128xf32, #tpu.memory_space<vmem>>
    %545 = tpu.memref_slice %arg4[%c0_i32_322] : memref<1x!tpu.dma_semaphore, #tpu.memory_space<semaphore_mem>> -> memref<1x!tpu.dma_semaphore, #tpu.memory_space<semaphore_mem>>
    %546 = tpu.memref_squeeze %545 : memref<1x!tpu.dma_semaphore, #tpu.memory_space<semaphore_mem>> -> memref<!tpu.dma_semaphore, #tpu.memory_space<semaphore_mem>>
    tpu.wait_dma2 semaphore(%546 : memref<!tpu.dma_semaphore, #tpu.memory_space<semaphore_mem>>) src(%543 : memref<1x128xf32, #tpu.memory_space<any>>) dst(%544 : memref<1x128xf32, #tpu.memory_space<vmem>>)
    %c14_i32_326 = arith.constant 14 : i32
    %547 = arith.addi %0, %c14_i32_326 : i32
    %548 = arith.index_cast %547 : i32 to index
    %549 = memref.load %arg1[%548] : memref<64xi32, #tpu.memory_space<smem>>
    %c0_i32_327 = arith.constant 0 : i32
    %c0_i32_328 = arith.constant 0 : i32
    %550 = tpu.memref_slice %arg2[%549, %c0_i32_328] : memref<64x128xf32, #tpu.memory_space<any>> -> memref<1x128xf32, #tpu.memory_space<any>>
    %c14_i32_329 = arith.constant 14 : i32
    %c0_i32_330 = arith.constant 0 : i32
    %551 = tpu.memref_slice %arg3[%c14_i32_329, %c0_i32_330] : memref<64x128xf32, #tpu.memory_space<vmem>> -> memref<1x128xf32, #tpu.memory_space<vmem>>
    %552 = tpu.memref_slice %arg4[%c0_i32_327] : memref<1x!tpu.dma_semaphore, #tpu.memory_space<semaphore_mem>> -> memref<1x!tpu.dma_semaphore, #tpu.memory_space<semaphore_mem>>
    %553 = tpu.memref_squeeze %552 : memref<1x!tpu.dma_semaphore, #tpu.memory_space<semaphore_mem>> -> memref<!tpu.dma_semaphore, #tpu.memory_space<semaphore_mem>>
    tpu.wait_dma2 semaphore(%553 : memref<!tpu.dma_semaphore, #tpu.memory_space<semaphore_mem>>) src(%550 : memref<1x128xf32, #tpu.memory_space<any>>) dst(%551 : memref<1x128xf32, #tpu.memory_space<vmem>>)
    %c15_i32_331 = arith.constant 15 : i32
    %554 = arith.addi %0, %c15_i32_331 : i32
    %555 = arith.index_cast %554 : i32 to index
    %556 = memref.load %arg1[%555] : memref<64xi32, #tpu.memory_space<smem>>
    %c0_i32_332 = arith.constant 0 : i32
    %c0_i32_333 = arith.constant 0 : i32
    %557 = tpu.memref_slice %arg2[%556, %c0_i32_333] : memref<64x128xf32, #tpu.memory_space<any>> -> memref<1x128xf32, #tpu.memory_space<any>>
    %c15_i32_334 = arith.constant 15 : i32
    %c0_i32_335 = arith.constant 0 : i32
    %558 = tpu.memref_slice %arg3[%c15_i32_334, %c0_i32_335] : memref<64x128xf32, #tpu.memory_space<vmem>> -> memref<1x128xf32, #tpu.memory_space<vmem>>
    %559 = tpu.memref_slice %arg4[%c0_i32_332] : memref<1x!tpu.dma_semaphore, #tpu.memory_space<semaphore_mem>> -> memref<1x!tpu.dma_semaphore, #tpu.memory_space<semaphore_mem>>
    %560 = tpu.memref_squeeze %559 : memref<1x!tpu.dma_semaphore, #tpu.memory_space<semaphore_mem>> -> memref<!tpu.dma_semaphore, #tpu.memory_space<semaphore_mem>>
    tpu.wait_dma2 semaphore(%560 : memref<!tpu.dma_semaphore, #tpu.memory_space<semaphore_mem>>) src(%557 : memref<1x128xf32, #tpu.memory_space<any>>) dst(%558 : memref<1x128xf32, #tpu.memory_space<vmem>>)
    %c16_i32_336 = arith.constant 16 : i32
    %561 = arith.addi %0, %c16_i32_336 : i32
    %562 = arith.index_cast %561 : i32 to index
    %563 = memref.load %arg1[%562] : memref<64xi32, #tpu.memory_space<smem>>
    %c0_i32_337 = arith.constant 0 : i32
    %c0_i32_338 = arith.constant 0 : i32
    %564 = tpu.memref_slice %arg2[%563, %c0_i32_338] : memref<64x128xf32, #tpu.memory_space<any>> -> memref<1x128xf32, #tpu.memory_space<any>>
    %c16_i32_339 = arith.constant 16 : i32
    %c0_i32_340 = arith.constant 0 : i32
    %565 = tpu.memref_slice %arg3[%c16_i32_339, %c0_i32_340] : memref<64x128xf32, #tpu.memory_space<vmem>> -> memref<1x128xf32, #tpu.memory_space<vmem>>
    %566 = tpu.memref_slice %arg4[%c0_i32_337] : memref<1x!tpu.dma_semaphore, #tpu.memory_space<semaphore_mem>> -> memref<1x!tpu.dma_semaphore, #tpu.memory_space<semaphore_mem>>
    %567 = tpu.memref_squeeze %566 : memref<1x!tpu.dma_semaphore, #tpu.memory_space<semaphore_mem>> -> memref<!tpu.dma_semaphore, #tpu.memory_space<semaphore_mem>>
    tpu.wait_dma2 semaphore(%567 : memref<!tpu.dma_semaphore, #tpu.memory_space<semaphore_mem>>) src(%564 : memref<1x128xf32, #tpu.memory_space<any>>) dst(%565 : memref<1x128xf32, #tpu.memory_space<vmem>>)
    %c17_i32_341 = arith.constant 17 : i32
    %568 = arith.addi %0, %c17_i32_341 : i32
    %569 = arith.index_cast %568 : i32 to index
    %570 = memref.load %arg1[%569] : memref<64xi32, #tpu.memory_space<smem>>
    %c0_i32_342 = arith.constant 0 : i32
    %c0_i32_343 = arith.constant 0 : i32
    %571 = tpu.memref_slice %arg2[%570, %c0_i32_343] : memref<64x128xf32, #tpu.memory_space<any>> -> memref<1x128xf32, #tpu.memory_space<any>>
    %c17_i32_344 = arith.constant 17 : i32
    %c0_i32_345 = arith.constant 0 : i32
    %572 = tpu.memref_slice %arg3[%c17_i32_344, %c0_i32_345] : memref<64x128xf32, #tpu.memory_space<vmem>> -> memref<1x128xf32, #tpu.memory_space<vmem>>
    %573 = tpu.memref_slice %arg4[%c0_i32_342] : memref<1x!tpu.dma_semaphore, #tpu.memory_space<semaphore_mem>> -> memref<1x!tpu.dma_semaphore, #tpu.memory_space<semaphore_mem>>
    %574 = tpu.memref_squeeze %573 : memref<1x!tpu.dma_semaphore, #tpu.memory_space<semaphore_mem>> -> memref<!tpu.dma_semaphore, #tpu.memory_space<semaphore_mem>>
    tpu.wait_dma2 semaphore(%574 : memref<!tpu.dma_semaphore, #tpu.memory_space<semaphore_mem>>) src(%571 : memref<1x128xf32, #tpu.memory_space<any>>) dst(%572 : memref<1x128xf32, #tpu.memory_space<vmem>>)
    %c18_i32_346 = arith.constant 18 : i32
    %575 = arith.addi %0, %c18_i32_346 : i32
    %576 = arith.index_cast %575 : i32 to index
    %577 = memref.load %arg1[%576] : memref<64xi32, #tpu.memory_space<smem>>
    %c0_i32_347 = arith.constant 0 : i32
    %c0_i32_348 = arith.constant 0 : i32
    %578 = tpu.memref_slice %arg2[%577, %c0_i32_348] : memref<64x128xf32, #tpu.memory_space<any>> -> memref<1x128xf32, #tpu.memory_space<any>>
    %c18_i32_349 = arith.constant 18 : i32
    %c0_i32_350 = arith.constant 0 : i32
    %579 = tpu.memref_slice %arg3[%c18_i32_349, %c0_i32_350] : memref<64x128xf32, #tpu.memory_space<vmem>> -> memref<1x128xf32, #tpu.memory_space<vmem>>
    %580 = tpu.memref_slice %arg4[%c0_i32_347] : memref<1x!tpu.dma_semaphore, #tpu.memory_space<semaphore_mem>> -> memref<1x!tpu.dma_semaphore, #tpu.memory_space<semaphore_mem>>
    %581 = tpu.memref_squeeze %580 : memref<1x!tpu.dma_semaphore, #tpu.memory_space<semaphore_mem>> -> memref<!tpu.dma_semaphore, #tpu.memory_space<semaphore_mem>>
    tpu.wait_dma2 semaphore(%581 : memref<!tpu.dma_semaphore, #tpu.memory_space<semaphore_mem>>) src(%578 : memref<1x128xf32, #tpu.memory_space<any>>) dst(%579 : memref<1x128xf32, #tpu.memory_space<vmem>>)
    %c19_i32_351 = arith.constant 19 : i32
    %582 = arith.addi %0, %c19_i32_351 : i32
    %583 = arith.index_cast %582 : i32 to index
    %584 = memref.load %arg1[%583] : memref<64xi32, #tpu.memory_space<smem>>
    %c0_i32_352 = arith.constant 0 : i32
    %c0_i32_353 = arith.constant 0 : i32
    %585 = tpu.memref_slice %arg2[%584, %c0_i32_353] : memref<64x128xf32, #tpu.memory_space<any>> -> memref<1x128xf32, #tpu.memory_space<any>>
    %c19_i32_354 = arith.constant 19 : i32
    %c0_i32_355 = arith.constant 0 : i32
    %586 = tpu.memref_slice %arg3[%c19_i32_354, %c0_i32_355] : memref<64x128xf32, #tpu.memory_space<vmem>> -> memref<1x128xf32, #tpu.memory_space<vmem>>
    %587 = tpu.memref_slice %arg4[%c0_i32_352] : memref<1x!tpu.dma_semaphore, #tpu.memory_space<semaphore_mem>> -> memref<1x!tpu.dma_semaphore, #tpu.memory_space<semaphore_mem>>
    %588 = tpu.memref_squeeze %587 : memref<1x!tpu.dma_semaphore, #tpu.memory_space<semaphore_mem>> -> memref<!tpu.dma_semaphore, #tpu.memory_space<semaphore_mem>>
    tpu.wait_dma2 semaphore(%588 : memref<!tpu.dma_semaphore, #tpu.memory_space<semaphore_mem>>) src(%585 : memref<1x128xf32, #tpu.memory_space<any>>) dst(%586 : memref<1x128xf32, #tpu.memory_space<vmem>>)
    %c20_i32_356 = arith.constant 20 : i32
    %589 = arith.addi %0, %c20_i32_356 : i32
    %590 = arith.index_cast %589 : i32 to index
    %591 = memref.load %arg1[%590] : memref<64xi32, #tpu.memory_space<smem>>
    %c0_i32_357 = arith.constant 0 : i32
    %c0_i32_358 = arith.constant 0 : i32
    %592 = tpu.memref_slice %arg2[%591, %c0_i32_358] : memref<64x128xf32, #tpu.memory_space<any>> -> memref<1x128xf32, #tpu.memory_space<any>>
    %c20_i32_359 = arith.constant 20 : i32
    %c0_i32_360 = arith.constant 0 : i32
    %593 = tpu.memref_slice %arg3[%c20_i32_359, %c0_i32_360] : memref<64x128xf32, #tpu.memory_space<vmem>> -> memref<1x128xf32, #tpu.memory_space<vmem>>
    %594 = tpu.memref_slice %arg4[%c0_i32_357] : memref<1x!tpu.dma_semaphore, #tpu.memory_space<semaphore_mem>> -> memref<1x!tpu.dma_semaphore, #tpu.memory_space<semaphore_mem>>
    %595 = tpu.memref_squeeze %594 : memref<1x!tpu.dma_semaphore, #tpu.memory_space<semaphore_mem>> -> memref<!tpu.dma_semaphore, #tpu.memory_space<semaphore_mem>>
    tpu.wait_dma2 semaphore(%595 : memref<!tpu.dma_semaphore, #tpu.memory_space<semaphore_mem>>) src(%592 : memref<1x128xf32, #tpu.memory_space<any>>) dst(%593 : memref<1x128xf32, #tpu.memory_space<vmem>>)
    %c21_i32_361 = arith.constant 21 : i32
    %596 = arith.addi %0, %c21_i32_361 : i32
    %597 = arith.index_cast %596 : i32 to index
    %598 = memref.load %arg1[%597] : memref<64xi32, #tpu.memory_space<smem>>
    %c0_i32_362 = arith.constant 0 : i32
    %c0_i32_363 = arith.constant 0 : i32
    %599 = tpu.memref_slice %arg2[%598, %c0_i32_363] : memref<64x128xf32, #tpu.memory_space<any>> -> memref<1x128xf32, #tpu.memory_space<any>>
    %c21_i32_364 = arith.constant 21 : i32
    %c0_i32_365 = arith.constant 0 : i32
    %600 = tpu.memref_slice %arg3[%c21_i32_364, %c0_i32_365] : memref<64x128xf32, #tpu.memory_space<vmem>> -> memref<1x128xf32, #tpu.memory_space<vmem>>
    %601 = tpu.memref_slice %arg4[%c0_i32_362] : memref<1x!tpu.dma_semaphore, #tpu.memory_space<semaphore_mem>> -> memref<1x!tpu.dma_semaphore, #tpu.memory_space<semaphore_mem>>
    %602 = tpu.memref_squeeze %601 : memref<1x!tpu.dma_semaphore, #tpu.memory_space<semaphore_mem>> -> memref<!tpu.dma_semaphore, #tpu.memory_space<semaphore_mem>>
    tpu.wait_dma2 semaphore(%602 : memref<!tpu.dma_semaphore, #tpu.memory_space<semaphore_mem>>) src(%599 : memref<1x128xf32, #tpu.memory_space<any>>) dst(%600 : memref<1x128xf32, #tpu.memory_space<vmem>>)
    %c22_i32_366 = arith.constant 22 : i32
    %603 = arith.addi %0, %c22_i32_366 : i32
    %604 = arith.index_cast %603 : i32 to index
    %605 = memref.load %arg1[%604] : memref<64xi32, #tpu.memory_space<smem>>
    %c0_i32_367 = arith.constant 0 : i32
    %c0_i32_368 = arith.constant 0 : i32
    %606 = tpu.memref_slice %arg2[%605, %c0_i32_368] : memref<64x128xf32, #tpu.memory_space<any>> -> memref<1x128xf32, #tpu.memory_space<any>>
    %c22_i32_369 = arith.constant 22 : i32
    %c0_i32_370 = arith.constant 0 : i32
    %607 = tpu.memref_slice %arg3[%c22_i32_369, %c0_i32_370] : memref<64x128xf32, #tpu.memory_space<vmem>> -> memref<1x128xf32, #tpu.memory_space<vmem>>
    %608 = tpu.memref_slice %arg4[%c0_i32_367] : memref<1x!tpu.dma_semaphore, #tpu.memory_space<semaphore_mem>> -> memref<1x!tpu.dma_semaphore, #tpu.memory_space<semaphore_mem>>
    %609 = tpu.memref_squeeze %608 : memref<1x!tpu.dma_semaphore, #tpu.memory_space<semaphore_mem>> -> memref<!tpu.dma_semaphore, #tpu.memory_space<semaphore_mem>>
    tpu.wait_dma2 semaphore(%609 : memref<!tpu.dma_semaphore, #tpu.memory_space<semaphore_mem>>) src(%606 : memref<1x128xf32, #tpu.memory_space<any>>) dst(%607 : memref<1x128xf32, #tpu.memory_space<vmem>>)
    %c23_i32_371 = arith.constant 23 : i32
    %610 = arith.addi %0, %c23_i32_371 : i32
    %611 = arith.index_cast %610 : i32 to index
    %612 = memref.load %arg1[%611] : memref<64xi32, #tpu.memory_space<smem>>
    %c0_i32_372 = arith.constant 0 : i32
    %c0_i32_373 = arith.constant 0 : i32
    %613 = tpu.memref_slice %arg2[%612, %c0_i32_373] : memref<64x128xf32, #tpu.memory_space<any>> -> memref<1x128xf32, #tpu.memory_space<any>>
    %c23_i32_374 = arith.constant 23 : i32
    %c0_i32_375 = arith.constant 0 : i32
    %614 = tpu.memref_slice %arg3[%c23_i32_374, %c0_i32_375] : memref<64x128xf32, #tpu.memory_space<vmem>> -> memref<1x128xf32, #tpu.memory_space<vmem>>
    %615 = tpu.memref_slice %arg4[%c0_i32_372] : memref<1x!tpu.dma_semaphore, #tpu.memory_space<semaphore_mem>> -> memref<1x!tpu.dma_semaphore, #tpu.memory_space<semaphore_mem>>
    %616 = tpu.memref_squeeze %615 : memref<1x!tpu.dma_semaphore, #tpu.memory_space<semaphore_mem>> -> memref<!tpu.dma_semaphore, #tpu.memory_space<semaphore_mem>>
    tpu.wait_dma2 semaphore(%616 : memref<!tpu.dma_semaphore, #tpu.memory_space<semaphore_mem>>) src(%613 : memref<1x128xf32, #tpu.memory_space<any>>) dst(%614 : memref<1x128xf32, #tpu.memory_space<vmem>>)
    %c24_i32_376 = arith.constant 24 : i32
    %617 = arith.addi %0, %c24_i32_376 : i32
    %618 = arith.index_cast %617 : i32 to index
    %619 = memref.load %arg1[%618] : memref<64xi32, #tpu.memory_space<smem>>
    %c0_i32_377 = arith.constant 0 : i32
    %c0_i32_378 = arith.constant 0 : i32
    %620 = tpu.memref_slice %arg2[%619, %c0_i32_378] : memref<64x128xf32, #tpu.memory_space<any>> -> memref<1x128xf32, #tpu.memory_space<any>>
    %c24_i32_379 = arith.constant 24 : i32
    %c0_i32_380 = arith.constant 0 : i32
    %621 = tpu.memref_slice %arg3[%c24_i32_379, %c0_i32_380] : memref<64x128xf32, #tpu.memory_space<vmem>> -> memref<1x128xf32, #tpu.memory_space<vmem>>
    %622 = tpu.memref_slice %arg4[%c0_i32_377] : memref<1x!tpu.dma_semaphore, #tpu.memory_space<semaphore_mem>> -> memref<1x!tpu.dma_semaphore, #tpu.memory_space<semaphore_mem>>
    %623 = tpu.memref_squeeze %622 : memref<1x!tpu.dma_semaphore, #tpu.memory_space<semaphore_mem>> -> memref<!tpu.dma_semaphore, #tpu.memory_space<semaphore_mem>>
    tpu.wait_dma2 semaphore(%623 : memref<!tpu.dma_semaphore, #tpu.memory_space<semaphore_mem>>) src(%620 : memref<1x128xf32, #tpu.memory_space<any>>) dst(%621 : memref<1x128xf32, #tpu.memory_space<vmem>>)
    %c25_i32_381 = arith.constant 25 : i32
    %624 = arith.addi %0, %c25_i32_381 : i32
    %625 = arith.index_cast %624 : i32 to index
    %626 = memref.load %arg1[%625] : memref<64xi32, #tpu.memory_space<smem>>
    %c0_i32_382 = arith.constant 0 : i32
    %c0_i32_383 = arith.constant 0 : i32
    %627 = tpu.memref_slice %arg2[%626, %c0_i32_383] : memref<64x128xf32, #tpu.memory_space<any>> -> memref<1x128xf32, #tpu.memory_space<any>>
    %c25_i32_384 = arith.constant 25 : i32
    %c0_i32_385 = arith.constant 0 : i32
    %628 = tpu.memref_slice %arg3[%c25_i32_384, %c0_i32_385] : memref<64x128xf32, #tpu.memory_space<vmem>> -> memref<1x128xf32, #tpu.memory_space<vmem>>
    %629 = tpu.memref_slice %arg4[%c0_i32_382] : memref<1x!tpu.dma_semaphore, #tpu.memory_space<semaphore_mem>> -> memref<1x!tpu.dma_semaphore, #tpu.memory_space<semaphore_mem>>
    %630 = tpu.memref_squeeze %629 : memref<1x!tpu.dma_semaphore, #tpu.memory_space<semaphore_mem>> -> memref<!tpu.dma_semaphore, #tpu.memory_space<semaphore_mem>>
    tpu.wait_dma2 semaphore(%630 : memref<!tpu.dma_semaphore, #tpu.memory_space<semaphore_mem>>) src(%627 : memref<1x128xf32, #tpu.memory_space<any>>) dst(%628 : memref<1x128xf32, #tpu.memory_space<vmem>>)
    %c26_i32_386 = arith.constant 26 : i32
    %631 = arith.addi %0, %c26_i32_386 : i32
    %632 = arith.index_cast %631 : i32 to index
    %633 = memref.load %arg1[%632] : memref<64xi32, #tpu.memory_space<smem>>
    %c0_i32_387 = arith.constant 0 : i32
    %c0_i32_388 = arith.constant 0 : i32
    %634 = tpu.memref_slice %arg2[%633, %c0_i32_388] : memref<64x128xf32, #tpu.memory_space<any>> -> memref<1x128xf32, #tpu.memory_space<any>>
    %c26_i32_389 = arith.constant 26 : i32
    %c0_i32_390 = arith.constant 0 : i32
    %635 = tpu.memref_slice %arg3[%c26_i32_389, %c0_i32_390] : memref<64x128xf32, #tpu.memory_space<vmem>> -> memref<1x128xf32, #tpu.memory_space<vmem>>
    %636 = tpu.memref_slice %arg4[%c0_i32_387] : memref<1x!tpu.dma_semaphore, #tpu.memory_space<semaphore_mem>> -> memref<1x!tpu.dma_semaphore, #tpu.memory_space<semaphore_mem>>
    %637 = tpu.memref_squeeze %636 : memref<1x!tpu.dma_semaphore, #tpu.memory_space<semaphore_mem>> -> memref<!tpu.dma_semaphore, #tpu.memory_space<semaphore_mem>>
    tpu.wait_dma2 semaphore(%637 : memref<!tpu.dma_semaphore, #tpu.memory_space<semaphore_mem>>) src(%634 : memref<1x128xf32, #tpu.memory_space<any>>) dst(%635 : memref<1x128xf32, #tpu.memory_space<vmem>>)
    %c27_i32_391 = arith.constant 27 : i32
    %638 = arith.addi %0, %c27_i32_391 : i32
    %639 = arith.index_cast %638 : i32 to index
    %640 = memref.load %arg1[%639] : memref<64xi32, #tpu.memory_space<smem>>
    %c0_i32_392 = arith.constant 0 : i32
    %c0_i32_393 = arith.constant 0 : i32
    %641 = tpu.memref_slice %arg2[%640, %c0_i32_393] : memref<64x128xf32, #tpu.memory_space<any>> -> memref<1x128xf32, #tpu.memory_space<any>>
    %c27_i32_394 = arith.constant 27 : i32
    %c0_i32_395 = arith.constant 0 : i32
    %642 = tpu.memref_slice %arg3[%c27_i32_394, %c0_i32_395] : memref<64x128xf32, #tpu.memory_space<vmem>> -> memref<1x128xf32, #tpu.memory_space<vmem>>
    %643 = tpu.memref_slice %arg4[%c0_i32_392] : memref<1x!tpu.dma_semaphore, #tpu.memory_space<semaphore_mem>> -> memref<1x!tpu.dma_semaphore, #tpu.memory_space<semaphore_mem>>
    %644 = tpu.memref_squeeze %643 : memref<1x!tpu.dma_semaphore, #tpu.memory_space<semaphore_mem>> -> memref<!tpu.dma_semaphore, #tpu.memory_space<semaphore_mem>>
    tpu.wait_dma2 semaphore(%644 : memref<!tpu.dma_semaphore, #tpu.memory_space<semaphore_mem>>) src(%641 : memref<1x128xf32, #tpu.memory_space<any>>) dst(%642 : memref<1x128xf32, #tpu.memory_space<vmem>>)
    %c28_i32_396 = arith.constant 28 : i32
    %645 = arith.addi %0, %c28_i32_396 : i32
    %646 = arith.index_cast %645 : i32 to index
    %647 = memref.load %arg1[%646] : memref<64xi32, #tpu.memory_space<smem>>
    %c0_i32_397 = arith.constant 0 : i32
    %c0_i32_398 = arith.constant 0 : i32
    %648 = tpu.memref_slice %arg2[%647, %c0_i32_398] : memref<64x128xf32, #tpu.memory_space<any>> -> memref<1x128xf32, #tpu.memory_space<any>>
    %c28_i32_399 = arith.constant 28 : i32
    %c0_i32_400 = arith.constant 0 : i32
    %649 = tpu.memref_slice %arg3[%c28_i32_399, %c0_i32_400] : memref<64x128xf32, #tpu.memory_space<vmem>> -> memref<1x128xf32, #tpu.memory_space<vmem>>
    %650 = tpu.memref_slice %arg4[%c0_i32_397] : memref<1x!tpu.dma_semaphore, #tpu.memory_space<semaphore_mem>> -> memref<1x!tpu.dma_semaphore, #tpu.memory_space<semaphore_mem>>
    %651 = tpu.memref_squeeze %650 : memref<1x!tpu.dma_semaphore, #tpu.memory_space<semaphore_mem>> -> memref<!tpu.dma_semaphore, #tpu.memory_space<semaphore_mem>>
    tpu.wait_dma2 semaphore(%651 : memref<!tpu.dma_semaphore, #tpu.memory_space<semaphore_mem>>) src(%648 : memref<1x128xf32, #tpu.memory_space<any>>) dst(%649 : memref<1x128xf32, #tpu.memory_space<vmem>>)
    %c29_i32_401 = arith.constant 29 : i32
    %652 = arith.addi %0, %c29_i32_401 : i32
    %653 = arith.index_cast %652 : i32 to index
    %654 = memref.load %arg1[%653] : memref<64xi32, #tpu.memory_space<smem>>
    %c0_i32_402 = arith.constant 0 : i32
    %c0_i32_403 = arith.constant 0 : i32
    %655 = tpu.memref_slice %arg2[%654, %c0_i32_403] : memref<64x128xf32, #tpu.memory_space<any>> -> memref<1x128xf32, #tpu.memory_space<any>>
    %c29_i32_404 = arith.constant 29 : i32
    %c0_i32_405 = arith.constant 0 : i32
    %656 = tpu.memref_slice %arg3[%c29_i32_404, %c0_i32_405] : memref<64x128xf32, #tpu.memory_space<vmem>> -> memref<1x128xf32, #tpu.memory_space<vmem>>
    %657 = tpu.memref_slice %arg4[%c0_i32_402] : memref<1x!tpu.dma_semaphore, #tpu.memory_space<semaphore_mem>> -> memref<1x!tpu.dma_semaphore, #tpu.memory_space<semaphore_mem>>
    %658 = tpu.memref_squeeze %657 : memref<1x!tpu.dma_semaphore, #tpu.memory_space<semaphore_mem>> -> memref<!tpu.dma_semaphore, #tpu.memory_space<semaphore_mem>>
    tpu.wait_dma2 semaphore(%658 : memref<!tpu.dma_semaphore, #tpu.memory_space<semaphore_mem>>) src(%655 : memref<1x128xf32, #tpu.memory_space<any>>) dst(%656 : memref<1x128xf32, #tpu.memory_space<vmem>>)
    %c30_i32_406 = arith.constant 30 : i32
    %659 = arith.addi %0, %c30_i32_406 : i32
    %660 = arith.index_cast %659 : i32 to index
    %661 = memref.load %arg1[%660] : memref<64xi32, #tpu.memory_space<smem>>
    %c0_i32_407 = arith.constant 0 : i32
    %c0_i32_408 = arith.constant 0 : i32
    %662 = tpu.memref_slice %arg2[%661, %c0_i32_408] : memref<64x128xf32, #tpu.memory_space<any>> -> memref<1x128xf32, #tpu.memory_space<any>>
    %c30_i32_409 = arith.constant 30 : i32
    %c0_i32_410 = arith.constant 0 : i32
    %663 = tpu.memref_slice %arg3[%c30_i32_409, %c0_i32_410] : memref<64x128xf32, #tpu.memory_space<vmem>> -> memref<1x128xf32, #tpu.memory_space<vmem>>
    %664 = tpu.memref_slice %arg4[%c0_i32_407] : memref<1x!tpu.dma_semaphore, #tpu.memory_space<semaphore_mem>> -> memref<1x!tpu.dma_semaphore, #tpu.memory_space<semaphore_mem>>
    %665 = tpu.memref_squeeze %664 : memref<1x!tpu.dma_semaphore, #tpu.memory_space<semaphore_mem>> -> memref<!tpu.dma_semaphore, #tpu.memory_space<semaphore_mem>>
    tpu.wait_dma2 semaphore(%665 : memref<!tpu.dma_semaphore, #tpu.memory_space<semaphore_mem>>) src(%662 : memref<1x128xf32, #tpu.memory_space<any>>) dst(%663 : memref<1x128xf32, #tpu.memory_space<vmem>>)
    %c31_i32_411 = arith.constant 31 : i32
    %666 = arith.addi %0, %c31_i32_411 : i32
    %667 = arith.index_cast %666 : i32 to index
    %668 = memref.load %arg1[%667] : memref<64xi32, #tpu.memory_space<smem>>
    %c0_i32_412 = arith.constant 0 : i32
    %c0_i32_413 = arith.constant 0 : i32
    %669 = tpu.memref_slice %arg2[%668, %c0_i32_413] : memref<64x128xf32, #tpu.memory_space<any>> -> memref<1x128xf32, #tpu.memory_space<any>>
    %c31_i32_414 = arith.constant 31 : i32
    %c0_i32_415 = arith.constant 0 : i32
    %670 = tpu.memref_slice %arg3[%c31_i32_414, %c0_i32_415] : memref<64x128xf32, #tpu.memory_space<vmem>> -> memref<1x128xf32, #tpu.memory_space<vmem>>
    %671 = tpu.memref_slice %arg4[%c0_i32_412] : memref<1x!tpu.dma_semaphore, #tpu.memory_space<semaphore_mem>> -> memref<1x!tpu.dma_semaphore, #tpu.memory_space<semaphore_mem>>
    %672 = tpu.memref_squeeze %671 : memref<1x!tpu.dma_semaphore, #tpu.memory_space<semaphore_mem>> -> memref<!tpu.dma_semaphore, #tpu.memory_space<semaphore_mem>>
    tpu.wait_dma2 semaphore(%672 : memref<!tpu.dma_semaphore, #tpu.memory_space<semaphore_mem>>) src(%669 : memref<1x128xf32, #tpu.memory_space<any>>) dst(%670 : memref<1x128xf32, #tpu.memory_space<vmem>>)
    %c32_i32_416 = arith.constant 32 : i32
    %673 = arith.addi %0, %c32_i32_416 : i32
    %674 = arith.index_cast %673 : i32 to index
    %675 = memref.load %arg1[%674] : memref<64xi32, #tpu.memory_space<smem>>
    %c0_i32_417 = arith.constant 0 : i32
    %c0_i32_418 = arith.constant 0 : i32
    %676 = tpu.memref_slice %arg2[%675, %c0_i32_418] : memref<64x128xf32, #tpu.memory_space<any>> -> memref<1x128xf32, #tpu.memory_space<any>>
    %c32_i32_419 = arith.constant 32 : i32
    %c0_i32_420 = arith.constant 0 : i32
    %677 = tpu.memref_slice %arg3[%c32_i32_419, %c0_i32_420] : memref<64x128xf32, #tpu.memory_space<vmem>> -> memref<1x128xf32, #tpu.memory_space<vmem>>
    %678 = tpu.memref_slice %arg4[%c0_i32_417] : memref<1x!tpu.dma_semaphore, #tpu.memory_space<semaphore_mem>> -> memref<1x!tpu.dma_semaphore, #tpu.memory_space<semaphore_mem>>
    %679 = tpu.memref_squeeze %678 : memref<1x!tpu.dma_semaphore, #tpu.memory_space<semaphore_mem>> -> memref<!tpu.dma_semaphore, #tpu.memory_space<semaphore_mem>>
    tpu.wait_dma2 semaphore(%679 : memref<!tpu.dma_semaphore, #tpu.memory_space<semaphore_mem>>) src(%676 : memref<1x128xf32, #tpu.memory_space<any>>) dst(%677 : memref<1x128xf32, #tpu.memory_space<vmem>>)
    %c33_i32_421 = arith.constant 33 : i32
    %680 = arith.addi %0, %c33_i32_421 : i32
    %681 = arith.index_cast %680 : i32 to index
    %682 = memref.load %arg1[%681] : memref<64xi32, #tpu.memory_space<smem>>
    %c0_i32_422 = arith.constant 0 : i32
    %c0_i32_423 = arith.constant 0 : i32
    %683 = tpu.memref_slice %arg2[%682, %c0_i32_423] : memref<64x128xf32, #tpu.memory_space<any>> -> memref<1x128xf32, #tpu.memory_space<any>>
    %c33_i32_424 = arith.constant 33 : i32
    %c0_i32_425 = arith.constant 0 : i32
    %684 = tpu.memref_slice %arg3[%c33_i32_424, %c0_i32_425] : memref<64x128xf32, #tpu.memory_space<vmem>> -> memref<1x128xf32, #tpu.memory_space<vmem>>
    %685 = tpu.memref_slice %arg4[%c0_i32_422] : memref<1x!tpu.dma_semaphore, #tpu.memory_space<semaphore_mem>> -> memref<1x!tpu.dma_semaphore, #tpu.memory_space<semaphore_mem>>
    %686 = tpu.memref_squeeze %685 : memref<1x!tpu.dma_semaphore, #tpu.memory_space<semaphore_mem>> -> memref<!tpu.dma_semaphore, #tpu.memory_space<semaphore_mem>>
    tpu.wait_dma2 semaphore(%686 : memref<!tpu.dma_semaphore, #tpu.memory_space<semaphore_mem>>) src(%683 : memref<1x128xf32, #tpu.memory_space<any>>) dst(%684 : memref<1x128xf32, #tpu.memory_space<vmem>>)
    %c34_i32_426 = arith.constant 34 : i32
    %687 = arith.addi %0, %c34_i32_426 : i32
    %688 = arith.index_cast %687 : i32 to index
    %689 = memref.load %arg1[%688] : memref<64xi32, #tpu.memory_space<smem>>
    %c0_i32_427 = arith.constant 0 : i32
    %c0_i32_428 = arith.constant 0 : i32
    %690 = tpu.memref_slice %arg2[%689, %c0_i32_428] : memref<64x128xf32, #tpu.memory_space<any>> -> memref<1x128xf32, #tpu.memory_space<any>>
    %c34_i32_429 = arith.constant 34 : i32
    %c0_i32_430 = arith.constant 0 : i32
    %691 = tpu.memref_slice %arg3[%c34_i32_429, %c0_i32_430] : memref<64x128xf32, #tpu.memory_space<vmem>> -> memref<1x128xf32, #tpu.memory_space<vmem>>
    %692 = tpu.memref_slice %arg4[%c0_i32_427] : memref<1x!tpu.dma_semaphore, #tpu.memory_space<semaphore_mem>> -> memref<1x!tpu.dma_semaphore, #tpu.memory_space<semaphore_mem>>
    %693 = tpu.memref_squeeze %692 : memref<1x!tpu.dma_semaphore, #tpu.memory_space<semaphore_mem>> -> memref<!tpu.dma_semaphore, #tpu.memory_space<semaphore_mem>>
    tpu.wait_dma2 semaphore(%693 : memref<!tpu.dma_semaphore, #tpu.memory_space<semaphore_mem>>) src(%690 : memref<1x128xf32, #tpu.memory_space<any>>) dst(%691 : memref<1x128xf32, #tpu.memory_space<vmem>>)
    %c35_i32_431 = arith.constant 35 : i32
    %694 = arith.addi %0, %c35_i32_431 : i32
    %695 = arith.index_cast %694 : i32 to index
    %696 = memref.load %arg1[%695] : memref<64xi32, #tpu.memory_space<smem>>
    %c0_i32_432 = arith.constant 0 : i32
    %c0_i32_433 = arith.constant 0 : i32
    %697 = tpu.memref_slice %arg2[%696, %c0_i32_433] : memref<64x128xf32, #tpu.memory_space<any>> -> memref<1x128xf32, #tpu.memory_space<any>>
    %c35_i32_434 = arith.constant 35 : i32
    %c0_i32_435 = arith.constant 0 : i32
    %698 = tpu.memref_slice %arg3[%c35_i32_434, %c0_i32_435] : memref<64x128xf32, #tpu.memory_space<vmem>> -> memref<1x128xf32, #tpu.memory_space<vmem>>
    %699 = tpu.memref_slice %arg4[%c0_i32_432] : memref<1x!tpu.dma_semaphore, #tpu.memory_space<semaphore_mem>> -> memref<1x!tpu.dma_semaphore, #tpu.memory_space<semaphore_mem>>
    %700 = tpu.memref_squeeze %699 : memref<1x!tpu.dma_semaphore, #tpu.memory_space<semaphore_mem>> -> memref<!tpu.dma_semaphore, #tpu.memory_space<semaphore_mem>>
    tpu.wait_dma2 semaphore(%700 : memref<!tpu.dma_semaphore, #tpu.memory_space<semaphore_mem>>) src(%697 : memref<1x128xf32, #tpu.memory_space<any>>) dst(%698 : memref<1x128xf32, #tpu.memory_space<vmem>>)
    %c36_i32_436 = arith.constant 36 : i32
    %701 = arith.addi %0, %c36_i32_436 : i32
    %702 = arith.index_cast %701 : i32 to index
    %703 = memref.load %arg1[%702] : memref<64xi32, #tpu.memory_space<smem>>
    %c0_i32_437 = arith.constant 0 : i32
    %c0_i32_438 = arith.constant 0 : i32
    %704 = tpu.memref_slice %arg2[%703, %c0_i32_438] : memref<64x128xf32, #tpu.memory_space<any>> -> memref<1x128xf32, #tpu.memory_space<any>>
    %c36_i32_439 = arith.constant 36 : i32
    %c0_i32_440 = arith.constant 0 : i32
    %705 = tpu.memref_slice %arg3[%c36_i32_439, %c0_i32_440] : memref<64x128xf32, #tpu.memory_space<vmem>> -> memref<1x128xf32, #tpu.memory_space<vmem>>
    %706 = tpu.memref_slice %arg4[%c0_i32_437] : memref<1x!tpu.dma_semaphore, #tpu.memory_space<semaphore_mem>> -> memref<1x!tpu.dma_semaphore, #tpu.memory_space<semaphore_mem>>
    %707 = tpu.memref_squeeze %706 : memref<1x!tpu.dma_semaphore, #tpu.memory_space<semaphore_mem>> -> memref<!tpu.dma_semaphore, #tpu.memory_space<semaphore_mem>>
    tpu.wait_dma2 semaphore(%707 : memref<!tpu.dma_semaphore, #tpu.memory_space<semaphore_mem>>) src(%704 : memref<1x128xf32, #tpu.memory_space<any>>) dst(%705 : memref<1x128xf32, #tpu.memory_space<vmem>>)
    %c37_i32_441 = arith.constant 37 : i32
    %708 = arith.addi %0, %c37_i32_441 : i32
    %709 = arith.index_cast %708 : i32 to index
    %710 = memref.load %arg1[%709] : memref<64xi32, #tpu.memory_space<smem>>
    %c0_i32_442 = arith.constant 0 : i32
    %c0_i32_443 = arith.constant 0 : i32
    %711 = tpu.memref_slice %arg2[%710, %c0_i32_443] : memref<64x128xf32, #tpu.memory_space<any>> -> memref<1x128xf32, #tpu.memory_space<any>>
    %c37_i32_444 = arith.constant 37 : i32
    %c0_i32_445 = arith.constant 0 : i32
    %712 = tpu.memref_slice %arg3[%c37_i32_444, %c0_i32_445] : memref<64x128xf32, #tpu.memory_space<vmem>> -> memref<1x128xf32, #tpu.memory_space<vmem>>
    %713 = tpu.memref_slice %arg4[%c0_i32_442] : memref<1x!tpu.dma_semaphore, #tpu.memory_space<semaphore_mem>> -> memref<1x!tpu.dma_semaphore, #tpu.memory_space<semaphore_mem>>
    %714 = tpu.memref_squeeze %713 : memref<1x!tpu.dma_semaphore, #tpu.memory_space<semaphore_mem>> -> memref<!tpu.dma_semaphore, #tpu.memory_space<semaphore_mem>>
    tpu.wait_dma2 semaphore(%714 : memref<!tpu.dma_semaphore, #tpu.memory_space<semaphore_mem>>) src(%711 : memref<1x128xf32, #tpu.memory_space<any>>) dst(%712 : memref<1x128xf32, #tpu.memory_space<vmem>>)
    %c38_i32_446 = arith.constant 38 : i32
    %715 = arith.addi %0, %c38_i32_446 : i32
    %716 = arith.index_cast %715 : i32 to index
    %717 = memref.load %arg1[%716] : memref<64xi32, #tpu.memory_space<smem>>
    %c0_i32_447 = arith.constant 0 : i32
    %c0_i32_448 = arith.constant 0 : i32
    %718 = tpu.memref_slice %arg2[%717, %c0_i32_448] : memref<64x128xf32, #tpu.memory_space<any>> -> memref<1x128xf32, #tpu.memory_space<any>>
    %c38_i32_449 = arith.constant 38 : i32
    %c0_i32_450 = arith.constant 0 : i32
    %719 = tpu.memref_slice %arg3[%c38_i32_449, %c0_i32_450] : memref<64x128xf32, #tpu.memory_space<vmem>> -> memref<1x128xf32, #tpu.memory_space<vmem>>
    %720 = tpu.memref_slice %arg4[%c0_i32_447] : memref<1x!tpu.dma_semaphore, #tpu.memory_space<semaphore_mem>> -> memref<1x!tpu.dma_semaphore, #tpu.memory_space<semaphore_mem>>
    %721 = tpu.memref_squeeze %720 : memref<1x!tpu.dma_semaphore, #tpu.memory_space<semaphore_mem>> -> memref<!tpu.dma_semaphore, #tpu.memory_space<semaphore_mem>>
    tpu.wait_dma2 semaphore(%721 : memref<!tpu.dma_semaphore, #tpu.memory_space<semaphore_mem>>) src(%718 : memref<1x128xf32, #tpu.memory_space<any>>) dst(%719 : memref<1x128xf32, #tpu.memory_space<vmem>>)
    %c39_i32_451 = arith.constant 39 : i32
    %722 = arith.addi %0, %c39_i32_451 : i32
    %723 = arith.index_cast %722 : i32 to index
    %724 = memref.load %arg1[%723] : memref<64xi32, #tpu.memory_space<smem>>
    %c0_i32_452 = arith.constant 0 : i32
    %c0_i32_453 = arith.constant 0 : i32
    %725 = tpu.memref_slice %arg2[%724, %c0_i32_453] : memref<64x128xf32, #tpu.memory_space<any>> -> memref<1x128xf32, #tpu.memory_space<any>>
    %c39_i32_454 = arith.constant 39 : i32
    %c0_i32_455 = arith.constant 0 : i32
    %726 = tpu.memref_slice %arg3[%c39_i32_454, %c0_i32_455] : memref<64x128xf32, #tpu.memory_space<vmem>> -> memref<1x128xf32, #tpu.memory_space<vmem>>
    %727 = tpu.memref_slice %arg4[%c0_i32_452] : memref<1x!tpu.dma_semaphore, #tpu.memory_space<semaphore_mem>> -> memref<1x!tpu.dma_semaphore, #tpu.memory_space<semaphore_mem>>
    %728 = tpu.memref_squeeze %727 : memref<1x!tpu.dma_semaphore, #tpu.memory_space<semaphore_mem>> -> memref<!tpu.dma_semaphore, #tpu.memory_space<semaphore_mem>>
    tpu.wait_dma2 semaphore(%728 : memref<!tpu.dma_semaphore, #tpu.memory_space<semaphore_mem>>) src(%725 : memref<1x128xf32, #tpu.memory_space<any>>) dst(%726 : memref<1x128xf32, #tpu.memory_space<vmem>>)
    %c40_i32_456 = arith.constant 40 : i32
    %729 = arith.addi %0, %c40_i32_456 : i32
    %730 = arith.index_cast %729 : i32 to index
    %731 = memref.load %arg1[%730] : memref<64xi32, #tpu.memory_space<smem>>
    %c0_i32_457 = arith.constant 0 : i32
    %c0_i32_458 = arith.constant 0 : i32
    %732 = tpu.memref_slice %arg2[%731, %c0_i32_458] : memref<64x128xf32, #tpu.memory_space<any>> -> memref<1x128xf32, #tpu.memory_space<any>>
    %c40_i32_459 = arith.constant 40 : i32
    %c0_i32_460 = arith.constant 0 : i32
    %733 = tpu.memref_slice %arg3[%c40_i32_459, %c0_i32_460] : memref<64x128xf32, #tpu.memory_space<vmem>> -> memref<1x128xf32, #tpu.memory_space<vmem>>
    %734 = tpu.memref_slice %arg4[%c0_i32_457] : memref<1x!tpu.dma_semaphore, #tpu.memory_space<semaphore_mem>> -> memref<1x!tpu.dma_semaphore, #tpu.memory_space<semaphore_mem>>
    %735 = tpu.memref_squeeze %734 : memref<1x!tpu.dma_semaphore, #tpu.memory_space<semaphore_mem>> -> memref<!tpu.dma_semaphore, #tpu.memory_space<semaphore_mem>>
    tpu.wait_dma2 semaphore(%735 : memref<!tpu.dma_semaphore, #tpu.memory_space<semaphore_mem>>) src(%732 : memref<1x128xf32, #tpu.memory_space<any>>) dst(%733 : memref<1x128xf32, #tpu.memory_space<vmem>>)
    %c41_i32_461 = arith.constant 41 : i32
    %736 = arith.addi %0, %c41_i32_461 : i32
    %737 = arith.index_cast %736 : i32 to index
    %738 = memref.load %arg1[%737] : memref<64xi32, #tpu.memory_space<smem>>
    %c0_i32_462 = arith.constant 0 : i32
    %c0_i32_463 = arith.constant 0 : i32
    %739 = tpu.memref_slice %arg2[%738, %c0_i32_463] : memref<64x128xf32, #tpu.memory_space<any>> -> memref<1x128xf32, #tpu.memory_space<any>>
    %c41_i32_464 = arith.constant 41 : i32
    %c0_i32_465 = arith.constant 0 : i32
    %740 = tpu.memref_slice %arg3[%c41_i32_464, %c0_i32_465] : memref<64x128xf32, #tpu.memory_space<vmem>> -> memref<1x128xf32, #tpu.memory_space<vmem>>
    %741 = tpu.memref_slice %arg4[%c0_i32_462] : memref<1x!tpu.dma_semaphore, #tpu.memory_space<semaphore_mem>> -> memref<1x!tpu.dma_semaphore, #tpu.memory_space<semaphore_mem>>
    %742 = tpu.memref_squeeze %741 : memref<1x!tpu.dma_semaphore, #tpu.memory_space<semaphore_mem>> -> memref<!tpu.dma_semaphore, #tpu.memory_space<semaphore_mem>>
    tpu.wait_dma2 semaphore(%742 : memref<!tpu.dma_semaphore, #tpu.memory_space<semaphore_mem>>) src(%739 : memref<1x128xf32, #tpu.memory_space<any>>) dst(%740 : memref<1x128xf32, #tpu.memory_space<vmem>>)
    %c42_i32_466 = arith.constant 42 : i32
    %743 = arith.addi %0, %c42_i32_466 : i32
    %744 = arith.index_cast %743 : i32 to index
    %745 = memref.load %arg1[%744] : memref<64xi32, #tpu.memory_space<smem>>
    %c0_i32_467 = arith.constant 0 : i32
    %c0_i32_468 = arith.constant 0 : i32
    %746 = tpu.memref_slice %arg2[%745, %c0_i32_468] : memref<64x128xf32, #tpu.memory_space<any>> -> memref<1x128xf32, #tpu.memory_space<any>>
    %c42_i32_469 = arith.constant 42 : i32
    %c0_i32_470 = arith.constant 0 : i32
    %747 = tpu.memref_slice %arg3[%c42_i32_469, %c0_i32_470] : memref<64x128xf32, #tpu.memory_space<vmem>> -> memref<1x128xf32, #tpu.memory_space<vmem>>
    %748 = tpu.memref_slice %arg4[%c0_i32_467] : memref<1x!tpu.dma_semaphore, #tpu.memory_space<semaphore_mem>> -> memref<1x!tpu.dma_semaphore, #tpu.memory_space<semaphore_mem>>
    %749 = tpu.memref_squeeze %748 : memref<1x!tpu.dma_semaphore, #tpu.memory_space<semaphore_mem>> -> memref<!tpu.dma_semaphore, #tpu.memory_space<semaphore_mem>>
    tpu.wait_dma2 semaphore(%749 : memref<!tpu.dma_semaphore, #tpu.memory_space<semaphore_mem>>) src(%746 : memref<1x128xf32, #tpu.memory_space<any>>) dst(%747 : memref<1x128xf32, #tpu.memory_space<vmem>>)
    %c43_i32_471 = arith.constant 43 : i32
    %750 = arith.addi %0, %c43_i32_471 : i32
    %751 = arith.index_cast %750 : i32 to index
    %752 = memref.load %arg1[%751] : memref<64xi32, #tpu.memory_space<smem>>
    %c0_i32_472 = arith.constant 0 : i32
    %c0_i32_473 = arith.constant 0 : i32
    %753 = tpu.memref_slice %arg2[%752, %c0_i32_473] : memref<64x128xf32, #tpu.memory_space<any>> -> memref<1x128xf32, #tpu.memory_space<any>>
    %c43_i32_474 = arith.constant 43 : i32
    %c0_i32_475 = arith.constant 0 : i32
    %754 = tpu.memref_slice %arg3[%c43_i32_474, %c0_i32_475] : memref<64x128xf32, #tpu.memory_space<vmem>> -> memref<1x128xf32, #tpu.memory_space<vmem>>
    %755 = tpu.memref_slice %arg4[%c0_i32_472] : memref<1x!tpu.dma_semaphore, #tpu.memory_space<semaphore_mem>> -> memref<1x!tpu.dma_semaphore, #tpu.memory_space<semaphore_mem>>
    %756 = tpu.memref_squeeze %755 : memref<1x!tpu.dma_semaphore, #tpu.memory_space<semaphore_mem>> -> memref<!tpu.dma_semaphore, #tpu.memory_space<semaphore_mem>>
    tpu.wait_dma2 semaphore(%756 : memref<!tpu.dma_semaphore, #tpu.memory_space<semaphore_mem>>) src(%753 : memref<1x128xf32, #tpu.memory_space<any>>) dst(%754 : memref<1x128xf32, #tpu.memory_space<vmem>>)
    %c44_i32_476 = arith.constant 44 : i32
    %757 = arith.addi %0, %c44_i32_476 : i32
    %758 = arith.index_cast %757 : i32 to index
    %759 = memref.load %arg1[%758] : memref<64xi32, #tpu.memory_space<smem>>
    %c0_i32_477 = arith.constant 0 : i32
    %c0_i32_478 = arith.constant 0 : i32
    %760 = tpu.memref_slice %arg2[%759, %c0_i32_478] : memref<64x128xf32, #tpu.memory_space<any>> -> memref<1x128xf32, #tpu.memory_space<any>>
    %c44_i32_479 = arith.constant 44 : i32
    %c0_i32_480 = arith.constant 0 : i32
    %761 = tpu.memref_slice %arg3[%c44_i32_479, %c0_i32_480] : memref<64x128xf32, #tpu.memory_space<vmem>> -> memref<1x128xf32, #tpu.memory_space<vmem>>
    %762 = tpu.memref_slice %arg4[%c0_i32_477] : memref<1x!tpu.dma_semaphore, #tpu.memory_space<semaphore_mem>> -> memref<1x!tpu.dma_semaphore, #tpu.memory_space<semaphore_mem>>
    %763 = tpu.memref_squeeze %762 : memref<1x!tpu.dma_semaphore, #tpu.memory_space<semaphore_mem>> -> memref<!tpu.dma_semaphore, #tpu.memory_space<semaphore_mem>>
    tpu.wait_dma2 semaphore(%763 : memref<!tpu.dma_semaphore, #tpu.memory_space<semaphore_mem>>) src(%760 : memref<1x128xf32, #tpu.memory_space<any>>) dst(%761 : memref<1x128xf32, #tpu.memory_space<vmem>>)
    %c45_i32_481 = arith.constant 45 : i32
    %764 = arith.addi %0, %c45_i32_481 : i32
    %765 = arith.index_cast %764 : i32 to index
    %766 = memref.load %arg1[%765] : memref<64xi32, #tpu.memory_space<smem>>
    %c0_i32_482 = arith.constant 0 : i32
    %c0_i32_483 = arith.constant 0 : i32
    %767 = tpu.memref_slice %arg2[%766, %c0_i32_483] : memref<64x128xf32, #tpu.memory_space<any>> -> memref<1x128xf32, #tpu.memory_space<any>>
    %c45_i32_484 = arith.constant 45 : i32
    %c0_i32_485 = arith.constant 0 : i32
    %768 = tpu.memref_slice %arg3[%c45_i32_484, %c0_i32_485] : memref<64x128xf32, #tpu.memory_space<vmem>> -> memref<1x128xf32, #tpu.memory_space<vmem>>
    %769 = tpu.memref_slice %arg4[%c0_i32_482] : memref<1x!tpu.dma_semaphore, #tpu.memory_space<semaphore_mem>> -> memref<1x!tpu.dma_semaphore, #tpu.memory_space<semaphore_mem>>
    %770 = tpu.memref_squeeze %769 : memref<1x!tpu.dma_semaphore, #tpu.memory_space<semaphore_mem>> -> memref<!tpu.dma_semaphore, #tpu.memory_space<semaphore_mem>>
    tpu.wait_dma2 semaphore(%770 : memref<!tpu.dma_semaphore, #tpu.memory_space<semaphore_mem>>) src(%767 : memref<1x128xf32, #tpu.memory_space<any>>) dst(%768 : memref<1x128xf32, #tpu.memory_space<vmem>>)
    %c46_i32_486 = arith.constant 46 : i32
    %771 = arith.addi %0, %c46_i32_486 : i32
    %772 = arith.index_cast %771 : i32 to index
    %773 = memref.load %arg1[%772] : memref<64xi32, #tpu.memory_space<smem>>
    %c0_i32_487 = arith.constant 0 : i32
    %c0_i32_488 = arith.constant 0 : i32
    %774 = tpu.memref_slice %arg2[%773, %c0_i32_488] : memref<64x128xf32, #tpu.memory_space<any>> -> memref<1x128xf32, #tpu.memory_space<any>>
    %c46_i32_489 = arith.constant 46 : i32
    %c0_i32_490 = arith.constant 0 : i32
    %775 = tpu.memref_slice %arg3[%c46_i32_489, %c0_i32_490] : memref<64x128xf32, #tpu.memory_space<vmem>> -> memref<1x128xf32, #tpu.memory_space<vmem>>
    %776 = tpu.memref_slice %arg4[%c0_i32_487] : memref<1x!tpu.dma_semaphore, #tpu.memory_space<semaphore_mem>> -> memref<1x!tpu.dma_semaphore, #tpu.memory_space<semaphore_mem>>
    %777 = tpu.memref_squeeze %776 : memref<1x!tpu.dma_semaphore, #tpu.memory_space<semaphore_mem>> -> memref<!tpu.dma_semaphore, #tpu.memory_space<semaphore_mem>>
    tpu.wait_dma2 semaphore(%777 : memref<!tpu.dma_semaphore, #tpu.memory_space<semaphore_mem>>) src(%774 : memref<1x128xf32, #tpu.memory_space<any>>) dst(%775 : memref<1x128xf32, #tpu.memory_space<vmem>>)
    %c47_i32_491 = arith.constant 47 : i32
    %778 = arith.addi %0, %c47_i32_491 : i32
    %779 = arith.index_cast %778 : i32 to index
    %780 = memref.load %arg1[%779] : memref<64xi32, #tpu.memory_space<smem>>
    %c0_i32_492 = arith.constant 0 : i32
    %c0_i32_493 = arith.constant 0 : i32
    %781 = tpu.memref_slice %arg2[%780, %c0_i32_493] : memref<64x128xf32, #tpu.memory_space<any>> -> memref<1x128xf32, #tpu.memory_space<any>>
    %c47_i32_494 = arith.constant 47 : i32
    %c0_i32_495 = arith.constant 0 : i32
    %782 = tpu.memref_slice %arg3[%c47_i32_494, %c0_i32_495] : memref<64x128xf32, #tpu.memory_space<vmem>> -> memref<1x128xf32, #tpu.memory_space<vmem>>
    %783 = tpu.memref_slice %arg4[%c0_i32_492] : memref<1x!tpu.dma_semaphore, #tpu.memory_space<semaphore_mem>> -> memref<1x!tpu.dma_semaphore, #tpu.memory_space<semaphore_mem>>
    %784 = tpu.memref_squeeze %783 : memref<1x!tpu.dma_semaphore, #tpu.memory_space<semaphore_mem>> -> memref<!tpu.dma_semaphore, #tpu.memory_space<semaphore_mem>>
    tpu.wait_dma2 semaphore(%784 : memref<!tpu.dma_semaphore, #tpu.memory_space<semaphore_mem>>) src(%781 : memref<1x128xf32, #tpu.memory_space<any>>) dst(%782 : memref<1x128xf32, #tpu.memory_space<vmem>>)
    %c48_i32_496 = arith.constant 48 : i32
    %785 = arith.addi %0, %c48_i32_496 : i32
    %786 = arith.index_cast %785 : i32 to index
    %787 = memref.load %arg1[%786] : memref<64xi32, #tpu.memory_space<smem>>
    %c0_i32_497 = arith.constant 0 : i32
    %c0_i32_498 = arith.constant 0 : i32
    %788 = tpu.memref_slice %arg2[%787, %c0_i32_498] : memref<64x128xf32, #tpu.memory_space<any>> -> memref<1x128xf32, #tpu.memory_space<any>>
    %c48_i32_499 = arith.constant 48 : i32
    %c0_i32_500 = arith.constant 0 : i32
    %789 = tpu.memref_slice %arg3[%c48_i32_499, %c0_i32_500] : memref<64x128xf32, #tpu.memory_space<vmem>> -> memref<1x128xf32, #tpu.memory_space<vmem>>
    %790 = tpu.memref_slice %arg4[%c0_i32_497] : memref<1x!tpu.dma_semaphore, #tpu.memory_space<semaphore_mem>> -> memref<1x!tpu.dma_semaphore, #tpu.memory_space<semaphore_mem>>
    %791 = tpu.memref_squeeze %790 : memref<1x!tpu.dma_semaphore, #tpu.memory_space<semaphore_mem>> -> memref<!tpu.dma_semaphore, #tpu.memory_space<semaphore_mem>>
    tpu.wait_dma2 semaphore(%791 : memref<!tpu.dma_semaphore, #tpu.memory_space<semaphore_mem>>) src(%788 : memref<1x128xf32, #tpu.memory_space<any>>) dst(%789 : memref<1x128xf32, #tpu.memory_space<vmem>>)
    %c49_i32_501 = arith.constant 49 : i32
    %792 = arith.addi %0, %c49_i32_501 : i32
    %793 = arith.index_cast %792 : i32 to index
    %794 = memref.load %arg1[%793] : memref<64xi32, #tpu.memory_space<smem>>
    %c0_i32_502 = arith.constant 0 : i32
    %c0_i32_503 = arith.constant 0 : i32
    %795 = tpu.memref_slice %arg2[%794, %c0_i32_503] : memref<64x128xf32, #tpu.memory_space<any>> -> memref<1x128xf32, #tpu.memory_space<any>>
    %c49_i32_504 = arith.constant 49 : i32
    %c0_i32_505 = arith.constant 0 : i32
    %796 = tpu.memref_slice %arg3[%c49_i32_504, %c0_i32_505] : memref<64x128xf32, #tpu.memory_space<vmem>> -> memref<1x128xf32, #tpu.memory_space<vmem>>
    %797 = tpu.memref_slice %arg4[%c0_i32_502] : memref<1x!tpu.dma_semaphore, #tpu.memory_space<semaphore_mem>> -> memref<1x!tpu.dma_semaphore, #tpu.memory_space<semaphore_mem>>
    %798 = tpu.memref_squeeze %797 : memref<1x!tpu.dma_semaphore, #tpu.memory_space<semaphore_mem>> -> memref<!tpu.dma_semaphore, #tpu.memory_space<semaphore_mem>>
    tpu.wait_dma2 semaphore(%798 : memref<!tpu.dma_semaphore, #tpu.memory_space<semaphore_mem>>) src(%795 : memref<1x128xf32, #tpu.memory_space<any>>) dst(%796 : memref<1x128xf32, #tpu.memory_space<vmem>>)
    %c50_i32_506 = arith.constant 50 : i32
    %799 = arith.addi %0, %c50_i32_506 : i32
    %800 = arith.index_cast %799 : i32 to index
    %801 = memref.load %arg1[%800] : memref<64xi32, #tpu.memory_space<smem>>
    %c0_i32_507 = arith.constant 0 : i32
    %c0_i32_508 = arith.constant 0 : i32
    %802 = tpu.memref_slice %arg2[%801, %c0_i32_508] : memref<64x128xf32, #tpu.memory_space<any>> -> memref<1x128xf32, #tpu.memory_space<any>>
    %c50_i32_509 = arith.constant 50 : i32
    %c0_i32_510 = arith.constant 0 : i32
    %803 = tpu.memref_slice %arg3[%c50_i32_509, %c0_i32_510] : memref<64x128xf32, #tpu.memory_space<vmem>> -> memref<1x128xf32, #tpu.memory_space<vmem>>
    %804 = tpu.memref_slice %arg4[%c0_i32_507] : memref<1x!tpu.dma_semaphore, #tpu.memory_space<semaphore_mem>> -> memref<1x!tpu.dma_semaphore, #tpu.memory_space<semaphore_mem>>
    %805 = tpu.memref_squeeze %804 : memref<1x!tpu.dma_semaphore, #tpu.memory_space<semaphore_mem>> -> memref<!tpu.dma_semaphore, #tpu.memory_space<semaphore_mem>>
    tpu.wait_dma2 semaphore(%805 : memref<!tpu.dma_semaphore, #tpu.memory_space<semaphore_mem>>) src(%802 : memref<1x128xf32, #tpu.memory_space<any>>) dst(%803 : memref<1x128xf32, #tpu.memory_space<vmem>>)
    %c51_i32_511 = arith.constant 51 : i32
    %806 = arith.addi %0, %c51_i32_511 : i32
    %807 = arith.index_cast %806 : i32 to index
    %808 = memref.load %arg1[%807] : memref<64xi32, #tpu.memory_space<smem>>
    %c0_i32_512 = arith.constant 0 : i32
    %c0_i32_513 = arith.constant 0 : i32
    %809 = tpu.memref_slice %arg2[%808, %c0_i32_513] : memref<64x128xf32, #tpu.memory_space<any>> -> memref<1x128xf32, #tpu.memory_space<any>>
    %c51_i32_514 = arith.constant 51 : i32
    %c0_i32_515 = arith.constant 0 : i32
    %810 = tpu.memref_slice %arg3[%c51_i32_514, %c0_i32_515] : memref<64x128xf32, #tpu.memory_space<vmem>> -> memref<1x128xf32, #tpu.memory_space<vmem>>
    %811 = tpu.memref_slice %arg4[%c0_i32_512] : memref<1x!tpu.dma_semaphore, #tpu.memory_space<semaphore_mem>> -> memref<1x!tpu.dma_semaphore, #tpu.memory_space<semaphore_mem>>
    %812 = tpu.memref_squeeze %811 : memref<1x!tpu.dma_semaphore, #tpu.memory_space<semaphore_mem>> -> memref<!tpu.dma_semaphore, #tpu.memory_space<semaphore_mem>>
    tpu.wait_dma2 semaphore(%812 : memref<!tpu.dma_semaphore, #tpu.memory_space<semaphore_mem>>) src(%809 : memref<1x128xf32, #tpu.memory_space<any>>) dst(%810 : memref<1x128xf32, #tpu.memory_space<vmem>>)
    %c52_i32_516 = arith.constant 52 : i32
    %813 = arith.addi %0, %c52_i32_516 : i32
    %814 = arith.index_cast %813 : i32 to index
    %815 = memref.load %arg1[%814] : memref<64xi32, #tpu.memory_space<smem>>
    %c0_i32_517 = arith.constant 0 : i32
    %c0_i32_518 = arith.constant 0 : i32
    %816 = tpu.memref_slice %arg2[%815, %c0_i32_518] : memref<64x128xf32, #tpu.memory_space<any>> -> memref<1x128xf32, #tpu.memory_space<any>>
    %c52_i32_519 = arith.constant 52 : i32
    %c0_i32_520 = arith.constant 0 : i32
    %817 = tpu.memref_slice %arg3[%c52_i32_519, %c0_i32_520] : memref<64x128xf32, #tpu.memory_space<vmem>> -> memref<1x128xf32, #tpu.memory_space<vmem>>
    %818 = tpu.memref_slice %arg4[%c0_i32_517] : memref<1x!tpu.dma_semaphore, #tpu.memory_space<semaphore_mem>> -> memref<1x!tpu.dma_semaphore, #tpu.memory_space<semaphore_mem>>
    %819 = tpu.memref_squeeze %818 : memref<1x!tpu.dma_semaphore, #tpu.memory_space<semaphore_mem>> -> memref<!tpu.dma_semaphore, #tpu.memory_space<semaphore_mem>>
    tpu.wait_dma2 semaphore(%819 : memref<!tpu.dma_semaphore, #tpu.memory_space<semaphore_mem>>) src(%816 : memref<1x128xf32, #tpu.memory_space<any>>) dst(%817 : memref<1x128xf32, #tpu.memory_space<vmem>>)
    %c53_i32_521 = arith.constant 53 : i32
    %820 = arith.addi %0, %c53_i32_521 : i32
    %821 = arith.index_cast %820 : i32 to index
    %822 = memref.load %arg1[%821] : memref<64xi32, #tpu.memory_space<smem>>
    %c0_i32_522 = arith.constant 0 : i32
    %c0_i32_523 = arith.constant 0 : i32
    %823 = tpu.memref_slice %arg2[%822, %c0_i32_523] : memref<64x128xf32, #tpu.memory_space<any>> -> memref<1x128xf32, #tpu.memory_space<any>>
    %c53_i32_524 = arith.constant 53 : i32
    %c0_i32_525 = arith.constant 0 : i32
    %824 = tpu.memref_slice %arg3[%c53_i32_524, %c0_i32_525] : memref<64x128xf32, #tpu.memory_space<vmem>> -> memref<1x128xf32, #tpu.memory_space<vmem>>
    %825 = tpu.memref_slice %arg4[%c0_i32_522] : memref<1x!tpu.dma_semaphore, #tpu.memory_space<semaphore_mem>> -> memref<1x!tpu.dma_semaphore, #tpu.memory_space<semaphore_mem>>
    %826 = tpu.memref_squeeze %825 : memref<1x!tpu.dma_semaphore, #tpu.memory_space<semaphore_mem>> -> memref<!tpu.dma_semaphore, #tpu.memory_space<semaphore_mem>>
    tpu.wait_dma2 semaphore(%826 : memref<!tpu.dma_semaphore, #tpu.memory_space<semaphore_mem>>) src(%823 : memref<1x128xf32, #tpu.memory_space<any>>) dst(%824 : memref<1x128xf32, #tpu.memory_space<vmem>>)
    %c54_i32_526 = arith.constant 54 : i32
    %827 = arith.addi %0, %c54_i32_526 : i32
    %828 = arith.index_cast %827 : i32 to index
    %829 = memref.load %arg1[%828] : memref<64xi32, #tpu.memory_space<smem>>
    %c0_i32_527 = arith.constant 0 : i32
    %c0_i32_528 = arith.constant 0 : i32
    %830 = tpu.memref_slice %arg2[%829, %c0_i32_528] : memref<64x128xf32, #tpu.memory_space<any>> -> memref<1x128xf32, #tpu.memory_space<any>>
    %c54_i32_529 = arith.constant 54 : i32
    %c0_i32_530 = arith.constant 0 : i32
    %831 = tpu.memref_slice %arg3[%c54_i32_529, %c0_i32_530] : memref<64x128xf32, #tpu.memory_space<vmem>> -> memref<1x128xf32, #tpu.memory_space<vmem>>
    %832 = tpu.memref_slice %arg4[%c0_i32_527] : memref<1x!tpu.dma_semaphore, #tpu.memory_space<semaphore_mem>> -> memref<1x!tpu.dma_semaphore, #tpu.memory_space<semaphore_mem>>
    %833 = tpu.memref_squeeze %832 : memref<1x!tpu.dma_semaphore, #tpu.memory_space<semaphore_mem>> -> memref<!tpu.dma_semaphore, #tpu.memory_space<semaphore_mem>>
    tpu.wait_dma2 semaphore(%833 : memref<!tpu.dma_semaphore, #tpu.memory_space<semaphore_mem>>) src(%830 : memref<1x128xf32, #tpu.memory_space<any>>) dst(%831 : memref<1x128xf32, #tpu.memory_space<vmem>>)
    %c55_i32_531 = arith.constant 55 : i32
    %834 = arith.addi %0, %c55_i32_531 : i32
    %835 = arith.index_cast %834 : i32 to index
    %836 = memref.load %arg1[%835] : memref<64xi32, #tpu.memory_space<smem>>
    %c0_i32_532 = arith.constant 0 : i32
    %c0_i32_533 = arith.constant 0 : i32
    %837 = tpu.memref_slice %arg2[%836, %c0_i32_533] : memref<64x128xf32, #tpu.memory_space<any>> -> memref<1x128xf32, #tpu.memory_space<any>>
    %c55_i32_534 = arith.constant 55 : i32
    %c0_i32_535 = arith.constant 0 : i32
    %838 = tpu.memref_slice %arg3[%c55_i32_534, %c0_i32_535] : memref<64x128xf32, #tpu.memory_space<vmem>> -> memref<1x128xf32, #tpu.memory_space<vmem>>
    %839 = tpu.memref_slice %arg4[%c0_i32_532] : memref<1x!tpu.dma_semaphore, #tpu.memory_space<semaphore_mem>> -> memref<1x!tpu.dma_semaphore, #tpu.memory_space<semaphore_mem>>
    %840 = tpu.memref_squeeze %839 : memref<1x!tpu.dma_semaphore, #tpu.memory_space<semaphore_mem>> -> memref<!tpu.dma_semaphore, #tpu.memory_space<semaphore_mem>>
    tpu.wait_dma2 semaphore(%840 : memref<!tpu.dma_semaphore, #tpu.memory_space<semaphore_mem>>) src(%837 : memref<1x128xf32, #tpu.memory_space<any>>) dst(%838 : memref<1x128xf32, #tpu.memory_space<vmem>>)
    %c56_i32_536 = arith.constant 56 : i32
    %841 = arith.addi %0, %c56_i32_536 : i32
    %842 = arith.index_cast %841 : i32 to index
    %843 = memref.load %arg1[%842] : memref<64xi32, #tpu.memory_space<smem>>
    %c0_i32_537 = arith.constant 0 : i32
    %c0_i32_538 = arith.constant 0 : i32
    %844 = tpu.memref_slice %arg2[%843, %c0_i32_538] : memref<64x128xf32, #tpu.memory_space<any>> -> memref<1x128xf32, #tpu.memory_space<any>>
    %c56_i32_539 = arith.constant 56 : i32
    %c0_i32_540 = arith.constant 0 : i32
    %845 = tpu.memref_slice %arg3[%c56_i32_539, %c0_i32_540] : memref<64x128xf32, #tpu.memory_space<vmem>> -> memref<1x128xf32, #tpu.memory_space<vmem>>
    %846 = tpu.memref_slice %arg4[%c0_i32_537] : memref<1x!tpu.dma_semaphore, #tpu.memory_space<semaphore_mem>> -> memref<1x!tpu.dma_semaphore, #tpu.memory_space<semaphore_mem>>
    %847 = tpu.memref_squeeze %846 : memref<1x!tpu.dma_semaphore, #tpu.memory_space<semaphore_mem>> -> memref<!tpu.dma_semaphore, #tpu.memory_space<semaphore_mem>>
    tpu.wait_dma2 semaphore(%847 : memref<!tpu.dma_semaphore, #tpu.memory_space<semaphore_mem>>) src(%844 : memref<1x128xf32, #tpu.memory_space<any>>) dst(%845 : memref<1x128xf32, #tpu.memory_space<vmem>>)
    %c57_i32_541 = arith.constant 57 : i32
    %848 = arith.addi %0, %c57_i32_541 : i32
    %849 = arith.index_cast %848 : i32 to index
    %850 = memref.load %arg1[%849] : memref<64xi32, #tpu.memory_space<smem>>
    %c0_i32_542 = arith.constant 0 : i32
    %c0_i32_543 = arith.constant 0 : i32
    %851 = tpu.memref_slice %arg2[%850, %c0_i32_543] : memref<64x128xf32, #tpu.memory_space<any>> -> memref<1x128xf32, #tpu.memory_space<any>>
    %c57_i32_544 = arith.constant 57 : i32
    %c0_i32_545 = arith.constant 0 : i32
    %852 = tpu.memref_slice %arg3[%c57_i32_544, %c0_i32_545] : memref<64x128xf32, #tpu.memory_space<vmem>> -> memref<1x128xf32, #tpu.memory_space<vmem>>
    %853 = tpu.memref_slice %arg4[%c0_i32_542] : memref<1x!tpu.dma_semaphore, #tpu.memory_space<semaphore_mem>> -> memref<1x!tpu.dma_semaphore, #tpu.memory_space<semaphore_mem>>
    %854 = tpu.memref_squeeze %853 : memref<1x!tpu.dma_semaphore, #tpu.memory_space<semaphore_mem>> -> memref<!tpu.dma_semaphore, #tpu.memory_space<semaphore_mem>>
    tpu.wait_dma2 semaphore(%854 : memref<!tpu.dma_semaphore, #tpu.memory_space<semaphore_mem>>) src(%851 : memref<1x128xf32, #tpu.memory_space<any>>) dst(%852 : memref<1x128xf32, #tpu.memory_space<vmem>>)
    %c58_i32_546 = arith.constant 58 : i32
    %855 = arith.addi %0, %c58_i32_546 : i32
    %856 = arith.index_cast %855 : i32 to index
    %857 = memref.load %arg1[%856] : memref<64xi32, #tpu.memory_space<smem>>
    %c0_i32_547 = arith.constant 0 : i32
    %c0_i32_548 = arith.constant 0 : i32
    %858 = tpu.memref_slice %arg2[%857, %c0_i32_548] : memref<64x128xf32, #tpu.memory_space<any>> -> memref<1x128xf32, #tpu.memory_space<any>>
    %c58_i32_549 = arith.constant 58 : i32
    %c0_i32_550 = arith.constant 0 : i32
    %859 = tpu.memref_slice %arg3[%c58_i32_549, %c0_i32_550] : memref<64x128xf32, #tpu.memory_space<vmem>> -> memref<1x128xf32, #tpu.memory_space<vmem>>
    %860 = tpu.memref_slice %arg4[%c0_i32_547] : memref<1x!tpu.dma_semaphore, #tpu.memory_space<semaphore_mem>> -> memref<1x!tpu.dma_semaphore, #tpu.memory_space<semaphore_mem>>
    %861 = tpu.memref_squeeze %860 : memref<1x!tpu.dma_semaphore, #tpu.memory_space<semaphore_mem>> -> memref<!tpu.dma_semaphore, #tpu.memory_space<semaphore_mem>>
    tpu.wait_dma2 semaphore(%861 : memref<!tpu.dma_semaphore, #tpu.memory_space<semaphore_mem>>) src(%858 : memref<1x128xf32, #tpu.memory_space<any>>) dst(%859 : memref<1x128xf32, #tpu.memory_space<vmem>>)
    %c59_i32_551 = arith.constant 59 : i32
    %862 = arith.addi %0, %c59_i32_551 : i32
    %863 = arith.index_cast %862 : i32 to index
    %864 = memref.load %arg1[%863] : memref<64xi32, #tpu.memory_space<smem>>
    %c0_i32_552 = arith.constant 0 : i32
    %c0_i32_553 = arith.constant 0 : i32
    %865 = tpu.memref_slice %arg2[%864, %c0_i32_553] : memref<64x128xf32, #tpu.memory_space<any>> -> memref<1x128xf32, #tpu.memory_space<any>>
    %c59_i32_554 = arith.constant 59 : i32
    %c0_i32_555 = arith.constant 0 : i32
    %866 = tpu.memref_slice %arg3[%c59_i32_554, %c0_i32_555] : memref<64x128xf32, #tpu.memory_space<vmem>> -> memref<1x128xf32, #tpu.memory_space<vmem>>
    %867 = tpu.memref_slice %arg4[%c0_i32_552] : memref<1x!tpu.dma_semaphore, #tpu.memory_space<semaphore_mem>> -> memref<1x!tpu.dma_semaphore, #tpu.memory_space<semaphore_mem>>
    %868 = tpu.memref_squeeze %867 : memref<1x!tpu.dma_semaphore, #tpu.memory_space<semaphore_mem>> -> memref<!tpu.dma_semaphore, #tpu.memory_space<semaphore_mem>>
    tpu.wait_dma2 semaphore(%868 : memref<!tpu.dma_semaphore, #tpu.memory_space<semaphore_mem>>) src(%865 : memref<1x128xf32, #tpu.memory_space<any>>) dst(%866 : memref<1x128xf32, #tpu.memory_space<vmem>>)
    %c60_i32_556 = arith.constant 60 : i32
    %869 = arith.addi %0, %c60_i32_556 : i32
    %870 = arith.index_cast %869 : i32 to index
    %871 = memref.load %arg1[%870] : memref<64xi32, #tpu.memory_space<smem>>
    %c0_i32_557 = arith.constant 0 : i32
    %c0_i32_558 = arith.constant 0 : i32
    %872 = tpu.memref_slice %arg2[%871, %c0_i32_558] : memref<64x128xf32, #tpu.memory_space<any>> -> memref<1x128xf32, #tpu.memory_space<any>>
    %c60_i32_559 = arith.constant 60 : i32
    %c0_i32_560 = arith.constant 0 : i32
    %873 = tpu.memref_slice %arg3[%c60_i32_559, %c0_i32_560] : memref<64x128xf32, #tpu.memory_space<vmem>> -> memref<1x128xf32, #tpu.memory_space<vmem>>
    %874 = tpu.memref_slice %arg4[%c0_i32_557] : memref<1x!tpu.dma_semaphore, #tpu.memory_space<semaphore_mem>> -> memref<1x!tpu.dma_semaphore, #tpu.memory_space<semaphore_mem>>
    %875 = tpu.memref_squeeze %874 : memref<1x!tpu.dma_semaphore, #tpu.memory_space<semaphore_mem>> -> memref<!tpu.dma_semaphore, #tpu.memory_space<semaphore_mem>>
    tpu.wait_dma2 semaphore(%875 : memref<!tpu.dma_semaphore, #tpu.memory_space<semaphore_mem>>) src(%872 : memref<1x128xf32, #tpu.memory_space<any>>) dst(%873 : memref<1x128xf32, #tpu.memory_space<vmem>>)
    %c61_i32_561 = arith.constant 61 : i32
    %876 = arith.addi %0, %c61_i32_561 : i32
    %877 = arith.index_cast %876 : i32 to index
    %878 = memref.load %arg1[%877] : memref<64xi32, #tpu.memory_space<smem>>
    %c0_i32_562 = arith.constant 0 : i32
    %c0_i32_563 = arith.constant 0 : i32
    %879 = tpu.memref_slice %arg2[%878, %c0_i32_563] : memref<64x128xf32, #tpu.memory_space<any>> -> memref<1x128xf32, #tpu.memory_space<any>>
    %c61_i32_564 = arith.constant 61 : i32
    %c0_i32_565 = arith.constant 0 : i32
    %880 = tpu.memref_slice %arg3[%c61_i32_564, %c0_i32_565] : memref<64x128xf32, #tpu.memory_space<vmem>> -> memref<1x128xf32, #tpu.memory_space<vmem>>
    %881 = tpu.memref_slice %arg4[%c0_i32_562] : memref<1x!tpu.dma_semaphore, #tpu.memory_space<semaphore_mem>> -> memref<1x!tpu.dma_semaphore, #tpu.memory_space<semaphore_mem>>
    %882 = tpu.memref_squeeze %881 : memref<1x!tpu.dma_semaphore, #tpu.memory_space<semaphore_mem>> -> memref<!tpu.dma_semaphore, #tpu.memory_space<semaphore_mem>>
    tpu.wait_dma2 semaphore(%882 : memref<!tpu.dma_semaphore, #tpu.memory_space<semaphore_mem>>) src(%879 : memref<1x128xf32, #tpu.memory_space<any>>) dst(%880 : memref<1x128xf32, #tpu.memory_space<vmem>>)
    %c62_i32_566 = arith.constant 62 : i32
    %883 = arith.addi %0, %c62_i32_566 : i32
    %884 = arith.index_cast %883 : i32 to index
    %885 = memref.load %arg1[%884] : memref<64xi32, #tpu.memory_space<smem>>
    %c0_i32_567 = arith.constant 0 : i32
    %c0_i32_568 = arith.constant 0 : i32
    %886 = tpu.memref_slice %arg2[%885, %c0_i32_568] : memref<64x128xf32, #tpu.memory_space<any>> -> memref<1x128xf32, #tpu.memory_space<any>>
    %c62_i32_569 = arith.constant 62 : i32
    %c0_i32_570 = arith.constant 0 : i32
    %887 = tpu.memref_slice %arg3[%c62_i32_569, %c0_i32_570] : memref<64x128xf32, #tpu.memory_space<vmem>> -> memref<1x128xf32, #tpu.memory_space<vmem>>
    %888 = tpu.memref_slice %arg4[%c0_i32_567] : memref<1x!tpu.dma_semaphore, #tpu.memory_space<semaphore_mem>> -> memref<1x!tpu.dma_semaphore, #tpu.memory_space<semaphore_mem>>
    %889 = tpu.memref_squeeze %888 : memref<1x!tpu.dma_semaphore, #tpu.memory_space<semaphore_mem>> -> memref<!tpu.dma_semaphore, #tpu.memory_space<semaphore_mem>>
    tpu.wait_dma2 semaphore(%889 : memref<!tpu.dma_semaphore, #tpu.memory_space<semaphore_mem>>) src(%886 : memref<1x128xf32, #tpu.memory_space<any>>) dst(%887 : memref<1x128xf32, #tpu.memory_space<vmem>>)
    %c63_i32_571 = arith.constant 63 : i32
    %890 = arith.addi %0, %c63_i32_571 : i32
    %891 = arith.index_cast %890 : i32 to index
    %892 = memref.load %arg1[%891] : memref<64xi32, #tpu.memory_space<smem>>
    %c0_i32_572 = arith.constant 0 : i32
    %c0_i32_573 = arith.constant 0 : i32
    %893 = tpu.memref_slice %arg2[%892, %c0_i32_573] : memref<64x128xf32, #tpu.memory_space<any>> -> memref<1x128xf32, #tpu.memory_space<any>>
    %c63_i32_574 = arith.constant 63 : i32
    %c0_i32_575 = arith.constant 0 : i32
    %894 = tpu.memref_slice %arg3[%c63_i32_574, %c0_i32_575] : memref<64x128xf32, #tpu.memory_space<vmem>> -> memref<1x128xf32, #tpu.memory_space<vmem>>
    %895 = tpu.memref_slice %arg4[%c0_i32_572] : memref<1x!tpu.dma_semaphore, #tpu.memory_space<semaphore_mem>> -> memref<1x!tpu.dma_semaphore, #tpu.memory_space<semaphore_mem>>
    %896 = tpu.memref_squeeze %895 : memref<1x!tpu.dma_semaphore, #tpu.memory_space<semaphore_mem>> -> memref<!tpu.dma_semaphore, #tpu.memory_space<semaphore_mem>>
    tpu.wait_dma2 semaphore(%896 : memref<!tpu.dma_semaphore, #tpu.memory_space<semaphore_mem>>) src(%893 : memref<1x128xf32, #tpu.memory_space<any>>) dst(%894 : memref<1x128xf32, #tpu.memory_space<vmem>>)
    return
  }
  func.func @transform_1(%arg0: i32, %arg1: memref<64xi32, #tpu.memory_space<smem>>) -> (i32, i32) {
    %c0_i32 = arith.constant 0 : i32
    %c0_i32_0 = arith.constant 0 : i32
    return %arg0, %c0_i32 : i32, i32
  }
}

module attributes {stable_mosaic.version = 11 : i64} {
  func.func @lstm_layer_kernel(%arg0: i32, %arg1: memref<32x128xf32, #tpu.memory_space<vmem>>, %arg2: memref<128x512xf32, #tpu.memory_space<any>>, %arg3: memref<128x512xf32, #tpu.memory_space<any>>, %arg4: memref<1x512xf32, #tpu.memory_space<vmem>>, %arg5: memref<32x128xf32, #tpu.memory_space<vmem>>, %arg6: memref<128x512xf32, #tpu.memory_space<vmem>>, %arg7: memref<128x512xf32, #tpu.memory_space<vmem>>, %arg8: memref<8x128xf32, #tpu.memory_space<vmem>>, %arg9: memref<8x128xf32, #tpu.memory_space<vmem>>, %arg10: memref<32x512xf32, #tpu.memory_space<vmem>>, %arg11: memref<2x!tpu.dma_semaphore, #tpu.memory_space<semaphore_mem>>) attributes {dimension_semantics = [#tpu.dimension_semantics<arbitrary>], iteration_bounds = array<i64: 2>, scalar_prefetch = 0 : i64, scratch_operands = 6 : i64, tpu.core_type = #tpu.core_type<tc>, window_params = [{transform_indices = @transform_0, window_bounds = array<i64: 32, 128>}, {}, {}, {pipeline_mode = #tpu.pipeline_mode<synchronous>, transform_indices = @transform_3, window_bounds = array<i64: 1, 512>}, {transform_indices = @transform_4, window_bounds = array<i64: 32, 128>}]} {
    %c0_i32 = arith.constant 0 : i32
    %0 = arith.cmpi eq, %arg0, %c0_i32 : i32
    %1 = arith.extui %0 : i1 to i32
    %c0_i32_0 = arith.constant 0 : i32
    %2 = arith.cmpi ne, %1, %c0_i32_0 : i32
    scf.if %2 {
      %cst_57 = arith.constant 0.000000e+00 : f32
      %158 = vector.broadcast %cst_57 : f32 to vector<8x128xf32>
      %c0_58 = arith.constant 0 : index
      %c0_59 = arith.constant 0 : index
      %159 = vector.load %arg8[%c0_58, %c0_59] : memref<8x128xf32, #tpu.memory_space<vmem>>, vector<8x128xf32>
      tpu.vector_store %arg8[%c0_58, %c0_59], %158 {strides = array<i32>} : memref<8x128xf32, #tpu.memory_space<vmem>>, vector<8x128xf32>,
      %cst_60 = arith.constant 0.000000e+00 : f32
      %160 = vector.broadcast %cst_60 : f32 to vector<8x128xf32>
      %c0_61 = arith.constant 0 : index
      %c0_62 = arith.constant 0 : index
      %161 = vector.load %arg9[%c0_61, %c0_62] : memref<8x128xf32, #tpu.memory_space<vmem>>, vector<8x128xf32>
      tpu.vector_store %arg9[%c0_61, %c0_62], %160 {strides = array<i32>} : memref<8x128xf32, #tpu.memory_space<vmem>>, vector<8x128xf32>,
      %c0_i32_63 = arith.constant 0 : i32
      %162 = tpu.memref_slice %arg11[%c0_i32_63] : memref<2x!tpu.dma_semaphore, #tpu.memory_space<semaphore_mem>> -> memref<1x!tpu.dma_semaphore, #tpu.memory_space<semaphore_mem>>
      %163 = tpu.memref_squeeze %162 : memref<1x!tpu.dma_semaphore, #tpu.memory_space<semaphore_mem>> -> memref<!tpu.dma_semaphore, #tpu.memory_space<semaphore_mem>>
      tpu.enqueue_dma source(%arg2 : memref<128x512xf32, #tpu.memory_space<any>>) target(%arg6 : memref<128x512xf32, #tpu.memory_space<vmem>>) target_semaphore(%163 : memref<!tpu.dma_semaphore, #tpu.memory_space<semaphore_mem>>)
      %c1_i32_64 = arith.constant 1 : i32
      %164 = tpu.memref_slice %arg11[%c1_i32_64] : memref<2x!tpu.dma_semaphore, #tpu.memory_space<semaphore_mem>> -> memref<1x!tpu.dma_semaphore, #tpu.memory_space<semaphore_mem>>
      %165 = tpu.memref_squeeze %164 : memref<1x!tpu.dma_semaphore, #tpu.memory_space<semaphore_mem>> -> memref<!tpu.dma_semaphore, #tpu.memory_space<semaphore_mem>>
      tpu.enqueue_dma source(%arg3 : memref<128x512xf32, #tpu.memory_space<any>>) target(%arg7 : memref<128x512xf32, #tpu.memory_space<vmem>>) target_semaphore(%165 : memref<!tpu.dma_semaphore, #tpu.memory_space<semaphore_mem>>)
      %c0_i32_65 = arith.constant 0 : i32
      %166 = tpu.memref_slice %arg11[%c0_i32_65] : memref<2x!tpu.dma_semaphore, #tpu.memory_space<semaphore_mem>> -> memref<1x!tpu.dma_semaphore, #tpu.memory_space<semaphore_mem>>
      %167 = tpu.memref_squeeze %166 : memref<1x!tpu.dma_semaphore, #tpu.memory_space<semaphore_mem>> -> memref<!tpu.dma_semaphore, #tpu.memory_space<semaphore_mem>>
      tpu.wait_dma2 semaphore(%167 : memref<!tpu.dma_semaphore, #tpu.memory_space<semaphore_mem>>) src(%arg2 : memref<128x512xf32, #tpu.memory_space<any>>) dst(%arg6 : memref<128x512xf32, #tpu.memory_space<vmem>>)
      %c1_i32_66 = arith.constant 1 : i32
      %168 = tpu.memref_slice %arg11[%c1_i32_66] : memref<2x!tpu.dma_semaphore, #tpu.memory_space<semaphore_mem>> -> memref<1x!tpu.dma_semaphore, #tpu.memory_space<semaphore_mem>>
      %169 = tpu.memref_squeeze %168 : memref<1x!tpu.dma_semaphore, #tpu.memory_space<semaphore_mem>> -> memref<!tpu.dma_semaphore, #tpu.memory_space<semaphore_mem>>
      tpu.wait_dma2 semaphore(%169 : memref<!tpu.dma_semaphore, #tpu.memory_space<semaphore_mem>>) src(%arg3 : memref<128x512xf32, #tpu.memory_space<any>>) dst(%arg7 : memref<128x512xf32, #tpu.memory_space<vmem>>)
    } else {
    }
    %c0 = arith.constant 0 : index
    %c0_1 = arith.constant 0 : index
    %3 = vector.load %arg1[%c0, %c0_1] : memref<32x128xf32, #tpu.memory_space<vmem>>, vector<32x128xf32>
    %c0_2 = arith.constant 0 : index
    %c0_3 = arith.constant 0 : index
    %4 = vector.load %arg6[%c0_2, %c0_3] : memref<128x512xf32, #tpu.memory_space<vmem>>, vector<128x512xf32>
    %cst = arith.constant dense<0.000000e+00> : vector<32x512xf32>
    %5 = tpu.matmul %3, %4, %cst {dimension_numbers = #tpu.dot_dimension_numbers<[1], [0], [0], [1], [0, 0, 1, 1], [], []>} : vector<32x128xf32>, vector<128x512xf32>, vector<32x512xf32> -> vector<32x512xf32>
    %c0_4 = arith.constant 0 : index
    %c0_5 = arith.constant 0 : index
    %6 = vector.load %arg4[%c0_4, %c0_5] : memref<1x512xf32, #tpu.memory_space<vmem>>, vector<1x512xf32>
    %7 = vector.broadcast %6 : vector<1x512xf32> to vector<32x512xf32>
    %8 = arith.addf %5, %7 : vector<32x512xf32>
    %c0_6 = arith.constant 0 : index
    %c0_7 = arith.constant 0 : index
    %9 = vector.load %arg10[%c0_6, %c0_7] : memref<32x512xf32, #tpu.memory_space<vmem>>, vector<32x512xf32>
    tpu.vector_store %arg10[%c0_6, %c0_7], %8 {strides = array<i32>} : memref<32x512xf32, #tpu.memory_space<vmem>>, vector<32x512xf32>,
    %c0_8 = arith.constant 0 : index
    %c0_9 = arith.constant 0 : index
    %10 = vector.load %arg8[%c0_8, %c0_9] : memref<8x128xf32, #tpu.memory_space<vmem>>, vector<8x128xf32>
    %c0_10 = arith.constant 0 : index
    %c0_11 = arith.constant 0 : index
    %11 = vector.load %arg9[%c0_10, %c0_11] : memref<8x128xf32, #tpu.memory_space<vmem>>, vector<8x128xf32>
    %c0_i32_12 = arith.constant 0 : i32
    %c4_i32 = arith.constant 4 : i32
    %12 = arith.muli %c0_i32_12, %c4_i32 : i32
    %c0_i32_13 = arith.constant 0 : i32
    %13 = arith.addi %12, %c0_i32_13 : i32
    %c8_i32 = arith.constant 8 : i32
    %14 = arith.muli %13, %c8_i32 : i32
    %15 = tpu.assume_multiple %14, 8 : i32
    %16 = arith.index_cast %15 : i32 to index
    %c0_14 = arith.constant 0 : index
    %17 = vector.load %arg10[%16, %c0_14] : memref<32x512xf32, #tpu.memory_space<vmem>>, vector<8x512xf32>
    %c0_15 = arith.constant 0 : index
    %c0_16 = arith.constant 0 : index
    %18 = vector.load %arg7[%c0_15, %c0_16] : memref<128x512xf32, #tpu.memory_space<vmem>>, vector<128x512xf32>
    %cst_17 = arith.constant dense<0.000000e+00> : vector<8x512xf32>
    %19 = tpu.matmul %10, %18, %cst_17 {dimension_numbers = #tpu.dot_dimension_numbers<[1], [0], [0], [1], [0, 0, 1, 1], [], []>} : vector<8x128xf32>, vector<128x512xf32>, vector<8x512xf32> -> vector<8x512xf32>
    %20 = arith.addf %17, %19 : vector<8x512xf32>
    %21 = vector.extract_strided_slice %20 {offsets = [0, 0], sizes = [8, 128], strides = [1, 1]} : vector<8x512xf32> to vector<8x128xf32>
    %22 = arith.negf %21 : vector<8x128xf32>
    %23 = math.exp %22 : vector<8x128xf32>
    %cst_18 = arith.constant 1.000000e+00 : f32
    %24 = vector.broadcast %cst_18 : f32 to vector<8x128xf32>
    %25 = arith.addf %24, %23 : vector<8x128xf32>
    %26 = arith.divf %24, %25 : vector<8x128xf32>
    %27 = vector.extract_strided_slice %20 {offsets = [0, 128], sizes = [8, 128], strides = [1, 1]} : vector<8x512xf32> to vector<8x128xf32>
    %28 = arith.negf %27 : vector<8x128xf32>
    %29 = math.exp %28 : vector<8x128xf32>
    %cst_19 = arith.constant 1.000000e+00 : f32
    %30 = vector.broadcast %cst_19 : f32 to vector<8x128xf32>
    %31 = arith.addf %30, %29 : vector<8x128xf32>
    %32 = arith.divf %30, %31 : vector<8x128xf32>
    %33 = vector.extract_strided_slice %20 {offsets = [0, 256], sizes = [8, 128], strides = [1, 1]} : vector<8x512xf32> to vector<8x128xf32>
    %34 = math.tanh %33 : vector<8x128xf32>
    %35 = vector.extract_strided_slice %20 {offsets = [0, 384], sizes = [8, 128], strides = [1, 1]} : vector<8x512xf32> to vector<8x128xf32>
    %36 = arith.negf %35 : vector<8x128xf32>
    %37 = math.exp %36 : vector<8x128xf32>
    %cst_20 = arith.constant 1.000000e+00 : f32
    %38 = vector.broadcast %cst_20 : f32 to vector<8x128xf32>
    %39 = arith.addf %38, %37 : vector<8x128xf32>
    %40 = arith.divf %38, %39 : vector<8x128xf32>
    %41 = arith.mulf %32, %11 : vector<8x128xf32>
    %42 = arith.mulf %26, %34 : vector<8x128xf32>
    %43 = arith.addf %41, %42 : vector<8x128xf32>
    %44 = math.tanh %43 : vector<8x128xf32>
    %45 = arith.mulf %40, %44 : vector<8x128xf32>
    %46 = arith.index_cast %15 : i32 to index
    %c0_21 = arith.constant 0 : index
    %47 = vector.load %arg5[%46, %c0_21] : memref<32x128xf32, #tpu.memory_space<vmem>>, vector<8x128xf32>
    tpu.vector_store %arg5[%46, %c0_21], %45 {strides = array<i32>} : memref<32x128xf32, #tpu.memory_space<vmem>>, vector<8x128xf32>,
    %c4_i32_22 = arith.constant 4 : i32
    %48 = arith.muli %c0_i32_12, %c4_i32_22 : i32
    %c1_i32 = arith.constant 1 : i32
    %49 = arith.addi %48, %c1_i32 : i32
    %c8_i32_23 = arith.constant 8 : i32
    %50 = arith.muli %49, %c8_i32_23 : i32
    %51 = tpu.assume_multiple %50, 8 : i32
    %52 = arith.index_cast %51 : i32 to index
    %c0_24 = arith.constant 0 : index
    %53 = vector.load %arg10[%52, %c0_24] : memref<32x512xf32, #tpu.memory_space<vmem>>, vector<8x512xf32>
    %c0_25 = arith.constant 0 : index
    %c0_26 = arith.constant 0 : index
    %54 = vector.load %arg7[%c0_25, %c0_26] : memref<128x512xf32, #tpu.memory_space<vmem>>, vector<128x512xf32>
    %cst_27 = arith.constant dense<0.000000e+00> : vector<8x512xf32>
    %55 = tpu.matmul %45, %54, %cst_27 {dimension_numbers = #tpu.dot_dimension_numbers<[1], [0], [0], [1], [0, 0, 1, 1], [], []>} : vector<8x128xf32>, vector<128x512xf32>, vector<8x512xf32> -> vector<8x512xf32>
    %56 = arith.addf %53, %55 : vector<8x512xf32>
    %57 = vector.extract_strided_slice %56 {offsets = [0, 0], sizes = [8, 128], strides = [1, 1]} : vector<8x512xf32> to vector<8x128xf32>
    %58 = arith.negf %57 : vector<8x128xf32>
    %59 = math.exp %58 : vector<8x128xf32>
    %cst_28 = arith.constant 1.000000e+00 : f32
    %60 = vector.broadcast %cst_28 : f32 to vector<8x128xf32>
    %61 = arith.addf %60, %59 : vector<8x128xf32>
    %62 = arith.divf %60, %61 : vector<8x128xf32>
    %63 = vector.extract_strided_slice %56 {offsets = [0, 128], sizes = [8, 128], strides = [1, 1]} : vector<8x512xf32> to vector<8x128xf32>
    %64 = arith.negf %63 : vector<8x128xf32>
    %65 = math.exp %64 : vector<8x128xf32>
    %cst_29 = arith.constant 1.000000e+00 : f32
    %66 = vector.broadcast %cst_29 : f32 to vector<8x128xf32>
    %67 = arith.addf %66, %65 : vector<8x128xf32>
    %68 = arith.divf %66, %67 : vector<8x128xf32>
    %69 = vector.extract_strided_slice %56 {offsets = [0, 256], sizes = [8, 128], strides = [1, 1]} : vector<8x512xf32> to vector<8x128xf32>
    %70 = math.tanh %69 : vector<8x128xf32>
    %71 = vector.extract_strided_slice %56 {offsets = [0, 384], sizes = [8, 128], strides = [1, 1]} : vector<8x512xf32> to vector<8x128xf32>
    %72 = arith.negf %71 : vector<8x128xf32>
    %73 = math.exp %72 : vector<8x128xf32>
    %cst_30 = arith.constant 1.000000e+00 : f32
    %74 = vector.broadcast %cst_30 : f32 to vector<8x128xf32>
    %75 = arith.addf %74, %73 : vector<8x128xf32>
    %76 = arith.divf %74, %75 : vector<8x128xf32>
    %77 = arith.mulf %68, %43 : vector<8x128xf32>
    %78 = arith.mulf %62, %70 : vector<8x128xf32>
    %79 = arith.addf %77, %78 : vector<8x128xf32>
    %80 = math.tanh %79 : vector<8x128xf32>
    %81 = arith.mulf %76, %80 : vector<8x128xf32>
    %82 = arith.index_cast %51 : i32 to index
    %c0_31 = arith.constant 0 : index
    %83 = vector.load %arg5[%82, %c0_31] : memref<32x128xf32, #tpu.memory_space<vmem>>, vector<8x128xf32>
    tpu.vector_store %arg5[%82, %c0_31], %81 {strides = array<i32>} : memref<32x128xf32, #tpu.memory_space<vmem>>, vector<8x128xf32>,
    %c4_i32_32 = arith.constant 4 : i32
    %84 = arith.muli %c0_i32_12, %c4_i32_32 : i32
    %c2_i32 = arith.constant 2 : i32
    %85 = arith.addi %84, %c2_i32 : i32
    %c8_i32_33 = arith.constant 8 : i32
    %86 = arith.muli %85, %c8_i32_33 : i32
    %87 = tpu.assume_multiple %86, 8 : i32
    %88 = arith.index_cast %87 : i32 to index
    %c0_34 = arith.constant 0 : index
    %89 = vector.load %arg10[%88, %c0_34] : memref<32x512xf32, #tpu.memory_space<vmem>>, vector<8x512xf32>
    %c0_35 = arith.constant 0 : index
    %c0_36 = arith.constant 0 : index
    %90 = vector.load %arg7[%c0_35, %c0_36] : memref<128x512xf32, #tpu.memory_space<vmem>>, vector<128x512xf32>
    %cst_37 = arith.constant dense<0.000000e+00> : vector<8x512xf32>
    %91 = tpu.matmul %81, %90, %cst_37 {dimension_numbers = #tpu.dot_dimension_numbers<[1], [0], [0], [1], [0, 0, 1, 1], [], []>} : vector<8x128xf32>, vector<128x512xf32>, vector<8x512xf32> -> vector<8x512xf32>
    %92 = arith.addf %89, %91 : vector<8x512xf32>
    %93 = vector.extract_strided_slice %92 {offsets = [0, 0], sizes = [8, 128], strides = [1, 1]} : vector<8x512xf32> to vector<8x128xf32>
    %94 = arith.negf %93 : vector<8x128xf32>
    %95 = math.exp %94 : vector<8x128xf32>
    %cst_38 = arith.constant 1.000000e+00 : f32
    %96 = vector.broadcast %cst_38 : f32 to vector<8x128xf32>
    %97 = arith.addf %96, %95 : vector<8x128xf32>
    %98 = arith.divf %96, %97 : vector<8x128xf32>
    %99 = vector.extract_strided_slice %92 {offsets = [0, 128], sizes = [8, 128], strides = [1, 1]} : vector<8x512xf32> to vector<8x128xf32>
    %100 = arith.negf %99 : vector<8x128xf32>
    %101 = math.exp %100 : vector<8x128xf32>
    %cst_39 = arith.constant 1.000000e+00 : f32
    %102 = vector.broadcast %cst_39 : f32 to vector<8x128xf32>
    %103 = arith.addf %102, %101 : vector<8x128xf32>
    %104 = arith.divf %102, %103 : vector<8x128xf32>
    %105 = vector.extract_strided_slice %92 {offsets = [0, 256], sizes = [8, 128], strides = [1, 1]} : vector<8x512xf32> to vector<8x128xf32>
    %106 = math.tanh %105 : vector<8x128xf32>
    %107 = vector.extract_strided_slice %92 {offsets = [0, 384], sizes = [8, 128], strides = [1, 1]} : vector<8x512xf32> to vector<8x128xf32>
    %108 = arith.negf %107 : vector<8x128xf32>
    %109 = math.exp %108 : vector<8x128xf32>
    %cst_40 = arith.constant 1.000000e+00 : f32
    %110 = vector.broadcast %cst_40 : f32 to vector<8x128xf32>
    %111 = arith.addf %110, %109 : vector<8x128xf32>
    %112 = arith.divf %110, %111 : vector<8x128xf32>
    %113 = arith.mulf %104, %79 : vector<8x128xf32>
    %114 = arith.mulf %98, %106 : vector<8x128xf32>
    %115 = arith.addf %113, %114 : vector<8x128xf32>
    %116 = math.tanh %115 : vector<8x128xf32>
    %117 = arith.mulf %112, %116 : vector<8x128xf32>
    %118 = arith.index_cast %87 : i32 to index
    %c0_41 = arith.constant 0 : index
    %119 = vector.load %arg5[%118, %c0_41] : memref<32x128xf32, #tpu.memory_space<vmem>>, vector<8x128xf32>
    tpu.vector_store %arg5[%118, %c0_41], %117 {strides = array<i32>} : memref<32x128xf32, #tpu.memory_space<vmem>>, vector<8x128xf32>,
    %c4_i32_42 = arith.constant 4 : i32
    %120 = arith.muli %c0_i32_12, %c4_i32_42 : i32
    %c3_i32 = arith.constant 3 : i32
    %121 = arith.addi %120, %c3_i32 : i32
    %c8_i32_43 = arith.constant 8 : i32
    %122 = arith.muli %121, %c8_i32_43 : i32
    %123 = tpu.assume_multiple %122, 8 : i32
    %124 = arith.index_cast %123 : i32 to index
    %c0_44 = arith.constant 0 : index
    %125 = vector.load %arg10[%124, %c0_44] : memref<32x512xf32, #tpu.memory_space<vmem>>, vector<8x512xf32>
    %c0_45 = arith.constant 0 : index
    %c0_46 = arith.constant 0 : index
    %126 = vector.load %arg7[%c0_45, %c0_46] : memref<128x512xf32, #tpu.memory_space<vmem>>, vector<128x512xf32>
    %cst_47 = arith.constant dense<0.000000e+00> : vector<8x512xf32>
    %127 = tpu.matmul %117, %126, %cst_47 {dimension_numbers = #tpu.dot_dimension_numbers<[1], [0], [0], [1], [0, 0, 1, 1], [], []>} : vector<8x128xf32>, vector<128x512xf32>, vector<8x512xf32> -> vector<8x512xf32>
    %128 = arith.addf %125, %127 : vector<8x512xf32>
    %129 = vector.extract_strided_slice %128 {offsets = [0, 0], sizes = [8, 128], strides = [1, 1]} : vector<8x512xf32> to vector<8x128xf32>
    %130 = arith.negf %129 : vector<8x128xf32>
    %131 = math.exp %130 : vector<8x128xf32>
    %cst_48 = arith.constant 1.000000e+00 : f32
    %132 = vector.broadcast %cst_48 : f32 to vector<8x128xf32>
    %133 = arith.addf %132, %131 : vector<8x128xf32>
    %134 = arith.divf %132, %133 : vector<8x128xf32>
    %135 = vector.extract_strided_slice %128 {offsets = [0, 128], sizes = [8, 128], strides = [1, 1]} : vector<8x512xf32> to vector<8x128xf32>
    %136 = arith.negf %135 : vector<8x128xf32>
    %137 = math.exp %136 : vector<8x128xf32>
    %cst_49 = arith.constant 1.000000e+00 : f32
    %138 = vector.broadcast %cst_49 : f32 to vector<8x128xf32>
    %139 = arith.addf %138, %137 : vector<8x128xf32>
    %140 = arith.divf %138, %139 : vector<8x128xf32>
    %141 = vector.extract_strided_slice %128 {offsets = [0, 256], sizes = [8, 128], strides = [1, 1]} : vector<8x512xf32> to vector<8x128xf32>
    %142 = math.tanh %141 : vector<8x128xf32>
    %143 = vector.extract_strided_slice %128 {offsets = [0, 384], sizes = [8, 128], strides = [1, 1]} : vector<8x512xf32> to vector<8x128xf32>
    %144 = arith.negf %143 : vector<8x128xf32>
    %145 = math.exp %144 : vector<8x128xf32>
    %cst_50 = arith.constant 1.000000e+00 : f32
    %146 = vector.broadcast %cst_50 : f32 to vector<8x128xf32>
    %147 = arith.addf %146, %145 : vector<8x128xf32>
    %148 = arith.divf %146, %147 : vector<8x128xf32>
    %149 = arith.mulf %140, %115 : vector<8x128xf32>
    %150 = arith.mulf %134, %142 : vector<8x128xf32>
    %151 = arith.addf %149, %150 : vector<8x128xf32>
    %152 = math.tanh %151 : vector<8x128xf32>
    %153 = arith.mulf %148, %152 : vector<8x128xf32>
    %154 = arith.index_cast %123 : i32 to index
    %c0_51 = arith.constant 0 : index
    %155 = vector.load %arg5[%154, %c0_51] : memref<32x128xf32, #tpu.memory_space<vmem>>, vector<8x128xf32>
    tpu.vector_store %arg5[%154, %c0_51], %153 {strides = array<i32>} : memref<32x128xf32, #tpu.memory_space<vmem>>, vector<8x128xf32>,
    %c1_i32_52 = arith.constant 1 : i32
    %c0_53 = arith.constant 0 : index
    %c0_54 = arith.constant 0 : index
    %156 = vector.load %arg8[%c0_53, %c0_54] : memref<8x128xf32, #tpu.memory_space<vmem>>, vector<8x128xf32>
    tpu.vector_store %arg8[%c0_53, %c0_54], %153 {strides = array<i32>} : memref<8x128xf32, #tpu.memory_space<vmem>>, vector<8x128xf32>,
    %c0_55 = arith.constant 0 : index
    %c0_56 = arith.constant 0 : index
    %157 = vector.load %arg9[%c0_55, %c0_56] : memref<8x128xf32, #tpu.memory_space<vmem>>, vector<8x128xf32>
    tpu.vector_store %arg9[%c0_55, %c0_56], %151 {strides = array<i32>} : memref<8x128xf32, #tpu.memory_space<vmem>>, vector<8x128xf32>,
    return
  }
  func.func @transform_0(%arg0: i32) -> (i32, i32) {
    %c0_i32 = arith.constant 0 : i32
    %c0_i32_0 = arith.constant 0 : i32
    return %arg0, %c0_i32 : i32, i32
  }
  func.func @transform_3(%arg0: i32) -> (i32, i32) {
    %c0_i32 = arith.constant 0 : i32
    %c0_i32_0 = arith.constant 0 : i32
    %c0_i32_1 = arith.constant 0 : i32
    return %c0_i32, %c0_i32_0 : i32, i32
  }
  func.func @transform_4(%arg0: i32) -> (i32, i32) {
    %c0_i32 = arith.constant 0 : i32
    %c0_i32_0 = arith.constant 0 : i32
    return %arg0, %c0_i32 : i32, i32
  }
}

module attributes {stable_mosaic.version = 11 : i64} {
  func.func @lstm_layer_kernel(%arg0: i32, %arg1: memref<32x128xf32, #tpu.memory_space<vmem>>, %arg2: memref<128x512xf32, #tpu.memory_space<any>>, %arg3: memref<128x512xf32, #tpu.memory_space<any>>, %arg4: memref<1x512xf32, #tpu.memory_space<vmem>>, %arg5: memref<32x128xf32, #tpu.memory_space<vmem>>, %arg6: memref<128x512xf32, #tpu.memory_space<vmem>>, %arg7: memref<128x512xf32, #tpu.memory_space<vmem>>, %arg8: memref<8x128xf32, #tpu.memory_space<vmem>>, %arg9: memref<8x128xf32, #tpu.memory_space<vmem>>, %arg10: memref<32x512xf32, #tpu.memory_space<vmem>>, %arg11: memref<2x!tpu.dma_semaphore, #tpu.memory_space<semaphore_mem>>) attributes {dimension_semantics = [#tpu.dimension_semantics<arbitrary>], iteration_bounds = array<i64: 2>, scalar_prefetch = 0 : i64, scratch_operands = 6 : i64, tpu.core_type = #tpu.core_type<tc>, window_params = [{transform_indices = @transform_0, window_bounds = array<i64: 32, 128>}, {}, {}, {pipeline_mode = #tpu.pipeline_mode<synchronous>, transform_indices = @transform_3, window_bounds = array<i64: 1, 512>}, {transform_indices = @transform_4, window_bounds = array<i64: 32, 128>}]} {
    %c0_i32 = arith.constant 0 : i32
    %0 = arith.cmpi eq, %arg0, %c0_i32 : i32
    %1 = arith.extui %0 : i1 to i32
    %c0_i32_0 = arith.constant 0 : i32
    %2 = arith.cmpi ne, %1, %c0_i32_0 : i32
    scf.if %2 {
      %cst_57 = arith.constant 0.000000e+00 : f32
      %158 = vector.broadcast %cst_57 : f32 to vector<8x128xf32>
      %c0_58 = arith.constant 0 : index
      %c0_59 = arith.constant 0 : index
      %159 = vector.load %arg8[%c0_58, %c0_59] : memref<8x128xf32, #tpu.memory_space<vmem>>, vector<8x128xf32>
      tpu.vector_store %arg8[%c0_58, %c0_59], %158 {strides = array<i32>} : memref<8x128xf32, #tpu.memory_space<vmem>>, vector<8x128xf32>,
      %cst_60 = arith.constant 0.000000e+00 : f32
      %160 = vector.broadcast %cst_60 : f32 to vector<8x128xf32>
      %c0_61 = arith.constant 0 : index
      %c0_62 = arith.constant 0 : index
      %161 = vector.load %arg9[%c0_61, %c0_62] : memref<8x128xf32, #tpu.memory_space<vmem>>, vector<8x128xf32>
      tpu.vector_store %arg9[%c0_61, %c0_62], %160 {strides = array<i32>} : memref<8x128xf32, #tpu.memory_space<vmem>>, vector<8x128xf32>,
      %c0_i32_63 = arith.constant 0 : i32
      %162 = tpu.memref_slice %arg11[%c0_i32_63] : memref<2x!tpu.dma_semaphore, #tpu.memory_space<semaphore_mem>> -> memref<1x!tpu.dma_semaphore, #tpu.memory_space<semaphore_mem>>
      %163 = tpu.memref_squeeze %162 : memref<1x!tpu.dma_semaphore, #tpu.memory_space<semaphore_mem>> -> memref<!tpu.dma_semaphore, #tpu.memory_space<semaphore_mem>>
      tpu.enqueue_dma source(%arg2 : memref<128x512xf32, #tpu.memory_space<any>>) target(%arg6 : memref<128x512xf32, #tpu.memory_space<vmem>>) target_semaphore(%163 : memref<!tpu.dma_semaphore, #tpu.memory_space<semaphore_mem>>)
      %c1_i32_64 = arith.constant 1 : i32
      %164 = tpu.memref_slice %arg11[%c1_i32_64] : memref<2x!tpu.dma_semaphore, #tpu.memory_space<semaphore_mem>> -> memref<1x!tpu.dma_semaphore, #tpu.memory_space<semaphore_mem>>
      %165 = tpu.memref_squeeze %164 : memref<1x!tpu.dma_semaphore, #tpu.memory_space<semaphore_mem>> -> memref<!tpu.dma_semaphore, #tpu.memory_space<semaphore_mem>>
      tpu.enqueue_dma source(%arg3 : memref<128x512xf32, #tpu.memory_space<any>>) target(%arg7 : memref<128x512xf32, #tpu.memory_space<vmem>>) target_semaphore(%165 : memref<!tpu.dma_semaphore, #tpu.memory_space<semaphore_mem>>)
      %c0_i32_65 = arith.constant 0 : i32
      %166 = tpu.memref_slice %arg11[%c0_i32_65] : memref<2x!tpu.dma_semaphore, #tpu.memory_space<semaphore_mem>> -> memref<1x!tpu.dma_semaphore, #tpu.memory_space<semaphore_mem>>
      %167 = tpu.memref_squeeze %166 : memref<1x!tpu.dma_semaphore, #tpu.memory_space<semaphore_mem>> -> memref<!tpu.dma_semaphore, #tpu.memory_space<semaphore_mem>>
      tpu.wait_dma2 semaphore(%167 : memref<!tpu.dma_semaphore, #tpu.memory_space<semaphore_mem>>) src(%arg2 : memref<128x512xf32, #tpu.memory_space<any>>) dst(%arg6 : memref<128x512xf32, #tpu.memory_space<vmem>>)
      %c1_i32_66 = arith.constant 1 : i32
      %168 = tpu.memref_slice %arg11[%c1_i32_66] : memref<2x!tpu.dma_semaphore, #tpu.memory_space<semaphore_mem>> -> memref<1x!tpu.dma_semaphore, #tpu.memory_space<semaphore_mem>>
      %169 = tpu.memref_squeeze %168 : memref<1x!tpu.dma_semaphore, #tpu.memory_space<semaphore_mem>> -> memref<!tpu.dma_semaphore, #tpu.memory_space<semaphore_mem>>
      tpu.wait_dma2 semaphore(%169 : memref<!tpu.dma_semaphore, #tpu.memory_space<semaphore_mem>>) src(%arg3 : memref<128x512xf32, #tpu.memory_space<any>>) dst(%arg7 : memref<128x512xf32, #tpu.memory_space<vmem>>)
    } else {
    }
    %c0 = arith.constant 0 : index
    %c0_1 = arith.constant 0 : index
    %3 = vector.load %arg1[%c0, %c0_1] : memref<32x128xf32, #tpu.memory_space<vmem>>, vector<32x128xf32>
    %c0_2 = arith.constant 0 : index
    %c0_3 = arith.constant 0 : index
    %4 = vector.load %arg6[%c0_2, %c0_3] : memref<128x512xf32, #tpu.memory_space<vmem>>, vector<128x512xf32>
    %cst = arith.constant dense<0.000000e+00> : vector<32x512xf32>
    %5 = tpu.matmul %3, %4, %cst {dimension_numbers = #tpu.dot_dimension_numbers<[1], [0], [0], [1], [0, 0, 1, 1], [], []>} : vector<32x128xf32>, vector<128x512xf32>, vector<32x512xf32> -> vector<32x512xf32>
    %c0_4 = arith.constant 0 : index
    %c0_5 = arith.constant 0 : index
    %6 = vector.load %arg4[%c0_4, %c0_5] : memref<1x512xf32, #tpu.memory_space<vmem>>, vector<1x512xf32>
    %7 = vector.broadcast %6 : vector<1x512xf32> to vector<32x512xf32>
    %8 = arith.addf %5, %7 : vector<32x512xf32>
    %c0_6 = arith.constant 0 : index
    %c0_7 = arith.constant 0 : index
    %9 = vector.load %arg10[%c0_6, %c0_7] : memref<32x512xf32, #tpu.memory_space<vmem>>, vector<32x512xf32>
    tpu.vector_store %arg10[%c0_6, %c0_7], %8 {strides = array<i32>} : memref<32x512xf32, #tpu.memory_space<vmem>>, vector<32x512xf32>,
    %c0_8 = arith.constant 0 : index
    %c0_9 = arith.constant 0 : index
    %10 = vector.load %arg8[%c0_8, %c0_9] : memref<8x128xf32, #tpu.memory_space<vmem>>, vector<8x128xf32>
    %c0_10 = arith.constant 0 : index
    %c0_11 = arith.constant 0 : index
    %11 = vector.load %arg9[%c0_10, %c0_11] : memref<8x128xf32, #tpu.memory_space<vmem>>, vector<8x128xf32>
    %c0_i32_12 = arith.constant 0 : i32
    %c4_i32 = arith.constant 4 : i32
    %12 = arith.muli %c0_i32_12, %c4_i32 : i32
    %c0_i32_13 = arith.constant 0 : i32
    %13 = arith.addi %12, %c0_i32_13 : i32
    %c8_i32 = arith.constant 8 : i32
    %14 = arith.muli %13, %c8_i32 : i32
    %15 = tpu.assume_multiple %14, 8 : i32
    %16 = arith.index_cast %15 : i32 to index
    %c0_14 = arith.constant 0 : index
    %17 = vector.load %arg10[%16, %c0_14] : memref<32x512xf32, #tpu.memory_space<vmem>>, vector<8x512xf32>
    %c0_15 = arith.constant 0 : index
    %c0_16 = arith.constant 0 : index
    %18 = vector.load %arg7[%c0_15, %c0_16] : memref<128x512xf32, #tpu.memory_space<vmem>>, vector<128x512xf32>
    %cst_17 = arith.constant dense<0.000000e+00> : vector<8x512xf32>
    %19 = tpu.matmul %10, %18, %cst_17 {dimension_numbers = #tpu.dot_dimension_numbers<[1], [0], [0], [1], [0, 0, 1, 1], [], []>} : vector<8x128xf32>, vector<128x512xf32>, vector<8x512xf32> -> vector<8x512xf32>
    %20 = arith.addf %17, %19 : vector<8x512xf32>
    %21 = vector.extract_strided_slice %20 {offsets = [0, 0], sizes = [8, 128], strides = [1, 1]} : vector<8x512xf32> to vector<8x128xf32>
    %22 = arith.negf %21 : vector<8x128xf32>
    %23 = math.exp %22 : vector<8x128xf32>
    %cst_18 = arith.constant 1.000000e+00 : f32
    %24 = vector.broadcast %cst_18 : f32 to vector<8x128xf32>
    %25 = arith.addf %24, %23 : vector<8x128xf32>
    %26 = arith.divf %24, %25 : vector<8x128xf32>
    %27 = vector.extract_strided_slice %20 {offsets = [0, 128], sizes = [8, 128], strides = [1, 1]} : vector<8x512xf32> to vector<8x128xf32>
    %28 = arith.negf %27 : vector<8x128xf32>
    %29 = math.exp %28 : vector<8x128xf32>
    %cst_19 = arith.constant 1.000000e+00 : f32
    %30 = vector.broadcast %cst_19 : f32 to vector<8x128xf32>
    %31 = arith.addf %30, %29 : vector<8x128xf32>
    %32 = arith.divf %30, %31 : vector<8x128xf32>
    %33 = vector.extract_strided_slice %20 {offsets = [0, 256], sizes = [8, 128], strides = [1, 1]} : vector<8x512xf32> to vector<8x128xf32>
    %34 = math.tanh %33 : vector<8x128xf32>
    %35 = vector.extract_strided_slice %20 {offsets = [0, 384], sizes = [8, 128], strides = [1, 1]} : vector<8x512xf32> to vector<8x128xf32>
    %36 = arith.negf %35 : vector<8x128xf32>
    %37 = math.exp %36 : vector<8x128xf32>
    %cst_20 = arith.constant 1.000000e+00 : f32
    %38 = vector.broadcast %cst_20 : f32 to vector<8x128xf32>
    %39 = arith.addf %38, %37 : vector<8x128xf32>
    %40 = arith.divf %38, %39 : vector<8x128xf32>
    %41 = arith.mulf %32, %11 : vector<8x128xf32>
    %42 = arith.mulf %26, %34 : vector<8x128xf32>
    %43 = arith.addf %41, %42 : vector<8x128xf32>
    %44 = math.tanh %43 : vector<8x128xf32>
    %45 = arith.mulf %40, %44 : vector<8x128xf32>
    %46 = arith.index_cast %15 : i32 to index
    %c0_21 = arith.constant 0 : index
    %47 = vector.load %arg5[%46, %c0_21] : memref<32x128xf32, #tpu.memory_space<vmem>>, vector<8x128xf32>
    tpu.vector_store %arg5[%46, %c0_21], %45 {strides = array<i32>} : memref<32x128xf32, #tpu.memory_space<vmem>>, vector<8x128xf32>,
    %c4_i32_22 = arith.constant 4 : i32
    %48 = arith.muli %c0_i32_12, %c4_i32_22 : i32
    %c1_i32 = arith.constant 1 : i32
    %49 = arith.addi %48, %c1_i32 : i32
    %c8_i32_23 = arith.constant 8 : i32
    %50 = arith.muli %49, %c8_i32_23 : i32
    %51 = tpu.assume_multiple %50, 8 : i32
    %52 = arith.index_cast %51 : i32 to index
    %c0_24 = arith.constant 0 : index
    %53 = vector.load %arg10[%52, %c0_24] : memref<32x512xf32, #tpu.memory_space<vmem>>, vector<8x512xf32>
    %c0_25 = arith.constant 0 : index
    %c0_26 = arith.constant 0 : index
    %54 = vector.load %arg7[%c0_25, %c0_26] : memref<128x512xf32, #tpu.memory_space<vmem>>, vector<128x512xf32>
    %cst_27 = arith.constant dense<0.000000e+00> : vector<8x512xf32>
    %55 = tpu.matmul %45, %54, %cst_27 {dimension_numbers = #tpu.dot_dimension_numbers<[1], [0], [0], [1], [0, 0, 1, 1], [], []>} : vector<8x128xf32>, vector<128x512xf32>, vector<8x512xf32> -> vector<8x512xf32>
    %56 = arith.addf %53, %55 : vector<8x512xf32>
    %57 = vector.extract_strided_slice %56 {offsets = [0, 0], sizes = [8, 128], strides = [1, 1]} : vector<8x512xf32> to vector<8x128xf32>
    %58 = arith.negf %57 : vector<8x128xf32>
    %59 = math.exp %58 : vector<8x128xf32>
    %cst_28 = arith.constant 1.000000e+00 : f32
    %60 = vector.broadcast %cst_28 : f32 to vector<8x128xf32>
    %61 = arith.addf %60, %59 : vector<8x128xf32>
    %62 = arith.divf %60, %61 : vector<8x128xf32>
    %63 = vector.extract_strided_slice %56 {offsets = [0, 128], sizes = [8, 128], strides = [1, 1]} : vector<8x512xf32> to vector<8x128xf32>
    %64 = arith.negf %63 : vector<8x128xf32>
    %65 = math.exp %64 : vector<8x128xf32>
    %cst_29 = arith.constant 1.000000e+00 : f32
    %66 = vector.broadcast %cst_29 : f32 to vector<8x128xf32>
    %67 = arith.addf %66, %65 : vector<8x128xf32>
    %68 = arith.divf %66, %67 : vector<8x128xf32>
    %69 = vector.extract_strided_slice %56 {offsets = [0, 256], sizes = [8, 128], strides = [1, 1]} : vector<8x512xf32> to vector<8x128xf32>
    %70 = math.tanh %69 : vector<8x128xf32>
    %71 = vector.extract_strided_slice %56 {offsets = [0, 384], sizes = [8, 128], strides = [1, 1]} : vector<8x512xf32> to vector<8x128xf32>
    %72 = arith.negf %71 : vector<8x128xf32>
    %73 = math.exp %72 : vector<8x128xf32>
    %cst_30 = arith.constant 1.000000e+00 : f32
    %74 = vector.broadcast %cst_30 : f32 to vector<8x128xf32>
    %75 = arith.addf %74, %73 : vector<8x128xf32>
    %76 = arith.divf %74, %75 : vector<8x128xf32>
    %77 = arith.mulf %68, %43 : vector<8x128xf32>
    %78 = arith.mulf %62, %70 : vector<8x128xf32>
    %79 = arith.addf %77, %78 : vector<8x128xf32>
    %80 = math.tanh %79 : vector<8x128xf32>
    %81 = arith.mulf %76, %80 : vector<8x128xf32>
    %82 = arith.index_cast %51 : i32 to index
    %c0_31 = arith.constant 0 : index
    %83 = vector.load %arg5[%82, %c0_31] : memref<32x128xf32, #tpu.memory_space<vmem>>, vector<8x128xf32>
    tpu.vector_store %arg5[%82, %c0_31], %81 {strides = array<i32>} : memref<32x128xf32, #tpu.memory_space<vmem>>, vector<8x128xf32>,
    %c4_i32_32 = arith.constant 4 : i32
    %84 = arith.muli %c0_i32_12, %c4_i32_32 : i32
    %c2_i32 = arith.constant 2 : i32
    %85 = arith.addi %84, %c2_i32 : i32
    %c8_i32_33 = arith.constant 8 : i32
    %86 = arith.muli %85, %c8_i32_33 : i32
    %87 = tpu.assume_multiple %86, 8 : i32
    %88 = arith.index_cast %87 : i32 to index
    %c0_34 = arith.constant 0 : index
    %89 = vector.load %arg10[%88, %c0_34] : memref<32x512xf32, #tpu.memory_space<vmem>>, vector<8x512xf32>
    %c0_35 = arith.constant 0 : index
    %c0_36 = arith.constant 0 : index
    %90 = vector.load %arg7[%c0_35, %c0_36] : memref<128x512xf32, #tpu.memory_space<vmem>>, vector<128x512xf32>
    %cst_37 = arith.constant dense<0.000000e+00> : vector<8x512xf32>
    %91 = tpu.matmul %81, %90, %cst_37 {dimension_numbers = #tpu.dot_dimension_numbers<[1], [0], [0], [1], [0, 0, 1, 1], [], []>} : vector<8x128xf32>, vector<128x512xf32>, vector<8x512xf32> -> vector<8x512xf32>
    %92 = arith.addf %89, %91 : vector<8x512xf32>
    %93 = vector.extract_strided_slice %92 {offsets = [0, 0], sizes = [8, 128], strides = [1, 1]} : vector<8x512xf32> to vector<8x128xf32>
    %94 = arith.negf %93 : vector<8x128xf32>
    %95 = math.exp %94 : vector<8x128xf32>
    %cst_38 = arith.constant 1.000000e+00 : f32
    %96 = vector.broadcast %cst_38 : f32 to vector<8x128xf32>
    %97 = arith.addf %96, %95 : vector<8x128xf32>
    %98 = arith.divf %96, %97 : vector<8x128xf32>
    %99 = vector.extract_strided_slice %92 {offsets = [0, 128], sizes = [8, 128], strides = [1, 1]} : vector<8x512xf32> to vector<8x128xf32>
    %100 = arith.negf %99 : vector<8x128xf32>
    %101 = math.exp %100 : vector<8x128xf32>
    %cst_39 = arith.constant 1.000000e+00 : f32
    %102 = vector.broadcast %cst_39 : f32 to vector<8x128xf32>
    %103 = arith.addf %102, %101 : vector<8x128xf32>
    %104 = arith.divf %102, %103 : vector<8x128xf32>
    %105 = vector.extract_strided_slice %92 {offsets = [0, 256], sizes = [8, 128], strides = [1, 1]} : vector<8x512xf32> to vector<8x128xf32>
    %106 = math.tanh %105 : vector<8x128xf32>
    %107 = vector.extract_strided_slice %92 {offsets = [0, 384], sizes = [8, 128], strides = [1, 1]} : vector<8x512xf32> to vector<8x128xf32>
    %108 = arith.negf %107 : vector<8x128xf32>
    %109 = math.exp %108 : vector<8x128xf32>
    %cst_40 = arith.constant 1.000000e+00 : f32
    %110 = vector.broadcast %cst_40 : f32 to vector<8x128xf32>
    %111 = arith.addf %110, %109 : vector<8x128xf32>
    %112 = arith.divf %110, %111 : vector<8x128xf32>
    %113 = arith.mulf %104, %79 : vector<8x128xf32>
    %114 = arith.mulf %98, %106 : vector<8x128xf32>
    %115 = arith.addf %113, %114 : vector<8x128xf32>
    %116 = math.tanh %115 : vector<8x128xf32>
    %117 = arith.mulf %112, %116 : vector<8x128xf32>
    %118 = arith.index_cast %87 : i32 to index
    %c0_41 = arith.constant 0 : index
    %119 = vector.load %arg5[%118, %c0_41] : memref<32x128xf32, #tpu.memory_space<vmem>>, vector<8x128xf32>
    tpu.vector_store %arg5[%118, %c0_41], %117 {strides = array<i32>} : memref<32x128xf32, #tpu.memory_space<vmem>>, vector<8x128xf32>,
    %c4_i32_42 = arith.constant 4 : i32
    %120 = arith.muli %c0_i32_12, %c4_i32_42 : i32
    %c3_i32 = arith.constant 3 : i32
    %121 = arith.addi %120, %c3_i32 : i32
    %c8_i32_43 = arith.constant 8 : i32
    %122 = arith.muli %121, %c8_i32_43 : i32
    %123 = tpu.assume_multiple %122, 8 : i32
    %124 = arith.index_cast %123 : i32 to index
    %c0_44 = arith.constant 0 : index
    %125 = vector.load %arg10[%124, %c0_44] : memref<32x512xf32, #tpu.memory_space<vmem>>, vector<8x512xf32>
    %c0_45 = arith.constant 0 : index
    %c0_46 = arith.constant 0 : index
    %126 = vector.load %arg7[%c0_45, %c0_46] : memref<128x512xf32, #tpu.memory_space<vmem>>, vector<128x512xf32>
    %cst_47 = arith.constant dense<0.000000e+00> : vector<8x512xf32>
    %127 = tpu.matmul %117, %126, %cst_47 {dimension_numbers = #tpu.dot_dimension_numbers<[1], [0], [0], [1], [0, 0, 1, 1], [], []>} : vector<8x128xf32>, vector<128x512xf32>, vector<8x512xf32> -> vector<8x512xf32>
    %128 = arith.addf %125, %127 : vector<8x512xf32>
    %129 = vector.extract_strided_slice %128 {offsets = [0, 0], sizes = [8, 128], strides = [1, 1]} : vector<8x512xf32> to vector<8x128xf32>
    %130 = arith.negf %129 : vector<8x128xf32>
    %131 = math.exp %130 : vector<8x128xf32>
    %cst_48 = arith.constant 1.000000e+00 : f32
    %132 = vector.broadcast %cst_48 : f32 to vector<8x128xf32>
    %133 = arith.addf %132, %131 : vector<8x128xf32>
    %134 = arith.divf %132, %133 : vector<8x128xf32>
    %135 = vector.extract_strided_slice %128 {offsets = [0, 128], sizes = [8, 128], strides = [1, 1]} : vector<8x512xf32> to vector<8x128xf32>
    %136 = arith.negf %135 : vector<8x128xf32>
    %137 = math.exp %136 : vector<8x128xf32>
    %cst_49 = arith.constant 1.000000e+00 : f32
    %138 = vector.broadcast %cst_49 : f32 to vector<8x128xf32>
    %139 = arith.addf %138, %137 : vector<8x128xf32>
    %140 = arith.divf %138, %139 : vector<8x128xf32>
    %141 = vector.extract_strided_slice %128 {offsets = [0, 256], sizes = [8, 128], strides = [1, 1]} : vector<8x512xf32> to vector<8x128xf32>
    %142 = math.tanh %141 : vector<8x128xf32>
    %143 = vector.extract_strided_slice %128 {offsets = [0, 384], sizes = [8, 128], strides = [1, 1]} : vector<8x512xf32> to vector<8x128xf32>
    %144 = arith.negf %143 : vector<8x128xf32>
    %145 = math.exp %144 : vector<8x128xf32>
    %cst_50 = arith.constant 1.000000e+00 : f32
    %146 = vector.broadcast %cst_50 : f32 to vector<8x128xf32>
    %147 = arith.addf %146, %145 : vector<8x128xf32>
    %148 = arith.divf %146, %147 : vector<8x128xf32>
    %149 = arith.mulf %140, %115 : vector<8x128xf32>
    %150 = arith.mulf %134, %142 : vector<8x128xf32>
    %151 = arith.addf %149, %150 : vector<8x128xf32>
    %152 = math.tanh %151 : vector<8x128xf32>
    %153 = arith.mulf %148, %152 : vector<8x128xf32>
    %154 = arith.index_cast %123 : i32 to index
    %c0_51 = arith.constant 0 : index
    %155 = vector.load %arg5[%154, %c0_51] : memref<32x128xf32, #tpu.memory_space<vmem>>, vector<8x128xf32>
    tpu.vector_store %arg5[%154, %c0_51], %153 {strides = array<i32>} : memref<32x128xf32, #tpu.memory_space<vmem>>, vector<8x128xf32>,
    %c1_i32_52 = arith.constant 1 : i32
    %c0_53 = arith.constant 0 : index
    %c0_54 = arith.constant 0 : index
    %156 = vector.load %arg8[%c0_53, %c0_54] : memref<8x128xf32, #tpu.memory_space<vmem>>, vector<8x128xf32>
    tpu.vector_store %arg8[%c0_53, %c0_54], %153 {strides = array<i32>} : memref<8x128xf32, #tpu.memory_space<vmem>>, vector<8x128xf32>,
    %c0_55 = arith.constant 0 : index
    %c0_56 = arith.constant 0 : index
    %157 = vector.load %arg9[%c0_55, %c0_56] : memref<8x128xf32, #tpu.memory_space<vmem>>, vector<8x128xf32>
    tpu.vector_store %arg9[%c0_55, %c0_56], %151 {strides = array<i32>} : memref<8x128xf32, #tpu.memory_space<vmem>>, vector<8x128xf32>,
    return
  }
  func.func @transform_0(%arg0: i32) -> (i32, i32) {
    %c0_i32 = arith.constant 0 : i32
    %c0_i32_0 = arith.constant 0 : i32
    return %arg0, %c0_i32 : i32, i32
  }
  func.func @transform_3(%arg0: i32) -> (i32, i32) {
    %c0_i32 = arith.constant 0 : i32
    %c0_i32_0 = arith.constant 0 : i32
    %c0_i32_1 = arith.constant 0 : i32
    return %c0_i32, %c0_i32_0 : i32, i32
  }
  func.func @transform_4(%arg0: i32) -> (i32, i32) {
    %c0_i32 = arith.constant 0 : i32
    %c0_i32_0 = arith.constant 0 : i32
    return %arg0, %c0_i32 : i32, i32
  }
}

module attributes {stable_mosaic.version = 11 : i64} {
  func.func @proj_logsoftmax_kernel(%arg0: i32, %arg1: memref<64x128xf32, #tpu.memory_space<vmem>>, %arg2: memref<1x128xf32, #tpu.memory_space<vmem>>, %arg3: memref<1x128x128xf32, #tpu.memory_space<any>>, %arg4: memref<64x128xf32, #tpu.memory_space<vmem>>, %arg5: memref<2x128x128xf32, #tpu.memory_space<vmem>>, %arg6: memref<2x!tpu.dma_semaphore, #tpu.memory_space<semaphore_mem>>) attributes {dimension_semantics = [#tpu.dimension_semantics<parallel>], iteration_bounds = array<i64: 1>, scalar_prefetch = 0 : i64, scratch_operands = 2 : i64, tpu.core_type = #tpu.core_type<tc>, window_params = [{transform_indices = @transform_0, window_bounds = array<i64: 64, 128>}, {pipeline_mode = #tpu.pipeline_mode<synchronous>, transform_indices = @transform_1, window_bounds = array<i64: 1, 128>}, {}, {transform_indices = @transform_3, window_bounds = array<i64: 64, 128>}]} {
    %c0 = arith.constant 0 : index
    %c0_0 = arith.constant 0 : index
    %0 = vector.load %arg1[%c0, %c0_0] : memref<64x128xf32, #tpu.memory_space<vmem>>, vector<64x128xf32>
    %c0_i32 = arith.constant 0 : i32
    %c0_i32_1 = arith.constant 0 : i32
    %c0_i32_2 = arith.constant 0 : i32
    %c0_i32_3 = arith.constant 0 : i32
    %c0_i32_4 = arith.constant 0 : i32
    %1 = tpu.memref_slice %arg3[%c0_i32, %c0_i32_3, %c0_i32_4] : memref<1x128x128xf32, #tpu.memory_space<any>> -> memref<1x128x128xf32, #tpu.memory_space<any>>
    %2 = tpu.memref_squeeze %1 : memref<1x128x128xf32, #tpu.memory_space<any>> -> memref<128x128xf32, #tpu.memory_space<any>>
    %c0_i32_5 = arith.constant 0 : i32
    %c0_i32_6 = arith.constant 0 : i32
    %3 = tpu.memref_slice %arg5[%c0_i32_1, %c0_i32_5, %c0_i32_6] : memref<2x128x128xf32, #tpu.memory_space<vmem>> -> memref<1x128x128xf32, #tpu.memory_space<vmem>>
    %4 = tpu.memref_squeeze %3 : memref<1x128x128xf32, #tpu.memory_space<vmem>> -> memref<128x128xf32, #tpu.memory_space<vmem>>
    %5 = tpu.memref_slice %arg6[%c0_i32_2] : memref<2x!tpu.dma_semaphore, #tpu.memory_space<semaphore_mem>> -> memref<1x!tpu.dma_semaphore, #tpu.memory_space<semaphore_mem>>
    %6 = tpu.memref_squeeze %5 : memref<1x!tpu.dma_semaphore, #tpu.memory_space<semaphore_mem>> -> memref<!tpu.dma_semaphore, #tpu.memory_space<semaphore_mem>>
    tpu.enqueue_dma source(%2 : memref<128x128xf32, #tpu.memory_space<any>>) target(%4 : memref<128x128xf32, #tpu.memory_space<vmem>>) target_semaphore(%6 : memref<!tpu.dma_semaphore, #tpu.memory_space<semaphore_mem>>)
    %cst = arith.constant -1.000000e+30 : f32
    %7 = vector.broadcast %cst : f32 to vector<64x1xf32>
    %cst_7 = arith.constant 0.000000e+00 : f32
    %8 = vector.broadcast %cst_7 : f32 to vector<64x1xf32>
    %c0_i32_8 = arith.constant 0 : i32
    %c0_i32_9 = arith.constant 0 : i32
    %c0_i32_10 = arith.constant 0 : i32
    %c0_i32_11 = arith.constant 0 : i32
    %c0_i32_12 = arith.constant 0 : i32
    %9 = tpu.memref_slice %arg3[%c0_i32_8, %c0_i32_11, %c0_i32_12] : memref<1x128x128xf32, #tpu.memory_space<any>> -> memref<1x128x128xf32, #tpu.memory_space<any>>
    %10 = tpu.memref_squeeze %9 : memref<1x128x128xf32, #tpu.memory_space<any>> -> memref<128x128xf32, #tpu.memory_space<any>>
    %c0_i32_13 = arith.constant 0 : i32
    %c0_i32_14 = arith.constant 0 : i32
    %11 = tpu.memref_slice %arg5[%c0_i32_9, %c0_i32_13, %c0_i32_14] : memref<2x128x128xf32, #tpu.memory_space<vmem>> -> memref<1x128x128xf32, #tpu.memory_space<vmem>>
    %12 = tpu.memref_squeeze %11 : memref<1x128x128xf32, #tpu.memory_space<vmem>> -> memref<128x128xf32, #tpu.memory_space<vmem>>
    %13 = tpu.memref_slice %arg6[%c0_i32_10] : memref<2x!tpu.dma_semaphore, #tpu.memory_space<semaphore_mem>> -> memref<1x!tpu.dma_semaphore, #tpu.memory_space<semaphore_mem>>
    %14 = tpu.memref_squeeze %13 : memref<1x!tpu.dma_semaphore, #tpu.memory_space<semaphore_mem>> -> memref<!tpu.dma_semaphore, #tpu.memory_space<semaphore_mem>>
    tpu.wait_dma2 semaphore(%14 : memref<!tpu.dma_semaphore, #tpu.memory_space<semaphore_mem>>) src(%10 : memref<128x128xf32, #tpu.memory_space<any>>) dst(%12 : memref<128x128xf32, #tpu.memory_space<vmem>>)
    %c0_15 = arith.constant 0 : index
    %c0_16 = arith.constant 0 : index
    %c0_17 = arith.constant 0 : index
    %15 = vector.load %arg5[%c0_15, %c0_16, %c0_17] : memref<2x128x128xf32, #tpu.memory_space<vmem>>, vector<1x128x128xf32>
    %16 = vector.shape_cast %15 : vector<1x128x128xf32> to vector<128x128xf32>
    %cst_18 = arith.constant dense<0.000000e+00> : vector<64x128xf32>
    %17 = tpu.matmul %0, %16, %cst_18 {dimension_numbers = #tpu.dot_dimension_numbers<[1], [0], [0], [1], [0, 0, 1, 1], [], []>} : vector<64x128xf32>, vector<128x128xf32>, vector<64x128xf32> -> vector<64x128xf32>
    %c0_19 = arith.constant 0 : index
    %c0_20 = arith.constant 0 : index
    %18 = vector.load %arg2[%c0_19, %c0_20] : memref<1x128xf32, #tpu.memory_space<vmem>>, vector<1x128xf32>
    %19 = vector.broadcast %18 : vector<1x128xf32> to vector<64x128xf32>
    %20 = arith.addf %17, %19 : vector<64x128xf32>
    %c0_21 = arith.constant 0 : index
    %c0_22 = arith.constant 0 : index
    %21 = vector.load %arg4[%c0_21, %c0_22] : memref<64x128xf32, #tpu.memory_space<vmem>>, vector<64x128xf32>
    tpu.vector_store %arg4[%c0_21, %c0_22], %20 {strides = array<i32>} : memref<64x128xf32, #tpu.memory_space<vmem>>, vector<64x128xf32>,
    %cst_23 = arith.constant dense<0xFF800000> : vector<64xf32>
    %22 = vector.multi_reduction <maximumf>, %20, %cst_23 [1] : vector<64x128xf32> to vector<64xf32>
    %23 = vector.shape_cast %22 : vector<64xf32> to vector<64x1xf32>
    %24 = arith.maximumf %7, %23 : vector<64x1xf32>
    %25 = arith.subf %7, %24 : vector<64x1xf32>
    %26 = math.exp %25 : vector<64x1xf32>
    %27 = arith.mulf %8, %26 : vector<64x1xf32>
    %28 = vector.broadcast %24 : vector<64x1xf32> to vector<64x128xf32>
    %29 = arith.subf %20, %28 : vector<64x128xf32>
    %30 = math.exp %29 : vector<64x128xf32>
    %cst_24 = arith.constant dense<0.000000e+00> : vector<64xf32>
    %31 = vector.multi_reduction <add>, %30, %cst_24 [1] : vector<64x128xf32> to vector<64xf32>
    %32 = vector.shape_cast %31 : vector<64xf32> to vector<64x1xf32>
    %33 = arith.addf %27, %32 : vector<64x1xf32>
    %34 = math.log %33 : vector<64x1xf32>
    %35 = arith.addf %24, %34 : vector<64x1xf32>
    %c0_25 = arith.constant 0 : index
    %c0_26 = arith.constant 0 : index
    %36 = vector.load %arg4[%c0_25, %c0_26] : memref<64x128xf32, #tpu.memory_space<vmem>>, vector<64x128xf32>
    %37 = vector.broadcast %35 : vector<64x1xf32> to vector<64x128xf32>
    %38 = arith.subf %36, %37 : vector<64x128xf32>
    %c0_27 = arith.constant 0 : index
    %c0_28 = arith.constant 0 : index
    %39 = vector.load %arg4[%c0_27, %c0_28] : memref<64x128xf32, #tpu.memory_space<vmem>>, vector<64x128xf32>
    tpu.vector_store %arg4[%c0_27, %c0_28], %38 {strides = array<i32>} : memref<64x128xf32, #tpu.memory_space<vmem>>, vector<64x128xf32>,
    return
  }
  func.func @transform_0(%arg0: i32) -> (i32, i32) {
    %c0_i32 = arith.constant 0 : i32
    %c0_i32_0 = arith.constant 0 : i32
    return %arg0, %c0_i32 : i32, i32
  }
  func.func @transform_1(%arg0: i32) -> (i32, i32) {
    %c0_i32 = arith.constant 0 : i32
    %c0_i32_0 = arith.constant 0 : i32
    %c0_i32_1 = arith.constant 0 : i32
    return %c0_i32, %c0_i32_0 : i32, i32
  }
  func.func @transform_3(%arg0: i32) -> (i32, i32) {
    %c0_i32 = arith.constant 0 : i32
    %c0_i32_0 = arith.constant 0 : i32
    return %arg0, %c0_i32 : i32, i32
  }
}

</mosaic_0001>

<llo_original>
// kernel: language_model_forward.7
$region0: #{language_model_forward.7}
  #allocation0 [shape = 'u32[]', space=smem, size = 0x4, offset = 0x4, fixed_abs, tag = 'smem constant byte address 0x4 - core index']
  #allocation1 [shape = 'u32[144,128]{1,0:T(1,128)}', space=vmem, size = 0x12000, scoped, tag = 'internal scratch']
  #allocation2 [shape = 'f32[2,128,128]{2,1,0:T(8,128)}', space=vmem, size = 0x20000, scoped, tag = 'scratch operand']
  #allocation3 [shape = 's32[2]{0}', space=sflag, size = 0x8, scoped, tag = 'scratch operand']
  #allocation4 [shape = 's32[]', space=sflag, size = 0x4, offset = 0, fixed_abs, tag = 'sflag constant byte address 0x0 - dummy sync flag']
  %s0 = inlined_call_operand.vmem [shape: f32[64,128], index: 0, kind: input, shape index: {}]
  %s1 = inlined_call_operand.vmem [shape: f32[1,128], index: 1, kind: input, shape index: {}]
  %s2 = inlined_call_operand.vmem [shape: f32[1,128,128], index: 2, kind: input, shape index: {}]
  %s3 = inlined_call_operand.vmem [shape: f32[64,128], index: 3, kind: output, shape index: {}]
  %s4 = sld [smem:[#allocation0]]
  $region52: #{language_model_forward.7} parent=0
    _
  %s6 = ssub.s32 1, %s4
  %s7 = scalar_select 0, %s6, %s4
  // Predicated region
  $region2: #{language_model_forward.7} parent=0 // pred_check
    _
  $region3: #{language_model_forward.7} parent=0 // pred_check_branch
    %9 = sbr.rel (0) target = $region5
  $region4: #{language_model_forward.7} parent=0 // pred_region
    _
  $region5: #{language_model_forward.7} parent=0 // pred_fallthru
    _
  // Predicated region
  $region6: #{language_model_forward.7} parent=0 // pred_check
    _
  $region7: #{language_model_forward.7} parent=0 // pred_check_branch
    %11 = sbr.rel (0) target = $region9
  $region8: #{language_model_forward.7} parent=0 // pred_region
    _
  $region9: #{language_model_forward.7} parent=0 // pred_fallthru
    _
  %v12 = vld [vmem:[%s0] sm:$0xff]
  %v13 = vld [vmem:[%s0 + $0x8] sm:$0xff]
  %v14 = vld [vmem:[%s0 + $0x10] sm:$0xff]
  %v15 = vld [vmem:[%s0 + $0x18] sm:$0xff]
  %v16 = vld [vmem:[%s0 + $0x20] sm:$0xff]
  %v17 = vld [vmem:[%s0 + $0x28] sm:$0xff]
  %v18 = vld [vmem:[%s0 + $0x30] sm:$0xff]
  %v19 = vld [vmem:[%s0 + $0x38] sm:$0xff]
  %p21 = scmp.lt.u32.totalorder 128, 8
  %p22 = pneg %p21
  // Predicated region
  $region10: #{language_model_forward.7} parent=0 // pred_check
    _
  $region11: #{language_model_forward.7} parent=0 // pred_check_branch
    %24 = sbr.rel (%p21) target = $region13
  $region12: #{language_model_forward.7} parent=0 // pred_region
    %s39 = sand.u32 128, 7
    %p40 = scmp.eq.s32.totalorder %s39, 0
    // Predicated region
    $region25: #{language_model_forward.7} parent=12 // pred_check
      %p41 = pneg %p40
    $region26: #{language_model_forward.7} parent=12 // pred_check_branch
      %43 = sbr.rel (%p41) target = $region28
    $region27: #{language_model_forward.7} parent=12 // pred_region
      loop: start=0, step=1, limit=1
      $region29: #{language_model_forward.7} parent=27 // loop_pre_header
        _
      $region30: #{language_model_forward.7} parent=27 // loop_header
        %s45 = sphi 0, %s49
        %p46 = scmp.ge.s32.totalorder %s45, 1
        %s50 = sphi %s2, %s2
        %s51 = sphi [#allocation2], [#allocation2]
      $region31: #{language_model_forward.7} parent=27 // loop_header_branch
        %48 = sbr.rel (%p46) target = $region35
      $region32: #{language_model_forward.7} parent=27 // loop_body
        %v52 = vld [vmem:[%s50] sm:$0xff]
        %53 = vst [vmem:[%s51] sm:$0xff] %v52
        %v54 = vld [vmem:[%s50 + $0x8] sm:$0xff]
        %55 = vst [vmem:[%s51 + $0x8] sm:$0xff] %v54
        %v56 = vld [vmem:[%s50 + $0x10] sm:$0xff]
        %57 = vst [vmem:[%s51 + $0x10] sm:$0xff] %v56
        %v58 = vld [vmem:[%s50 + $0x18] sm:$0xff]
        %59 = vst [vmem:[%s51 + $0x18] sm:$0xff] %v58
        %v60 = vld [vmem:[%s50 + $0x20] sm:$0xff]
        %61 = vst [vmem:[%s51 + $0x20] sm:$0xff] %v60
        %v62 = vld [vmem:[%s50 + $0x28] sm:$0xff]
        %63 = vst [vmem:[%s51 + $0x28] sm:$0xff] %v62
        %v64 = vld [vmem:[%s50 + $0x30] sm:$0xff]
        %65 = vst [vmem:[%s51 + $0x30] sm:$0xff] %v64
        %v66 = vld [vmem:[%s50 + $0x38] sm:$0xff]
        %67 = vst [vmem:[%s51 + $0x38] sm:$0xff] %v66
        %v68 = vld [vmem:[%s50 + $0x40] sm:$0xff]
        %69 = vst [vmem:[%s51 + $0x40] sm:$0xff] %v68
        %v70 = vld [vmem:[%s50 + $0x48] sm:$0xff]
        %71 = vst [vmem:[%s51 + $0x48] sm:$0xff] %v70
        %v72 = vld [vmem:[%s50 + $0x50] sm:$0xff]
        %73 = vst [vmem:[%s51 + $0x50] sm:$0xff] %v72
        %v74 = vld [vmem:[%s50 + $0x58] sm:$0xff]
        %75 = vst [vmem:[%s51 + $0x58] sm:$0xff] %v74
        %v76 = vld [vmem:[%s50 + $0x60] sm:$0xff]
        %77 = vst [vmem:[%s51 + $0x60] sm:$0xff] %v76
        %v78 = vld [vmem:[%s50 + $0x68] sm:$0xff]
        %79 = vst [vmem:[%s51 + $0x68] sm:$0xff] %v78
        %v80 = vld [vmem:[%s50 + $0x70] sm:$0xff]
        %81 = vst [vmem:[%s51 + $0x70] sm:$0xff] %v80
        %v82 = vld [vmem:[%s50 + $0x78] sm:$0xff]
        %83 = vst [vmem:[%s51 + $0x78] sm:$0xff] %v82
      $region33: #{language_model_forward.7} parent=27 // loop_footer
        %s49 = sadd.s32 1, %s45
      $region34: #{language_model_forward.7} parent=27 // loop_footer_branch
        %44 = sbr.rel target = $region30
      $region35: #{language_model_forward.7} parent=27 // loop_exit
        _
    $region28: #{language_model_forward.7} parent=12 // pred_fallthru
      _
    %p84 = pneg %p40
    // Predicated region
    $region36: #{language_model_forward.7} parent=12 // pred_check
      _
    $region37: #{language_model_forward.7} parent=12 // pred_check_branch
      %86 = sbr.rel (%p40) target = $region39
    $region38: #{language_model_forward.7} parent=12 // pred_region
      %s87 = sand.u32 128, 7
    $region39: #{language_model_forward.7} parent=12 // pred_fallthru
      _
  $region13: #{language_model_forward.7} parent=0 // pred_fallthru
    _
  // Predicated region
  $region14: #{language_model_forward.7} parent=0 // pred_check
    %p25 = pneg %p21
  $region15: #{language_model_forward.7} parent=0 // pred_check_branch
    %27 = sbr.rel (%p25) target = $region17
  $region16: #{language_model_forward.7} parent=0 // pred_region
    %s28 = sshllo.u32 0, 128
    loop: start=0, step=1, limit=1
    $region18: #{language_model_forward.7} parent=16 // loop_pre_header
      _
    $region19: #{language_model_forward.7} parent=16 // loop_header
      %s30 = sphi 0, %s34
      %p31 = scmp.ge.s32.totalorder %s30, 1
      %s35 = sphi %s2, %s2
      %s36 = sphi [#allocation2], [#allocation2]
    $region20: #{language_model_forward.7} parent=16 // loop_header_branch
      %33 = sbr.rel (%p31) target = $region24
    $region21: #{language_model_forward.7} parent=16 // loop_body
      %v37 = vld [vmem:[%s35] sm:%s28]
      %38 = vst [vmem:[%s36] sm:%s28] %v37
    $region22: #{language_model_forward.7} parent=16 // loop_footer
      %s34 = sadd.s32 1, %s30
    $region23: #{language_model_forward.7} parent=16 // loop_footer_branch
      %29 = sbr.rel target = $region19
    $region24: #{language_model_forward.7} parent=16 // loop_exit
      _
  $region17: #{language_model_forward.7} parent=0 // pred_fallthru
    _
  // Predicated region
  $region40: #{language_model_forward.7} parent=0 // pred_check
    _
  $region41: #{language_model_forward.7} parent=0 // pred_check_branch
    %90 = sbr.rel (0) target = $region43
  $region42: #{language_model_forward.7} parent=0 // pred_region
    %91 = vsyncadd [#allocation3], 2048
  $region43: #{language_model_forward.7} parent=0 // pred_fallthru
    _
  %s92 = smul.u32 128, 1
  %s93 = sshll.u32 %s92, 4
  %94 = dma.done [#allocation3], %s93
  %v95 = vld [vmem:[#allocation2] sm:$0xff]
  %v96 = vld [vmem:[#allocation2 + $0x8] sm:$0xff]
  %v97 = vld [vmem:[#allocation2 + $0x10] sm:$0xff]
  %v98 = vld [vmem:[#allocation2 + $0x18] sm:$0xff]
  %v99 = vld [vmem:[#allocation2 + $0x20] sm:$0xff]
  %v100 = vld [vmem:[#allocation2 + $0x28] sm:$0xff]
  %v101 = vld [vmem:[#allocation2 + $0x30] sm:$0xff]
  %v102 = vld [vmem:[#allocation2 + $0x38] sm:$0xff]
  %v103 = vld [vmem:[#allocation2 + $0x40] sm:$0xff]
  %v104 = vld [vmem:[#allocation2 + $0x48] sm:$0xff]
  %v105 = vld [vmem:[#allocation2 + $0x50] sm:$0xff]
  %v106 = vld [vmem:[#allocation2 + $0x58] sm:$0xff]
  %v107 = vld [vmem:[#allocation2 + $0x60] sm:$0xff]
  %v108 = vld [vmem:[#allocation2 + $0x68] sm:$0xff]
  %v109 = vld [vmem:[#allocation2 + $0x70] sm:$0xff]
  %v110 = vld [vmem:[#allocation2 + $0x78] sm:$0xff]
  %v111 = vld [vmem:[%s1] sm:$0x1]
  %v113 = vlaneseq
  %v114 = vshrl.u32 %v113, 7
  %v115 = vsub.s32 0, %v114
  %v116 = vrot.slane %v111, %v115
  %118 = vmatprep.subr.mxu0 0.0
  %119 = vmatpush1.msra.mxu0 %v95
  %120 = vmatprep.subr.mxu0 0.0
  %121 = vmatpush1.msra.mxu0 %v96
  %122 = vmatprep.subr.mxu0 0.0
  %123 = vmatpush1.msra.mxu0 %v97
  %124 = vmatprep.subr.mxu0 0.0
  %125 = vmatpush1.msra.mxu0 %v98
  %126 = vmatprep.subr.mxu0 0.0
  %127 = vmatpush1.msra.mxu0 %v99
  %128 = vmatprep.subr.mxu0 0.0
  %129 = vmatpush1.msra.mxu0 %v100
  %130 = vmatprep.subr.mxu0 0.0
  %131 = vmatpush1.msra.mxu0 %v101
  %132 = vmatprep.subr.mxu0 0.0
  %133 = vmatpush1.msra.mxu0 %v102
  %134 = vmatprep.subr.mxu0 0.0
  %135 = vmatpush1.msra.mxu0 %v103
  %136 = vmatprep.subr.mxu0 0.0
  %137 = vmatpush1.msra.mxu0 %v104
  %138 = vmatprep.subr.mxu0 0.0
  %139 = vmatpush1.msra.mxu0 %v105
  %140 = vmatprep.subr.mxu0 0.0
  %141 = vmatpush1.msra.mxu0 %v106
  %142 = vmatprep.subr.mxu0 0.0
  %143 = vmatpush1.msra.mxu0 %v107
  %144 = vmatprep.subr.mxu0 0.0
  %145 = vmatpush1.msra.mxu0 %v108
  %146 = vmatprep.subr.mxu0 0.0
  %147 = vmatpush1.msra.mxu0 %v109
  %148 = vmatprep.subr.mxu0 0.0
  %149 = vmatpush1.msra.mxu0 %v110
  %150 = vmatprep.subr.mxu0 0.0
  %151 = vmatpush1.msra.mxu0 0.0
  %152 = vmatprep.subr.mxu0 0.0
  %153 = vmatpush1.msra.mxu0 0.0
  %154 = vmatprep.subr.mxu0 0.0
  %155 = vmatpush1.msra.mxu0 0.0
  %156 = vmatprep.subr.mxu0 0.0
  %157 = vmatpush1.msra.mxu0 0.0
  %158 = vmatprep.subr.mxu0 0.0
  %159 = vmatpush1.msra.mxu0 0.0
  %160 = vmatprep.subr.mxu0 0.0
  %161 = vmatpush1.msra.mxu0 0.0
  %162 = vmatprep.subr.mxu0 0.0
  %163 = vmatpush1.msra.mxu0 0.0
  %164 = vmatprep.subr.mxu0 0.0
  %165 = vmatpush1.msra.mxu0 0.0
  %166 = vmatprep.subr.mxu0 0.0
  %167 = vmatpush1.msra.mxu0 0.0
  %168 = vmatprep.subr.mxu0 0.0
  %169 = vmatpush1.msra.mxu0 0.0
  %170 = vmatprep.subr.mxu0 0.0
  %171 = vmatpush1.msra.mxu0 0.0
  %172 = vmatprep.subr.mxu0 0.0
  %173 = vmatpush1.msra.mxu0 0.0
  %174 = vmatprep.subr.mxu0 0.0
  %175 = vmatpush1.msra.mxu0 0.0
  %176 = vmatprep.subr.mxu0 0.0
  %177 = vmatpush1.msra.mxu0 0.0
  %178 = vmatprep.subr.mxu0 0.0
  %179 = vmatpush1.msra.mxu0 0.0
  %180 = vmatprep.subr.mxu0 0.0
  %181 = vmatpush1.msra.mxu0 0.0
  %182 = vmatprep.mubr.f32.mxu0 0.0
  %183 = vmatmul.mubr.f32.gmra.mrb[0].mxu0 %v12
  %v184 = vpop.f32.mrb[0].mxu0
  %v185 = vadd.f32 %v116, %v184
  %v186 = vpop.f32.mrb[0].mxu0
  %187 = vmatprep.mubr.f32.mxu0 0.0
  %188 = vmatmul.mubr.f32.gmra.mrb[0].mxu0 %v13
  %v189 = vpop.f32.mrb[0].mxu0
  %v190 = vadd.f32 %v116, %v189
  %v191 = vpop.f32.mrb[0].mxu0
  %192 = vmatprep.mubr.f32.mxu0 0.0
  %193 = vmatmul.mubr.f32.gmra.mrb[0].mxu0 %v14
  %v194 = vpop.f32.mrb[0].mxu0
  %v195 = vadd.f32 %v116, %v194
  %v196 = vpop.f32.mrb[0].mxu0
  %197 = vmatprep.mubr.f32.mxu0 0.0
  %198 = vmatmul.mubr.f32.gmra.mrb[0].mxu0 %v15
  %v199 = vpop.f32.mrb[0].mxu0
  %v200 = vadd.f32 %v116, %v199
  %v201 = vpop.f32.mrb[0].mxu0
  %202 = vmatprep.mubr.f32.mxu0 0.0
  %203 = vmatmul.mubr.f32.gmra.mrb[0].mxu0 %v16
  %v204 = vpop.f32.mrb[0].mxu0
  %v205 = vadd.f32 %v116, %v204
  %v206 = vpop.f32.mrb[0].mxu0
  %207 = vmatprep.mubr.f32.mxu0 0.0
  %208 = vmatmul.mubr.f32.gmra.mrb[0].mxu0 %v17
  %v209 = vpop.f32.mrb[0].mxu0
  %v210 = vadd.f32 %v116, %v209
  %v211 = vpop.f32.mrb[0].mxu0
  %212 = vmatprep.mubr.f32.mxu0 0.0
  %213 = vmatmul.mubr.f32.gmra.mrb[0].mxu0 %v18
  %v214 = vpop.f32.mrb[0].mxu0
  %v215 = vadd.f32 %v116, %v214
  %v216 = vpop.f32.mrb[0].mxu0
  %217 = vmatprep.mubr.f32.mxu0 0.0
  %218 = vmatmul.mubr.f32.gmra.mrb[0].mxu0 %v19
  %v219 = vpop.f32.mrb[0].mxu0
  %v220 = vadd.f32 %v116, %v219
  %v221 = vpop.f32.mrb[0].mxu0
  %222 = vdwg.mxu0
  %223 = vst [vmem:[%s3] sm:$0xff] %v185
  %224 = vst [vmem:[%s3 + $0x8] sm:$0xff] %v190
  %225 = vst [vmem:[%s3 + $0x10] sm:$0xff] %v195
  %226 = vst [vmem:[%s3 + $0x18] sm:$0xff] %v200
  %227 = vst [vmem:[%s3 + $0x20] sm:$0xff] %v205
  %228 = vst [vmem:[%s3 + $0x28] sm:$0xff] %v210
  %229 = vst [vmem:[%s3 + $0x30] sm:$0xff] %v215
  %230 = vst [vmem:[%s3 + $0x38] sm:$0xff] %v220
  %231 = vmax.xlane.f32.xlu0 %v185
  %v232 = vpop.xlane.xlu0 %231
  %233 = vmax.xlane.f32.xlu0 %v190
  %v234 = vpop.xlane.xlu0 %233
  %235 = vmax.xlane.f32.xlu0 %v195
  %v236 = vpop.xlane.xlu0 %235
  %237 = vmax.xlane.f32.xlu0 %v200
  %v238 = vpop.xlane.xlu0 %237
  %239 = vmax.xlane.f32.xlu0 %v205
  %v240 = vpop.xlane.xlu0 %239
  %241 = vmax.xlane.f32.xlu0 %v210
  %v242 = vpop.xlane.xlu0 %241
  %243 = vmax.xlane.f32.xlu0 %v215
  %v244 = vpop.xlane.xlu0 %243
  %245 = vmax.xlane.f32.xlu0 %v220
  %v246 = vpop.xlane.xlu0 %245
  %v247 = vmax.f32 %v232, -1e+30
  %v248 = vmax.f32 %v234, -1e+30
  %v249 = vmax.f32 %v236, -1e+30
  %v250 = vmax.f32 %v238, -1e+30
  %v251 = vmax.f32 %v240, -1e+30
  %v252 = vmax.f32 %v242, -1e+30
  %v253 = vmax.f32 %v244, -1e+30
  %v254 = vmax.f32 %v246, -1e+30
  %v255 = vsub.f32 -1e+30, %v247
  %v256 = vsub.f32 -1e+30, %v248
  %v257 = vsub.f32 -1e+30, %v249
  %v258 = vsub.f32 -1e+30, %v250
  %v259 = vsub.f32 -1e+30, %v251
  %v260 = vsub.f32 -1e+30, %v252
  %v261 = vsub.f32 -1e+30, %v253
  %v262 = vsub.f32 -1e+30, %v254
  %v263 = vmul.f32 %v255, 1.442695
  %v264 = vpow.pop %v263
  %v265 = vmul.f32 %v256, 1.442695
  %v266 = vpow.pop %v265
  %v267 = vmul.f32 %v257, 1.442695
  %v268 = vpow.pop %v267
  %v269 = vmul.f32 %v258, 1.442695
  %v270 = vpow.pop %v269
  %v271 = vmul.f32 %v259, 1.442695
  %v272 = vpow.pop %v271
  %v273 = vmul.f32 %v260, 1.442695
  %v274 = vpow.pop %v273
  %v275 = vmul.f32 %v261, 1.442695
  %v276 = vpow.pop %v275
  %v277 = vmul.f32 %v262, 1.442695
  %v278 = vpow.pop %v277
  %v279 = vmul.f32 %v264, 0.0
  %v280 = vmul.f32 %v266, 0.0
  %v281 = vmul.f32 %v268, 0.0
  %v282 = vmul.f32 %v270, 0.0
  %v283 = vmul.f32 %v272, 0.0
  %v284 = vmul.f32 %v274, 0.0
  %v285 = vmul.f32 %v276, 0.0
  %v286 = vmul.f32 %v278, 0.0
  %v287 = vsub.f32 %v185, %v247
  %v288 = vsub.f32 %v190, %v248
  %v289 = vsub.f32 %v195, %v249
  %v290 = vsub.f32 %v200, %v250
  %v291 = vsub.f32 %v205, %v251
  %v292 = vsub.f32 %v210, %v252
  %v293 = vsub.f32 %v215, %v253
  %v294 = vsub.f32 %v220, %v254
  %v295 = vmul.f32 %v287, 1.442695
  %v296 = vpow.pop %v295
  %v297 = vmul.f32 %v288, 1.442695
  %v298 = vpow.pop %v297
  %v299 = vmul.f32 %v289, 1.442695
  %v300 = vpow.pop %v299
  %v301 = vmul.f32 %v290, 1.442695
  %v302 = vpow.pop %v301
  %v303 = vmul.f32 %v291, 1.442695
  %v304 = vpow.pop %v303
  %v305 = vmul.f32 %v292, 1.442695
  %v306 = vpow.pop %v305
  %v307 = vmul.f32 %v293, 1.442695
  %v308 = vpow.pop %v307
  %v309 = vmul.f32 %v294, 1.442695
  %v310 = vpow.pop %v309
  %311 = vadd.xlane.f32.xlu0 %v296
  %v312 = vpop.xlane.xlu0 %311
  %313 = vadd.xlane.f32.xlu0 %v298
  %v314 = vpop.xlane.xlu0 %313
  %315 = vadd.xlane.f32.xlu0 %v300
  %v316 = vpop.xlane.xlu0 %315
  %317 = vadd.xlane.f32.xlu0 %v302
  %v318 = vpop.xlane.xlu0 %317
  %319 = vadd.xlane.f32.xlu0 %v304
  %v320 = vpop.xlane.xlu0 %319
  %321 = vadd.xlane.f32.xlu0 %v306
  %v322 = vpop.xlane.xlu0 %321
  %323 = vadd.xlane.f32.xlu0 %v308
  %v324 = vpop.xlane.xlu0 %323
  %325 = vadd.xlane.f32.xlu0 %v310
  %v326 = vpop.xlane.xlu0 %325
  %v327 = vadd.f32 %v279, %v312
  %v328 = vadd.f32 %v280, %v314
  %v329 = vadd.f32 %v281, %v316
  %v330 = vadd.f32 %v282, %v318
  %v331 = vadd.f32 %v283, %v320
  %v332 = vadd.f32 %v284, %v322
  %v333 = vadd.f32 %v285, %v324
  %v334 = vadd.f32 %v286, %v326
  %v335 = vlog2.pop %v327
  %v336 = vmul.f32 %v335, 0.6931472
  %v337 = vlog2.pop %v328
  %v338 = vmul.f32 %v337, 0.6931472
  %v339 = vlog2.pop %v329
  %v340 = vmul.f32 %v339, 0.6931472
  %v341 = vlog2.pop %v330
  %v342 = vmul.f32 %v341, 0.6931472
  %v343 = vlog2.pop %v331
  %v344 = vmul.f32 %v343, 0.6931472
  %v345 = vlog2.pop %v332
  %v346 = vmul.f32 %v345, 0.6931472
  %v347 = vlog2.pop %v333
  %v348 = vmul.f32 %v347, 0.6931472
  %v349 = vlog2.pop %v334
  %v350 = vmul.f32 %v349, 0.6931472
  %v351 = vadd.f32 %v247, %v336
  %v352 = vadd.f32 %v248, %v338
  %v353 = vadd.f32 %v249, %v340
  %v354 = vadd.f32 %v250, %v342
  %v355 = vadd.f32 %v251, %v344
  %v356 = vadd.f32 %v252, %v346
  %v357 = vadd.f32 %v253, %v348
  %v358 = vadd.f32 %v254, %v350
  %v359 = vld [vmem:[%s3] sm:$0xff]
  %v360 = vld [vmem:[%s3 + $0x8] sm:$0xff]
  %v361 = vld [vmem:[%s3 + $0x10] sm:$0xff]
  %v362 = vld [vmem:[%s3 + $0x18] sm:$0xff]
  %v363 = vld [vmem:[%s3 + $0x20] sm:$0xff]
  %v364 = vld [vmem:[%s3 + $0x28] sm:$0xff]
  %v365 = vld [vmem:[%s3 + $0x30] sm:$0xff]
  %v366 = vld [vmem:[%s3 + $0x38] sm:$0xff]
  %v367 = vsub.f32 %v359, %v351
  %v368 = vsub.f32 %v360, %v352
  %v369 = vsub.f32 %v361, %v353
  %v370 = vsub.f32 %v362, %v354
  %v371 = vsub.f32 %v363, %v355
  %v372 = vsub.f32 %v364, %v356
  %v373 = vsub.f32 %v365, %v357
  %v374 = vsub.f32 %v366, %v358
  %375 = vst [vmem:[%s3] sm:$0xff] %v367
  %376 = vst [vmem:[%s3 + $0x8] sm:$0xff] %v368
  %377 = vst [vmem:[%s3 + $0x10] sm:$0xff] %v369
  %378 = vst [vmem:[%s3 + $0x18] sm:$0xff] %v370
  %379 = vst [vmem:[%s3 + $0x20] sm:$0xff] %v371
  %380 = vst [vmem:[%s3 + $0x28] sm:$0xff] %v372
  %381 = vst [vmem:[%s3 + $0x30] sm:$0xff] %v373
  %382 = vst [vmem:[%s3 + $0x38] sm:$0xff] %v374
  // Predicated region
  $region44: #{language_model_forward.7} parent=0 // pred_check
    _
  $region45: #{language_model_forward.7} parent=0 // pred_check_branch
    %384 = sbr.rel (0) target = $region47
  $region46: #{language_model_forward.7} parent=0 // pred_region
    _
  $region47: #{language_model_forward.7} parent=0 // pred_fallthru
    _
  // Predicated region
  $region48: #{language_model_forward.7} parent=0 // pred_check
    _
  $region49: #{language_model_forward.7} parent=0 // pred_check_branch
    %386 = sbr.rel (0) target = $region51
  $region50: #{language_model_forward.7} parent=0 // pred_region
    _
  $region51: #{language_model_forward.7} parent=0 // pred_fallthru
    _
  %387 = vsyncmov [#allocation3]
  %s388 = vpop.sfrf %387
  %p389 = scmp.eq.s32.totalorder %s388, 0
  %p390 = pneg %p389
  %392 = shalt.err (%p390)
  %s393 = scalar_lea.sflag [#allocation3], 1
  %394 = vsyncmov %s393
  %s395 = vpop.sfrf %394
  %p396 = scmp.eq.s32.totalorder %s395, 0
  %p397 = pneg %p396
  %399 = shalt.err (%p397)

// kernel: language_model_forward.4
$region0: #{language_model_forward.4}
  #allocation0 [shape = 'u32[]', space=smem, size = 0x4, offset = 0x4, fixed_abs, tag = 'smem constant byte address 0x4 - core index']
  #allocation1 [shape = 'u32[144,128]{1,0:T(1,128)}', space=vmem, size = 0x12000, scoped, tag = 'internal scratch']
  #allocation2 [shape = 's32[1]{0}', space=sflag, size = 0x4, scoped, tag = 'scratch operand']
  #allocation3 [shape = 's32[1]{0}', space=sflag, size = 0x4, scoped, tag = 'scoped memory for language_model_forward.4']
  #allocation4 [shape = 'u8[512]{0}', space=smem, size = 0x200, scoped, tag = 'prefetched SMEM operand 0']
  #allocation5 [shape = 's32[]', space=sflag, size = 0x4, offset = 0, fixed_abs, tag = 'sflag constant byte address 0x0 - dummy sync flag']
  #allocation6 [shape = 's32[]', space=sflag, size = 0x4, offset = 0, fixed_abs, tag = 'sflag constant byte address 0x0 - dummy sync flag']
  #allocation7 [shape = 'u32[]', space=smem, size = 0x4, offset = 0x44, fixed_abs, tag = 'smem constant byte address 0x44 - assertion arg 0']
  #allocation8 [shape = 'u32[]', space=smem, size = 0x4, offset = 0x48, fixed_abs, tag = 'smem constant byte address 0x48 - assertion arg 1']
  #allocation9 [shape = 's32[]', space=sflag, size = 0x4, offset = 0, fixed_abs, tag = 'sflag constant byte address 0x0 - dummy sync flag']
  #allocation10 [shape = 's32[]', space=sflag, size = 0x4, offset = 0, fixed_abs, tag = 'sflag constant byte address 0x0 - dummy sync flag']
  #allocation11 [shape = 's32[]', space=sflag, size = 0x4, offset = 0, fixed_abs, tag = 'sflag constant byte address 0x0 - dummy sync flag']
  #allocation12 [shape = 's32[]', space=sflag, size = 0x4, offset = 0, fixed_abs, tag = 'sflag constant byte address 0x0 - dummy sync flag']
  #allocation13 [shape = 's32[]', space=sflag, size = 0x4, offset = 0, fixed_abs, tag = 'sflag constant byte address 0x0 - dummy sync flag']
  #allocation14 [shape = 's32[]', space=sflag, size = 0x4, offset = 0, fixed_abs, tag = 'sflag constant byte address 0x0 - dummy sync flag']
  #allocation15 [shape = 's32[]', space=sflag, size = 0x4, offset = 0, fixed_abs, tag = 'sflag constant byte address 0x0 - dummy sync flag']
  #allocation16 [shape = 's32[]', space=sflag, size = 0x4, offset = 0, fixed_abs, tag = 'sflag constant byte address 0x0 - dummy sync flag']
  #allocation17 [shape = 's32[]', space=sflag, size = 0x4, offset = 0, fixed_abs, tag = 'sflag constant byte address 0x0 - dummy sync flag']
  #allocation18 [shape = 's32[]', space=sflag, size = 0x4, offset = 0, fixed_abs, tag = 'sflag constant byte address 0x0 - dummy sync flag']
  #allocation19 [shape = 's32[]', space=sflag, size = 0x4, offset = 0, fixed_abs, tag = 'sflag constant byte address 0x0 - dummy sync flag']
  #allocation20 [shape = 's32[]', space=sflag, size = 0x4, offset = 0, fixed_abs, tag = 'sflag constant byte address 0x0 - dummy sync flag']
  #allocation21 [shape = 's32[]', space=sflag, size = 0x4, offset = 0, fixed_abs, tag = 'sflag constant byte address 0x0 - dummy sync flag']
  #allocation22 [shape = 's32[]', space=sflag, size = 0x4, offset = 0, fixed_abs, tag = 'sflag constant byte address 0x0 - dummy sync flag']
  #allocation23 [shape = 's32[]', space=sflag, size = 0x4, offset = 0, fixed_abs, tag = 'sflag constant byte address 0x0 - dummy sync flag']
  #allocation24 [shape = 's32[]', space=sflag, size = 0x4, offset = 0, fixed_abs, tag = 'sflag constant byte address 0x0 - dummy sync flag']
  #allocation25 [shape = 's32[]', space=sflag, size = 0x4, offset = 0, fixed_abs, tag = 'sflag constant byte address 0x0 - dummy sync flag']
  #allocation26 [shape = 's32[]', space=sflag, size = 0x4, offset = 0, fixed_abs, tag = 'sflag constant byte address 0x0 - dummy sync flag']
  #allocation27 [shape = 's32[]', space=sflag, size = 0x4, offset = 0, fixed_abs, tag = 'sflag constant byte address 0x0 - dummy sync flag']
  #allocation28 [shape = 's32[]', space=sflag, size = 0x4, offset = 0, fixed_abs, tag = 'sflag constant byte address 0x0 - dummy sync flag']
  #allocation29 [shape = 's32[]', space=sflag, size = 0x4, offset = 0, fixed_abs, tag = 'sflag constant byte address 0x0 - dummy sync flag']
  #allocation30 [shape = 's32[]', space=sflag, size = 0x4, offset = 0, fixed_abs, tag = 'sflag constant byte address 0x0 - dummy sync flag']
  #allocation31 [shape = 's32[]', space=sflag, size = 0x4, offset = 0, fixed_abs, tag = 'sflag constant byte address 0x0 - dummy sync flag']
  #allocation32 [shape = 's32[]', space=sflag, size = 0x4, offset = 0, fixed_abs, tag = 'sflag constant byte address 0x0 - dummy sync flag']
  #allocation33 [shape = 's32[]', space=sflag, size = 0x4, offset = 0, fixed_abs, tag = 'sflag constant byte address 0x0 - dummy sync flag']
  #allocation34 [shape = 's32[]', space=sflag, size = 0x4, offset = 0, fixed_abs, tag = 'sflag constant byte address 0x0 - dummy sync flag']
  #allocation35 [shape = 's32[]', space=sflag, size = 0x4, offset = 0, fixed_abs, tag = 'sflag constant byte address 0x0 - dummy sync flag']
  #allocation36 [shape = 's32[]', space=sflag, size = 0x4, offset = 0, fixed_abs, tag = 'sflag constant byte address 0x0 - dummy sync flag']
  #allocation37 [shape = 's32[]', space=sflag, size = 0x4, offset = 0, fixed_abs, tag = 'sflag constant byte address 0x0 - dummy sync flag']
  #allocation38 [shape = 's32[]', space=sflag, size = 0x4, offset = 0, fixed_abs, tag = 'sflag constant byte address 0x0 - dummy sync flag']
  #allocation39 [shape = 's32[]', space=sflag, size = 0x4, offset = 0, fixed_abs, tag = 'sflag constant byte address 0x0 - dummy sync flag']
  #allocation40 [shape = 's32[]', space=sflag, size = 0x4, offset = 0, fixed_abs, tag = 'sflag constant byte address 0x0 - dummy sync flag']
  #allocation41 [shape = 's32[]', space=sflag, size = 0x4, offset = 0, fixed_abs, tag = 'sflag constant byte address 0x0 - dummy sync flag']
  #allocation42 [shape = 's32[]', space=sflag, size = 0x4, offset = 0, fixed_abs, tag = 'sflag constant byte address 0x0 - dummy sync flag']
  #allocation43 [shape = 's32[]', space=sflag, size = 0x4, offset = 0, fixed_abs, tag = 'sflag constant byte address 0x0 - dummy sync flag']
  #allocation44 [shape = 's32[]', space=sflag, size = 0x4, offset = 0, fixed_abs, tag = 'sflag constant byte address 0x0 - dummy sync flag']
  #allocation45 [shape = 's32[]', space=sflag, size = 0x4, offset = 0, fixed_abs, tag = 'sflag constant byte address 0x0 - dummy sync flag']
  #allocation46 [shape = 's32[]', space=sflag, size = 0x4, offset = 0, fixed_abs, tag = 'sflag constant byte address 0x0 - dummy sync flag']
  #allocation47 [shape = 's32[]', space=sflag, size = 0x4, offset = 0, fixed_abs, tag = 'sflag constant byte address 0x0 - dummy sync flag']
  #allocation48 [shape = 's32[]', space=sflag, size = 0x4, offset = 0, fixed_abs, tag = 'sflag constant byte address 0x0 - dummy sync flag']
  #allocation49 [shape = 's32[]', space=sflag, size = 0x4, offset = 0, fixed_abs, tag = 'sflag constant byte address 0x0 - dummy sync flag']
  #allocation50 [shape = 's32[]', space=sflag, size = 0x4, offset = 0, fixed_abs, tag = 'sflag constant byte address 0x0 - dummy sync flag']
  #allocation51 [shape = 's32[]', space=sflag, size = 0x4, offset = 0, fixed_abs, tag = 'sflag constant byte address 0x0 - dummy sync flag']
  #allocation52 [shape = 's32[]', space=sflag, size = 0x4, offset = 0, fixed_abs, tag = 'sflag constant byte address 0x0 - dummy sync flag']
  #allocation53 [shape = 's32[]', space=sflag, size = 0x4, offset = 0, fixed_abs, tag = 'sflag constant byte address 0x0 - dummy sync flag']
  #allocation54 [shape = 's32[]', space=sflag, size = 0x4, offset = 0, fixed_abs, tag = 'sflag constant byte address 0x0 - dummy sync flag']
  #allocation55 [shape = 's32[]', space=sflag, size = 0x4, offset = 0, fixed_abs, tag = 'sflag constant byte address 0x0 - dummy sync flag']
  #allocation56 [shape = 's32[]', space=sflag, size = 0x4, offset = 0, fixed_abs, tag = 'sflag constant byte address 0x0 - dummy sync flag']
  #allocation57 [shape = 's32[]', space=sflag, size = 0x4, offset = 0, fixed_abs, tag = 'sflag constant byte address 0x0 - dummy sync flag']
  #allocation58 [shape = 's32[]', space=sflag, size = 0x4, offset = 0, fixed_abs, tag = 'sflag constant byte address 0x0 - dummy sync flag']
  #allocation59 [shape = 's32[]', space=sflag, size = 0x4, offset = 0, fixed_abs, tag = 'sflag constant byte address 0x0 - dummy sync flag']
  #allocation60 [shape = 's32[]', space=sflag, size = 0x4, offset = 0, fixed_abs, tag = 'sflag constant byte address 0x0 - dummy sync flag']
  #allocation61 [shape = 's32[]', space=sflag, size = 0x4, offset = 0, fixed_abs, tag = 'sflag constant byte address 0x0 - dummy sync flag']
  #allocation62 [shape = 's32[]', space=sflag, size = 0x4, offset = 0, fixed_abs, tag = 'sflag constant byte address 0x0 - dummy sync flag']
  #allocation63 [shape = 's32[]', space=sflag, size = 0x4, offset = 0, fixed_abs, tag = 'sflag constant byte address 0x0 - dummy sync flag']
  #allocation64 [shape = 's32[]', space=sflag, size = 0x4, offset = 0, fixed_abs, tag = 'sflag constant byte address 0x0 - dummy sync flag']
  #allocation65 [shape = 's32[]', space=sflag, size = 0x4, offset = 0, fixed_abs, tag = 'sflag constant byte address 0x0 - dummy sync flag']
  #allocation66 [shape = 's32[]', space=sflag, size = 0x4, offset = 0, fixed_abs, tag = 'sflag constant byte address 0x0 - dummy sync flag']
  #allocation67 [shape = 's32[]', space=sflag, size = 0x4, offset = 0, fixed_abs, tag = 'sflag constant byte address 0x0 - dummy sync flag']
  #allocation68 [shape = 's32[]', space=sflag, size = 0x4, offset = 0, fixed_abs, tag = 'sflag constant byte address 0x0 - dummy sync flag']
  #allocation69 [shape = 's32[]', space=sflag, size = 0x4, offset = 0, fixed_abs, tag = 'sflag constant byte address 0x0 - dummy sync flag']
  #allocation70 [shape = 's32[]', space=sflag, size = 0x4, offset = 0, fixed_abs, tag = 'sflag constant byte address 0x0 - dummy sync flag']
  #allocation71 [shape = 's32[]', space=sflag, size = 0x4, offset = 0, fixed_abs, tag = 'sflag constant byte address 0x0 - dummy sync flag']
  #allocation72 [shape = 's32[]', space=sflag, size = 0x4, offset = 0, fixed_abs, tag = 'sflag constant byte address 0x0 - dummy sync flag']
  #allocation73 [shape = 's32[]', space=sflag, size = 0x4, offset = 0, fixed_abs, tag = 'sflag constant byte address 0x0 - dummy sync flag']
  #allocation74 [shape = 's32[]', space=sflag, size = 0x4, offset = 0, fixed_abs, tag = 'sflag constant byte address 0x0 - dummy sync flag']
  #allocation75 [shape = 's32[]', space=sflag, size = 0x4, offset = 0, fixed_abs, tag = 'sflag constant byte address 0x0 - dummy sync flag']
  #allocation76 [shape = 's32[]', space=sflag, size = 0x4, offset = 0, fixed_abs, tag = 'sflag constant byte address 0x0 - dummy sync flag']
  #allocation77 [shape = 's32[]', space=sflag, size = 0x4, offset = 0, fixed_abs, tag = 'sflag constant byte address 0x0 - dummy sync flag']
  #allocation78 [shape = 's32[]', space=sflag, size = 0x4, offset = 0, fixed_abs, tag = 'sflag constant byte address 0x0 - dummy sync flag']
  #allocation79 [shape = 's32[]', space=sflag, size = 0x4, offset = 0, fixed_abs, tag = 'sflag constant byte address 0x0 - dummy sync flag']
  #allocation80 [shape = 's32[]', space=sflag, size = 0x4, offset = 0, fixed_abs, tag = 'sflag constant byte address 0x0 - dummy sync flag']
  #allocation81 [shape = 's32[]', space=sflag, size = 0x4, offset = 0, fixed_abs, tag = 'sflag constant byte address 0x0 - dummy sync flag']
  #allocation82 [shape = 's32[]', space=sflag, size = 0x4, offset = 0, fixed_abs, tag = 'sflag constant byte address 0x0 - dummy sync flag']
  #allocation83 [shape = 's32[]', space=sflag, size = 0x4, offset = 0, fixed_abs, tag = 'sflag constant byte address 0x0 - dummy sync flag']
  #allocation84 [shape = 's32[]', space=sflag, size = 0x4, offset = 0, fixed_abs, tag = 'sflag constant byte address 0x0 - dummy sync flag']
  #allocation85 [shape = 's32[]', space=sflag, size = 0x4, offset = 0, fixed_abs, tag = 'sflag constant byte address 0x0 - dummy sync flag']
  #allocation86 [shape = 's32[]', space=sflag, size = 0x4, offset = 0, fixed_abs, tag = 'sflag constant byte address 0x0 - dummy sync flag']
  #allocation87 [shape = 's32[]', space=sflag, size = 0x4, offset = 0, fixed_abs, tag = 'sflag constant byte address 0x0 - dummy sync flag']
  #allocation88 [shape = 's32[]', space=sflag, size = 0x4, offset = 0, fixed_abs, tag = 'sflag constant byte address 0x0 - dummy sync flag']
  #allocation89 [shape = 's32[]', space=sflag, size = 0x4, offset = 0, fixed_abs, tag = 'sflag constant byte address 0x0 - dummy sync flag']
  #allocation90 [shape = 's32[]', space=sflag, size = 0x4, offset = 0, fixed_abs, tag = 'sflag constant byte address 0x0 - dummy sync flag']
  #allocation91 [shape = 's32[]', space=sflag, size = 0x4, offset = 0, fixed_abs, tag = 'sflag constant byte address 0x0 - dummy sync flag']
  #allocation92 [shape = 's32[]', space=sflag, size = 0x4, offset = 0, fixed_abs, tag = 'sflag constant byte address 0x0 - dummy sync flag']
  #allocation93 [shape = 's32[]', space=sflag, size = 0x4, offset = 0, fixed_abs, tag = 'sflag constant byte address 0x0 - dummy sync flag']
  #allocation94 [shape = 's32[]', space=sflag, size = 0x4, offset = 0, fixed_abs, tag = 'sflag constant byte address 0x0 - dummy sync flag']
  #allocation95 [shape = 's32[]', space=sflag, size = 0x4, offset = 0, fixed_abs, tag = 'sflag constant byte address 0x0 - dummy sync flag']
  #allocation96 [shape = 's32[]', space=sflag, size = 0x4, offset = 0, fixed_abs, tag = 'sflag constant byte address 0x0 - dummy sync flag']
  #allocation97 [shape = 's32[]', space=sflag, size = 0x4, offset = 0, fixed_abs, tag = 'sflag constant byte address 0x0 - dummy sync flag']
  #allocation98 [shape = 's32[]', space=sflag, size = 0x4, offset = 0, fixed_abs, tag = 'sflag constant byte address 0x0 - dummy sync flag']
  #allocation99 [shape = 's32[]', space=sflag, size = 0x4, offset = 0, fixed_abs, tag = 'sflag constant byte address 0x0 - dummy sync flag']
  #allocation100 [shape = 's32[]', space=sflag, size = 0x4, offset = 0, fixed_abs, tag = 'sflag constant byte address 0x0 - dummy sync flag']
  #allocation101 [shape = 's32[]', space=sflag, size = 0x4, offset = 0, fixed_abs, tag = 'sflag constant byte address 0x0 - dummy sync flag']
  #allocation102 [shape = 's32[]', space=sflag, size = 0x4, offset = 0, fixed_abs, tag = 'sflag constant byte address 0x0 - dummy sync flag']
  #allocation103 [shape = 's32[]', space=sflag, size = 0x4, offset = 0, fixed_abs, tag = 'sflag constant byte address 0x0 - dummy sync flag']
  #allocation104 [shape = 's32[]', space=sflag, size = 0x4, offset = 0, fixed_abs, tag = 'sflag constant byte address 0x0 - dummy sync flag']
  #allocation105 [shape = 's32[]', space=sflag, size = 0x4, offset = 0, fixed_abs, tag = 'sflag constant byte address 0x0 - dummy sync flag']
  #allocation106 [shape = 's32[]', space=sflag, size = 0x4, offset = 0, fixed_abs, tag = 'sflag constant byte address 0x0 - dummy sync flag']
  #allocation107 [shape = 's32[]', space=sflag, size = 0x4, offset = 0, fixed_abs, tag = 'sflag constant byte address 0x0 - dummy sync flag']
  #allocation108 [shape = 's32[]', space=sflag, size = 0x4, offset = 0, fixed_abs, tag = 'sflag constant byte address 0x0 - dummy sync flag']
  #allocation109 [shape = 's32[]', space=sflag, size = 0x4, offset = 0, fixed_abs, tag = 'sflag constant byte address 0x0 - dummy sync flag']
  #allocation110 [shape = 's32[]', space=sflag, size = 0x4, offset = 0, fixed_abs, tag = 'sflag constant byte address 0x0 - dummy sync flag']
  #allocation111 [shape = 's32[]', space=sflag, size = 0x4, offset = 0, fixed_abs, tag = 'sflag constant byte address 0x0 - dummy sync flag']
  #allocation112 [shape = 's32[]', space=sflag, size = 0x4, offset = 0, fixed_abs, tag = 'sflag constant byte address 0x0 - dummy sync flag']
  #allocation113 [shape = 's32[]', space=sflag, size = 0x4, offset = 0, fixed_abs, tag = 'sflag constant byte address 0x0 - dummy sync flag']
  #allocation114 [shape = 's32[]', space=sflag, size = 0x4, offset = 0, fixed_abs, tag = 'sflag constant byte address 0x0 - dummy sync flag']
  #allocation115 [shape = 's32[]', space=sflag, size = 0x4, offset = 0, fixed_abs, tag = 'sflag constant byte address 0x0 - dummy sync flag']
  #allocation116 [shape = 's32[]', space=sflag, size = 0x4, offset = 0, fixed_abs, tag = 'sflag constant byte address 0x0 - dummy sync flag']
  #allocation117 [shape = 's32[]', space=sflag, size = 0x4, offset = 0, fixed_abs, tag = 'sflag constant byte address 0x0 - dummy sync flag']
  #allocation118 [shape = 's32[]', space=sflag, size = 0x4, offset = 0, fixed_abs, tag = 'sflag constant byte address 0x0 - dummy sync flag']
  #allocation119 [shape = 's32[]', space=sflag, size = 0x4, offset = 0, fixed_abs, tag = 'sflag constant byte address 0x0 - dummy sync flag']
  #allocation120 [shape = 's32[]', space=sflag, size = 0x4, offset = 0, fixed_abs, tag = 'sflag constant byte address 0x0 - dummy sync flag']
  #allocation121 [shape = 's32[]', space=sflag, size = 0x4, offset = 0, fixed_abs, tag = 'sflag constant byte address 0x0 - dummy sync flag']
  #allocation122 [shape = 's32[]', space=sflag, size = 0x4, offset = 0, fixed_abs, tag = 'sflag constant byte address 0x0 - dummy sync flag']
  #allocation123 [shape = 's32[]', space=sflag, size = 0x4, offset = 0, fixed_abs, tag = 'sflag constant byte address 0x0 - dummy sync flag']
  #allocation124 [shape = 's32[]', space=sflag, size = 0x4, offset = 0, fixed_abs, tag = 'sflag constant byte address 0x0 - dummy sync flag']
  #allocation125 [shape = 's32[]', space=sflag, size = 0x4, offset = 0, fixed_abs, tag = 'sflag constant byte address 0x0 - dummy sync flag']
  #allocation126 [shape = 's32[]', space=sflag, size = 0x4, offset = 0, fixed_abs, tag = 'sflag constant byte address 0x0 - dummy sync flag']
  #allocation127 [shape = 's32[]', space=sflag, size = 0x4, offset = 0, fixed_abs, tag = 'sflag constant byte address 0x0 - dummy sync flag']
  #allocation128 [shape = 's32[]', space=sflag, size = 0x4, offset = 0, fixed_abs, tag = 'sflag constant byte address 0x0 - dummy sync flag']
  #allocation129 [shape = 's32[]', space=sflag, size = 0x4, offset = 0, fixed_abs, tag = 'sflag constant byte address 0x0 - dummy sync flag']
  #allocation130 [shape = 's32[]', space=sflag, size = 0x4, offset = 0, fixed_abs, tag = 'sflag constant byte address 0x0 - dummy sync flag']
  #allocation131 [shape = 's32[]', space=sflag, size = 0x4, offset = 0, fixed_abs, tag = 'sflag constant byte address 0x0 - dummy sync flag']
  #allocation132 [shape = 's32[]', space=sflag, size = 0x4, offset = 0, fixed_abs, tag = 'sflag constant byte address 0x0 - dummy sync flag']
  #allocation133 [shape = 's32[]', space=sflag, size = 0x4, offset = 0, fixed_abs, tag = 'sflag constant byte address 0x0 - dummy sync flag']
  #allocation134 [shape = 's32[]', space=sflag, size = 0x4, offset = 0, fixed_abs, tag = 'sflag constant byte address 0x0 - dummy sync flag']
  %s0 = inlined_call_operand.vmem [shape: s32[64], index: 0, kind: input, shape index: {}]
  %s1 = inlined_call_operand.hbm [shape: f32[64,128], index: 1, kind: input, shape index: {}]
  %s2 = inlined_call_operand.vmem [shape: f32[64,128], index: 2, kind: output, shape index: {}]
  %s3 = sld [smem:[#allocation0]]
  $region266: #{language_model_forward.4} parent=0
    _
  %s5 = ssub.s32 1, %s3
  %s6 = scalar_select 0, %s5, %s3
  %s7 = sshll.u32 %s0, 4
  %s8 = int_to_ptr.vmem [resolvable:$true] %s7
  %10 = dma.vmem_to_smem %s8, 16, [#allocation4], [#allocation3]
  %11 = dma.done [#allocation3], 16
  %12 = sfence
  %s13 = smul.u32 0, 64
  %s14 = sld [smem:[#allocation4 + %s13]]
  %s15 = smul.addr %s14, 16
  %s16 = scalar_lea.hbm %s1, %s15
  // Predicated region
  $region2: #{language_model_forward.4} parent=0 // pred_check
    _
  $region3: #{language_model_forward.4} parent=0 // pred_check_branch
    %18 = sbr.rel target = $region5
  $region4: #{language_model_forward.4} parent=0 // pred_region
    %19 = sst [smem:[#allocation7]] [#allocation6]
    %20 = sst [smem:[#allocation8]] [#allocation5]
  $region5: #{language_model_forward.4} parent=0 // pred_fallthru
    _
  %22 = shalt.err (0)
  %s24 = sshll.u32 %s2, 4
  %s25 = int_to_ptr.vmem [resolvable:$true] %s24
  %27 = dma.hbm_to_vmem [thread:$0]  %s16, 16, %s25, [#allocation2]
  %s28 = sadd.s32 %s13, 1
  %s29 = sld [smem:[#allocation4 + %s28]]
  %s30 = smul.addr %s29, 16
  %s31 = scalar_lea.hbm %s1, %s30
  %s32 = scalar_lea.vmem %s2, 1
  // Predicated region
  $region6: #{language_model_forward.4} parent=0 // pred_check
    _
  $region7: #{language_model_forward.4} parent=0 // pred_check_branch
    %34 = sbr.rel target = $region9
  $region8: #{language_model_forward.4} parent=0 // pred_region
    %35 = sst [smem:[#allocation7]] [#allocation10]
    %36 = sst [smem:[#allocation8]] [#allocation9]
  $region9: #{language_model_forward.4} parent=0 // pred_fallthru
    _
  %38 = shalt.err (0)
  %s40 = sshll.u32 %s32, 4
  %s41 = int_to_ptr.vmem [resolvable:$true] %s40
  %43 = dma.hbm_to_vmem [thread:$0]  %s31, 16, %s41, [#allocation2]
  %s44 = sadd.s32 %s13, 2
  %s45 = sld [smem:[#allocation4 + %s44]]
  %s46 = smul.addr %s45, 16
  %s47 = scalar_lea.hbm %s1, %s46
  %s48 = scalar_lea.vmem %s2, 2
  // Predicated region
  $region10: #{language_model_forward.4} parent=0 // pred_check
    _
  $region11: #{language_model_forward.4} parent=0 // pred_check_branch
    %50 = sbr.rel target = $region13
  $region12: #{language_model_forward.4} parent=0 // pred_region
    %51 = sst [smem:[#allocation7]] [#allocation12]
    %52 = sst [smem:[#allocation8]] [#allocation11]
  $region13: #{language_model_forward.4} parent=0 // pred_fallthru
    _
  %54 = shalt.err (0)
  %s56 = sshll.u32 %s48, 4
  %s57 = int_to_ptr.vmem [resolvable:$true] %s56
  %59 = dma.hbm_to_vmem [thread:$0]  %s47, 16, %s57, [#allocation2]
  %s60 = sadd.s32 %s13, 3
  %s61 = sld [smem:[#allocation4 + %s60]]
  %s62 = smul.addr %s61, 16
  %s63 = scalar_lea.hbm %s1, %s62
  %s64 = scalar_lea.vmem %s2, 3
  // Predicated region
  $region14: #{language_model_forward.4} parent=0 // pred_check
    _
  $region15: #{language_model_forward.4} parent=0 // pred_check_branch
    %66 = sbr.rel target = $region17
  $region16: #{language_model_forward.4} parent=0 // pred_region
    %67 = sst [smem:[#allocation7]] [#allocation14]
    %68 = sst [smem:[#allocation8]] [#allocation13]
  $region17: #{language_model_forward.4} parent=0 // pred_fallthru
    _
  %70 = shalt.err (0)
  %s72 = sshll.u32 %s64, 4
  %s73 = int_to_ptr.vmem [resolvable:$true] %s72
  %75 = dma.hbm_to_vmem [thread:$0]  %s63, 16, %s73, [#allocation2]
  %s76 = sadd.s32 %s13, 4
  %s77 = sld [smem:[#allocation4 + %s76]]
  %s78 = smul.addr %s77, 16
  %s79 = scalar_lea.hbm %s1, %s78
  %s80 = scalar_lea.vmem %s2, 4
  // Predicated region
  $region18: #{language_model_forward.4} parent=0 // pred_check
    _
  $region19: #{language_model_forward.4} parent=0 // pred_check_branch
    %82 = sbr.rel target = $region21
  $region20: #{language_model_forward.4} parent=0 // pred_region
    %83 = sst [smem:[#allocation7]] [#allocation16]
    %84 = sst [smem:[#allocation8]] [#allocation15]
  $region21: #{language_model_forward.4} parent=0 // pred_fallthru
    _
  %86 = shalt.err (0)
  %s88 = sshll.u32 %s80, 4
  %s89 = int_to_ptr.vmem [resolvable:$true] %s88
  %91 = dma.hbm_to_vmem [thread:$0]  %s79, 16, %s89, [#allocation2]
  %s92 = sadd.s32 %s13, 5
  %s93 = sld [smem:[#allocation4 + %s92]]
  %s94 = smul.addr %s93, 16
  %s95 = scalar_lea.hbm %s1, %s94
  %s96 = scalar_lea.vmem %s2, 5
  // Predicated region
  $region22: #{language_model_forward.4} parent=0 // pred_check
    _
  $region23: #{language_model_forward.4} parent=0 // pred_check_branch
    %98 = sbr.rel target = $region25
  $region24: #{language_model_forward.4} parent=0 // pred_region
    %99 = sst [smem:[#allocation7]] [#allocation18]
    %100 = sst [smem:[#allocation8]] [#allocation17]
  $region25: #{language_model_forward.4} parent=0 // pred_fallthru
    _
  %102 = shalt.err (0)
  %s104 = sshll.u32 %s96, 4
  %s105 = int_to_ptr.vmem [resolvable:$true] %s104
  %107 = dma.hbm_to_vmem [thread:$0]  %s95, 16, %s105, [#allocation2]
  %s108 = sadd.s32 %s13, 6
  %s109 = sld [smem:[#allocation4 + %s108]]
  %s110 = smul.addr %s109, 16
  %s111 = scalar_lea.hbm %s1, %s110
  %s112 = scalar_lea.vmem %s2, 6
  // Predicated region
  $region26: #{language_model_forward.4} parent=0 // pred_check
    _
  $region27: #{language_model_forward.4} parent=0 // pred_check_branch
    %114 = sbr.rel target = $region29
  $region28: #{language_model_forward.4} parent=0 // pred_region
    %115 = sst [smem:[#allocation7]] [#allocation20]
    %116 = sst [smem:[#allocation8]] [#allocation19]
  $region29: #{language_model_forward.4} parent=0 // pred_fallthru
    _
  %118 = shalt.err (0)
  %s120 = sshll.u32 %s112, 4
  %s121 = int_to_ptr.vmem [resolvable:$true] %s120
  %123 = dma.hbm_to_vmem [thread:$0]  %s111, 16, %s121, [#allocation2]
  %s124 = sadd.s32 %s13, 7
  %s125 = sld [smem:[#allocation4 + %s124]]
  %s126 = smul.addr %s125, 16
  %s127 = scalar_lea.hbm %s1, %s126
  %s128 = scalar_lea.vmem %s2, 7
  // Predicated region
  $region30: #{language_model_forward.4} parent=0 // pred_check
    _
  $region31: #{language_model_forward.4} parent=0 // pred_check_branch
    %130 = sbr.rel target = $region33
  $region32: #{language_model_forward.4} parent=0 // pred_region
    %131 = sst [smem:[#allocation7]] [#allocation22]
    %132 = sst [smem:[#allocation8]] [#allocation21]
  $region33: #{language_model_forward.4} parent=0 // pred_fallthru
    _
  %134 = shalt.err (0)
  %s136 = sshll.u32 %s128, 4
  %s137 = int_to_ptr.vmem [resolvable:$true] %s136
  %139 = dma.hbm_to_vmem [thread:$0]  %s127, 16, %s137, [#allocation2]
  %s140 = sadd.s32 %s13, 8
  %s141 = sld [smem:[#allocation4 + %s140]]
  %s142 = smul.addr %s141, 16
  %s143 = scalar_lea.hbm %s1, %s142
  %s144 = scalar_lea.vmem %s2, 8
  // Predicated region
  $region34: #{language_model_forward.4} parent=0 // pred_check
    _
  $region35: #{language_model_forward.4} parent=0 // pred_check_branch
    %146 = sbr.rel target = $region37
  $region36: #{language_model_forward.4} parent=0 // pred_region
    %147 = sst [smem:[#allocation7]] [#allocation24]
    %148 = sst [smem:[#allocation8]] [#allocation23]
  $region37: #{language_model_forward.4} parent=0 // pred_fallthru
    _
  %150 = shalt.err (0)
  %s152 = sshll.u32 %s144, 4
  %s153 = int_to_ptr.vmem [resolvable:$true] %s152
  %155 = dma.hbm_to_vmem [thread:$0]  %s143, 16, %s153, [#allocation2]
  %s156 = sadd.s32 %s13, 9
  %s157 = sld [smem:[#allocation4 + %s156]]
  %s158 = smul.addr %s157, 16
  %s159 = scalar_lea.hbm %s1, %s158
  %s160 = scalar_lea.vmem %s2, 9
  // Predicated region
  $region38: #{language_model_forward.4} parent=0 // pred_check
    _
  $region39: #{language_model_forward.4} parent=0 // pred_check_branch
    %162 = sbr.rel target = $region41
  $region40: #{language_model_forward.4} parent=0 // pred_region
    %163 = sst [smem:[#allocation7]] [#allocation26]
    %164 = sst [smem:[#allocation8]] [#allocation25]
  $region41: #{language_model_forward.4} parent=0 // pred_fallthru
    _
  %166 = shalt.err (0)
  %s168 = sshll.u32 %s160, 4
  %s169 = int_to_ptr.vmem [resolvable:$true] %s168
  %171 = dma.hbm_to_vmem [thread:$0]  %s159, 16, %s169, [#allocation2]
  %s172 = sadd.s32 %s13, 10
  %s173 = sld [smem:[#allocation4 + %s172]]
  %s174 = smul.addr %s173, 16
  %s175 = scalar_lea.hbm %s1, %s174
  %s176 = scalar_lea.vmem %s2, 10
  // Predicated region
  $region42: #{language_model_forward.4} parent=0 // pred_check
    _
  $region43: #{language_model_forward.4} parent=0 // pred_check_branch
    %178 = sbr.rel target = $region45
  $region44: #{language_model_forward.4} parent=0 // pred_region
    %179 = sst [smem:[#allocation7]] [#allocation28]
    %180 = sst [smem:[#allocation8]] [#allocation27]
  $region45: #{language_model_forward.4} parent=0 // pred_fallthru
    _
  %182 = shalt.err (0)
  %s184 = sshll.u32 %s176, 4
  %s185 = int_to_ptr.vmem [resolvable:$true] %s184
  %187 = dma.hbm_to_vmem [thread:$0]  %s175, 16, %s185, [#allocation2]
  %s188 = sadd.s32 %s13, 11
  %s189 = sld [smem:[#allocation4 + %s188]]
  %s190 = smul.addr %s189, 16
  %s191 = scalar_lea.hbm %s1, %s190
  %s192 = scalar_lea.vmem %s2, 11
  // Predicated region
  $region46: #{language_model_forward.4} parent=0 // pred_check
    _
  $region47: #{language_model_forward.4} parent=0 // pred_check_branch
    %194 = sbr.rel target = $region49
  $region48: #{language_model_forward.4} parent=0 // pred_region
    %195 = sst [smem:[#allocation7]] [#allocation30]
    %196 = sst [smem:[#allocation8]] [#allocation29]
  $region49: #{language_model_forward.4} parent=0 // pred_fallthru
    _
  %198 = shalt.err (0)
  %s200 = sshll.u32 %s192, 4
  %s201 = int_to_ptr.vmem [resolvable:$true] %s200
  %203 = dma.hbm_to_vmem [thread:$0]  %s191, 16, %s201, [#allocation2]
  %s204 = sadd.s32 %s13, 12
  %s205 = sld [smem:[#allocation4 + %s204]]
  %s206 = smul.addr %s205, 16
  %s207 = scalar_lea.hbm %s1, %s206
  %s208 = scalar_lea.vmem %s2, 12
  // Predicated region
  $region50: #{language_model_forward.4} parent=0 // pred_check
    _
  $region51: #{language_model_forward.4} parent=0 // pred_check_branch
    %210 = sbr.rel target = $region53
  $region52: #{language_model_forward.4} parent=0 // pred_region
    %211 = sst [smem:[#allocation7]] [#allocation32]
    %212 = sst [smem:[#allocation8]] [#allocation31]
  $region53: #{language_model_forward.4} parent=0 // pred_fallthru
    _
  %214 = shalt.err (0)
  %s216 = sshll.u32 %s208, 4
  %s217 = int_to_ptr.vmem [resolvable:$true] %s216
  %219 = dma.hbm_to_vmem [thread:$0]  %s207, 16, %s217, [#allocation2]
  %s220 = sadd.s32 %s13, 13
  %s221 = sld [smem:[#allocation4 + %s220]]
  %s222 = smul.addr %s221, 16
  %s223 = scalar_lea.hbm %s1, %s222
  %s224 = scalar_lea.vmem %s2, 13
  // Predicated region
  $region54: #{language_model_forward.4} parent=0 // pred_check
    _
  $region55: #{language_model_forward.4} parent=0 // pred_check_branch
    %226 = sbr.rel target = $region57
  $region56: #{language_model_forward.4} parent=0 // pred_region
    %227 = sst [smem:[#allocation7]] [#allocation34]
    %228 = sst [smem:[#allocation8]] [#allocation33]
  $region57: #{language_model_forward.4} parent=0 // pred_fallthru
    _
  %230 = shalt.err (0)
  %s232 = sshll.u32 %s224, 4
  %s233 = int_to_ptr.vmem [resolvable:$true] %s232
  %235 = dma.hbm_to_vmem [thread:$0]  %s223, 16, %s233, [#allocation2]
  %s236 = sadd.s32 %s13, 14
  %s237 = sld [smem:[#allocation4 + %s236]]
  %s238 = smul.addr %s237, 16
  %s239 = scalar_lea.hbm %s1, %s238
  %s240 = scalar_lea.vmem %s2, 14
  // Predicated region
  $region58: #{language_model_forward.4} parent=0 // pred_check
    _
  $region59: #{language_model_forward.4} parent=0 // pred_check_branch
    %242 = sbr.rel target = $region61
  $region60: #{language_model_forward.4} parent=0 // pred_region
    %243 = sst [smem:[#allocation7]] [#allocation36]
    %244 = sst [smem:[#allocation8]] [#allocation35]
  $region61: #{language_model_forward.4} parent=0 // pred_fallthru
    _
  %246 = shalt.err (0)
  %s248 = sshll.u32 %s240, 4
  %s249 = int_to_ptr.vmem [resolvable:$true] %s248
  %251 = dma.hbm_to_vmem [thread:$0]  %s239, 16, %s249, [#allocation2]
  %s252 = sadd.s32 %s13, 15
  %s253 = sld [smem:[#allocation4 + %s252]]
  %s254 = smul.addr %s253, 16
  %s255 = scalar_lea.hbm %s1, %s254
  %s256 = scalar_lea.vmem %s2, 15
  // Predicated region
  $region62: #{language_model_forward.4} parent=0 // pred_check
    _
  $region63: #{language_model_forward.4} parent=0 // pred_check_branch
    %258 = sbr.rel target = $region65
  $region64: #{language_model_forward.4} parent=0 // pred_region
    %259 = sst [smem:[#allocation7]] [#allocation38]
    %260 = sst [smem:[#allocation8]] [#allocation37]
  $region65: #{language_model_forward.4} parent=0 // pred_fallthru
    _
  %262 = shalt.err (0)
  %s264 = sshll.u32 %s256, 4
  %s265 = int_to_ptr.vmem [resolvable:$true] %s264
  %267 = dma.hbm_to_vmem [thread:$0]  %s255, 16, %s265, [#allocation2]
  %s268 = sadd.s32 %s13, 16
  %s269 = sld [smem:[#allocation4 + %s268]]
  %s270 = smul.addr %s269, 16
  %s271 = scalar_lea.hbm %s1, %s270
  %s272 = scalar_lea.vmem %s2, 16
  // Predicated region
  $region66: #{language_model_forward.4} parent=0 // pred_check
    _
  $region67: #{language_model_forward.4} parent=0 // pred_check_branch
    %274 = sbr.rel target = $region69
  $region68: #{language_model_forward.4} parent=0 // pred_region
    %275 = sst [smem:[#allocation7]] [#allocation40]
    %276 = sst [smem:[#allocation8]] [#allocation39]
  $region69: #{language_model_forward.4} parent=0 // pred_fallthru
    _
  %278 = shalt.err (0)
  %s280 = sshll.u32 %s272, 4
  %s281 = int_to_ptr.vmem [resolvable:$true] %s280
  %283 = dma.hbm_to_vmem [thread:$0]  %s271, 16, %s281, [#allocation2]
  %s284 = sadd.s32 %s13, 17
  %s285 = sld [smem:[#allocation4 + %s284]]
  %s286 = smul.addr %s285, 16
  %s287 = scalar_lea.hbm %s1, %s286
  %s288 = scalar_lea.vmem %s2, 17
  // Predicated region
  $region70: #{language_model_forward.4} parent=0 // pred_check
    _
  $region71: #{language_model_forward.4} parent=0 // pred_check_branch
    %290 = sbr.rel target = $region73
  $region72: #{language_model_forward.4} parent=0 // pred_region
    %291 = sst [smem:[#allocation7]] [#allocation42]
    %292 = sst [smem:[#allocation8]] [#allocation41]
  $region73: #{language_model_forward.4} parent=0 // pred_fallthru
    _
  %294 = shalt.err (0)
  %s296 = sshll.u32 %s288, 4
  %s297 = int_to_ptr.vmem [resolvable:$true] %s296
  %299 = dma.hbm_to_vmem [thread:$0]  %s287, 16, %s297, [#allocation2]
  %s300 = sadd.s32 %s13, 18
  %s301 = sld [smem:[#allocation4 + %s300]]
  %s302 = smul.addr %s301, 16
  %s303 = scalar_lea.hbm %s1, %s302
  %s304 = scalar_lea.vmem %s2, 18
  // Predicated region
  $region74: #{language_model_forward.4} parent=0 // pred_check
    _
  $region75: #{language_model_forward.4} parent=0 // pred_check_branch
    %306 = sbr.rel target = $region77
  $region76: #{language_model_forward.4} parent=0 // pred_region
    %307 = sst [smem:[#allocation7]] [#allocation44]
    %308 = sst [smem:[#allocation8]] [#allocation43]
  $region77: #{language_model_forward.4} parent=0 // pred_fallthru
    _
  %310 = shalt.err (0)
  %s312 = sshll.u32 %s304, 4
  %s313 = int_to_ptr.vmem [resolvable:$true] %s312
  %315 = dma.hbm_to_vmem [thread:$0]  %s303, 16, %s313, [#allocation2]
  %s316 = sadd.s32 %s13, 19
  %s317 = sld [smem:[#allocation4 + %s316]]
  %s318 = smul.addr %s317, 16
  %s319 = scalar_lea.hbm %s1, %s318
  %s320 = scalar_lea.vmem %s2, 19
  // Predicated region
  $region78: #{language_model_forward.4} parent=0 // pred_check
    _
  $region79: #{language_model_forward.4} parent=0 // pred_check_branch
    %322 = sbr.rel target = $region81
  $region80: #{language_model_forward.4} parent=0 // pred_region
    %323 = sst [smem:[#allocation7]] [#allocation46]
    %324 = sst [smem:[#allocation8]] [#allocation45]
  $region81: #{language_model_forward.4} parent=0 // pred_fallthru
    _
  %326 = shalt.err (0)
  %s328 = sshll.u32 %s320, 4
  %s329 = int_to_ptr.vmem [resolvable:$true] %s328
  %331 = dma.hbm_to_vmem [thread:$0]  %s319, 16, %s329, [#allocation2]
  %s332 = sadd.s32 %s13, 20
  %s333 = sld [smem:[#allocation4 + %s332]]
  %s334 = smul.addr %s333, 16
  %s335 = scalar_lea.hbm %s1, %s334
  %s336 = scalar_lea.vmem %s2, 20
  // Predicated region
  $region82: #{language_model_forward.4} parent=0 // pred_check
    _
  $region83: #{language_model_forward.4} parent=0 // pred_check_branch
    %338 = sbr.rel target = $region85
  $region84: #{language_model_forward.4} parent=0 // pred_region
    %339 = sst [smem:[#allocation7]] [#allocation48]
    %340 = sst [smem:[#allocation8]] [#allocation47]
  $region85: #{language_model_forward.4} parent=0 // pred_fallthru
    _
  %342 = shalt.err (0)
  %s344 = sshll.u32 %s336, 4
  %s345 = int_to_ptr.vmem [resolvable:$true] %s344
  %347 = dma.hbm_to_vmem [thread:$0]  %s335, 16, %s345, [#allocation2]
  %s348 = sadd.s32 %s13, 21
  %s349 = sld [smem:[#allocation4 + %s348]]
  %s350 = smul.addr %s349, 16
  %s351 = scalar_lea.hbm %s1, %s350
  %s352 = scalar_lea.vmem %s2, 21
  // Predicated region
  $region86: #{language_model_forward.4} parent=0 // pred_check
    _
  $region87: #{language_model_forward.4} parent=0 // pred_check_branch
    %354 = sbr.rel target = $region89
  $region88: #{language_model_forward.4} parent=0 // pred_region
    %355 = sst [smem:[#allocation7]] [#allocation50]
    %356 = sst [smem:[#allocation8]] [#allocation49]
  $region89: #{language_model_forward.4} parent=0 // pred_fallthru
    _
  %358 = shalt.err (0)
  %s360 = sshll.u32 %s352, 4
  %s361 = int_to_ptr.vmem [resolvable:$true] %s360
  %363 = dma.hbm_to_vmem [thread:$0]  %s351, 16, %s361, [#allocation2]
  %s364 = sadd.s32 %s13, 22
  %s365 = sld [smem:[#allocation4 + %s364]]
  %s366 = smul.addr %s365, 16
  %s367 = scalar_lea.hbm %s1, %s366
  %s368 = scalar_lea.vmem %s2, 22
  // Predicated region
  $region90: #{language_model_forward.4} parent=0 // pred_check
    _
  $region91: #{language_model_forward.4} parent=0 // pred_check_branch
    %370 = sbr.rel target = $region93
  $region92: #{language_model_forward.4} parent=0 // pred_region
    %371 = sst [smem:[#allocation7]] [#allocation52]
    %372 = sst [smem:[#allocation8]] [#allocation51]
  $region93: #{language_model_forward.4} parent=0 // pred_fallthru
    _
  %374 = shalt.err (0)
  %s376 = sshll.u32 %s368, 4
  %s377 = int_to_ptr.vmem [resolvable:$true] %s376
  %379 = dma.hbm_to_vmem [thread:$0]  %s367, 16, %s377, [#allocation2]
  %s380 = sadd.s32 %s13, 23
  %s381 = sld [smem:[#allocation4 + %s380]]
  %s382 = smul.addr %s381, 16
  %s383 = scalar_lea.hbm %s1, %s382
  %s384 = scalar_lea.vmem %s2, 23
  // Predicated region
  $region94: #{language_model_forward.4} parent=0 // pred_check
    _
  $region95: #{language_model_forward.4} parent=0 // pred_check_branch
    %386 = sbr.rel target = $region97
  $region96: #{language_model_forward.4} parent=0 // pred_region
    %387 = sst [smem:[#allocation7]] [#allocation54]
    %388 = sst [smem:[#allocation8]] [#allocation53]
  $region97: #{language_model_forward.4} parent=0 // pred_fallthru
    _
  %390 = shalt.err (0)
  %s392 = sshll.u32 %s384, 4
  %s393 = int_to_ptr.vmem [resolvable:$true] %s392
  %395 = dma.hbm_to_vmem [thread:$0]  %s383, 16, %s393, [#allocation2]
  %s396 = sadd.s32 %s13, 24
  %s397 = sld [smem:[#allocation4 + %s396]]
  %s398 = smul.addr %s397, 16
  %s399 = scalar_lea.hbm %s1, %s398
  %s400 = scalar_lea.vmem %s2, 24
  // Predicated region
  $region98: #{language_model_forward.4} parent=0 // pred_check
    _
  $region99: #{language_model_forward.4} parent=0 // pred_check_branch
    %402 = sbr.rel target = $region101
  $region100: #{language_model_forward.4} parent=0 // pred_region
    %403 = sst [smem:[#allocation7]] [#allocation56]
    %404 = sst [smem:[#allocation8]] [#allocation55]
  $region101: #{language_model_forward.4} parent=0 // pred_fallthru
    _
  %406 = shalt.err (0)
  %s408 = sshll.u32 %s400, 4
  %s409 = int_to_ptr.vmem [resolvable:$true] %s408
  %411 = dma.hbm_to_vmem [thread:$0]  %s399, 16, %s409, [#allocation2]
  %s412 = sadd.s32 %s13, 25
  %s413 = sld [smem:[#allocation4 + %s412]]
  %s414 = smul.addr %s413, 16
  %s415 = scalar_lea.hbm %s1, %s414
  %s416 = scalar_lea.vmem %s2, 25
  // Predicated region
  $region102: #{language_model_forward.4} parent=0 // pred_check
    _
  $region103: #{language_model_forward.4} parent=0 // pred_check_branch
    %418 = sbr.rel target = $region105
  $region104: #{language_model_forward.4} parent=0 // pred_region
    %419 = sst [smem:[#allocation7]] [#allocation58]
    %420 = sst [smem:[#allocation8]] [#allocation57]
  $region105: #{language_model_forward.4} parent=0 // pred_fallthru
    _
  %422 = shalt.err (0)
  %s424 = sshll.u32 %s416, 4
  %s425 = int_to_ptr.vmem [resolvable:$true] %s424
  %427 = dma.hbm_to_vmem [thread:$0]  %s415, 16, %s425, [#allocation2]
  %s428 = sadd.s32 %s13, 26
  %s429 = sld [smem:[#allocation4 + %s428]]
  %s430 = smul.addr %s429, 16
  %s431 = scalar_lea.hbm %s1, %s430
  %s432 = scalar_lea.vmem %s2, 26
  // Predicated region
  $region106: #{language_model_forward.4} parent=0 // pred_check
    _
  $region107: #{language_model_forward.4} parent=0 // pred_check_branch
    %434 = sbr.rel target = $region109
  $region108: #{language_model_forward.4} parent=0 // pred_region
    %435 = sst [smem:[#allocation7]] [#allocation60]
    %436 = sst [smem:[#allocation8]] [#allocation59]
  $region109: #{language_model_forward.4} parent=0 // pred_fallthru
    _
  %438 = shalt.err (0)
  %s440 = sshll.u32 %s432, 4
  %s441 = int_to_ptr.vmem [resolvable:$true] %s440
  %443 = dma.hbm_to_vmem [thread:$0]  %s431, 16, %s441, [#allocation2]
  %s444 = sadd.s32 %s13, 27
  %s445 = sld [smem:[#allocation4 + %s444]]
  %s446 = smul.addr %s445, 16
  %s447 = scalar_lea.hbm %s1, %s446
  %s448 = scalar_lea.vmem %s2, 27
  // Predicated region
  $region110: #{language_model_forward.4} parent=0 // pred_check
    _
  $region111: #{language_model_forward.4} parent=0 // pred_check_branch
    %450 = sbr.rel target = $region113
  $region112: #{language_model_forward.4} parent=0 // pred_region
    %451 = sst [smem:[#allocation7]] [#allocation62]
    %452 = sst [smem:[#allocation8]] [#allocation61]
  $region113: #{language_model_forward.4} parent=0 // pred_fallthru
    _
  %454 = shalt.err (0)
  %s456 = sshll.u32 %s448, 4
  %s457 = int_to_ptr.vmem [resolvable:$true] %s456
  %459 = dma.hbm_to_vmem [thread:$0]  %s447, 16, %s457, [#allocation2]
  %s460 = sadd.s32 %s13, 28
  %s461 = sld [smem:[#allocation4 + %s460]]
  %s462 = smul.addr %s461, 16
  %s463 = scalar_lea.hbm %s1, %s462
  %s464 = scalar_lea.vmem %s2, 28
  // Predicated region
  $region114: #{language_model_forward.4} parent=0 // pred_check
    _
  $region115: #{language_model_forward.4} parent=0 // pred_check_branch
    %466 = sbr.rel target = $region117
  $region116: #{language_model_forward.4} parent=0 // pred_region
    %467 = sst [smem:[#allocation7]] [#allocation64]
    %468 = sst [smem:[#allocation8]] [#allocation63]
  $region117: #{language_model_forward.4} parent=0 // pred_fallthru
    _
  %470 = shalt.err (0)
  %s472 = sshll.u32 %s464, 4
  %s473 = int_to_ptr.vmem [resolvable:$true] %s472
  %475 = dma.hbm_to_vmem [thread:$0]  %s463, 16, %s473, [#allocation2]
  %s476 = sadd.s32 %s13, 29
  %s477 = sld [smem:[#allocation4 + %s476]]
  %s478 = smul.addr %s477, 16
  %s479 = scalar_lea.hbm %s1, %s478
  %s480 = scalar_lea.vmem %s2, 29
  // Predicated region
  $region118: #{language_model_forward.4} parent=0 // pred_check
    _
  $region119: #{language_model_forward.4} parent=0 // pred_check_branch
    %482 = sbr.rel target = $region121
  $region120: #{language_model_forward.4} parent=0 // pred_region
    %483 = sst [smem:[#allocation7]] [#allocation66]
    %484 = sst [smem:[#allocation8]] [#allocation65]
  $region121: #{language_model_forward.4} parent=0 // pred_fallthru
    _
  %486 = shalt.err (0)
  %s488 = sshll.u32 %s480, 4
  %s489 = int_to_ptr.vmem [resolvable:$true] %s488
  %491 = dma.hbm_to_vmem [thread:$0]  %s479, 16, %s489, [#allocation2]
  %s492 = sadd.s32 %s13, 30
  %s493 = sld [smem:[#allocation4 + %s492]]
  %s494 = smul.addr %s493, 16
  %s495 = scalar_lea.hbm %s1, %s494
  %s496 = scalar_lea.vmem %s2, 30
  // Predicated region
  $region122: #{language_model_forward.4} parent=0 // pred_check
    _
  $region123: #{language_model_forward.4} parent=0 // pred_check_branch
    %498 = sbr.rel target = $region125
  $region124: #{language_model_forward.4} parent=0 // pred_region
    %499 = sst [smem:[#allocation7]] [#allocation68]
    %500 = sst [smem:[#allocation8]] [#allocation67]
  $region125: #{language_model_forward.4} parent=0 // pred_fallthru
    _
  %502 = shalt.err (0)
  %s504 = sshll.u32 %s496, 4
  %s505 = int_to_ptr.vmem [resolvable:$true] %s504
  %507 = dma.hbm_to_vmem [thread:$0]  %s495, 16, %s505, [#allocation2]
  %s508 = sadd.s32 %s13, 31
  %s509 = sld [smem:[#allocation4 + %s508]]
  %s510 = smul.addr %s509, 16
  %s511 = scalar_lea.hbm %s1, %s510
  %s512 = scalar_lea.vmem %s2, 31
  // Predicated region
  $region126: #{language_model_forward.4} parent=0 // pred_check
    _
  $region127: #{language_model_forward.4} parent=0 // pred_check_branch
    %514 = sbr.rel target = $region129
  $region128: #{language_model_forward.4} parent=0 // pred_region
    %515 = sst [smem:[#allocation7]] [#allocation70]
    %516 = sst [smem:[#allocation8]] [#allocation69]
  $region129: #{language_model_forward.4} parent=0 // pred_fallthru
    _
  %518 = shalt.err (0)
  %s520 = sshll.u32 %s512, 4
  %s521 = int_to_ptr.vmem [resolvable:$true] %s520
  %523 = dma.hbm_to_vmem [thread:$0]  %s511, 16, %s521, [#allocation2]
  %s524 = sadd.s32 %s13, 32
  %s525 = sld [smem:[#allocation4 + %s524]]
  %s526 = smul.addr %s525, 16
  %s527 = scalar_lea.hbm %s1, %s526
  %s528 = scalar_lea.vmem %s2, 32
  // Predicated region
  $region130: #{language_model_forward.4} parent=0 // pred_check
    _
  $region131: #{language_model_forward.4} parent=0 // pred_check_branch
    %530 = sbr.rel target = $region133
  $region132: #{language_model_forward.4} parent=0 // pred_region
    %531 = sst [smem:[#allocation7]] [#allocation72]
    %532 = sst [smem:[#allocation8]] [#allocation71]
  $region133: #{language_model_forward.4} parent=0 // pred_fallthru
    _
  %534 = shalt.err (0)
  %s536 = sshll.u32 %s528, 4
  %s537 = int_to_ptr.vmem [resolvable:$true] %s536
  %539 = dma.hbm_to_vmem [thread:$0]  %s527, 16, %s537, [#allocation2]
  %s540 = sadd.s32 %s13, 33
  %s541 = sld [smem:[#allocation4 + %s540]]
  %s542 = smul.addr %s541, 16
  %s543 = scalar_lea.hbm %s1, %s542
  %s544 = scalar_lea.vmem %s2, 33
  // Predicated region
  $region134: #{language_model_forward.4} parent=0 // pred_check
    _
  $region135: #{language_model_forward.4} parent=0 // pred_check_branch
    %546 = sbr.rel target = $region137
  $region136: #{language_model_forward.4} parent=0 // pred_region
    %547 = sst [smem:[#allocation7]] [#allocation74]
    %548 = sst [smem:[#allocation8]] [#allocation73]
  $region137: #{language_model_forward.4} parent=0 // pred_fallthru
    _
  %550 = shalt.err (0)
  %s552 = sshll.u32 %s544, 4
  %s553 = int_to_ptr.vmem [resolvable:$true] %s552
  %555 = dma.hbm_to_vmem [thread:$0]  %s543, 16, %s553, [#allocation2]
  %s556 = sadd.s32 %s13, 34
  %s557 = sld [smem:[#allocation4 + %s556]]
  %s558 = smul.addr %s557, 16
  %s559 = scalar_lea.hbm %s1, %s558
  %s560 = scalar_lea.vmem %s2, 34
  // Predicated region
  $region138: #{language_model_forward.4} parent=0 // pred_check
    _
  $region139: #{language_model_forward.4} parent=0 // pred_check_branch
    %562 = sbr.rel target = $region141
  $region140: #{language_model_forward.4} parent=0 // pred_region
    %563 = sst [smem:[#allocation7]] [#allocation76]
    %564 = sst [smem:[#allocation8]] [#allocation75]
  $region141: #{language_model_forward.4} parent=0 // pred_fallthru
    _
  %566 = shalt.err (0)
  %s568 = sshll.u32 %s560, 4
  %s569 = int_to_ptr.vmem [resolvable:$true] %s568
  %571 = dma.hbm_to_vmem [thread:$0]  %s559, 16, %s569, [#allocation2]
  %s572 = sadd.s32 %s13, 35
  %s573 = sld [smem:[#allocation4 + %s572]]
  %s574 = smul.addr %s573, 16
  %s575 = scalar_lea.hbm %s1, %s574
  %s576 = scalar_lea.vmem %s2, 35
  // Predicated region
  $region142: #{language_model_forward.4} parent=0 // pred_check
    _
  $region143: #{language_model_forward.4} parent=0 // pred_check_branch
    %578 = sbr.rel target = $region145
  $region144: #{language_model_forward.4} parent=0 // pred_region
    %579 = sst [smem:[#allocation7]] [#allocation78]
    %580 = sst [smem:[#allocation8]] [#allocation77]
  $region145: #{language_model_forward.4} parent=0 // pred_fallthru
    _
  %582 = shalt.err (0)
  %s584 = sshll.u32 %s576, 4
  %s585 = int_to_ptr.vmem [resolvable:$true] %s584
  %587 = dma.hbm_to_vmem [thread:$0]  %s575, 16, %s585, [#allocation2]
  %s588 = sadd.s32 %s13, 36
  %s589 = sld [smem:[#allocation4 + %s588]]
  %s590 = smul.addr %s589, 16
  %s591 = scalar_lea.hbm %s1, %s590
  %s592 = scalar_lea.vmem %s2, 36
  // Predicated region
  $region146: #{language_model_forward.4} parent=0 // pred_check
    _
  $region147: #{language_model_forward.4} parent=0 // pred_check_branch
    %594 = sbr.rel target = $region149
  $region148: #{language_model_forward.4} parent=0 // pred_region
    %595 = sst [smem:[#allocation7]] [#allocation80]
    %596 = sst [smem:[#allocation8]] [#allocation79]
  $region149: #{language_model_forward.4} parent=0 // pred_fallthru
    _
  %598 = shalt.err (0)
  %s600 = sshll.u32 %s592, 4
  %s601 = int_to_ptr.vmem [resolvable:$true] %s600
  %603 = dma.hbm_to_vmem [thread:$0]  %s591, 16, %s601, [#allocation2]
  %s604 = sadd.s32 %s13, 37
  %s605 = sld [smem:[#allocation4 + %s604]]
  %s606 = smul.addr %s605, 16
  %s607 = scalar_lea.hbm %s1, %s606
  %s608 = scalar_lea.vmem %s2, 37
  // Predicated region
  $region150: #{language_model_forward.4} parent=0 // pred_check
    _
  $region151: #{language_model_forward.4} parent=0 // pred_check_branch
    %610 = sbr.rel target = $region153
  $region152: #{language_model_forward.4} parent=0 // pred_region
    %611 = sst [smem:[#allocation7]] [#allocation82]
    %612 = sst [smem:[#allocation8]] [#allocation81]
  $region153: #{language_model_forward.4} parent=0 // pred_fallthru
    _
  %614 = shalt.err (0)
  %s616 = sshll.u32 %s608, 4
  %s617 = int_to_ptr.vmem [resolvable:$true] %s616
  %619 = dma.hbm_to_vmem [thread:$0]  %s607, 16, %s617, [#allocation2]
  %s620 = sadd.s32 %s13, 38
  %s621 = sld [smem:[#allocation4 + %s620]]
  %s622 = smul.addr %s621, 16
  %s623 = scalar_lea.hbm %s1, %s622
  %s624 = scalar_lea.vmem %s2, 38
  // Predicated region
  $region154: #{language_model_forward.4} parent=0 // pred_check
    _
  $region155: #{language_model_forward.4} parent=0 // pred_check_branch
    %626 = sbr.rel target = $region157
  $region156: #{language_model_forward.4} parent=0 // pred_region
    %627 = sst [smem:[#allocation7]] [#allocation84]
    %628 = sst [smem:[#allocation8]] [#allocation83]
  $region157: #{language_model_forward.4} parent=0 // pred_fallthru
    _
  %630 = shalt.err (0)
  %s632 = sshll.u32 %s624, 4
  %s633 = int_to_ptr.vmem [resolvable:$true] %s632
  %635 = dma.hbm_to_vmem [thread:$0]  %s623, 16, %s633, [#allocation2]
  %s636 = sadd.s32 %s13, 39
  %s637 = sld [smem:[#allocation4 + %s636]]
  %s638 = smul.addr %s637, 16
  %s639 = scalar_lea.hbm %s1, %s638
  %s640 = scalar_lea.vmem %s2, 39
  // Predicated region
  $region158: #{language_model_forward.4} parent=0 // pred_check
    _
  $region159: #{language_model_forward.4} parent=0 // pred_check_branch
    %642 = sbr.rel target = $region161
  $region160: #{language_model_forward.4} parent=0 // pred_region
    %643 = sst [smem:[#allocation7]] [#allocation86]
    %644 = sst [smem:[#allocation8]] [#allocation85]
  $region161: #{language_model_forward.4} parent=0 // pred_fallthru
    _
  %646 = shalt.err (0)
  %s648 = sshll.u32 %s640, 4
  %s649 = int_to_ptr.vmem [resolvable:$true] %s648
  %651 = dma.hbm_to_vmem [thread:$0]  %s639, 16, %s649, [#allocation2]
  %s652 = sadd.s32 %s13, 40
  %s653 = sld [smem:[#allocation4 + %s652]]
  %s654 = smul.addr %s653, 16
  %s655 = scalar_lea.hbm %s1, %s654
  %s656 = scalar_lea.vmem %s2, 40
  // Predicated region
  $region162: #{language_model_forward.4} parent=0 // pred_check
    _
  $region163: #{language_model_forward.4} parent=0 // pred_check_branch
    %658 = sbr.rel target = $region165
  $region164: #{language_model_forward.4} parent=0 // pred_region
    %659 = sst [smem:[#allocation7]] [#allocation88]
    %660 = sst [smem:[#allocation8]] [#allocation87]
  $region165: #{language_model_forward.4} parent=0 // pred_fallthru
    _
  %662 = shalt.err (0)
  %s664 = sshll.u32 %s656, 4
  %s665 = int_to_ptr.vmem [resolvable:$true] %s664
  %667 = dma.hbm_to_vmem [thread:$0]  %s655, 16, %s665, [#allocation2]
  %s668 = sadd.s32 %s13, 41
  %s669 = sld [smem:[#allocation4 + %s668]]
  %s670 = smul.addr %s669, 16
  %s671 = scalar_lea.hbm %s1, %s670
  %s672 = scalar_lea.vmem %s2, 41
  // Predicated region
  $region166: #{language_model_forward.4} parent=0 // pred_check
    _
  $region167: #{language_model_forward.4} parent=0 // pred_check_branch
    %674 = sbr.rel target = $region169
  $region168: #{language_model_forward.4} parent=0 // pred_region
    %675 = sst [smem:[#allocation7]] [#allocation90]
    %676 = sst [smem:[#allocation8]] [#allocation89]
  $region169: #{language_model_forward.4} parent=0 // pred_fallthru
    _
  %678 = shalt.err (0)
  %s680 = sshll.u32 %s672, 4
  %s681 = int_to_ptr.vmem [resolvable:$true] %s680
  %683 = dma.hbm_to_vmem [thread:$0]  %s671, 16, %s681, [#allocation2]
  %s684 = sadd.s32 %s13, 42
  %s685 = sld [smem:[#allocation4 + %s684]]
  %s686 = smul.addr %s685, 16
  %s687 = scalar_lea.hbm %s1, %s686
  %s688 = scalar_lea.vmem %s2, 42
  // Predicated region
  $region170: #{language_model_forward.4} parent=0 // pred_check
    _
  $region171: #{language_model_forward.4} parent=0 // pred_check_branch
    %690 = sbr.rel target = $region173
  $region172: #{language_model_forward.4} parent=0 // pred_region
    %691 = sst [smem:[#allocation7]] [#allocation92]
    %692 = sst [smem:[#allocation8]] [#allocation91]
  $region173: #{language_model_forward.4} parent=0 // pred_fallthru
    _
  %694 = shalt.err (0)
  %s696 = sshll.u32 %s688, 4
  %s697 = int_to_ptr.vmem [resolvable:$true] %s696
  %699 = dma.hbm_to_vmem [thread:$0]  %s687, 16, %s697, [#allocation2]
  %s700 = sadd.s32 %s13, 43
  %s701 = sld [smem:[#allocation4 + %s700]]
  %s702 = smul.addr %s701, 16
  %s703 = scalar_lea.hbm %s1, %s702
  %s704 = scalar_lea.vmem %s2, 43
  // Predicated region
  $region174: #{language_model_forward.4} parent=0 // pred_check
    _
  $region175: #{language_model_forward.4} parent=0 // pred_check_branch
    %706 = sbr.rel target = $region177
  $region176: #{language_model_forward.4} parent=0 // pred_region
    %707 = sst [smem:[#allocation7]] [#allocation94]
    %708 = sst [smem:[#allocation8]] [#allocation93]
  $region177: #{language_model_forward.4} parent=0 // pred_fallthru
    _
  %710 = shalt.err (0)
  %s712 = sshll.u32 %s704, 4
  %s713 = int_to_ptr.vmem [resolvable:$true] %s712
  %715 = dma.hbm_to_vmem [thread:$0]  %s703, 16, %s713, [#allocation2]
  %s716 = sadd.s32 %s13, 44
  %s717 = sld [smem:[#allocation4 + %s716]]
  %s718 = smul.addr %s717, 16
  %s719 = scalar_lea.hbm %s1, %s718
  %s720 = scalar_lea.vmem %s2, 44
  // Predicated region
  $region178: #{language_model_forward.4} parent=0 // pred_check
    _
  $region179: #{language_model_forward.4} parent=0 // pred_check_branch
    %722 = sbr.rel target = $region181
  $region180: #{language_model_forward.4} parent=0 // pred_region
    %723 = sst [smem:[#allocation7]] [#allocation96]
    %724 = sst [smem:[#allocation8]] [#allocation95]
  $region181: #{language_model_forward.4} parent=0 // pred_fallthru
    _
  %726 = shalt.err (0)
  %s728 = sshll.u32 %s720, 4
  %s729 = int_to_ptr.vmem [resolvable:$true] %s728
  %731 = dma.hbm_to_vmem [thread:$0]  %s719, 16, %s729, [#allocation2]
  %s732 = sadd.s32 %s13, 45
  %s733 = sld [smem:[#allocation4 + %s732]]
  %s734 = smul.addr %s733, 16
  %s735 = scalar_lea.hbm %s1, %s734
  %s736 = scalar_lea.vmem %s2, 45
  // Predicated region
  $region182: #{language_model_forward.4} parent=0 // pred_check
    _
  $region183: #{language_model_forward.4} parent=0 // pred_check_branch
    %738 = sbr.rel target = $region185
  $region184: #{language_model_forward.4} parent=0 // pred_region
    %739 = sst [smem:[#allocation7]] [#allocation98]
    %740 = sst [smem:[#allocation8]] [#allocation97]
  $region185: #{language_model_forward.4} parent=0 // pred_fallthru
    _
  %742 = shalt.err (0)
  %s744 = sshll.u32 %s736, 4
  %s745 = int_to_ptr.vmem [resolvable:$true] %s744
  %747 = dma.hbm_to_vmem [thread:$0]  %s735, 16, %s745, [#allocation2]
  %s748 = sadd.s32 %s13, 46
  %s749 = sld [smem:[#allocation4 + %s748]]
  %s750 = smul.addr %s749, 16
  %s751 = scalar_lea.hbm %s1, %s750
  %s752 = scalar_lea.vmem %s2, 46
  // Predicated region
  $region186: #{language_model_forward.4} parent=0 // pred_check
    _
  $region187: #{language_model_forward.4} parent=0 // pred_check_branch
    %754 = sbr.rel target = $region189
  $region188: #{language_model_forward.4} parent=0 // pred_region
    %755 = sst [smem:[#allocation7]] [#allocation100]
    %756 = sst [smem:[#allocation8]] [#allocation99]
  $region189: #{language_model_forward.4} parent=0 // pred_fallthru
    _
  %758 = shalt.err (0)
  %s760 = sshll.u32 %s752, 4
  %s761 = int_to_ptr.vmem [resolvable:$true] %s760
  %763 = dma.hbm_to_vmem [thread:$0]  %s751, 16, %s761, [#allocation2]
  %s764 = sadd.s32 %s13, 47
  %s765 = sld [smem:[#allocation4 + %s764]]
  %s766 = smul.addr %s765, 16
  %s767 = scalar_lea.hbm %s1, %s766
  %s768 = scalar_lea.vmem %s2, 47
  // Predicated region
  $region190: #{language_model_forward.4} parent=0 // pred_check
    _
  $region191: #{language_model_forward.4} parent=0 // pred_check_branch
    %770 = sbr.rel target = $region193
  $region192: #{language_model_forward.4} parent=0 // pred_region
    %771 = sst [smem:[#allocation7]] [#allocation102]
    %772 = sst [smem:[#allocation8]] [#allocation101]
  $region193: #{language_model_forward.4} parent=0 // pred_fallthru
    _
  %774 = shalt.err (0)
  %s776 = sshll.u32 %s768, 4
  %s777 = int_to_ptr.vmem [resolvable:$true] %s776
  %779 = dma.hbm_to_vmem [thread:$0]  %s767, 16, %s777, [#allocation2]
  %s780 = sadd.s32 %s13, 48
  %s781 = sld [smem:[#allocation4 + %s780]]
  %s782 = smul.addr %s781, 16
  %s783 = scalar_lea.hbm %s1, %s782
  %s784 = scalar_lea.vmem %s2, 48
  // Predicated region
  $region194: #{language_model_forward.4} parent=0 // pred_check
    _
  $region195: #{language_model_forward.4} parent=0 // pred_check_branch
    %786 = sbr.rel target = $region197
  $region196: #{language_model_forward.4} parent=0 // pred_region
    %787 = sst [smem:[#allocation7]] [#allocation104]
    %788 = sst [smem:[#allocation8]] [#allocation103]
  $region197: #{language_model_forward.4} parent=0 // pred_fallthru
    _
  %790 = shalt.err (0)
  %s792 = sshll.u32 %s784, 4
  %s793 = int_to_ptr.vmem [resolvable:$true] %s792
  %795 = dma.hbm_to_vmem [thread:$0]  %s783, 16, %s793, [#allocation2]
  %s796 = sadd.s32 %s13, 49
  %s797 = sld [smem:[#allocation4 + %s796]]
  %s798 = smul.addr %s797, 16
  %s799 = scalar_lea.hbm %s1, %s798
  %s800 = scalar_lea.vmem %s2, 49
  // Predicated region
  $region198: #{language_model_forward.4} parent=0 // pred_check
    _
  $region199: #{language_model_forward.4} parent=0 // pred_check_branch
    %802 = sbr.rel target = $region201
  $region200: #{language_model_forward.4} parent=0 // pred_region
    %803 = sst [smem:[#allocation7]] [#allocation106]
    %804 = sst [smem:[#allocation8]] [#allocation105]
  $region201: #{language_model_forward.4} parent=0 // pred_fallthru
    _
  %806 = shalt.err (0)
  %s808 = sshll.u32 %s800, 4
  %s809 = int_to_ptr.vmem [resolvable:$true] %s808
  %811 = dma.hbm_to_vmem [thread:$0]  %s799, 16, %s809, [#allocation2]
  %s812 = sadd.s32 %s13, 50
  %s813 = sld [smem:[#allocation4 + %s812]]
  %s814 = smul.addr %s813, 16
  %s815 = scalar_lea.hbm %s1, %s814
  %s816 = scalar_lea.vmem %s2, 50
  // Predicated region
  $region202: #{language_model_forward.4} parent=0 // pred_check
    _
  $region203: #{language_model_forward.4} parent=0 // pred_check_branch
    %818 = sbr.rel target = $region205
  $region204: #{language_model_forward.4} parent=0 // pred_region
    %819 = sst [smem:[#allocation7]] [#allocation108]
    %820 = sst [smem:[#allocation8]] [#allocation107]
  $region205: #{language_model_forward.4} parent=0 // pred_fallthru
    _
  %822 = shalt.err (0)
  %s824 = sshll.u32 %s816, 4
  %s825 = int_to_ptr.vmem [resolvable:$true] %s824
  %827 = dma.hbm_to_vmem [thread:$0]  %s815, 16, %s825, [#allocation2]
  %s828 = sadd.s32 %s13, 51
  %s829 = sld [smem:[#allocation4 + %s828]]
  %s830 = smul.addr %s829, 16
  %s831 = scalar_lea.hbm %s1, %s830
  %s832 = scalar_lea.vmem %s2, 51
  // Predicated region
  $region206: #{language_model_forward.4} parent=0 // pred_check
    _
  $region207: #{language_model_forward.4} parent=0 // pred_check_branch
    %834 = sbr.rel target = $region209
  $region208: #{language_model_forward.4} parent=0 // pred_region
    %835 = sst [smem:[#allocation7]] [#allocation110]
    %836 = sst [smem:[#allocation8]] [#allocation109]
  $region209: #{language_model_forward.4} parent=0 // pred_fallthru
    _
  %838 = shalt.err (0)
  %s840 = sshll.u32 %s832, 4
  %s841 = int_to_ptr.vmem [resolvable:$true] %s840
  %843 = dma.hbm_to_vmem [thread:$0]  %s831, 16, %s841, [#allocation2]
  %s844 = sadd.s32 %s13, 52
  %s845 = sld [smem:[#allocation4 + %s844]]
  %s846 = smul.addr %s845, 16
  %s847 = scalar_lea.hbm %s1, %s846
  %s848 = scalar_lea.vmem %s2, 52
  // Predicated region
  $region210: #{language_model_forward.4} parent=0 // pred_check
    _
  $region211: #{language_model_forward.4} parent=0 // pred_check_branch
    %850 = sbr.rel target = $region213
  $region212: #{language_model_forward.4} parent=0 // pred_region
    %851 = sst [smem:[#allocation7]] [#allocation112]
    %852 = sst [smem:[#allocation8]] [#allocation111]
  $region213: #{language_model_forward.4} parent=0 // pred_fallthru
    _
  %854 = shalt.err (0)
  %s856 = sshll.u32 %s848, 4
  %s857 = int_to_ptr.vmem [resolvable:$true] %s856
  %859 = dma.hbm_to_vmem [thread:$0]  %s847, 16, %s857, [#allocation2]
  %s860 = sadd.s32 %s13, 53
  %s861 = sld [smem:[#allocation4 + %s860]]
  %s862 = smul.addr %s861, 16
  %s863 = scalar_lea.hbm %s1, %s862
  %s864 = scalar_lea.vmem %s2, 53
  // Predicated region
  $region214: #{language_model_forward.4} parent=0 // pred_check
    _
  $region215: #{language_model_forward.4} parent=0 // pred_check_branch
    %866 = sbr.rel target = $region217
  $region216: #{language_model_forward.4} parent=0 // pred_region
    %867 = sst [smem:[#allocation7]] [#allocation114]
    %868 = sst [smem:[#allocation8]] [#allocation113]
  $region217: #{language_model_forward.4} parent=0 // pred_fallthru
    _
  %870 = shalt.err (0)
  %s872 = sshll.u32 %s864, 4
  %s873 = int_to_ptr.vmem [resolvable:$true] %s872
  %875 = dma.hbm_to_vmem [thread:$0]  %s863, 16, %s873, [#allocation2]
  %s876 = sadd.s32 %s13, 54
  %s877 = sld [smem:[#allocation4 + %s876]]
  %s878 = smul.addr %s877, 16
  %s879 = scalar_lea.hbm %s1, %s878
  %s880 = scalar_lea.vmem %s2, 54
  // Predicated region
  $region218: #{language_model_forward.4} parent=0 // pred_check
    _
  $region219: #{language_model_forward.4} parent=0 // pred_check_branch
    %882 = sbr.rel target = $region221
  $region220: #{language_model_forward.4} parent=0 // pred_region
    %883 = sst [smem:[#allocation7]] [#allocation116]
    %884 = sst [smem:[#allocation8]] [#allocation115]
  $region221: #{language_model_forward.4} parent=0 // pred_fallthru
    _
  %886 = shalt.err (0)
  %s888 = sshll.u32 %s880, 4
  %s889 = int_to_ptr.vmem [resolvable:$true] %s888
  %891 = dma.hbm_to_vmem [thread:$0]  %s879, 16, %s889, [#allocation2]
  %s892 = sadd.s32 %s13, 55
  %s893 = sld [smem:[#allocation4 + %s892]]
  %s894 = smul.addr %s893, 16
  %s895 = scalar_lea.hbm %s1, %s894
  %s896 = scalar_lea.vmem %s2, 55
  // Predicated region
  $region222: #{language_model_forward.4} parent=0 // pred_check
    _
  $region223: #{language_model_forward.4} parent=0 // pred_check_branch
    %898 = sbr.rel target = $region225
  $region224: #{language_model_forward.4} parent=0 // pred_region
    %899 = sst [smem:[#allocation7]] [#allocation118]
    %900 = sst [smem:[#allocation8]] [#allocation117]
  $region225: #{language_model_forward.4} parent=0 // pred_fallthru
    _
  %902 = shalt.err (0)
  %s904 = sshll.u32 %s896, 4
  %s905 = int_to_ptr.vmem [resolvable:$true] %s904
  %907 = dma.hbm_to_vmem [thread:$0]  %s895, 16, %s905, [#allocation2]
  %s908 = sadd.s32 %s13, 56
  %s909 = sld [smem:[#allocation4 + %s908]]
  %s910 = smul.addr %s909, 16
  %s911 = scalar_lea.hbm %s1, %s910
  %s912 = scalar_lea.vmem %s2, 56
  // Predicated region
  $region226: #{language_model_forward.4} parent=0 // pred_check
    _
  $region227: #{language_model_forward.4} parent=0 // pred_check_branch
    %914 = sbr.rel target = $region229
  $region228: #{language_model_forward.4} parent=0 // pred_region
    %915 = sst [smem:[#allocation7]] [#allocation120]
    %916 = sst [smem:[#allocation8]] [#allocation119]
  $region229: #{language_model_forward.4} parent=0 // pred_fallthru
    _
  %918 = shalt.err (0)
  %s920 = sshll.u32 %s912, 4
  %s921 = int_to_ptr.vmem [resolvable:$true] %s920
  %923 = dma.hbm_to_vmem [thread:$0]  %s911, 16, %s921, [#allocation2]
  %s924 = sadd.s32 %s13, 57
  %s925 = sld [smem:[#allocation4 + %s924]]
  %s926 = smul.addr %s925, 16
  %s927 = scalar_lea.hbm %s1, %s926
  %s928 = scalar_lea.vmem %s2, 57
  // Predicated region
  $region230: #{language_model_forward.4} parent=0 // pred_check
    _
  $region231: #{language_model_forward.4} parent=0 // pred_check_branch
    %930 = sbr.rel target = $region233
  $region232: #{language_model_forward.4} parent=0 // pred_region
    %931 = sst [smem:[#allocation7]] [#allocation122]
    %932 = sst [smem:[#allocation8]] [#allocation121]
  $region233: #{language_model_forward.4} parent=0 // pred_fallthru
    _
  %934 = shalt.err (0)
  %s936 = sshll.u32 %s928, 4
  %s937 = int_to_ptr.vmem [resolvable:$true] %s936
  %939 = dma.hbm_to_vmem [thread:$0]  %s927, 16, %s937, [#allocation2]
  %s940 = sadd.s32 %s13, 58
  %s941 = sld [smem:[#allocation4 + %s940]]
  %s942 = smul.addr %s941, 16
  %s943 = scalar_lea.hbm %s1, %s942
  %s944 = scalar_lea.vmem %s2, 58
  // Predicated region
  $region234: #{language_model_forward.4} parent=0 // pred_check
    _
  $region235: #{language_model_forward.4} parent=0 // pred_check_branch
    %946 = sbr.rel target = $region237
  $region236: #{language_model_forward.4} parent=0 // pred_region
    %947 = sst [smem:[#allocation7]] [#allocation124]
    %948 = sst [smem:[#allocation8]] [#allocation123]
  $region237: #{language_model_forward.4} parent=0 // pred_fallthru
    _
  %950 = shalt.err (0)
  %s952 = sshll.u32 %s944, 4
  %s953 = int_to_ptr.vmem [resolvable:$true] %s952
  %955 = dma.hbm_to_vmem [thread:$0]  %s943, 16, %s953, [#allocation2]
  %s956 = sadd.s32 %s13, 59
  %s957 = sld [smem:[#allocation4 + %s956]]
  %s958 = smul.addr %s957, 16
  %s959 = scalar_lea.hbm %s1, %s958
  %s960 = scalar_lea.vmem %s2, 59
  // Predicated region
  $region238: #{language_model_forward.4} parent=0 // pred_check
    _
  $region239: #{language_model_forward.4} parent=0 // pred_check_branch
    %962 = sbr.rel target = $region241
  $region240: #{language_model_forward.4} parent=0 // pred_region
    %963 = sst [smem:[#allocation7]] [#allocation126]
    %964 = sst [smem:[#allocation8]] [#allocation125]
  $region241: #{language_model_forward.4} parent=0 // pred_fallthru
    _
  %966 = shalt.err (0)
  %s968 = sshll.u32 %s960, 4
  %s969 = int_to_ptr.vmem [resolvable:$true] %s968
  %971 = dma.hbm_to_vmem [thread:$0]  %s959, 16, %s969, [#allocation2]
  %s972 = sadd.s32 %s13, 60
  %s973 = sld [smem:[#allocation4 + %s972]]
  %s974 = smul.addr %s973, 16
  %s975 = scalar_lea.hbm %s1, %s974
  %s976 = scalar_lea.vmem %s2, 60
  // Predicated region
  $region242: #{language_model_forward.4} parent=0 // pred_check
    _
  $region243: #{language_model_forward.4} parent=0 // pred_check_branch
    %978 = sbr.rel target = $region245
  $region244: #{language_model_forward.4} parent=0 // pred_region
    %979 = sst [smem:[#allocation7]] [#allocation128]
    %980 = sst [smem:[#allocation8]] [#allocation127]
  $region245: #{language_model_forward.4} parent=0 // pred_fallthru
    _
  %982 = shalt.err (0)
  %s984 = sshll.u32 %s976, 4
  %s985 = int_to_ptr.vmem [resolvable:$true] %s984
  %987 = dma.hbm_to_vmem [thread:$0]  %s975, 16, %s985, [#allocation2]
  %s988 = sadd.s32 %s13, 61
  %s989 = sld [smem:[#allocation4 + %s988]]
  %s990 = smul.addr %s989, 16
  %s991 = scalar_lea.hbm %s1, %s990
  %s992 = scalar_lea.vmem %s2, 61
  // Predicated region
  $region246: #{language_model_forward.4} parent=0 // pred_check
    _
  $region247: #{language_model_forward.4} parent=0 // pred_check_branch
    %994 = sbr.rel target = $region249
  $region248: #{language_model_forward.4} parent=0 // pred_region
    %995 = sst [smem:[#allocation7]] [#allocation130]
    %996 = sst [smem:[#allocation8]] [#allocation129]
  $region249: #{language_model_forward.4} parent=0 // pred_fallthru
    _
  %998 = shalt.err (0)
  %s1000 = sshll.u32 %s992, 4
  %s1001 = int_to_ptr.vmem [resolvable:$true] %s1000
  %1003 = dma.hbm_to_vmem [thread:$0]  %s991, 16, %s1001, [#allocation2]
  %s1004 = sadd.s32 %s13, 62
  %s1005 = sld [smem:[#allocation4 + %s1004]]
  %s1006 = smul.addr %s1005, 16
  %s1007 = scalar_lea.hbm %s1, %s1006
  %s1008 = scalar_lea.vmem %s2, 62
  // Predicated region
  $region250: #{language_model_forward.4} parent=0 // pred_check
    _
  $region251: #{language_model_forward.4} parent=0 // pred_check_branch
    %1010 = sbr.rel target = $region253
  $region252: #{language_model_forward.4} parent=0 // pred_region
    %1011 = sst [smem:[#allocation7]] [#allocation132]
    %1012 = sst [smem:[#allocation8]] [#allocation131]
  $region253: #{language_model_forward.4} parent=0 // pred_fallthru
    _
  %1014 = shalt.err (0)
  %s1016 = sshll.u32 %s1008, 4
  %s1017 = int_to_ptr.vmem [resolvable:$true] %s1016
  %1019 = dma.hbm_to_vmem [thread:$0]  %s1007, 16, %s1017, [#allocation2]
  %s1020 = sadd.s32 %s13, 63
  %s1021 = sld [smem:[#allocation4 + %s1020]]
  %s1022 = smul.addr %s1021, 16
  %s1023 = scalar_lea.hbm %s1, %s1022
  %s1024 = scalar_lea.vmem %s2, 63
  // Predicated region
  $region254: #{language_model_forward.4} parent=0 // pred_check
    _
  $region255: #{language_model_forward.4} parent=0 // pred_check_branch
    %1026 = sbr.rel target = $region257
  $region256: #{language_model_forward.4} parent=0 // pred_region
    %1027 = sst [smem:[#allocation7]] [#allocation134]
    %1028 = sst [smem:[#allocation8]] [#allocation133]
  $region257: #{language_model_forward.4} parent=0 // pred_fallthru
    _
  %1030 = shalt.err (0)
  %s1032 = sshll.u32 %s1024, 4
  %s1033 = int_to_ptr.vmem [resolvable:$true] %s1032
  %1035 = dma.hbm_to_vmem [thread:$0]  %s1023, 16, %s1033, [#allocation2]
  %s1036 = sld [smem:[#allocation4 + %s13]]
  %s1037 = smul.u32 1, 1
  %s1038 = sshll.u32 %s1037, 4
  %1039 = dma.done [#allocation2], %s1038
  %s1040 = sld [smem:[#allocation4 + %s28]]
  %s1041 = sshll.u32 %s1037, 4
  %1042 = dma.done [#allocation2], %s1041
  %s1043 = sld [smem:[#allocation4 + %s44]]
  %s1044 = sshll.u32 %s1037, 4
  %1045 = dma.done [#allocation2], %s1044
  %s1046 = sld [smem:[#allocation4 + %s60]]
  %s1047 = sshll.u32 %s1037, 4
  %1048 = dma.done [#allocation2], %s1047
  %s1049 = sld [smem:[#allocation4 + %s76]]
  %s1050 = sshll.u32 %s1037, 4
  %1051 = dma.done [#allocation2], %s1050
  %s1052 = sld [smem:[#allocation4 + %s92]]
  %s1053 = sshll.u32 %s1037, 4
  %1054 = dma.done [#allocation2], %s1053
  %s1055 = sld [smem:[#allocation4 + %s108]]
  %s1056 = sshll.u32 %s1037, 4
  %1057 = dma.done [#allocation2], %s1056
  %s1058 = sld [smem:[#allocation4 + %s124]]
  %s1059 = sshll.u32 %s1037, 4
  %1060 = dma.done [#allocation2], %s1059
  %s1061 = sld [smem:[#allocation4 + %s140]]
  %s1062 = sshll.u32 %s1037, 4
  %1063 = dma.done [#allocation2], %s1062
  %s1064 = sld [smem:[#allocation4 + %s156]]
  %s1065 = sshll.u32 %s1037, 4
  %1066 = dma.done [#allocation2], %s1065
  %s1067 = sld [smem:[#allocation4 + %s172]]
  %s1068 = sshll.u32 %s1037, 4
  %1069 = dma.done [#allocation2], %s1068
  %s1070 = sld [smem:[#allocation4 + %s188]]
  %s1071 = sshll.u32 %s1037, 4
  %1072 = dma.done [#allocation2], %s1071
  %s1073 = sld [smem:[#allocation4 + %s204]]
  %s1074 = sshll.u32 %s1037, 4
  %1075 = dma.done [#allocation2], %s1074
  %s1076 = sld [smem:[#allocation4 + %s220]]
  %s1077 = sshll.u32 %s1037, 4
  %1078 = dma.done [#allocation2], %s1077
  %s1079 = sld [smem:[#allocation4 + %s236]]
  %s1080 = sshll.u32 %s1037, 4
  %1081 = dma.done [#allocation2], %s1080
  %s1082 = sld [smem:[#allocation4 + %s252]]
  %s1083 = sshll.u32 %s1037, 4
  %1084 = dma.done [#allocation2], %s1083
  %s1085 = sld [smem:[#allocation4 + %s268]]
  %s1086 = sshll.u32 %s1037, 4
  %1087 = dma.done [#allocation2], %s1086
  %s1088 = sld [smem:[#allocation4 + %s284]]
  %s1089 = sshll.u32 %s1037, 4
  %1090 = dma.done [#allocation2], %s1089
  %s1091 = sld [smem:[#allocation4 + %s300]]
  %s1092 = sshll.u32 %s1037, 4
  %1093 = dma.done [#allocation2], %s1092
  %s1094 = sld [smem:[#allocation4 + %s316]]
  %s1095 = sshll.u32 %s1037, 4
  %1096 = dma.done [#allocation2], %s1095
  %s1097 = sld [smem:[#allocation4 + %s332]]
  %s1098 = sshll.u32 %s1037, 4
  %1099 = dma.done [#allocation2], %s1098
  %s1100 = sld [smem:[#allocation4 + %s348]]
  %s1101 = sshll.u32 %s1037, 4
  %1102 = dma.done [#allocation2], %s1101
  %s1103 = sld [smem:[#allocation4 + %s364]]
  %s1104 = sshll.u32 %s1037, 4
  %1105 = dma.done [#allocation2], %s1104
  %s1106 = sld [smem:[#allocation4 + %s380]]
  %s1107 = sshll.u32 %s1037, 4
  %1108 = dma.done [#allocation2], %s1107
  %s1109 = sld [smem:[#allocation4 + %s396]]
  %s1110 = sshll.u32 %s1037, 4
  %1111 = dma.done [#allocation2], %s1110
  %s1112 = sld [smem:[#allocation4 + %s412]]
  %s1113 = sshll.u32 %s1037, 4
  %1114 = dma.done [#allocation2], %s1113
  %s1115 = sld [smem:[#allocation4 + %s428]]
  %s1116 = sshll.u32 %s1037, 4
  %1117 = dma.done [#allocation2], %s1116
  %s1118 = sld [smem:[#allocation4 + %s444]]
  %s1119 = sshll.u32 %s1037, 4
  %1120 = dma.done [#allocation2], %s1119
  %s1121 = sld [smem:[#allocation4 + %s460]]
  %s1122 = sshll.u32 %s1037, 4
  %1123 = dma.done [#allocation2], %s1122
  %s1124 = sld [smem:[#allocation4 + %s476]]
  %s1125 = sshll.u32 %s1037, 4
  %1126 = dma.done [#allocation2], %s1125
  %s1127 = sld [smem:[#allocation4 + %s492]]
  %s1128 = sshll.u32 %s1037, 4
  %1129 = dma.done [#allocation2], %s1128
  %s1130 = sld [smem:[#allocation4 + %s508]]
  %s1131 = sshll.u32 %s1037, 4
  %1132 = dma.done [#allocation2], %s1131
  %s1133 = sld [smem:[#allocation4 + %s524]]
  %s1134 = sshll.u32 %s1037, 4
  %1135 = dma.done [#allocation2], %s1134
  %s1136 = sld [smem:[#allocation4 + %s540]]
  %s1137 = sshll.u32 %s1037, 4
  %1138 = dma.done [#allocation2], %s1137
  %s1139 = sld [smem:[#allocation4 + %s556]]
  %s1140 = sshll.u32 %s1037, 4
  %1141 = dma.done [#allocation2], %s1140
  %s1142 = sld [smem:[#allocation4 + %s572]]
  %s1143 = sshll.u32 %s1037, 4
  %1144 = dma.done [#allocation2], %s1143
  %s1145 = sld [smem:[#allocation4 + %s588]]
  %s1146 = sshll.u32 %s1037, 4
  %1147 = dma.done [#allocation2], %s1146
  %s1148 = sld [smem:[#allocation4 + %s604]]
  %s1149 = sshll.u32 %s1037, 4
  %1150 = dma.done [#allocation2], %s1149
  %s1151 = sld [smem:[#allocation4 + %s620]]
  %s1152 = sshll.u32 %s1037, 4
  %1153 = dma.done [#allocation2], %s1152
  %s1154 = sld [smem:[#allocation4 + %s636]]
  %s1155 = sshll.u32 %s1037, 4
  %1156 = dma.done [#allocation2], %s1155
  %s1157 = sld [smem:[#allocation4 + %s652]]
  %s1158 = sshll.u32 %s1037, 4
  %1159 = dma.done [#allocation2], %s1158
  %s1160 = sld [smem:[#allocation4 + %s668]]
  %s1161 = sshll.u32 %s1037, 4
  %1162 = dma.done [#allocation2], %s1161
  %s1163 = sld [smem:[#allocation4 + %s684]]
  %s1164 = sshll.u32 %s1037, 4
  %1165 = dma.done [#allocation2], %s1164
  %s1166 = sld [smem:[#allocation4 + %s700]]
  %s1167 = sshll.u32 %s1037, 4
  %1168 = dma.done [#allocation2], %s1167
  %s1169 = sld [smem:[#allocation4 + %s716]]
  %s1170 = sshll.u32 %s1037, 4
  %1171 = dma.done [#allocation2], %s1170
  %s1172 = sld [smem:[#allocation4 + %s732]]
  %s1173 = sshll.u32 %s1037, 4
  %1174 = dma.done [#allocation2], %s1173
  %s1175 = sld [smem:[#allocation4 + %s748]]
  %s1176 = sshll.u32 %s1037, 4
  %1177 = dma.done [#allocation2], %s1176
  %s1178 = sld [smem:[#allocation4 + %s764]]
  %s1179 = sshll.u32 %s1037, 4
  %1180 = dma.done [#allocation2], %s1179
  %s1181 = sld [smem:[#allocation4 + %s780]]
  %s1182 = sshll.u32 %s1037, 4
  %1183 = dma.done [#allocation2], %s1182
  %s1184 = sld [smem:[#allocation4 + %s796]]
  %s1185 = sshll.u32 %s1037, 4
  %1186 = dma.done [#allocation2], %s1185
  %s1187 = sld [smem:[#allocation4 + %s812]]
  %s1188 = sshll.u32 %s1037, 4
  %1189 = dma.done [#allocation2], %s1188
  %s1190 = sld [smem:[#allocation4 + %s828]]
  %s1191 = sshll.u32 %s1037, 4
  %1192 = dma.done [#allocation2], %s1191
  %s1193 = sld [smem:[#allocation4 + %s844]]
  %s1194 = sshll.u32 %s1037, 4
  %1195 = dma.done [#allocation2], %s1194
  %s1196 = sld [smem:[#allocation4 + %s860]]
  %s1197 = sshll.u32 %s1037, 4
  %1198 = dma.done [#allocation2], %s1197
  %s1199 = sld [smem:[#allocation4 + %s876]]
  %s1200 = sshll.u32 %s1037, 4
  %1201 = dma.done [#allocation2], %s1200
  %s1202 = sld [smem:[#allocation4 + %s892]]
  %s1203 = sshll.u32 %s1037, 4
  %1204 = dma.done [#allocation2], %s1203
  %s1205 = sld [smem:[#allocation4 + %s908]]
  %s1206 = sshll.u32 %s1037, 4
  %1207 = dma.done [#allocation2], %s1206
  %s1208 = sld [smem:[#allocation4 + %s924]]
  %s1209 = sshll.u32 %s1037, 4
  %1210 = dma.done [#allocation2], %s1209
  %s1211 = sld [smem:[#allocation4 + %s940]]
  %s1212 = sshll.u32 %s1037, 4
  %1213 = dma.done [#allocation2], %s1212
  %s1214 = sld [smem:[#allocation4 + %s956]]
  %s1215 = sshll.u32 %s1037, 4
  %1216 = dma.done [#allocation2], %s1215
  %s1217 = sld [smem:[#allocation4 + %s972]]
  %s1218 = sshll.u32 %s1037, 4
  %1219 = dma.done [#allocation2], %s1218
  %s1220 = sld [smem:[#allocation4 + %s988]]
  %s1221 = sshll.u32 %s1037, 4
  %1222 = dma.done [#allocation2], %s1221
  %s1223 = sld [smem:[#allocation4 + %s1004]]
  %s1224 = sshll.u32 %s1037, 4
  %1225 = dma.done [#allocation2], %s1224
  %s1226 = sld [smem:[#allocation4 + %s1020]]
  %s1227 = sshll.u32 %s1037, 4
  %1228 = dma.done [#allocation2], %s1227
  // Predicated region
  $region258: #{language_model_forward.4} parent=0 // pred_check
    _
  $region259: #{language_model_forward.4} parent=0 // pred_check_branch
    %1230 = sbr.rel (0) target = $region261
  $region260: #{language_model_forward.4} parent=0 // pred_region
    _
  $region261: #{language_model_forward.4} parent=0 // pred_fallthru
    _
  // Predicated region
  $region262: #{language_model_forward.4} parent=0 // pred_check
    _
  $region263: #{language_model_forward.4} parent=0 // pred_check_branch
    %1232 = sbr.rel (0) target = $region265
  $region264: #{language_model_forward.4} parent=0 // pred_region
    _
  $region265: #{language_model_forward.4} parent=0 // pred_fallthru
    _
  %1233 = vsyncmov [#allocation2]
  %s1234 = vpop.sfrf %1233
  %p1235 = scmp.eq.s32.totalorder %s1234, 0
  %p1236 = pneg %p1235
  %1238 = shalt.err (%p1236)

// kernel: language_model_forward.6
$region0: #{language_model_forward.6}
  #allocation0 [shape = 'u32[]', space=smem, size = 0x4, offset = 0x4, fixed_abs, tag = 'smem constant byte address 0x4 - core index']
  #allocation1 [shape = 'u32[144,128]{1,0:T(1,128)}', space=vmem, size = 0x12000, scoped, tag = 'internal scratch']
  #allocation2 [shape = 'f32[128,512]{1,0:T(8,128)}', space=vmem, size = 0x40000, scoped, tag = 'scratch operand']
  #allocation3 [shape = 'f32[128,512]{1,0:T(8,128)}', space=vmem, size = 0x40000, scoped, tag = 'scratch operand']
  #allocation4 [shape = 'f32[8,128]{1,0:T(8,128)}', space=vmem, size = 0x1000, scoped, tag = 'scratch operand']
  #allocation5 [shape = 'f32[8,128]{1,0:T(8,128)}', space=vmem, size = 0x1000, scoped, tag = 'scratch operand']
  #allocation6 [shape = 'f32[32,512]{1,0:T(8,128)}', space=vmem, size = 0x10000, scoped, tag = 'scratch operand']
  #allocation7 [shape = 's32[2]{0}', space=sflag, size = 0x8, scoped, tag = 'scratch operand']
  #allocation8 [shape = 's32[]', space=sflag, size = 0x4, offset = 0, fixed_abs, tag = 'sflag constant byte address 0x0 - dummy sync flag']
  #allocation9 [shape = 's32[]', space=sflag, size = 0x4, offset = 0, fixed_abs, tag = 'sflag constant byte address 0x0 - dummy sync flag']
  %s0 = inlined_call_operand.vmem [shape: f32[64,128], index: 0, kind: input, shape index: {}]
  %s1 = inlined_call_operand.vmem [shape: f32[128,512], index: 1, kind: input, shape index: {}]
  %s2 = inlined_call_operand.vmem [shape: f32[128,512], index: 2, kind: input, shape index: {}]
  %s3 = inlined_call_operand.vmem [shape: f32[1,512], index: 3, kind: input, shape index: {}]
  %s4 = inlined_call_operand.vmem [shape: f32[64,128], index: 4, kind: output, shape index: {}]
  %s5 = sld [smem:[#allocation0]]
  $region113: #{language_model_forward.6} parent=0
    _
  %s7 = ssub.s32 1, %s5
  %s8 = scalar_select 0, %s7, %s5
  loop: start=0, step=1, limit=4
  $region2: #{language_model_forward.6} parent=0 // loop_pre_header
    _
  $region3: #{language_model_forward.6} parent=0 // loop_header
    %s10 = sphi 0, %s14
    %p11 = scmp.ge.s32.totalorder %s10, 4
    %s20 = sphi 0, %s22
    %s23 = sphi 0, %s20
    %s24 = sphi 0, %s23
    %s40 = sphi 0, %s24
    %s44 = sphi 0, %s44
    %s46 = sphi 0, %s44
    %s47 = sphi 0, %s46
    %s61 = sphi 0, %s47
    %s67 = sphi 0, %s69
    %s70 = sphi 0, %s67
    %s71 = sphi 0, %s70
    %s87 = sphi 0, %s71
  $region4: #{language_model_forward.6} parent=0 // loop_header_branch
    %13 = sbr.rel (%p11) target = $region8
  $region5: #{language_model_forward.6} parent=0 // loop_body
    %s15 = ssub.s32 %s10, 1
    %s16 = ssub.s32 %s10, 2
    %s17 = sadd.s32 %s10, 1
    %s18 = ssub.s32 %s10, %s17
    %p19 = scmp.eq.s32.totalorder %s18, 0
    %s21 = sadd.s32 %s20, 1
    %s22 = scalar_select %p19, %s20, %s21
    %p25 = pneg %p19
    %p26 = scmp.eq.s32.totalorder %s10, 1
    %p27 = por %p25, %p26
    %p28 = scmp.ne.s32.totalorder %s20, %s23
    %p29 = scmp.eq.s32.totalorder %s10, 0
    %p30 = por %p28, %p29
    %p31 = scmp.ne.s32.totalorder %s20, %s23
    %p32 = scmp.eq.s32.totalorder %s15, 1
    %p33 = por %p31, %p32
    %p34 = scmp.ne.s32.totalorder %s23, %s24
    %p35 = scmp.eq.s32.totalorder %s15, 0
    %p36 = por %p34, %p35
    %p37 = scmp.ne.s32.totalorder %s23, %s24
    %p38 = scmp.eq.s32.totalorder %s16, 1
    %p39 = por %p37, %p38
    %p41 = scmp.ne.s32.totalorder %s24, %s40
    %p42 = scmp.eq.s32.totalorder %s16, 0
    %p43 = por %p41, %p42
    %s45 = sadd.s32 %s44, 1
    %p48 = scmp.eq.s32.totalorder %s10, 1
    %p49 = scmp.ne.s32.totalorder %s44, %s46
    %p50 = scmp.eq.s32.totalorder %s10, 0
    %p51 = por %p49, %p50
    %p52 = scmp.ne.s32.totalorder %s44, %s46
    %p53 = scmp.eq.s32.totalorder %s15, 1
    %p54 = por %p52, %p53
    %p55 = scmp.ne.s32.totalorder %s46, %s47
    %p56 = scmp.eq.s32.totalorder %s15, 0
    %p57 = por %p55, %p56
    %p58 = scmp.ne.s32.totalorder %s46, %s47
    %p59 = scmp.eq.s32.totalorder %s16, 1
    %p60 = por %p58, %p59
    %p62 = scmp.ne.s32.totalorder %s47, %s61
    %p63 = scmp.eq.s32.totalorder %s16, 0
    %p64 = por %p62, %p63
    %s65 = ssub.s32 %s10, %s17
    %p66 = scmp.eq.s32.totalorder %s65, 0
    %s68 = sadd.s32 %s67, 1
    %s69 = scalar_select %p66, %s67, %s68
    %p72 = pneg %p66
    %p73 = scmp.eq.s32.totalorder %s10, 1
    %p74 = por %p72, %p73
    %p75 = scmp.ne.s32.totalorder %s67, %s70
    %p76 = scmp.eq.s32.totalorder %s10, 0
    %p77 = por %p75, %p76
    %p78 = scmp.ne.s32.totalorder %s67, %s70
    %p79 = scmp.eq.s32.totalorder %s15, 1
    %p80 = por %p78, %p79
    %p81 = scmp.ne.s32.totalorder %s70, %s71
    %p82 = scmp.eq.s32.totalorder %s15, 0
    %p83 = por %p81, %p82
    %p84 = scmp.ne.s32.totalorder %s70, %s71
    %p85 = scmp.eq.s32.totalorder %s16, 1
    %p86 = por %p84, %p85
    %p88 = scmp.ne.s32.totalorder %s71, %s87
    %p89 = scmp.eq.s32.totalorder %s16, 0
    %p90 = por %p88, %p89
    %p91 = scmp.le.s32.totalorder 1, %s10
    %p92 = scmp.lt.s32.totalorder %s10, 3
    %p93 = pnand %p91, %p92
    %p94 = pneg %p93
    // Predicated region
    $region9: #{language_model_forward.6} parent=5 // pred_check
      _
    $region10: #{language_model_forward.6} parent=5 // pred_check_branch
      %96 = sbr.rel (%p93) target = $region12
    $region11: #{language_model_forward.6} parent=5 // pred_region
      %s97 = ssub.s32 %s10, 1
      // Predicated region
      $region13: #{language_model_forward.6} parent=11 // pred_check
        %p98 = pneg %p57
      $region14: #{language_model_forward.6} parent=11 // pred_check_branch
        %100 = sbr.rel (%p98) target = $region16
      $region15: #{language_model_forward.6} parent=11 // pred_region
        _
      $region16: #{language_model_forward.6} parent=11 // pred_fallthru
        _
    $region12: #{language_model_forward.6} parent=5 // pred_fallthru
      _
    %p101 = scmp.lt.s32.totalorder %s10, 2
    // Predicated region
    $region17: #{language_model_forward.6} parent=5 // pred_check
      %p102 = pneg %p101
    $region18: #{language_model_forward.6} parent=5 // pred_check_branch
      %104 = sbr.rel (%p102) target = $region20
    $region19: #{language_model_forward.6} parent=5 // pred_region
      // Predicated region
      $region21: #{language_model_forward.6} parent=19 // pred_check
        %p105 = pneg %p30
      $region22: #{language_model_forward.6} parent=19 // pred_check_branch
        %107 = sbr.rel (%p105) target = $region24
      $region23: #{language_model_forward.6} parent=19 // pred_region
        %s108 = smul.u32 4, %s10
        %p109 = scmp.lt.s32.totalorder %s108, 7
        %s110 = scalar_select %p109, %s108, 7
        %s111 = smul.addr %s110, 8
        %s112 = scalar_lea.vmem %s0, %s111
        %s113 = smul.u32 4, %s10
      $region24: #{language_model_forward.6} parent=19 // pred_fallthru
        _
    $region20: #{language_model_forward.6} parent=5 // pred_fallthru
      _
    %p114 = scmp.le.s32.totalorder 1, %s10
    %p115 = scmp.lt.s32.totalorder %s10, 3
    %p116 = pnand %p114, %p115
    %p117 = pneg %p116
    // Predicated region
    $region25: #{language_model_forward.6} parent=5 // pred_check
      _
    $region26: #{language_model_forward.6} parent=5 // pred_check_branch
      %119 = sbr.rel (%p116) target = $region28
    $region27: #{language_model_forward.6} parent=5 // pred_region
      %s120 = ssub.s32 %s10, 1
      %s121 = smul.u32 4, %s15
      %p122 = scmp.lt.s32.totalorder %s121, 7
      %s123 = scalar_select %p122, %s121, 7
      %s124 = smul.addr %s123, 8
      %s125 = scalar_lea.vmem %s0, %s124
      %p126 = pneg %p36
      %p127 = pneg %p33
      %p128 = pneg %p57
      %p129 = pneg %p54
      %p130 = pneg %p83
      %p131 = pneg %p80
      %s132 = smul.u32 4, %s15
      %p133 = scmp.lt.s32.totalorder %s132, 7
      %s134 = scalar_select %p133, %s132, 7
      %s135 = smul.addr %s134, 8
      %s136 = scalar_lea.vmem %s4, %s135
      %s137 = smul.u32 4, %s15
      %p138 = scmp.lt.s32.totalorder %s137, 7
      %s139 = scalar_select %p138, %s137, 7
      %s140 = smul.addr %s139, 8
      %s141 = scalar_lea.vmem %s0, %s140
      %s142 = smul.u32 4, %s15
      %s143 = smul.u32 4, %s15
      %p144 = scmp.lt.s32.totalorder %s143, 7
      %s145 = scalar_select %p144, %s143, 7
      %s146 = smul.addr %s145, 8
      %s147 = scalar_lea.vmem %s4, %s146
      %s148 = smul.u32 4, %s15
      %p149 = scmp.eq.s32.totalorder %s15, 0
      // Predicated region
      $region29: #{language_model_forward.6} parent=27 // pred_check
        %p150 = pneg %p149
      $region30: #{language_model_forward.6} parent=27 // pred_check_branch
        %152 = sbr.rel (%p150) target = $region32
      $region31: #{language_model_forward.6} parent=27 // pred_region
        %153 = vst [vmem:[#allocation4] sm:$0xff] 0.0
        %154 = vst [vmem:[#allocation5] sm:$0xff] 0.0
        %p156 = scmp.lt.u32.totalorder 512, 8
        %p157 = pneg %p156
        // Predicated region
        $region33: #{language_model_forward.6} parent=31 // pred_check
          _
        $region34: #{language_model_forward.6} parent=31 // pred_check_branch
          %159 = sbr.rel (%p156) target = $region36
        $region35: #{language_model_forward.6} parent=31 // pred_region
          %s174 = sand.u32 512, 7
          %p175 = scmp.eq.s32.totalorder %s174, 0
          // Predicated region
          $region48: #{language_model_forward.6} parent=35 // pred_check
            %p176 = pneg %p175
          $region49: #{language_model_forward.6} parent=35 // pred_check_branch
            %178 = sbr.rel (%p176) target = $region51
          $region50: #{language_model_forward.6} parent=35 // pred_region
            loop: start=0, step=1, limit=1
            $region52: #{language_model_forward.6} parent=50 // loop_pre_header
              _
            $region53: #{language_model_forward.6} parent=50 // loop_header
              %s180 = sphi 0, %s184
              %p181 = scmp.ge.s32.totalorder %s180, 1
              %s185 = sphi %s1, %s1
              %s186 = sphi [#allocation2], [#allocation2]
            $region54: #{language_model_forward.6} parent=50 // loop_header_branch
              %183 = sbr.rel (%p181) target = $region58
            $region55: #{language_model_forward.6} parent=50 // loop_body
              %v187 = vld [vmem:[%s185] sm:$0xff]
              %188 = vst [vmem:[%s186] sm:$0xff] %v187
              %v189 = vld [vmem:[%s185 + $0x8] sm:$0xff]
              %190 = vst [vmem:[%s186 + $0x8] sm:$0xff] %v189
              %v191 = vld [vmem:[%s185 + $0x10] sm:$0xff]
              %192 = vst [vmem:[%s186 + $0x10] sm:$0xff] %v191
              %v193 = vld [vmem:[%s185 + $0x18] sm:$0xff]
              %194 = vst [vmem:[%s186 + $0x18] sm:$0xff] %v193
              %v195 = vld [vmem:[%s185 + $0x20] sm:$0xff]
              %196 = vst [vmem:[%s186 + $0x20] sm:$0xff] %v195
              %v197 = vld [vmem:[%s185 + $0x28] sm:$0xff]
              %198 = vst [vmem:[%s186 + $0x28] sm:$0xff] %v197
              %v199 = vld [vmem:[%s185 + $0x30] sm:$0xff]
              %200 = vst [vmem:[%s186 + $0x30] sm:$0xff] %v199
              %v201 = vld [vmem:[%s185 + $0x38] sm:$0xff]
              %202 = vst [vmem:[%s186 + $0x38] sm:$0xff] %v201
              %v203 = vld [vmem:[%s185 + $0x40] sm:$0xff]
              %204 = vst [vmem:[%s186 + $0x40] sm:$0xff] %v203
              %v205 = vld [vmem:[%s185 + $0x48] sm:$0xff]
              %206 = vst [vmem:[%s186 + $0x48] sm:$0xff] %v205
              %v207 = vld [vmem:[%s185 + $0x50] sm:$0xff]
              %208 = vst [vmem:[%s186 + $0x50] sm:$0xff] %v207
              %v209 = vld [vmem:[%s185 + $0x58] sm:$0xff]
              %210 = vst [vmem:[%s186 + $0x58] sm:$0xff] %v209
              %v211 = vld [vmem:[%s185 + $0x60] sm:$0xff]
              %212 = vst [vmem:[%s186 + $0x60] sm:$0xff] %v211
              %v213 = vld [vmem:[%s185 + $0x68] sm:$0xff]
              %214 = vst [vmem:[%s186 + $0x68] sm:$0xff] %v213
              %v215 = vld [vmem:[%s185 + $0x70] sm:$0xff]
              %216 = vst [vmem:[%s186 + $0x70] sm:$0xff] %v215
              %v217 = vld [vmem:[%s185 + $0x78] sm:$0xff]
              %218 = vst [vmem:[%s186 + $0x78] sm:$0xff] %v217
              %v219 = vld [vmem:[%s185 + $0x80] sm:$0xff]
              %220 = vst [vmem:[%s186 + $0x80] sm:$0xff] %v219
              %v221 = vld [vmem:[%s185 + $0x88] sm:$0xff]
              %222 = vst [vmem:[%s186 + $0x88] sm:$0xff] %v221
              %v223 = vld [vmem:[%s185 + $0x90] sm:$0xff]
              %224 = vst [vmem:[%s186 + $0x90] sm:$0xff] %v223
              %v225 = vld [vmem:[%s185 + $0x98] sm:$0xff]
              %226 = vst [vmem:[%s186 + $0x98] sm:$0xff] %v225
              %v227 = vld [vmem:[%s185 + $0xa0] sm:$0xff]
              %228 = vst [vmem:[%s186 + $0xa0] sm:$0xff] %v227
              %v229 = vld [vmem:[%s185 + $0xa8] sm:$0xff]
              %230 = vst [vmem:[%s186 + $0xa8] sm:$0xff] %v229
              %v231 = vld [vmem:[%s185 + $0xb0] sm:$0xff]
              %232 = vst [vmem:[%s186 + $0xb0] sm:$0xff] %v231
              %v233 = vld [vmem:[%s185 + $0xb8] sm:$0xff]
              %234 = vst [vmem:[%s186 + $0xb8] sm:$0xff] %v233
              %v235 = vld [vmem:[%s185 + $0xc0] sm:$0xff]
              %236 = vst [vmem:[%s186 + $0xc0] sm:$0xff] %v235
              %v237 = vld [vmem:[%s185 + $0xc8] sm:$0xff]
              %238 = vst [vmem:[%s186 + $0xc8] sm:$0xff] %v237
              %v239 = vld [vmem:[%s185 + $0xd0] sm:$0xff]
              %240 = vst [vmem:[%s186 + $0xd0] sm:$0xff] %v239
              %v241 = vld [vmem:[%s185 + $0xd8] sm:$0xff]
              %242 = vst [vmem:[%s186 + $0xd8] sm:$0xff] %v241
              %v243 = vld [vmem:[%s185 + $0xe0] sm:$0xff]
              %244 = vst [vmem:[%s186 + $0xe0] sm:$0xff] %v243
              %v245 = vld [vmem:[%s185 + $0xe8] sm:$0xff]
              %246 = vst [vmem:[%s186 + $0xe8] sm:$0xff] %v245
              %v247 = vld [vmem:[%s185 + $0xf0] sm:$0xff]
              %248 = vst [vmem:[%s186 + $0xf0] sm:$0xff] %v247
              %v249 = vld [vmem:[%s185 + $0xf8] sm:$0xff]
              %250 = vst [vmem:[%s186 + $0xf8] sm:$0xff] %v249
              %v251 = vld [vmem:[%s185 + $0x100] sm:$0xff]
              %252 = vst [vmem:[%s186 + $0x100] sm:$0xff] %v251
              %v253 = vld [vmem:[%s185 + $0x108] sm:$0xff]
              %254 = vst [vmem:[%s186 + $0x108] sm:$0xff] %v253
              %v255 = vld [vmem:[%s185 + $0x110] sm:$0xff]
              %256 = vst [vmem:[%s186 + $0x110] sm:$0xff] %v255
              %v257 = vld [vmem:[%s185 + $0x118] sm:$0xff]
              %258 = vst [vmem:[%s186 + $0x118] sm:$0xff] %v257
              %v259 = vld [vmem:[%s185 + $0x120] sm:$0xff]
              %260 = vst [vmem:[%s186 + $0x120] sm:$0xff] %v259
              %v261 = vld [vmem:[%s185 + $0x128] sm:$0xff]
              %262 = vst [vmem:[%s186 + $0x128] sm:$0xff] %v261
              %v263 = vld [vmem:[%s185 + $0x130] sm:$0xff]
              %264 = vst [vmem:[%s186 + $0x130] sm:$0xff] %v263
              %v265 = vld [vmem:[%s185 + $0x138] sm:$0xff]
              %266 = vst [vmem:[%s186 + $0x138] sm:$0xff] %v265
              %v267 = vld [vmem:[%s185 + $0x140] sm:$0xff]
              %268 = vst [vmem:[%s186 + $0x140] sm:$0xff] %v267
              %v269 = vld [vmem:[%s185 + $0x148] sm:$0xff]
              %270 = vst [vmem:[%s186 + $0x148] sm:$0xff] %v269
              %v271 = vld [vmem:[%s185 + $0x150] sm:$0xff]
              %272 = vst [vmem:[%s186 + $0x150] sm:$0xff] %v271
              %v273 = vld [vmem:[%s185 + $0x158] sm:$0xff]
              %274 = vst [vmem:[%s186 + $0x158] sm:$0xff] %v273
              %v275 = vld [vmem:[%s185 + $0x160] sm:$0xff]
              %276 = vst [vmem:[%s186 + $0x160] sm:$0xff] %v275
              %v277 = vld [vmem:[%s185 + $0x168] sm:$0xff]
              %278 = vst [vmem:[%s186 + $0x168] sm:$0xff] %v277
              %v279 = vld [vmem:[%s185 + $0x170] sm:$0xff]
              %280 = vst [vmem:[%s186 + $0x170] sm:$0xff] %v279
              %v281 = vld [vmem:[%s185 + $0x178] sm:$0xff]
              %282 = vst [vmem:[%s186 + $0x178] sm:$0xff] %v281
              %v283 = vld [vmem:[%s185 + $0x180] sm:$0xff]
              %284 = vst [vmem:[%s186 + $0x180] sm:$0xff] %v283
              %v285 = vld [vmem:[%s185 + $0x188] sm:$0xff]
              %286 = vst [vmem:[%s186 + $0x188] sm:$0xff] %v285
              %v287 = vld [vmem:[%s185 + $0x190] sm:$0xff]
              %288 = vst [vmem:[%s186 + $0x190] sm:$0xff] %v287
              %v289 = vld [vmem:[%s185 + $0x198] sm:$0xff]
              %290 = vst [vmem:[%s186 + $0x198] sm:$0xff] %v289
              %v291 = vld [vmem:[%s185 + $0x1a0] sm:$0xff]
              %292 = vst [vmem:[%s186 + $0x1a0] sm:$0xff] %v291
              %v293 = vld [vmem:[%s185 + $0x1a8] sm:$0xff]
              %294 = vst [vmem:[%s186 + $0x1a8] sm:$0xff] %v293
              %v295 = vld [vmem:[%s185 + $0x1b0] sm:$0xff]
              %296 = vst [vmem:[%s186 + $0x1b0] sm:$0xff] %v295
              %v297 = vld [vmem:[%s185 + $0x1b8] sm:$0xff]
              %298 = vst [vmem:[%s186 + $0x1b8] sm:$0xff] %v297
              %v299 = vld [vmem:[%s185 + $0x1c0] sm:$0xff]
              %300 = vst [vmem:[%s186 + $0x1c0] sm:$0xff] %v299
              %v301 = vld [vmem:[%s185 + $0x1c8] sm:$0xff]
              %302 = vst [vmem:[%s186 + $0x1c8] sm:$0xff] %v301
              %v303 = vld [vmem:[%s185 + $0x1d0] sm:$0xff]
              %304 = vst [vmem:[%s186 + $0x1d0] sm:$0xff] %v303
              %v305 = vld [vmem:[%s185 + $0x1d8] sm:$0xff]
              %306 = vst [vmem:[%s186 + $0x1d8] sm:$0xff] %v305
              %v307 = vld [vmem:[%s185 + $0x1e0] sm:$0xff]
              %308 = vst [vmem:[%s186 + $0x1e0] sm:$0xff] %v307
              %v309 = vld [vmem:[%s185 + $0x1e8] sm:$0xff]
              %310 = vst [vmem:[%s186 + $0x1e8] sm:$0xff] %v309
              %v311 = vld [vmem:[%s185 + $0x1f0] sm:$0xff]
              %312 = vst [vmem:[%s186 + $0x1f0] sm:$0xff] %v311
              %v313 = vld [vmem:[%s185 + $0x1f8] sm:$0xff]
              %314 = vst [vmem:[%s186 + $0x1f8] sm:$0xff] %v313
            $region56: #{language_model_forward.6} parent=50 // loop_footer
              %s184 = sadd.s32 1, %s180
            $region57: #{language_model_forward.6} parent=50 // loop_footer_branch
              %179 = sbr.rel target = $region53
            $region58: #{language_model_forward.6} parent=50 // loop_exit
              _
          $region51: #{language_model_forward.6} parent=35 // pred_fallthru
            _
          %p315 = pneg %p175
          // Predicated region
          $region59: #{language_model_forward.6} parent=35 // pred_check
            _
          $region60: #{language_model_forward.6} parent=35 // pred_check_branch
            %317 = sbr.rel (%p175) target = $region62
          $region61: #{language_model_forward.6} parent=35 // pred_region
            %s318 = sand.u32 512, 7
          $region62: #{language_model_forward.6} parent=35 // pred_fallthru
            _
        $region36: #{language_model_forward.6} parent=31 // pred_fallthru
          _
        // Predicated region
        $region37: #{language_model_forward.6} parent=31 // pred_check
          %p160 = pneg %p156
        $region38: #{language_model_forward.6} parent=31 // pred_check_branch
          %162 = sbr.rel (%p160) target = $region40
        $region39: #{language_model_forward.6} parent=31 // pred_region
          %s163 = sshllo.u32 0, 512
          loop: start=0, step=1, limit=1
          $region41: #{language_model_forward.6} parent=39 // loop_pre_header
            _
          $region42: #{language_model_forward.6} parent=39 // loop_header
            %s165 = sphi 0, %s169
            %p166 = scmp.ge.s32.totalorder %s165, 1
            %s170 = sphi %s1, %s1
            %s171 = sphi [#allocation2], [#allocation2]
          $region43: #{language_model_forward.6} parent=39 // loop_header_branch
            %168 = sbr.rel (%p166) target = $region47
          $region44: #{language_model_forward.6} parent=39 // loop_body
            %v172 = vld [vmem:[%s170] sm:%s163]
            %173 = vst [vmem:[%s171] sm:%s163] %v172
          $region45: #{language_model_forward.6} parent=39 // loop_footer
            %s169 = sadd.s32 1, %s165
          $region46: #{language_model_forward.6} parent=39 // loop_footer_branch
            %164 = sbr.rel target = $region42
          $region47: #{language_model_forward.6} parent=39 // loop_exit
            _
        $region40: #{language_model_forward.6} parent=31 // pred_fallthru
          _
        // Predicated region
        $region63: #{language_model_forward.6} parent=31 // pred_check
          _
        $region64: #{language_model_forward.6} parent=31 // pred_check_branch
          %321 = sbr.rel (0) target = $region66
        $region65: #{language_model_forward.6} parent=31 // pred_region
          %322 = vsyncadd [#allocation7], 8192
        $region66: #{language_model_forward.6} parent=31 // pred_fallthru
          _
        %s323 = scalar_lea.sflag [#allocation7], 1
        %p325 = scmp.lt.u32.totalorder 512, 8
        %p326 = pneg %p325
        // Predicated region
        $region67: #{language_model_forward.6} parent=31 // pred_check
          _
        $region68: #{language_model_forward.6} parent=31 // pred_check_branch
          %328 = sbr.rel (%p325) target = $region70
        $region69: #{language_model_forward.6} parent=31 // pred_region
          %s343 = sand.u32 512, 7
          %p344 = scmp.eq.s32.totalorder %s343, 0
          // Predicated region
          $region82: #{language_model_forward.6} parent=69 // pred_check
            %p345 = pneg %p344
          $region83: #{language_model_forward.6} parent=69 // pred_check_branch
            %347 = sbr.rel (%p345) target = $region85
          $region84: #{language_model_forward.6} parent=69 // pred_region
            loop: start=0, step=1, limit=1
            $region86: #{language_model_forward.6} parent=84 // loop_pre_header
              _
            $region87: #{language_model_forward.6} parent=84 // loop_header
              %s349 = sphi 0, %s353
              %p350 = scmp.ge.s32.totalorder %s349, 1
              %s354 = sphi %s2, %s2
              %s355 = sphi [#allocation3], [#allocation3]
            $region88: #{language_model_forward.6} parent=84 // loop_header_branch
              %352 = sbr.rel (%p350) target = $region92
            $region89: #{language_model_forward.6} parent=84 // loop_body
              %v356 = vld [vmem:[%s354] sm:$0xff]
              %357 = vst [vmem:[%s355] sm:$0xff] %v356
              %v358 = vld [vmem:[%s354 + $0x8] sm:$0xff]
              %359 = vst [vmem:[%s355 + $0x8] sm:$0xff] %v358
              %v360 = vld [vmem:[%s354 + $0x10] sm:$0xff]
              %361 = vst [vmem:[%s355 + $0x10] sm:$0xff] %v360
              %v362 = vld [vmem:[%s354 + $0x18] sm:$0xff]
              %363 = vst [vmem:[%s355 + $0x18] sm:$0xff] %v362
              %v364 = vld [vmem:[%s354 + $0x20] sm:$0xff]
              %365 = vst [vmem:[%s355 + $0x20] sm:$0xff] %v364
              %v366 = vld [vmem:[%s354 + $0x28] sm:$0xff]
              %367 = vst [vmem:[%s355 + $0x28] sm:$0xff] %v366
              %v368 = vld [vmem:[%s354 + $0x30] sm:$0xff]
              %369 = vst [vmem:[%s355 + $0x30] sm:$0xff] %v368
              %v370 = vld [vmem:[%s354 + $0x38] sm:$0xff]
              %371 = vst [vmem:[%s355 + $0x38] sm:$0xff] %v370
              %v372 = vld [vmem:[%s354 + $0x40] sm:$0xff]
              %373 = vst [vmem:[%s355 + $0x40] sm:$0xff] %v372
              %v374 = vld [vmem:[%s354 + $0x48] sm:$0xff]
              %375 = vst [vmem:[%s355 + $0x48] sm:$0xff] %v374
              %v376 = vld [vmem:[%s354 + $0x50] sm:$0xff]
              %377 = vst [vmem:[%s355 + $0x50] sm:$0xff] %v376
              %v378 = vld [vmem:[%s354 + $0x58] sm:$0xff]
              %379 = vst [vmem:[%s355 + $0x58] sm:$0xff] %v378
              %v380 = vld [vmem:[%s354 + $0x60] sm:$0xff]
              %381 = vst [vmem:[%s355 + $0x60] sm:$0xff] %v380
              %v382 = vld [vmem:[%s354 + $0x68] sm:$0xff]
              %383 = vst [vmem:[%s355 + $0x68] sm:$0xff] %v382
              %v384 = vld [vmem:[%s354 + $0x70] sm:$0xff]
              %385 = vst [vmem:[%s355 + $0x70] sm:$0xff] %v384
              %v386 = vld [vmem:[%s354 + $0x78] sm:$0xff]
              %387 = vst [vmem:[%s355 + $0x78] sm:$0xff] %v386
              %v388 = vld [vmem:[%s354 + $0x80] sm:$0xff]
              %389 = vst [vmem:[%s355 + $0x80] sm:$0xff] %v388
              %v390 = vld [vmem:[%s354 + $0x88] sm:$0xff]
              %391 = vst [vmem:[%s355 + $0x88] sm:$0xff] %v390
              %v392 = vld [vmem:[%s354 + $0x90] sm:$0xff]
              %393 = vst [vmem:[%s355 + $0x90] sm:$0xff] %v392
              %v394 = vld [vmem:[%s354 + $0x98] sm:$0xff]
              %395 = vst [vmem:[%s355 + $0x98] sm:$0xff] %v394
              %v396 = vld [vmem:[%s354 + $0xa0] sm:$0xff]
              %397 = vst [vmem:[%s355 + $0xa0] sm:$0xff] %v396
              %v398 = vld [vmem:[%s354 + $0xa8] sm:$0xff]
              %399 = vst [vmem:[%s355 + $0xa8] sm:$0xff] %v398
              %v400 = vld [vmem:[%s354 + $0xb0] sm:$0xff]
              %401 = vst [vmem:[%s355 + $0xb0] sm:$0xff] %v400
              %v402 = vld [vmem:[%s354 + $0xb8] sm:$0xff]
              %403 = vst [vmem:[%s355 + $0xb8] sm:$0xff] %v402
              %v404 = vld [vmem:[%s354 + $0xc0] sm:$0xff]
              %405 = vst [vmem:[%s355 + $0xc0] sm:$0xff] %v404
              %v406 = vld [vmem:[%s354 + $0xc8] sm:$0xff]
              %407 = vst [vmem:[%s355 + $0xc8] sm:$0xff] %v406
              %v408 = vld [vmem:[%s354 + $0xd0] sm:$0xff]
              %409 = vst [vmem:[%s355 + $0xd0] sm:$0xff] %v408
              %v410 = vld [vmem:[%s354 + $0xd8] sm:$0xff]
              %411 = vst [vmem:[%s355 + $0xd8] sm:$0xff] %v410
              %v412 = vld [vmem:[%s354 + $0xe0] sm:$0xff]
              %413 = vst [vmem:[%s355 + $0xe0] sm:$0xff] %v412
              %v414 = vld [vmem:[%s354 + $0xe8] sm:$0xff]
              %415 = vst [vmem:[%s355 + $0xe8] sm:$0xff] %v414
              %v416 = vld [vmem:[%s354 + $0xf0] sm:$0xff]
              %417 = vst [vmem:[%s355 + $0xf0] sm:$0xff] %v416
              %v418 = vld [vmem:[%s354 + $0xf8] sm:$0xff]
              %419 = vst [vmem:[%s355 + $0xf8] sm:$0xff] %v418
              %v420 = vld [vmem:[%s354 + $0x100] sm:$0xff]
              %421 = vst [vmem:[%s355 + $0x100] sm:$0xff] %v420
              %v422 = vld [vmem:[%s354 + $0x108] sm:$0xff]
              %423 = vst [vmem:[%s355 + $0x108] sm:$0xff] %v422
              %v424 = vld [vmem:[%s354 + $0x110] sm:$0xff]
              %425 = vst [vmem:[%s355 + $0x110] sm:$0xff] %v424
              %v426 = vld [vmem:[%s354 + $0x118] sm:$0xff]
              %427 = vst [vmem:[%s355 + $0x118] sm:$0xff] %v426
              %v428 = vld [vmem:[%s354 + $0x120] sm:$0xff]
              %429 = vst [vmem:[%s355 + $0x120] sm:$0xff] %v428
              %v430 = vld [vmem:[%s354 + $0x128] sm:$0xff]
              %431 = vst [vmem:[%s355 + $0x128] sm:$0xff] %v430
              %v432 = vld [vmem:[%s354 + $0x130] sm:$0xff]
              %433 = vst [vmem:[%s355 + $0x130] sm:$0xff] %v432
              %v434 = vld [vmem:[%s354 + $0x138] sm:$0xff]
              %435 = vst [vmem:[%s355 + $0x138] sm:$0xff] %v434
              %v436 = vld [vmem:[%s354 + $0x140] sm:$0xff]
              %437 = vst [vmem:[%s355 + $0x140] sm:$0xff] %v436
              %v438 = vld [vmem:[%s354 + $0x148] sm:$0xff]
              %439 = vst [vmem:[%s355 + $0x148] sm:$0xff] %v438
              %v440 = vld [vmem:[%s354 + $0x150] sm:$0xff]
              %441 = vst [vmem:[%s355 + $0x150] sm:$0xff] %v440
              %v442 = vld [vmem:[%s354 + $0x158] sm:$0xff]
              %443 = vst [vmem:[%s355 + $0x158] sm:$0xff] %v442
              %v444 = vld [vmem:[%s354 + $0x160] sm:$0xff]
              %445 = vst [vmem:[%s355 + $0x160] sm:$0xff] %v444
              %v446 = vld [vmem:[%s354 + $0x168] sm:$0xff]
              %447 = vst [vmem:[%s355 + $0x168] sm:$0xff] %v446
              %v448 = vld [vmem:[%s354 + $0x170] sm:$0xff]
              %449 = vst [vmem:[%s355 + $0x170] sm:$0xff] %v448
              %v450 = vld [vmem:[%s354 + $0x178] sm:$0xff]
              %451 = vst [vmem:[%s355 + $0x178] sm:$0xff] %v450
              %v452 = vld [vmem:[%s354 + $0x180] sm:$0xff]
              %453 = vst [vmem:[%s355 + $0x180] sm:$0xff] %v452
              %v454 = vld [vmem:[%s354 + $0x188] sm:$0xff]
              %455 = vst [vmem:[%s355 + $0x188] sm:$0xff] %v454
              %v456 = vld [vmem:[%s354 + $0x190] sm:$0xff]
              %457 = vst [vmem:[%s355 + $0x190] sm:$0xff] %v456
              %v458 = vld [vmem:[%s354 + $0x198] sm:$0xff]
              %459 = vst [vmem:[%s355 + $0x198] sm:$0xff] %v458
              %v460 = vld [vmem:[%s354 + $0x1a0] sm:$0xff]
              %461 = vst [vmem:[%s355 + $0x1a0] sm:$0xff] %v460
              %v462 = vld [vmem:[%s354 + $0x1a8] sm:$0xff]
              %463 = vst [vmem:[%s355 + $0x1a8] sm:$0xff] %v462
              %v464 = vld [vmem:[%s354 + $0x1b0] sm:$0xff]
              %465 = vst [vmem:[%s355 + $0x1b0] sm:$0xff] %v464
              %v466 = vld [vmem:[%s354 + $0x1b8] sm:$0xff]
              %467 = vst [vmem:[%s355 + $0x1b8] sm:$0xff] %v466
              %v468 = vld [vmem:[%s354 + $0x1c0] sm:$0xff]
              %469 = vst [vmem:[%s355 + $0x1c0] sm:$0xff] %v468
              %v470 = vld [vmem:[%s354 + $0x1c8] sm:$0xff]
              %471 = vst [vmem:[%s355 + $0x1c8] sm:$0xff] %v470
              %v472 = vld [vmem:[%s354 + $0x1d0] sm:$0xff]
              %473 = vst [vmem:[%s355 + $0x1d0] sm:$0xff] %v472
              %v474 = vld [vmem:[%s354 + $0x1d8] sm:$0xff]
              %475 = vst [vmem:[%s355 + $0x1d8] sm:$0xff] %v474
              %v476 = vld [vmem:[%s354 + $0x1e0] sm:$0xff]
              %477 = vst [vmem:[%s355 + $0x1e0] sm:$0xff] %v476
              %v478 = vld [vmem:[%s354 + $0x1e8] sm:$0xff]
              %479 = vst [vmem:[%s355 + $0x1e8] sm:$0xff] %v478
              %v480 = vld [vmem:[%s354 + $0x1f0] sm:$0xff]
              %481 = vst [vmem:[%s355 + $0x1f0] sm:$0xff] %v480
              %v482 = vld [vmem:[%s354 + $0x1f8] sm:$0xff]
              %483 = vst [vmem:[%s355 + $0x1f8] sm:$0xff] %v482
            $region90: #{language_model_forward.6} parent=84 // loop_footer
              %s353 = sadd.s32 1, %s349
            $region91: #{language_model_forward.6} parent=84 // loop_footer_branch
              %348 = sbr.rel target = $region87
            $region92: #{language_model_forward.6} parent=84 // loop_exit
              _
          $region85: #{language_model_forward.6} parent=69 // pred_fallthru
            _
          %p484 = pneg %p344
          // Predicated region
          $region93: #{language_model_forward.6} parent=69 // pred_check
            _
          $region94: #{language_model_forward.6} parent=69 // pred_check_branch
            %486 = sbr.rel (%p344) target = $region96
          $region95: #{language_model_forward.6} parent=69 // pred_region
            %s487 = sand.u32 512, 7
          $region96: #{language_model_forward.6} parent=69 // pred_fallthru
            _
        $region70: #{language_model_forward.6} parent=31 // pred_fallthru
          _
        // Predicated region
        $region71: #{language_model_forward.6} parent=31 // pred_check
          %p329 = pneg %p325
        $region72: #{language_model_forward.6} parent=31 // pred_check_branch
          %331 = sbr.rel (%p329) target = $region74
        $region73: #{language_model_forward.6} parent=31 // pred_region
          %s332 = sshllo.u32 0, 512
          loop: start=0, step=1, limit=1
          $region75: #{language_model_forward.6} parent=73 // loop_pre_header
            _
          $region76: #{language_model_forward.6} parent=73 // loop_header
            %s334 = sphi 0, %s338
            %p335 = scmp.ge.s32.totalorder %s334, 1
            %s339 = sphi %s2, %s2
            %s340 = sphi [#allocation3], [#allocation3]
          $region77: #{language_model_forward.6} parent=73 // loop_header_branch
            %337 = sbr.rel (%p335) target = $region81
          $region78: #{language_model_forward.6} parent=73 // loop_body
            %v341 = vld [vmem:[%s339] sm:%s332]
            %342 = vst [vmem:[%s340] sm:%s332] %v341
          $region79: #{language_model_forward.6} parent=73 // loop_footer
            %s338 = sadd.s32 1, %s334
          $region80: #{language_model_forward.6} parent=73 // loop_footer_branch
            %333 = sbr.rel target = $region76
          $region81: #{language_model_forward.6} parent=73 // loop_exit
            _
        $region74: #{language_model_forward.6} parent=31 // pred_fallthru
          _
        // Predicated region
        $region97: #{language_model_forward.6} parent=31 // pred_check
          _
        $region98: #{language_model_forward.6} parent=31 // pred_check_branch
          %490 = sbr.rel (0) target = $region100
        $region99: #{language_model_forward.6} parent=31 // pred_region
          %491 = vsyncadd %s323, 8192
        $region100: #{language_model_forward.6} parent=31 // pred_fallthru
          _
        %s492 = smul.u32 8, 16
        %s493 = smul.u32 %s492, 4
        %s494 = sshll.u32 %s493, 4
        %495 = dma.done [#allocation7], %s494
        %s496 = sshll.u32 %s493, 4
        %497 = dma.done %s323, %s496
      $region32: #{language_model_forward.6} parent=27 // pred_fallthru
        _
      %v498 = vld [vmem:[%s141] sm:$0xff]
      %v499 = vld [vmem:[%s141 + $0x8] sm:$0xff]
      %v500 = vld [vmem:[%s141 + $0x10] sm:$0xff]
      %v501 = vld [vmem:[%s141 + $0x18] sm:$0xff]
      %v502 = vld [vmem:[#allocation2] sm:$0xff]
      %v503 = vld [vmem:[#allocation2 + $0x8] sm:$0xff]
      %v504 = vld [vmem:[#allocation2 + $0x10] sm:$0xff]
      %v505 = vld [vmem:[#allocation2 + $0x18] sm:$0xff]
      %v506 = vld [vmem:[#allocation2 + $0x20] sm:$0xff]
      %v507 = vld [vmem:[#allocation2 + $0x28] sm:$0xff]
      %v508 = vld [vmem:[#allocation2 + $0x30] sm:$0xff]
      %v509 = vld [vmem:[#allocation2 + $0x38] sm:$0xff]
      %v510 = vld [vmem:[#allocation2 + $0x40] sm:$0xff]
      %v511 = vld [vmem:[#allocation2 + $0x48] sm:$0xff]
      %v512 = vld [vmem:[#allocation2 + $0x50] sm:$0xff]
      %v513 = vld [vmem:[#allocation2 + $0x58] sm:$0xff]
      %v514 = vld [vmem:[#allocation2 + $0x60] sm:$0xff]
      %v515 = vld [vmem:[#allocation2 + $0x68] sm:$0xff]
      %v516 = vld [vmem:[#allocation2 + $0x70] sm:$0xff]
      %v517 = vld [vmem:[#allocation2 + $0x78] sm:$0xff]
      %v518 = vld [vmem:[#allocation2 + $0x80] sm:$0xff]
      %v519 = vld [vmem:[#allocation2 + $0x88] sm:$0xff]
      %v520 = vld [vmem:[#allocation2 + $0x90] sm:$0xff]
      %v521 = vld [vmem:[#allocation2 + $0x98] sm:$0xff]
      %v522 = vld [vmem:[#allocation2 + $0xa0] sm:$0xff]
      %v523 = vld [vmem:[#allocation2 + $0xa8] sm:$0xff]
      %v524 = vld [vmem:[#allocation2 + $0xb0] sm:$0xff]
      %v525 = vld [vmem:[#allocation2 + $0xb8] sm:$0xff]
      %v526 = vld [vmem:[#allocation2 + $0xc0] sm:$0xff]
      %v527 = vld [vmem:[#allocation2 + $0xc8] sm:$0xff]
      %v528 = vld [vmem:[#allocation2 + $0xd0] sm:$0xff]
      %v529 = vld [vmem:[#allocation2 + $0xd8] sm:$0xff]
      %v530 = vld [vmem:[#allocation2 + $0xe0] sm:$0xff]
      %v531 = vld [vmem:[#allocation2 + $0xe8] sm:$0xff]
      %v532 = vld [vmem:[#allocation2 + $0xf0] sm:$0xff]
      %v533 = vld [vmem:[#allocation2 + $0xf8] sm:$0xff]
      %v534 = vld [vmem:[#allocation2 + $0x100] sm:$0xff]
      %v535 = vld [vmem:[#allocation2 + $0x108] sm:$0xff]
      %v536 = vld [vmem:[#allocation2 + $0x110] sm:$0xff]
      %v537 = vld [vmem:[#allocation2 + $0x118] sm:$0xff]
      %v538 = vld [vmem:[#allocation2 + $0x120] sm:$0xff]
      %v539 = vld [vmem:[#allocation2 + $0x128] sm:$0xff]
      %v540 = vld [vmem:[#allocation2 + $0x130] sm:$0xff]
      %v541 = vld [vmem:[#allocation2 + $0x138] sm:$0xff]
      %v542 = vld [vmem:[#allocation2 + $0x140] sm:$0xff]
      %v543 = vld [vmem:[#allocation2 + $0x148] sm:$0xff]
      %v544 = vld [vmem:[#allocation2 + $0x150] sm:$0xff]
      %v545 = vld [vmem:[#allocation2 + $0x158] sm:$0xff]
      %v546 = vld [vmem:[#allocation2 + $0x160] sm:$0xff]
      %v547 = vld [vmem:[#allocation2 + $0x168] sm:$0xff]
      %v548 = vld [vmem:[#allocation2 + $0x170] sm:$0xff]
      %v549 = vld [vmem:[#allocation2 + $0x178] sm:$0xff]
      %v550 = vld [vmem:[#allocation2 + $0x180] sm:$0xff]
      %v551 = vld [vmem:[#allocation2 + $0x188] sm:$0xff]
      %v552 = vld [vmem:[#allocation2 + $0x190] sm:$0xff]
      %v553 = vld [vmem:[#allocation2 + $0x198] sm:$0xff]
      %v554 = vld [vmem:[#allocation2 + $0x1a0] sm:$0xff]
      %v555 = vld [vmem:[#allocation2 + $0x1a8] sm:$0xff]
      %v556 = vld [vmem:[#allocation2 + $0x1b0] sm:$0xff]
      %v557 = vld [vmem:[#allocation2 + $0x1b8] sm:$0xff]
      %v558 = vld [vmem:[#allocation2 + $0x1c0] sm:$0xff]
      %v559 = vld [vmem:[#allocation2 + $0x1c8] sm:$0xff]
      %v560 = vld [vmem:[#allocation2 + $0x1d0] sm:$0xff]
      %v561 = vld [vmem:[#allocation2 + $0x1d8] sm:$0xff]
      %v562 = vld [vmem:[#allocation2 + $0x1e0] sm:$0xff]
      %v563 = vld [vmem:[#allocation2 + $0x1e8] sm:$0xff]
      %v564 = vld [vmem:[#allocation2 + $0x1f0] sm:$0xff]
      %v565 = vld [vmem:[#allocation2 + $0x1f8] sm:$0xff]
      %v566 = vld [vmem:[%s3] sm:$0xf]
      %v568 = vlaneseq
      %v569 = vshrl.u32 %v568, 7
      %v570 = vsub.s32 0, %v569
      %v571 = vrot.slane %v566, %v570
      %v572 = vlaneseq
      %v573 = vshrl.u32 %v572, 7
      %v574 = vsub.s32 1, %v573
      %v575 = vrot.slane %v566, %v574
      %v576 = vlaneseq
      %v577 = vshrl.u32 %v576, 7
      %v578 = vsub.s32 2, %v577
      %v579 = vrot.slane %v566, %v578
      %v580 = vlaneseq
      %v581 = vshrl.u32 %v580, 7
      %v582 = vsub.s32 3, %v581
      %v583 = vrot.slane %v566, %v582
      %588 = vmatprep.subr.mxu0 %v503
      %589 = vmatpush1.msra.mxu0 %v502
      %590 = vmatprep.subr.mxu0 %v507
      %591 = vmatpush1.msra.mxu0 %v506
      %592 = vmatprep.subr.mxu0 %v511
      %593 = vmatpush1.msra.mxu0 %v510
      %594 = vmatprep.subr.mxu0 %v515
      %595 = vmatpush1.msra.mxu0 %v514
      %596 = vmatprep.subr.mxu0 %v519
      %597 = vmatpush1.msra.mxu0 %v518
      %598 = vmatprep.subr.mxu0 %v523
      %599 = vmatpush1.msra.mxu0 %v522
      %600 = vmatprep.subr.mxu0 %v527
      %601 = vmatpush1.msra.mxu0 %v526
      %602 = vmatprep.subr.mxu0 %v531
      %603 = vmatpush1.msra.mxu0 %v530
      %604 = vmatprep.subr.mxu0 %v535
      %605 = vmatpush1.msra.mxu0 %v534
      %606 = vmatprep.subr.mxu0 %v539
      %607 = vmatpush1.msra.mxu0 %v538
      %608 = vmatprep.subr.mxu0 %v543
      %609 = vmatpush1.msra.mxu0 %v542
      %610 = vmatprep.subr.mxu0 %v547
      %611 = vmatpush1.msra.mxu0 %v546
      %612 = vmatprep.subr.mxu0 %v551
      %613 = vmatpush1.msra.mxu0 %v550
      %614 = vmatprep.subr.mxu0 %v555
      %615 = vmatpush1.msra.mxu0 %v554
      %616 = vmatprep.subr.mxu0 %v559
      %617 = vmatpush1.msra.mxu0 %v558
      %618 = vmatprep.subr.mxu0 %v563
      %619 = vmatpush1.msra.mxu0 %v562
      %620 = vmatprep.subr.mxu0 0.0
      %621 = vmatpush1.msra.mxu0 0.0
      %622 = vmatprep.subr.mxu0 0.0
      %623 = vmatpush1.msra.mxu0 0.0
      %624 = vmatprep.subr.mxu0 0.0
      %625 = vmatpush1.msra.mxu0 0.0
      %626 = vmatprep.subr.mxu0 0.0
      %627 = vmatpush1.msra.mxu0 0.0
      %628 = vmatprep.subr.mxu0 0.0
      %629 = vmatpush1.msra.mxu0 0.0
      %630 = vmatprep.subr.mxu0 0.0
      %631 = vmatpush1.msra.mxu0 0.0
      %632 = vmatprep.subr.mxu0 0.0
      %633 = vmatpush1.msra.mxu0 0.0
      %634 = vmatprep.subr.mxu0 0.0
      %635 = vmatpush1.msra.mxu0 0.0
      %636 = vmatprep.subr.mxu0 0.0
      %637 = vmatpush1.msra.mxu0 0.0
      %638 = vmatprep.subr.mxu0 0.0
      %639 = vmatpush1.msra.mxu0 0.0
      %640 = vmatprep.subr.mxu0 0.0
      %641 = vmatpush1.msra.mxu0 0.0
      %642 = vmatprep.subr.mxu0 0.0
      %643 = vmatpush1.msra.mxu0 0.0
      %644 = vmatprep.subr.mxu0 0.0
      %645 = vmatpush1.msra.mxu0 0.0
      %646 = vmatprep.subr.mxu0 0.0
      %647 = vmatpush1.msra.mxu0 0.0
      %648 = vmatprep.subr.mxu0 0.0
      %649 = vmatpush1.msra.mxu0 0.0
      %650 = vmatprep.subr.mxu0 0.0
      %651 = vmatpush1.msra.mxu0 0.0
      %652 = vmatprep.mubr.f32.mxu0 0.0
      %653 = vmatmul.mubr.f32.gmra.mrb[0].mxu0 %v498
      %v654 = vpop.f32.mrb[0].mxu0
      %v655 = vadd.f32 %v571, %v654
      %v656 = vpop.f32.mrb[0].mxu0
      %v657 = vadd.f32 %v575, %v656
      %658 = vmatprep.mubr.f32.mxu0 0.0
      %659 = vmatmul.mubr.f32.gmra.mrb[0].mxu0 %v499
      %v660 = vpop.f32.mrb[0].mxu0
      %v661 = vadd.f32 %v571, %v660
      %v662 = vpop.f32.mrb[0].mxu0
      %v663 = vadd.f32 %v575, %v662
      %664 = vmatprep.mubr.f32.mxu0 0.0
      %665 = vmatmul.mubr.f32.gmra.mrb[0].mxu0 %v500
      %v666 = vpop.f32.mrb[0].mxu0
      %v667 = vadd.f32 %v571, %v666
      %v668 = vpop.f32.mrb[0].mxu0
      %v669 = vadd.f32 %v575, %v668
      %670 = vmatprep.mubr.f32.mxu0 0.0
      %671 = vmatmul.mubr.f32.gmra.mrb[0].mxu0 %v501
      %v672 = vpop.f32.mrb[0].mxu0
      %v673 = vadd.f32 %v571, %v672
      %v674 = vpop.f32.mrb[0].mxu0
      %v675 = vadd.f32 %v575, %v674
      %676 = vdwg.mxu0
      %677 = vmatprep.subr.mxu0 %v505
      %678 = vmatpush1.msra.mxu0 %v504
      %679 = vmatprep.subr.mxu0 %v509
      %680 = vmatpush1.msra.mxu0 %v508
      %681 = vmatprep.subr.mxu0 %v513
      %682 = vmatpush1.msra.mxu0 %v512
      %683 = vmatprep.subr.mxu0 %v517
      %684 = vmatpush1.msra.mxu0 %v516
      %685 = vmatprep.subr.mxu0 %v521
      %686 = vmatpush1.msra.mxu0 %v520
      %687 = vmatprep.subr.mxu0 %v525
      %688 = vmatpush1.msra.mxu0 %v524
      %689 = vmatprep.subr.mxu0 %v529
      %690 = vmatpush1.msra.mxu0 %v528
      %691 = vmatprep.subr.mxu0 %v533
      %692 = vmatpush1.msra.mxu0 %v532
      %693 = vmatprep.subr.mxu0 %v537
      %694 = vmatpush1.msra.mxu0 %v536
      %695 = vmatprep.subr.mxu0 %v541
      %696 = vmatpush1.msra.mxu0 %v540
      %697 = vmatprep.subr.mxu0 %v545
      %698 = vmatpush1.msra.mxu0 %v544
      %699 = vmatprep.subr.mxu0 %v549
      %700 = vmatpush1.msra.mxu0 %v548
      %701 = vmatprep.subr.mxu0 %v553
      %702 = vmatpush1.msra.mxu0 %v552
      %703 = vmatprep.subr.mxu0 %v557
      %704 = vmatpush1.msra.mxu0 %v556
      %705 = vmatprep.subr.mxu0 %v561
      %706 = vmatpush1.msra.mxu0 %v560
      %707 = vmatprep.subr.mxu0 %v565
      %708 = vmatpush1.msra.mxu0 %v564
      %709 = vmatprep.subr.mxu0 0.0
      %710 = vmatpush1.msra.mxu0 0.0
      %711 = vmatprep.subr.mxu0 0.0
      %712 = vmatpush1.msra.mxu0 0.0
      %713 = vmatprep.subr.mxu0 0.0
      %714 = vmatpush1.msra.mxu0 0.0
      %715 = vmatprep.subr.mxu0 0.0
      %716 = vmatpush1.msra.mxu0 0.0
      %717 = vmatprep.subr.mxu0 0.0
      %718 = vmatpush1.msra.mxu0 0.0
      %719 = vmatprep.subr.mxu0 0.0
      %720 = vmatpush1.msra.mxu0 0.0
      %721 = vmatprep.subr.mxu0 0.0
      %722 = vmatpush1.msra.mxu0 0.0
      %723 = vmatprep.subr.mxu0 0.0
      %724 = vmatpush1.msra.mxu0 0.0
      %725 = vmatprep.subr.mxu0 0.0
      %726 = vmatpush1.msra.mxu0 0.0
      %727 = vmatprep.subr.mxu0 0.0
      %728 = vmatpush1.msra.mxu0 0.0
      %729 = vmatprep.subr.mxu0 0.0
      %730 = vmatpush1.msra.mxu0 0.0
      %731 = vmatprep.subr.mxu0 0.0
      %732 = vmatpush1.msra.mxu0 0.0
      %733 = vmatprep.subr.mxu0 0.0
      %734 = vmatpush1.msra.mxu0 0.0
      %735 = vmatprep.subr.mxu0 0.0
      %736 = vmatpush1.msra.mxu0 0.0
      %737 = vmatprep.subr.mxu0 0.0
      %738 = vmatpush1.msra.mxu0 0.0
      %739 = vmatprep.subr.mxu0 0.0
      %740 = vmatpush1.msra.mxu0 0.0
      %741 = vmatprep.mubr.f32.mxu0 0.0
      %742 = vmatmul.mubr.f32.gmra.mrb[0].mxu0 %v498
      %v743 = vpop.f32.mrb[0].mxu0
      %v744 = vadd.f32 %v579, %v743
      %v745 = vpop.f32.mrb[0].mxu0
      %v746 = vadd.f32 %v583, %v745
      %747 = vmatprep.mubr.f32.mxu0 0.0
      %748 = vmatmul.mubr.f32.gmra.mrb[0].mxu0 %v499
      %v749 = vpop.f32.mrb[0].mxu0
      %v750 = vadd.f32 %v579, %v749
      %v751 = vpop.f32.mrb[0].mxu0
      %v752 = vadd.f32 %v583, %v751
      %753 = vmatprep.mubr.f32.mxu0 0.0
      %754 = vmatmul.mubr.f32.gmra.mrb[0].mxu0 %v500
      %v755 = vpop.f32.mrb[0].mxu0
      %v756 = vadd.f32 %v579, %v755
      %v757 = vpop.f32.mrb[0].mxu0
      %v758 = vadd.f32 %v583, %v757
      %759 = vmatprep.mubr.f32.mxu0 0.0
      %760 = vmatmul.mubr.f32.gmra.mrb[0].mxu0 %v501
      %v761 = vpop.f32.mrb[0].mxu0
      %v762 = vadd.f32 %v579, %v761
      %v763 = vpop.f32.mrb[0].mxu0
      %v764 = vadd.f32 %v583, %v763
      %765 = vdwg.mxu0
      %766 = vst [vmem:[#allocation6] sm:$0xff] %v655
      %767 = vst [vmem:[#allocation6 + $0x8] sm:$0xff] %v657
      %768 = vst [vmem:[#allocation6 + $0x10] sm:$0xff] %v744
      %769 = vst [vmem:[#allocation6 + $0x18] sm:$0xff] %v746
      %770 = vst [vmem:[#allocation6 + $0x20] sm:$0xff] %v661
      %771 = vst [vmem:[#allocation6 + $0x28] sm:$0xff] %v663
      %772 = vst [vmem:[#allocation6 + $0x30] sm:$0xff] %v750
      %773 = vst [vmem:[#allocation6 + $0x38] sm:$0xff] %v752
      %774 = vst [vmem:[#allocation6 + $0x40] sm:$0xff] %v667
      %775 = vst [vmem:[#allocation6 + $0x48] sm:$0xff] %v669
      %776 = vst [vmem:[#allocation6 + $0x50] sm:$0xff] %v756
      %777 = vst [vmem:[#allocation6 + $0x58] sm:$0xff] %v758
      %778 = vst [vmem:[#allocation6 + $0x60] sm:$0xff] %v673
      %779 = vst [vmem:[#allocation6 + $0x68] sm:$0xff] %v675
      %780 = vst [vmem:[#allocation6 + $0x70] sm:$0xff] %v762
      %781 = vst [vmem:[#allocation6 + $0x78] sm:$0xff] %v764
      %v782 = vld [vmem:[#allocation4] sm:$0xff]
      %v783 = vld [vmem:[#allocation5] sm:$0xff]
      %s784 = smul.u32 0, 4
      %s785 = smul.addr %s784, 8
      %s786 = scalar_lea.vmem [#allocation6], %s785
      %v787 = vld [vmem:[%s786] sm:$0xff]
      %v788 = vld [vmem:[%s786 + $0x8] sm:$0xff]
      %v789 = vld [vmem:[%s786 + $0x10] sm:$0xff]
      %v790 = vld [vmem:[%s786 + $0x18] sm:$0xff]
      %v791 = vld [vmem:[#allocation3] sm:$0xff]
      %v792 = vld [vmem:[#allocation3 + $0x8] sm:$0xff]
      %v793 = vld [vmem:[#allocation3 + $0x10] sm:$0xff]
      %v794 = vld [vmem:[#allocation3 + $0x18] sm:$0xff]
      %v795 = vld [vmem:[#allocation3 + $0x20] sm:$0xff]
      %v796 = vld [vmem:[#allocation3 + $0x28] sm:$0xff]
      %v797 = vld [vmem:[#allocation3 + $0x30] sm:$0xff]
      %v798 = vld [vmem:[#allocation3 + $0x38] sm:$0xff]
      %v799 = vld [vmem:[#allocation3 + $0x40] sm:$0xff]
      %v800 = vld [vmem:[#allocation3 + $0x48] sm:$0xff]
      %v801 = vld [vmem:[#allocation3 + $0x50] sm:$0xff]
      %v802 = vld [vmem:[#allocation3 + $0x58] sm:$0xff]
      %v803 = vld [vmem:[#allocation3 + $0x60] sm:$0xff]
      %v804 = vld [vmem:[#allocation3 + $0x68] sm:$0xff]
      %v805 = vld [vmem:[#allocation3 + $0x70] sm:$0xff]
      %v806 = vld [vmem:[#allocation3 + $0x78] sm:$0xff]
      %v807 = vld [vmem:[#allocation3 + $0x80] sm:$0xff]
      %v808 = vld [vmem:[#allocation3 + $0x88] sm:$0xff]
      %v809 = vld [vmem:[#allocation3 + $0x90] sm:$0xff]
      %v810 = vld [vmem:[#allocation3 + $0x98] sm:$0xff]
      %v811 = vld [vmem:[#allocation3 + $0xa0] sm:$0xff]
      %v812 = vld [vmem:[#allocation3 + $0xa8] sm:$0xff]
      %v813 = vld [vmem:[#allocation3 + $0xb0] sm:$0xff]
      %v814 = vld [vmem:[#allocation3 + $0xb8] sm:$0xff]
      %v815 = vld [vmem:[#allocation3 + $0xc0] sm:$0xff]
      %v816 = vld [vmem:[#allocation3 + $0xc8] sm:$0xff]
      %v817 = vld [vmem:[#allocation3 + $0xd0] sm:$0xff]
      %v818 = vld [vmem:[#allocation3 + $0xd8] sm:$0xff]
      %v819 = vld [vmem:[#allocation3 + $0xe0] sm:$0xff]
      %v820 = vld [vmem:[#allocation3 + $0xe8] sm:$0xff]
      %v821 = vld [vmem:[#allocation3 + $0xf0] sm:$0xff]
      %v822 = vld [vmem:[#allocation3 + $0xf8] sm:$0xff]
      %v823 = vld [vmem:[#allocation3 + $0x100] sm:$0xff]
      %v824 = vld [vmem:[#allocation3 + $0x108] sm:$0xff]
      %v825 = vld [vmem:[#allocation3 + $0x110] sm:$0xff]
      %v826 = vld [vmem:[#allocation3 + $0x118] sm:$0xff]
      %v827 = vld [vmem:[#allocation3 + $0x120] sm:$0xff]
      %v828 = vld [vmem:[#allocation3 + $0x128] sm:$0xff]
      %v829 = vld [vmem:[#allocation3 + $0x130] sm:$0xff]
      %v830 = vld [vmem:[#allocation3 + $0x138] sm:$0xff]
      %v831 = vld [vmem:[#allocation3 + $0x140] sm:$0xff]
      %v832 = vld [vmem:[#allocation3 + $0x148] sm:$0xff]
      %v833 = vld [vmem:[#allocation3 + $0x150] sm:$0xff]
      %v834 = vld [vmem:[#allocation3 + $0x158] sm:$0xff]
      %v835 = vld [vmem:[#allocation3 + $0x160] sm:$0xff]
      %v836 = vld [vmem:[#allocation3 + $0x168] sm:$0xff]
      %v837 = vld [vmem:[#allocation3 + $0x170] sm:$0xff]
      %v838 = vld [vmem:[#allocation3 + $0x178] sm:$0xff]
      %v839 = vld [vmem:[#allocation3 + $0x180] sm:$0xff]
      %v840 = vld [vmem:[#allocation3 + $0x188] sm:$0xff]
      %v841 = vld [vmem:[#allocation3 + $0x190] sm:$0xff]
      %v842 = vld [vmem:[#allocation3 + $0x198] sm:$0xff]
      %v843 = vld [vmem:[#allocation3 + $0x1a0] sm:$0xff]
      %v844 = vld [vmem:[#allocation3 + $0x1a8] sm:$0xff]
      %v845 = vld [vmem:[#allocation3 + $0x1b0] sm:$0xff]
      %v846 = vld [vmem:[#allocation3 + $0x1b8] sm:$0xff]
      %v847 = vld [vmem:[#allocation3 + $0x1c0] sm:$0xff]
      %v848 = vld [vmem:[#allocation3 + $0x1c8] sm:$0xff]
      %v849 = vld [vmem:[#allocation3 + $0x1d0] sm:$0xff]
      %v850 = vld [vmem:[#allocation3 + $0x1d8] sm:$0xff]
      %v851 = vld [vmem:[#allocation3 + $0x1e0] sm:$0xff]
      %v852 = vld [vmem:[#allocation3 + $0x1e8] sm:$0xff]
      %v853 = vld [vmem:[#allocation3 + $0x1f0] sm:$0xff]
      %v854 = vld [vmem:[#allocation3 + $0x1f8] sm:$0xff]
      %855 = vmatprep.subr.mxu0 %v792
      %856 = vmatpush1.msra.mxu0 %v791
      %857 = vmatprep.subr.mxu0 %v796
      %858 = vmatpush1.msra.mxu0 %v795
      %859 = vmatprep.subr.mxu0 %v800
      %860 = vmatpush1.msra.mxu0 %v799
      %861 = vmatprep.subr.mxu0 %v804
      %862 = vmatpush1.msra.mxu0 %v803
      %863 = vmatprep.subr.mxu0 %v808
      %864 = vmatpush1.msra.mxu0 %v807
      %865 = vmatprep.subr.mxu0 %v812
      %866 = vmatpush1.msra.mxu0 %v811
      %867 = vmatprep.subr.mxu0 %v816
      %868 = vmatpush1.msra.mxu0 %v815
      %869 = vmatprep.subr.mxu0 %v820
      %870 = vmatpush1.msra.mxu0 %v819
      %871 = vmatprep.subr.mxu0 %v824
      %872 = vmatpush1.msra.mxu0 %v823
      %873 = vmatprep.subr.mxu0 %v828
      %874 = vmatpush1.msra.mxu0 %v827
      %875 = vmatprep.subr.mxu0 %v832
      %876 = vmatpush1.msra.mxu0 %v831
      %877 = vmatprep.subr.mxu0 %v836
      %878 = vmatpush1.msra.mxu0 %v835
      %879 = vmatprep.subr.mxu0 %v840
      %880 = vmatpush1.msra.mxu0 %v839
      %881 = vmatprep.subr.mxu0 %v844
      %882 = vmatpush1.msra.mxu0 %v843
      %883 = vmatprep.subr.mxu0 %v848
      %884 = vmatpush1.msra.mxu0 %v847
      %885 = vmatprep.subr.mxu0 %v852
      %886 = vmatpush1.msra.mxu0 %v851
      %887 = vmatprep.subr.mxu0 0.0
      %888 = vmatpush1.msra.mxu0 0.0
      %889 = vmatprep.subr.mxu0 0.0
      %890 = vmatpush1.msra.mxu0 0.0
      %891 = vmatprep.subr.mxu0 0.0
      %892 = vmatpush1.msra.mxu0 0.0
      %893 = vmatprep.subr.mxu0 0.0
      %894 = vmatpush1.msra.mxu0 0.0
      %895 = vmatprep.subr.mxu0 0.0
      %896 = vmatpush1.msra.mxu0 0.0
      %897 = vmatprep.subr.mxu0 0.0
      %898 = vmatpush1.msra.mxu0 0.0
      %899 = vmatprep.subr.mxu0 0.0
      %900 = vmatpush1.msra.mxu0 0.0
      %901 = vmatprep.subr.mxu0 0.0
      %902 = vmatpush1.msra.mxu0 0.0
      %903 = vmatprep.subr.mxu0 0.0
      %904 = vmatpush1.msra.mxu0 0.0
      %905 = vmatprep.subr.mxu0 0.0
      %906 = vmatpush1.msra.mxu0 0.0
      %907 = vmatprep.subr.mxu0 0.0
      %908 = vmatpush1.msra.mxu0 0.0
      %909 = vmatprep.subr.mxu0 0.0
      %910 = vmatpush1.msra.mxu0 0.0
      %911 = vmatprep.subr.mxu0 0.0
      %912 = vmatpush1.msra.mxu0 0.0
      %913 = vmatprep.subr.mxu0 0.0
      %914 = vmatpush1.msra.mxu0 0.0
      %915 = vmatprep.subr.mxu0 0.0
      %916 = vmatpush1.msra.mxu0 0.0
      %917 = vmatprep.subr.mxu0 0.0
      %918 = vmatpush1.msra.mxu0 0.0
      %919 = vmatprep.mubr.f32.mxu0 0.0
      %920 = vmatmul.mubr.f32.gmra.mrb[0].mxu0 %v782
      %v921 = vpop.f32.mrb[0].mxu0
      %v922 = vadd.f32 0.0, %v921
      %v923 = vpop.f32.mrb[0].mxu0
      %v924 = vadd.f32 0.0, %v923
      %925 = vdwg.mxu0
      %926 = vmatprep.subr.mxu0 %v794
      %927 = vmatpush1.msra.mxu0 %v793
      %928 = vmatprep.subr.mxu0 %v798
      %929 = vmatpush1.msra.mxu0 %v797
      %930 = vmatprep.subr.mxu0 %v802
      %931 = vmatpush1.msra.mxu0 %v801
      %932 = vmatprep.subr.mxu0 %v806
      %933 = vmatpush1.msra.mxu0 %v805
      %934 = vmatprep.subr.mxu0 %v810
      %935 = vmatpush1.msra.mxu0 %v809
      %936 = vmatprep.subr.mxu0 %v814
      %937 = vmatpush1.msra.mxu0 %v813
      %938 = vmatprep.subr.mxu0 %v818
      %939 = vmatpush1.msra.mxu0 %v817
      %940 = vmatprep.subr.mxu0 %v822
      %941 = vmatpush1.msra.mxu0 %v821
      %942 = vmatprep.subr.mxu0 %v826
      %943 = vmatpush1.msra.mxu0 %v825
      %944 = vmatprep.subr.mxu0 %v830
      %945 = vmatpush1.msra.mxu0 %v829
      %946 = vmatprep.subr.mxu0 %v834
      %947 = vmatpush1.msra.mxu0 %v833
      %948 = vmatprep.subr.mxu0 %v838
      %949 = vmatpush1.msra.mxu0 %v837
      %950 = vmatprep.subr.mxu0 %v842
      %951 = vmatpush1.msra.mxu0 %v841
      %952 = vmatprep.subr.mxu0 %v846
      %953 = vmatpush1.msra.mxu0 %v845
      %954 = vmatprep.subr.mxu0 %v850
      %955 = vmatpush1.msra.mxu0 %v849
      %956 = vmatprep.subr.mxu0 %v854
      %957 = vmatpush1.msra.mxu0 %v853
      %958 = vmatprep.subr.mxu0 0.0
      %959 = vmatpush1.msra.mxu0 0.0
      %960 = vmatprep.subr.mxu0 0.0
      %961 = vmatpush1.msra.mxu0 0.0
      %962 = vmatprep.subr.mxu0 0.0
      %963 = vmatpush1.msra.mxu0 0.0
      %964 = vmatprep.subr.mxu0 0.0
      %965 = vmatpush1.msra.mxu0 0.0
      %966 = vmatprep.subr.mxu0 0.0
      %967 = vmatpush1.msra.mxu0 0.0
      %968 = vmatprep.subr.mxu0 0.0
      %969 = vmatpush1.msra.mxu0 0.0
      %970 = vmatprep.subr.mxu0 0.0
      %971 = vmatpush1.msra.mxu0 0.0
      %972 = vmatprep.subr.mxu0 0.0
      %973 = vmatpush1.msra.mxu0 0.0
      %974 = vmatprep.subr.mxu0 0.0
      %975 = vmatpush1.msra.mxu0 0.0
      %976 = vmatprep.subr.mxu0 0.0
      %977 = vmatpush1.msra.mxu0 0.0
      %978 = vmatprep.subr.mxu0 0.0
      %979 = vmatpush1.msra.mxu0 0.0
      %980 = vmatprep.subr.mxu0 0.0
      %981 = vmatpush1.msra.mxu0 0.0
      %982 = vmatprep.subr.mxu0 0.0
      %983 = vmatpush1.msra.mxu0 0.0
      %984 = vmatprep.subr.mxu0 0.0
      %985 = vmatpush1.msra.mxu0 0.0
      %986 = vmatprep.subr.mxu0 0.0
      %987 = vmatpush1.msra.mxu0 0.0
      %988 = vmatprep.subr.mxu0 0.0
      %989 = vmatpush1.msra.mxu0 0.0
      %990 = vmatprep.mubr.f32.mxu0 0.0
      %991 = vmatmul.mubr.f32.gmra.mrb[0].mxu0 %v782
      %v992 = vpop.f32.mrb[0].mxu0
      %v993 = vadd.f32 0.0, %v992
      %v994 = vpop.f32.mrb[0].mxu0
      %v995 = vadd.f32 0.0, %v994
      %996 = vdwg.mxu0
      %v997 = vadd.f32 %v787, %v922
      %v998 = vadd.f32 %v788, %v924
      %v999 = vadd.f32 %v789, %v993
      %v1000 = vadd.f32 %v790, %v995
      %v1001 = vxor.u32 %v997, 2147483648
      %v1002 = vmul.f32 %v1001, 1.442695
      %v1003 = vpow.pop %v1002
      %v1004 = vadd.f32 %v1003, 1.0
      %v1005 = vrcp.pop %v1004
      %v1006 = vmul.f32 1.0, %v1005
      %v1007 = vxor.u32 %v998, 2147483648
      %v1008 = vmul.f32 %v1007, 1.442695
      %v1009 = vpow.pop %v1008
      %v1010 = vadd.f32 %v1009, 1.0
      %v1011 = vrcp.pop %v1010
      %v1012 = vmul.f32 1.0, %v1011
      %v1013 = vtanh.pop %v999
      %v1014 = vxor.u32 %v1000, 2147483648
      %v1015 = vmul.f32 %v1014, 1.442695
      %v1016 = vpow.pop %v1015
      %v1017 = vadd.f32 %v1016, 1.0
      %v1018 = vrcp.pop %v1017
      %v1019 = vmul.f32 1.0, %v1018
      %v1020 = vmul.f32 %v1012, %v783
      %v1021 = vmul.f32 %v1006, %v1013
      %v1022 = vadd.f32 %v1020, %v1021
      %v1023 = vtanh.pop %v1022
      %v1024 = vmul.f32 %v1019, %v1023
      %1025 = vst [vmem:[%s147] sm:$0xff] %v1024
      %s1026 = smul.u32 1, 4
      %s1027 = smul.addr %s1026, 8
      %s1028 = scalar_lea.vmem [#allocation6], %s1027
      %v1029 = vld [vmem:[%s1028] sm:$0xff]
      %v1030 = vld [vmem:[%s1028 + $0x8] sm:$0xff]
      %v1031 = vld [vmem:[%s1028 + $0x10] sm:$0xff]
      %v1032 = vld [vmem:[%s1028 + $0x18] sm:$0xff]
      %v1033 = vld [vmem:[#allocation3] sm:$0xff]
      %v1034 = vld [vmem:[#allocation3 + $0x8] sm:$0xff]
      %v1035 = vld [vmem:[#allocation3 + $0x10] sm:$0xff]
      %v1036 = vld [vmem:[#allocation3 + $0x18] sm:$0xff]
      %v1037 = vld [vmem:[#allocation3 + $0x20] sm:$0xff]
      %v1038 = vld [vmem:[#allocation3 + $0x28] sm:$0xff]
      %v1039 = vld [vmem:[#allocation3 + $0x30] sm:$0xff]
      %v1040 = vld [vmem:[#allocation3 + $0x38] sm:$0xff]
      %v1041 = vld [vmem:[#allocation3 + $0x40] sm:$0xff]
      %v1042 = vld [vmem:[#allocation3 + $0x48] sm:$0xff]
      %v1043 = vld [vmem:[#allocation3 + $0x50] sm:$0xff]
      %v1044 = vld [vmem:[#allocation3 + $0x58] sm:$0xff]
      %v1045 = vld [vmem:[#allocation3 + $0x60] sm:$0xff]
      %v1046 = vld [vmem:[#allocation3 + $0x68] sm:$0xff]
      %v1047 = vld [vmem:[#allocation3 + $0x70] sm:$0xff]
      %v1048 = vld [vmem:[#allocation3 + $0x78] sm:$0xff]
      %v1049 = vld [vmem:[#allocation3 + $0x80] sm:$0xff]
      %v1050 = vld [vmem:[#allocation3 + $0x88] sm:$0xff]
      %v1051 = vld [vmem:[#allocation3 + $0x90] sm:$0xff]
      %v1052 = vld [vmem:[#allocation3 + $0x98] sm:$0xff]
      %v1053 = vld [vmem:[#allocation3 + $0xa0] sm:$0xff]
      %v1054 = vld [vmem:[#allocation3 + $0xa8] sm:$0xff]
      %v1055 = vld [vmem:[#allocation3 + $0xb0] sm:$0xff]
      %v1056 = vld [vmem:[#allocation3 + $0xb8] sm:$0xff]
      %v1057 = vld [vmem:[#allocation3 + $0xc0] sm:$0xff]
      %v1058 = vld [vmem:[#allocation3 + $0xc8] sm:$0xff]
      %v1059 = vld [vmem:[#allocation3 + $0xd0] sm:$0xff]
      %v1060 = vld [vmem:[#allocation3 + $0xd8] sm:$0xff]
      %v1061 = vld [vmem:[#allocation3 + $0xe0] sm:$0xff]
      %v1062 = vld [vmem:[#allocation3 + $0xe8] sm:$0xff]
      %v1063 = vld [vmem:[#allocation3 + $0xf0] sm:$0xff]
      %v1064 = vld [vmem:[#allocation3 + $0xf8] sm:$0xff]
      %v1065 = vld [vmem:[#allocation3 + $0x100] sm:$0xff]
      %v1066 = vld [vmem:[#allocation3 + $0x108] sm:$0xff]
      %v1067 = vld [vmem:[#allocation3 + $0x110] sm:$0xff]
      %v1068 = vld [vmem:[#allocation3 + $0x118] sm:$0xff]
      %v1069 = vld [vmem:[#allocation3 + $0x120] sm:$0xff]
      %v1070 = vld [vmem:[#allocation3 + $0x128] sm:$0xff]
      %v1071 = vld [vmem:[#allocation3 + $0x130] sm:$0xff]
      %v1072 = vld [vmem:[#allocation3 + $0x138] sm:$0xff]
      %v1073 = vld [vmem:[#allocation3 + $0x140] sm:$0xff]
      %v1074 = vld [vmem:[#allocation3 + $0x148] sm:$0xff]
      %v1075 = vld [vmem:[#allocation3 + $0x150] sm:$0xff]
      %v1076 = vld [vmem:[#allocation3 + $0x158] sm:$0xff]
      %v1077 = vld [vmem:[#allocation3 + $0x160] sm:$0xff]
      %v1078 = vld [vmem:[#allocation3 + $0x168] sm:$0xff]
      %v1079 = vld [vmem:[#allocation3 + $0x170] sm:$0xff]
      %v1080 = vld [vmem:[#allocation3 + $0x178] sm:$0xff]
      %v1081 = vld [vmem:[#allocation3 + $0x180] sm:$0xff]
      %v1082 = vld [vmem:[#allocation3 + $0x188] sm:$0xff]
      %v1083 = vld [vmem:[#allocation3 + $0x190] sm:$0xff]
      %v1084 = vld [vmem:[#allocation3 + $0x198] sm:$0xff]
      %v1085 = vld [vmem:[#allocation3 + $0x1a0] sm:$0xff]
      %v1086 = vld [vmem:[#allocation3 + $0x1a8] sm:$0xff]
      %v1087 = vld [vmem:[#allocation3 + $0x1b0] sm:$0xff]
      %v1088 = vld [vmem:[#allocation3 + $0x1b8] sm:$0xff]
      %v1089 = vld [vmem:[#allocation3 + $0x1c0] sm:$0xff]
      %v1090 = vld [vmem:[#allocation3 + $0x1c8] sm:$0xff]
      %v1091 = vld [vmem:[#allocation3 + $0x1d0] sm:$0xff]
      %v1092 = vld [vmem:[#allocation3 + $0x1d8] sm:$0xff]
      %v1093 = vld [vmem:[#allocation3 + $0x1e0] sm:$0xff]
      %v1094 = vld [vmem:[#allocation3 + $0x1e8] sm:$0xff]
      %v1095 = vld [vmem:[#allocation3 + $0x1f0] sm:$0xff]
      %v1096 = vld [vmem:[#allocation3 + $0x1f8] sm:$0xff]
      %1097 = vmatprep.subr.mxu0 %v1034
      %1098 = vmatpush1.msra.mxu0 %v1033
      %1099 = vmatprep.subr.mxu0 %v1038
      %1100 = vmatpush1.msra.mxu0 %v1037
      %1101 = vmatprep.subr.mxu0 %v1042
      %1102 = vmatpush1.msra.mxu0 %v1041
      %1103 = vmatprep.subr.mxu0 %v1046
      %1104 = vmatpush1.msra.mxu0 %v1045
      %1105 = vmatprep.subr.mxu0 %v1050
      %1106 = vmatpush1.msra.mxu0 %v1049
      %1107 = vmatprep.subr.mxu0 %v1054
      %1108 = vmatpush1.msra.mxu0 %v1053
      %1109 = vmatprep.subr.mxu0 %v1058
      %1110 = vmatpush1.msra.mxu0 %v1057
      %1111 = vmatprep.subr.mxu0 %v1062
      %1112 = vmatpush1.msra.mxu0 %v1061
      %1113 = vmatprep.subr.mxu0 %v1066
      %1114 = vmatpush1.msra.mxu0 %v1065
      %1115 = vmatprep.subr.mxu0 %v1070
      %1116 = vmatpush1.msra.mxu0 %v1069
      %1117 = vmatprep.subr.mxu0 %v1074
      %1118 = vmatpush1.msra.mxu0 %v1073
      %1119 = vmatprep.subr.mxu0 %v1078
      %1120 = vmatpush1.msra.mxu0 %v1077
      %1121 = vmatprep.subr.mxu0 %v1082
      %1122 = vmatpush1.msra.mxu0 %v1081
      %1123 = vmatprep.subr.mxu0 %v1086
      %1124 = vmatpush1.msra.mxu0 %v1085
      %1125 = vmatprep.subr.mxu0 %v1090
      %1126 = vmatpush1.msra.mxu0 %v1089
      %1127 = vmatprep.subr.mxu0 %v1094
      %1128 = vmatpush1.msra.mxu0 %v1093
      %1129 = vmatprep.subr.mxu0 0.0
      %1130 = vmatpush1.msra.mxu0 0.0
      %1131 = vmatprep.subr.mxu0 0.0
      %1132 = vmatpush1.msra.mxu0 0.0
      %1133 = vmatprep.subr.mxu0 0.0
      %1134 = vmatpush1.msra.mxu0 0.0
      %1135 = vmatprep.subr.mxu0 0.0
      %1136 = vmatpush1.msra.mxu0 0.0
      %1137 = vmatprep.subr.mxu0 0.0
      %1138 = vmatpush1.msra.mxu0 0.0
      %1139 = vmatprep.subr.mxu0 0.0
      %1140 = vmatpush1.msra.mxu0 0.0
      %1141 = vmatprep.subr.mxu0 0.0
      %1142 = vmatpush1.msra.mxu0 0.0
      %1143 = vmatprep.subr.mxu0 0.0
      %1144 = vmatpush1.msra.mxu0 0.0
      %1145 = vmatprep.subr.mxu0 0.0
      %1146 = vmatpush1.msra.mxu0 0.0
      %1147 = vmatprep.subr.mxu0 0.0
      %1148 = vmatpush1.msra.mxu0 0.0
      %1149 = vmatprep.subr.mxu0 0.0
      %1150 = vmatpush1.msra.mxu0 0.0
      %1151 = vmatprep.subr.mxu0 0.0
      %1152 = vmatpush1.msra.mxu0 0.0
      %1153 = vmatprep.subr.mxu0 0.0
      %1154 = vmatpush1.msra.mxu0 0.0
      %1155 = vmatprep.subr.mxu0 0.0
      %1156 = vmatpush1.msra.mxu0 0.0
      %1157 = vmatprep.subr.mxu0 0.0
      %1158 = vmatpush1.msra.mxu0 0.0
      %1159 = vmatprep.subr.mxu0 0.0
      %1160 = vmatpush1.msra.mxu0 0.0
      %1161 = vmatprep.mubr.f32.mxu0 0.0
      %1162 = vmatmul.mubr.f32.gmra.mrb[0].mxu0 %v1024
      %v1163 = vpop.f32.mrb[0].mxu0
      %v1164 = vadd.f32 0.0, %v1163
      %v1165 = vpop.f32.mrb[0].mxu0
      %v1166 = vadd.f32 0.0, %v1165
      %1167 = vdwg.mxu0
      %1168 = vmatprep.subr.mxu0 %v1036
      %1169 = vmatpush1.msra.mxu0 %v1035
      %1170 = vmatprep.subr.mxu0 %v1040
      %1171 = vmatpush1.msra.mxu0 %v1039
      %1172 = vmatprep.subr.mxu0 %v1044
      %1173 = vmatpush1.msra.mxu0 %v1043
      %1174 = vmatprep.subr.mxu0 %v1048
      %1175 = vmatpush1.msra.mxu0 %v1047
      %1176 = vmatprep.subr.mxu0 %v1052
      %1177 = vmatpush1.msra.mxu0 %v1051
      %1178 = vmatprep.subr.mxu0 %v1056
      %1179 = vmatpush1.msra.mxu0 %v1055
      %1180 = vmatprep.subr.mxu0 %v1060
      %1181 = vmatpush1.msra.mxu0 %v1059
      %1182 = vmatprep.subr.mxu0 %v1064
      %1183 = vmatpush1.msra.mxu0 %v1063
      %1184 = vmatprep.subr.mxu0 %v1068
      %1185 = vmatpush1.msra.mxu0 %v1067
      %1186 = vmatprep.subr.mxu0 %v1072
      %1187 = vmatpush1.msra.mxu0 %v1071
      %1188 = vmatprep.subr.mxu0 %v1076
      %1189 = vmatpush1.msra.mxu0 %v1075
      %1190 = vmatprep.subr.mxu0 %v1080
      %1191 = vmatpush1.msra.mxu0 %v1079
      %1192 = vmatprep.subr.mxu0 %v1084
      %1193 = vmatpush1.msra.mxu0 %v1083
      %1194 = vmatprep.subr.mxu0 %v1088
      %1195 = vmatpush1.msra.mxu0 %v1087
      %1196 = vmatprep.subr.mxu0 %v1092
      %1197 = vmatpush1.msra.mxu0 %v1091
      %1198 = vmatprep.subr.mxu0 %v1096
      %1199 = vmatpush1.msra.mxu0 %v1095
      %1200 = vmatprep.subr.mxu0 0.0
      %1201 = vmatpush1.msra.mxu0 0.0
      %1202 = vmatprep.subr.mxu0 0.0
      %1203 = vmatpush1.msra.mxu0 0.0
      %1204 = vmatprep.subr.mxu0 0.0
      %1205 = vmatpush1.msra.mxu0 0.0
      %1206 = vmatprep.subr.mxu0 0.0
      %1207 = vmatpush1.msra.mxu0 0.0
      %1208 = vmatprep.subr.mxu0 0.0
      %1209 = vmatpush1.msra.mxu0 0.0
      %1210 = vmatprep.subr.mxu0 0.0
      %1211 = vmatpush1.msra.mxu0 0.0
      %1212 = vmatprep.subr.mxu0 0.0
      %1213 = vmatpush1.msra.mxu0 0.0
      %1214 = vmatprep.subr.mxu0 0.0
      %1215 = vmatpush1.msra.mxu0 0.0
      %1216 = vmatprep.subr.mxu0 0.0
      %1217 = vmatpush1.msra.mxu0 0.0
      %1218 = vmatprep.subr.mxu0 0.0
      %1219 = vmatpush1.msra.mxu0 0.0
      %1220 = vmatprep.subr.mxu0 0.0
      %1221 = vmatpush1.msra.mxu0 0.0
      %1222 = vmatprep.subr.mxu0 0.0
      %1223 = vmatpush1.msra.mxu0 0.0
      %1224 = vmatprep.subr.mxu0 0.0
      %1225 = vmatpush1.msra.mxu0 0.0
      %1226 = vmatprep.subr.mxu0 0.0
      %1227 = vmatpush1.msra.mxu0 0.0
      %1228 = vmatprep.subr.mxu0 0.0
      %1229 = vmatpush1.msra.mxu0 0.0
      %1230 = vmatprep.subr.mxu0 0.0
      %1231 = vmatpush1.msra.mxu0 0.0
      %1232 = vmatprep.mubr.f32.mxu0 0.0
      %1233 = vmatmul.mubr.f32.gmra.mrb[0].mxu0 %v1024
      %v1234 = vpop.f32.mrb[0].mxu0
      %v1235 = vadd.f32 0.0, %v1234
      %v1236 = vpop.f32.mrb[0].mxu0
      %v1237 = vadd.f32 0.0, %v1236
      %1238 = vdwg.mxu0
      %v1239 = vadd.f32 %v1029, %v1164
      %v1240 = vadd.f32 %v1030, %v1166
      %v1241 = vadd.f32 %v1031, %v1235
      %v1242 = vadd.f32 %v1032, %v1237
      %v1243 = vxor.u32 %v1239, 2147483648
      %v1244 = vmul.f32 %v1243, 1.442695
      %v1245 = vpow.pop %v1244
      %v1246 = vadd.f32 %v1245, 1.0
      %v1247 = vrcp.pop %v1246
      %v1248 = vmul.f32 1.0, %v1247
      %v1249 = vxor.u32 %v1240, 2147483648
      %v1250 = vmul.f32 %v1249, 1.442695
      %v1251 = vpow.pop %v1250
      %v1252 = vadd.f32 %v1251, 1.0
      %v1253 = vrcp.pop %v1252
      %v1254 = vmul.f32 1.0, %v1253
      %v1255 = vtanh.pop %v1241
      %v1256 = vxor.u32 %v1242, 2147483648
      %v1257 = vmul.f32 %v1256, 1.442695
      %v1258 = vpow.pop %v1257
      %v1259 = vadd.f32 %v1258, 1.0
      %v1260 = vrcp.pop %v1259
      %v1261 = vmul.f32 1.0, %v1260
      %v1262 = vmul.f32 %v1254, %v1022
      %v1263 = vmul.f32 %v1248, %v1255
      %v1264 = vadd.f32 %v1262, %v1263
      %v1265 = vtanh.pop %v1264
      %v1266 = vmul.f32 %v1261, %v1265
      %s1267 = scalar_lea.vmem %s147, 8
      %1268 = vst [vmem:[%s1267] sm:$0xff] %v1266
      %s1269 = smul.u32 2, 4
      %s1270 = smul.addr %s1269, 8
      %s1271 = scalar_lea.vmem [#allocation6], %s1270
      %v1272 = vld [vmem:[%s1271] sm:$0xff]
      %v1273 = vld [vmem:[%s1271 + $0x8] sm:$0xff]
      %v1274 = vld [vmem:[%s1271 + $0x10] sm:$0xff]
      %v1275 = vld [vmem:[%s1271 + $0x18] sm:$0xff]
      %v1276 = vld [vmem:[#allocation3] sm:$0xff]
      %v1277 = vld [vmem:[#allocation3 + $0x8] sm:$0xff]
      %v1278 = vld [vmem:[#allocation3 + $0x10] sm:$0xff]
      %v1279 = vld [vmem:[#allocation3 + $0x18] sm:$0xff]
      %v1280 = vld [vmem:[#allocation3 + $0x20] sm:$0xff]
      %v1281 = vld [vmem:[#allocation3 + $0x28] sm:$0xff]
      %v1282 = vld [vmem:[#allocation3 + $0x30] sm:$0xff]
      %v1283 = vld [vmem:[#allocation3 + $0x38] sm:$0xff]
      %v1284 = vld [vmem:[#allocation3 + $0x40] sm:$0xff]
      %v1285 = vld [vmem:[#allocation3 + $0x48] sm:$0xff]
      %v1286 = vld [vmem:[#allocation3 + $0x50] sm:$0xff]
      %v1287 = vld [vmem:[#allocation3 + $0x58] sm:$0xff]
      %v1288 = vld [vmem:[#allocation3 + $0x60] sm:$0xff]
      %v1289 = vld [vmem:[#allocation3 + $0x68] sm:$0xff]
      %v1290 = vld [vmem:[#allocation3 + $0x70] sm:$0xff]
      %v1291 = vld [vmem:[#allocation3 + $0x78] sm:$0xff]
      %v1292 = vld [vmem:[#allocation3 + $0x80] sm:$0xff]
      %v1293 = vld [vmem:[#allocation3 + $0x88] sm:$0xff]
      %v1294 = vld [vmem:[#allocation3 + $0x90] sm:$0xff]
      %v1295 = vld [vmem:[#allocation3 + $0x98] sm:$0xff]
      %v1296 = vld [vmem:[#allocation3 + $0xa0] sm:$0xff]
      %v1297 = vld [vmem:[#allocation3 + $0xa8] sm:$0xff]
      %v1298 = vld [vmem:[#allocation3 + $0xb0] sm:$0xff]
      %v1299 = vld [vmem:[#allocation3 + $0xb8] sm:$0xff]
      %v1300 = vld [vmem:[#allocation3 + $0xc0] sm:$0xff]
      %v1301 = vld [vmem:[#allocation3 + $0xc8] sm:$0xff]
      %v1302 = vld [vmem:[#allocation3 + $0xd0] sm:$0xff]
      %v1303 = vld [vmem:[#allocation3 + $0xd8] sm:$0xff]
      %v1304 = vld [vmem:[#allocation3 + $0xe0] sm:$0xff]
      %v1305 = vld [vmem:[#allocation3 + $0xe8] sm:$0xff]
      %v1306 = vld [vmem:[#allocation3 + $0xf0] sm:$0xff]
      %v1307 = vld [vmem:[#allocation3 + $0xf8] sm:$0xff]
      %v1308 = vld [vmem:[#allocation3 + $0x100] sm:$0xff]
      %v1309 = vld [vmem:[#allocation3 + $0x108] sm:$0xff]
      %v1310 = vld [vmem:[#allocation3 + $0x110] sm:$0xff]
      %v1311 = vld [vmem:[#allocation3 + $0x118] sm:$0xff]
      %v1312 = vld [vmem:[#allocation3 + $0x120] sm:$0xff]
      %v1313 = vld [vmem:[#allocation3 + $0x128] sm:$0xff]
      %v1314 = vld [vmem:[#allocation3 + $0x130] sm:$0xff]
      %v1315 = vld [vmem:[#allocation3 + $0x138] sm:$0xff]
      %v1316 = vld [vmem:[#allocation3 + $0x140] sm:$0xff]
      %v1317 = vld [vmem:[#allocation3 + $0x148] sm:$0xff]
      %v1318 = vld [vmem:[#allocation3 + $0x150] sm:$0xff]
      %v1319 = vld [vmem:[#allocation3 + $0x158] sm:$0xff]
      %v1320 = vld [vmem:[#allocation3 + $0x160] sm:$0xff]
      %v1321 = vld [vmem:[#allocation3 + $0x168] sm:$0xff]
      %v1322 = vld [vmem:[#allocation3 + $0x170] sm:$0xff]
      %v1323 = vld [vmem:[#allocation3 + $0x178] sm:$0xff]
      %v1324 = vld [vmem:[#allocation3 + $0x180] sm:$0xff]
      %v1325 = vld [vmem:[#allocation3 + $0x188] sm:$0xff]
      %v1326 = vld [vmem:[#allocation3 + $0x190] sm:$0xff]
      %v1327 = vld [vmem:[#allocation3 + $0x198] sm:$0xff]
      %v1328 = vld [vmem:[#allocation3 + $0x1a0] sm:$0xff]
      %v1329 = vld [vmem:[#allocation3 + $0x1a8] sm:$0xff]
      %v1330 = vld [vmem:[#allocation3 + $0x1b0] sm:$0xff]
      %v1331 = vld [vmem:[#allocation3 + $0x1b8] sm:$0xff]
      %v1332 = vld [vmem:[#allocation3 + $0x1c0] sm:$0xff]
      %v1333 = vld [vmem:[#allocation3 + $0x1c8] sm:$0xff]
      %v1334 = vld [vmem:[#allocation3 + $0x1d0] sm:$0xff]
      %v1335 = vld [vmem:[#allocation3 + $0x1d8] sm:$0xff]
      %v1336 = vld [vmem:[#allocation3 + $0x1e0] sm:$0xff]
      %v1337 = vld [vmem:[#allocation3 + $0x1e8] sm:$0xff]
      %v1338 = vld [vmem:[#allocation3 + $0x1f0] sm:$0xff]
      %v1339 = vld [vmem:[#allocation3 + $0x1f8] sm:$0xff]
      %1340 = vmatprep.subr.mxu0 %v1277
      %1341 = vmatpush1.msra.mxu0 %v1276
      %1342 = vmatprep.subr.mxu0 %v1281
      %1343 = vmatpush1.msra.mxu0 %v1280
      %1344 = vmatprep.subr.mxu0 %v1285
      %1345 = vmatpush1.msra.mxu0 %v1284
      %1346 = vmatprep.subr.mxu0 %v1289
      %1347 = vmatpush1.msra.mxu0 %v1288
      %1348 = vmatprep.subr.mxu0 %v1293
      %1349 = vmatpush1.msra.mxu0 %v1292
      %1350 = vmatprep.subr.mxu0 %v1297
      %1351 = vmatpush1.msra.mxu0 %v1296
      %1352 = vmatprep.subr.mxu0 %v1301
      %1353 = vmatpush1.msra.mxu0 %v1300
      %1354 = vmatprep.subr.mxu0 %v1305
      %1355 = vmatpush1.msra.mxu0 %v1304
      %1356 = vmatprep.subr.mxu0 %v1309
      %1357 = vmatpush1.msra.mxu0 %v1308
      %1358 = vmatprep.subr.mxu0 %v1313
      %1359 = vmatpush1.msra.mxu0 %v1312
      %1360 = vmatprep.subr.mxu0 %v1317
      %1361 = vmatpush1.msra.mxu0 %v1316
      %1362 = vmatprep.subr.mxu0 %v1321
      %1363 = vmatpush1.msra.mxu0 %v1320
      %1364 = vmatprep.subr.mxu0 %v1325
      %1365 = vmatpush1.msra.mxu0 %v1324
      %1366 = vmatprep.subr.mxu0 %v1329
      %1367 = vmatpush1.msra.mxu0 %v1328
      %1368 = vmatprep.subr.mxu0 %v1333
      %1369 = vmatpush1.msra.mxu0 %v1332
      %1370 = vmatprep.subr.mxu0 %v1337
      %1371 = vmatpush1.msra.mxu0 %v1336
      %1372 = vmatprep.subr.mxu0 0.0
      %1373 = vmatpush1.msra.mxu0 0.0
      %1374 = vmatprep.subr.mxu0 0.0
      %1375 = vmatpush1.msra.mxu0 0.0
      %1376 = vmatprep.subr.mxu0 0.0
      %1377 = vmatpush1.msra.mxu0 0.0
      %1378 = vmatprep.subr.mxu0 0.0
      %1379 = vmatpush1.msra.mxu0 0.0
      %1380 = vmatprep.subr.mxu0 0.0
      %1381 = vmatpush1.msra.mxu0 0.0
      %1382 = vmatprep.subr.mxu0 0.0
      %1383 = vmatpush1.msra.mxu0 0.0
      %1384 = vmatprep.subr.mxu0 0.0
      %1385 = vmatpush1.msra.mxu0 0.0
      %1386 = vmatprep.subr.mxu0 0.0
      %1387 = vmatpush1.msra.mxu0 0.0
      %1388 = vmatprep.subr.mxu0 0.0
      %1389 = vmatpush1.msra.mxu0 0.0
      %1390 = vmatprep.subr.mxu0 0.0
      %1391 = vmatpush1.msra.mxu0 0.0
      %1392 = vmatprep.subr.mxu0 0.0
      %1393 = vmatpush1.msra.mxu0 0.0
      %1394 = vmatprep.subr.mxu0 0.0
      %1395 = vmatpush1.msra.mxu0 0.0
      %1396 = vmatprep.subr.mxu0 0.0
      %1397 = vmatpush1.msra.mxu0 0.0
      %1398 = vmatprep.subr.mxu0 0.0
      %1399 = vmatpush1.msra.mxu0 0.0
      %1400 = vmatprep.subr.mxu0 0.0
      %1401 = vmatpush1.msra.mxu0 0.0
      %1402 = vmatprep.subr.mxu0 0.0
      %1403 = vmatpush1.msra.mxu0 0.0
      %1404 = vmatprep.mubr.f32.mxu0 0.0
      %1405 = vmatmul.mubr.f32.gmra.mrb[0].mxu0 %v1266
      %v1406 = vpop.f32.mrb[0].mxu0
      %v1407 = vadd.f32 0.0, %v1406
      %v1408 = vpop.f32.mrb[0].mxu0
      %v1409 = vadd.f32 0.0, %v1408
      %1410 = vdwg.mxu0
      %1411 = vmatprep.subr.mxu0 %v1279
      %1412 = vmatpush1.msra.mxu0 %v1278
      %1413 = vmatprep.subr.mxu0 %v1283
      %1414 = vmatpush1.msra.mxu0 %v1282
      %1415 = vmatprep.subr.mxu0 %v1287
      %1416 = vmatpush1.msra.mxu0 %v1286
      %1417 = vmatprep.subr.mxu0 %v1291
      %1418 = vmatpush1.msra.mxu0 %v1290
      %1419 = vmatprep.subr.mxu0 %v1295
      %1420 = vmatpush1.msra.mxu0 %v1294
      %1421 = vmatprep.subr.mxu0 %v1299
      %1422 = vmatpush1.msra.mxu0 %v1298
      %1423 = vmatprep.subr.mxu0 %v1303
      %1424 = vmatpush1.msra.mxu0 %v1302
      %1425 = vmatprep.subr.mxu0 %v1307
      %1426 = vmatpush1.msra.mxu0 %v1306
      %1427 = vmatprep.subr.mxu0 %v1311
      %1428 = vmatpush1.msra.mxu0 %v1310
      %1429 = vmatprep.subr.mxu0 %v1315
      %1430 = vmatpush1.msra.mxu0 %v1314
      %1431 = vmatprep.subr.mxu0 %v1319
      %1432 = vmatpush1.msra.mxu0 %v1318
      %1433 = vmatprep.subr.mxu0 %v1323
      %1434 = vmatpush1.msra.mxu0 %v1322
      %1435 = vmatprep.subr.mxu0 %v1327
      %1436 = vmatpush1.msra.mxu0 %v1326
      %1437 = vmatprep.subr.mxu0 %v1331
      %1438 = vmatpush1.msra.mxu0 %v1330
      %1439 = vmatprep.subr.mxu0 %v1335
      %1440 = vmatpush1.msra.mxu0 %v1334
      %1441 = vmatprep.subr.mxu0 %v1339
      %1442 = vmatpush1.msra.mxu0 %v1338
      %1443 = vmatprep.subr.mxu0 0.0
      %1444 = vmatpush1.msra.mxu0 0.0
      %1445 = vmatprep.subr.mxu0 0.0
      %1446 = vmatpush1.msra.mxu0 0.0
      %1447 = vmatprep.subr.mxu0 0.0
      %1448 = vmatpush1.msra.mxu0 0.0
      %1449 = vmatprep.subr.mxu0 0.0
      %1450 = vmatpush1.msra.mxu0 0.0
      %1451 = vmatprep.subr.mxu0 0.0
      %1452 = vmatpush1.msra.mxu0 0.0
      %1453 = vmatprep.subr.mxu0 0.0
      %1454 = vmatpush1.msra.mxu0 0.0
      %1455 = vmatprep.subr.mxu0 0.0
      %1456 = vmatpush1.msra.mxu0 0.0
      %1457 = vmatprep.subr.mxu0 0.0
      %1458 = vmatpush1.msra.mxu0 0.0
      %1459 = vmatprep.subr.mxu0 0.0
      %1460 = vmatpush1.msra.mxu0 0.0
      %1461 = vmatprep.subr.mxu0 0.0
      %1462 = vmatpush1.msra.mxu0 0.0
      %1463 = vmatprep.subr.mxu0 0.0
      %1464 = vmatpush1.msra.mxu0 0.0
      %1465 = vmatprep.subr.mxu0 0.0
      %1466 = vmatpush1.msra.mxu0 0.0
      %1467 = vmatprep.subr.mxu0 0.0
      %1468 = vmatpush1.msra.mxu0 0.0
      %1469 = vmatprep.subr.mxu0 0.0
      %1470 = vmatpush1.msra.mxu0 0.0
      %1471 = vmatprep.subr.mxu0 0.0
      %1472 = vmatpush1.msra.mxu0 0.0
      %1473 = vmatprep.subr.mxu0 0.0
      %1474 = vmatpush1.msra.mxu0 0.0
      %1475 = vmatprep.mubr.f32.mxu0 0.0
      %1476 = vmatmul.mubr.f32.gmra.mrb[0].mxu0 %v1266
      %v1477 = vpop.f32.mrb[0].mxu0
      %v1478 = vadd.f32 0.0, %v1477
      %v1479 = vpop.f32.mrb[0].mxu0
      %v1480 = vadd.f32 0.0, %v1479
      %1481 = vdwg.mxu0
      %v1482 = vadd.f32 %v1272, %v1407
      %v1483 = vadd.f32 %v1273, %v1409
      %v1484 = vadd.f32 %v1274, %v1478
      %v1485 = vadd.f32 %v1275, %v1480
      %v1486 = vxor.u32 %v1482, 2147483648
      %v1487 = vmul.f32 %v1486, 1.442695
      %v1488 = vpow.pop %v1487
      %v1489 = vadd.f32 %v1488, 1.0
      %v1490 = vrcp.pop %v1489
      %v1491 = vmul.f32 1.0, %v1490
      %v1492 = vxor.u32 %v1483, 2147483648
      %v1493 = vmul.f32 %v1492, 1.442695
      %v1494 = vpow.pop %v1493
      %v1495 = vadd.f32 %v1494, 1.0
      %v1496 = vrcp.pop %v1495
      %v1497 = vmul.f32 1.0, %v1496
      %v1498 = vtanh.pop %v1484
      %v1499 = vxor.u32 %v1485, 2147483648
      %v1500 = vmul.f32 %v1499, 1.442695
      %v1501 = vpow.pop %v1500
      %v1502 = vadd.f32 %v1501, 1.0
      %v1503 = vrcp.pop %v1502
      %v1504 = vmul.f32 1.0, %v1503
      %v1505 = vmul.f32 %v1497, %v1264
      %v1506 = vmul.f32 %v1491, %v1498
      %v1507 = vadd.f32 %v1505, %v1506
      %v1508 = vtanh.pop %v1507
      %v1509 = vmul.f32 %v1504, %v1508
      %s1510 = scalar_lea.vmem %s147, 16
      %1511 = vst [vmem:[%s1510] sm:$0xff] %v1509
      %s1512 = smul.u32 3, 4
      %s1513 = smul.addr %s1512, 8
      %s1514 = scalar_lea.vmem [#allocation6], %s1513
      %v1515 = vld [vmem:[%s1514] sm:$0xff]
      %v1516 = vld [vmem:[%s1514 + $0x8] sm:$0xff]
      %v1517 = vld [vmem:[%s1514 + $0x10] sm:$0xff]
      %v1518 = vld [vmem:[%s1514 + $0x18] sm:$0xff]
      %v1519 = vld [vmem:[#allocation3] sm:$0xff]
      %v1520 = vld [vmem:[#allocation3 + $0x8] sm:$0xff]
      %v1521 = vld [vmem:[#allocation3 + $0x10] sm:$0xff]
      %v1522 = vld [vmem:[#allocation3 + $0x18] sm:$0xff]
      %v1523 = vld [vmem:[#allocation3 + $0x20] sm:$0xff]
      %v1524 = vld [vmem:[#allocation3 + $0x28] sm:$0xff]
      %v1525 = vld [vmem:[#allocation3 + $0x30] sm:$0xff]
      %v1526 = vld [vmem:[#allocation3 + $0x38] sm:$0xff]
      %v1527 = vld [vmem:[#allocation3 + $0x40] sm:$0xff]
      %v1528 = vld [vmem:[#allocation3 + $0x48] sm:$0xff]
      %v1529 = vld [vmem:[#allocation3 + $0x50] sm:$0xff]
      %v1530 = vld [vmem:[#allocation3 + $0x58] sm:$0xff]
      %v1531 = vld [vmem:[#allocation3 + $0x60] sm:$0xff]
      %v1532 = vld [vmem:[#allocation3 + $0x68] sm:$0xff]
      %v1533 = vld [vmem:[#allocation3 + $0x70] sm:$0xff]
      %v1534 = vld [vmem:[#allocation3 + $0x78] sm:$0xff]
      %v1535 = vld [vmem:[#allocation3 + $0x80] sm:$0xff]
      %v1536 = vld [vmem:[#allocation3 + $0x88] sm:$0xff]
      %v1537 = vld [vmem:[#allocation3 + $0x90] sm:$0xff]
      %v1538 = vld [vmem:[#allocation3 + $0x98] sm:$0xff]
      %v1539 = vld [vmem:[#allocation3 + $0xa0] sm:$0xff]
      %v1540 = vld [vmem:[#allocation3 + $0xa8] sm:$0xff]
      %v1541 = vld [vmem:[#allocation3 + $0xb0] sm:$0xff]
      %v1542 = vld [vmem:[#allocation3 + $0xb8] sm:$0xff]
      %v1543 = vld [vmem:[#allocation3 + $0xc0] sm:$0xff]
      %v1544 = vld [vmem:[#allocation3 + $0xc8] sm:$0xff]
      %v1545 = vld [vmem:[#allocation3 + $0xd0] sm:$0xff]
      %v1546 = vld [vmem:[#allocation3 + $0xd8] sm:$0xff]
      %v1547 = vld [vmem:[#allocation3 + $0xe0] sm:$0xff]
      %v1548 = vld [vmem:[#allocation3 + $0xe8] sm:$0xff]
      %v1549 = vld [vmem:[#allocation3 + $0xf0] sm:$0xff]
      %v1550 = vld [vmem:[#allocation3 + $0xf8] sm:$0xff]
      %v1551 = vld [vmem:[#allocation3 + $0x100] sm:$0xff]
      %v1552 = vld [vmem:[#allocation3 + $0x108] sm:$0xff]
      %v1553 = vld [vmem:[#allocation3 + $0x110] sm:$0xff]
      %v1554 = vld [vmem:[#allocation3 + $0x118] sm:$0xff]
      %v1555 = vld [vmem:[#allocation3 + $0x120] sm:$0xff]
      %v1556 = vld [vmem:[#allocation3 + $0x128] sm:$0xff]
      %v1557 = vld [vmem:[#allocation3 + $0x130] sm:$0xff]
      %v1558 = vld [vmem:[#allocation3 + $0x138] sm:$0xff]
      %v1559 = vld [vmem:[#allocation3 + $0x140] sm:$0xff]
      %v1560 = vld [vmem:[#allocation3 + $0x148] sm:$0xff]
      %v1561 = vld [vmem:[#allocation3 + $0x150] sm:$0xff]
      %v1562 = vld [vmem:[#allocation3 + $0x158] sm:$0xff]
      %v1563 = vld [vmem:[#allocation3 + $0x160] sm:$0xff]
      %v1564 = vld [vmem:[#allocation3 + $0x168] sm:$0xff]
      %v1565 = vld [vmem:[#allocation3 + $0x170] sm:$0xff]
      %v1566 = vld [vmem:[#allocation3 + $0x178] sm:$0xff]
      %v1567 = vld [vmem:[#allocation3 + $0x180] sm:$0xff]
      %v1568 = vld [vmem:[#allocation3 + $0x188] sm:$0xff]
      %v1569 = vld [vmem:[#allocation3 + $0x190] sm:$0xff]
      %v1570 = vld [vmem:[#allocation3 + $0x198] sm:$0xff]
      %v1571 = vld [vmem:[#allocation3 + $0x1a0] sm:$0xff]
      %v1572 = vld [vmem:[#allocation3 + $0x1a8] sm:$0xff]
      %v1573 = vld [vmem:[#allocation3 + $0x1b0] sm:$0xff]
      %v1574 = vld [vmem:[#allocation3 + $0x1b8] sm:$0xff]
      %v1575 = vld [vmem:[#allocation3 + $0x1c0] sm:$0xff]
      %v1576 = vld [vmem:[#allocation3 + $0x1c8] sm:$0xff]
      %v1577 = vld [vmem:[#allocation3 + $0x1d0] sm:$0xff]
      %v1578 = vld [vmem:[#allocation3 + $0x1d8] sm:$0xff]
      %v1579 = vld [vmem:[#allocation3 + $0x1e0] sm:$0xff]
      %v1580 = vld [vmem:[#allocation3 + $0x1e8] sm:$0xff]
      %v1581 = vld [vmem:[#allocation3 + $0x1f0] sm:$0xff]
      %v1582 = vld [vmem:[#allocation3 + $0x1f8] sm:$0xff]
      %1583 = vmatprep.subr.mxu0 %v1520
      %1584 = vmatpush1.msra.mxu0 %v1519
      %1585 = vmatprep.subr.mxu0 %v1524
      %1586 = vmatpush1.msra.mxu0 %v1523
      %1587 = vmatprep.subr.mxu0 %v1528
      %1588 = vmatpush1.msra.mxu0 %v1527
      %1589 = vmatprep.subr.mxu0 %v1532
      %1590 = vmatpush1.msra.mxu0 %v1531
      %1591 = vmatprep.subr.mxu0 %v1536
      %1592 = vmatpush1.msra.mxu0 %v1535
      %1593 = vmatprep.subr.mxu0 %v1540
      %1594 = vmatpush1.msra.mxu0 %v1539
      %1595 = vmatprep.subr.mxu0 %v1544
      %1596 = vmatpush1.msra.mxu0 %v1543
      %1597 = vmatprep.subr.mxu0 %v1548
      %1598 = vmatpush1.msra.mxu0 %v1547
      %1599 = vmatprep.subr.mxu0 %v1552
      %1600 = vmatpush1.msra.mxu0 %v1551
      %1601 = vmatprep.subr.mxu0 %v1556
      %1602 = vmatpush1.msra.mxu0 %v1555
      %1603 = vmatprep.subr.mxu0 %v1560
      %1604 = vmatpush1.msra.mxu0 %v1559
      %1605 = vmatprep.subr.mxu0 %v1564
      %1606 = vmatpush1.msra.mxu0 %v1563
      %1607 = vmatprep.subr.mxu0 %v1568
      %1608 = vmatpush1.msra.mxu0 %v1567
      %1609 = vmatprep.subr.mxu0 %v1572
      %1610 = vmatpush1.msra.mxu0 %v1571
      %1611 = vmatprep.subr.mxu0 %v1576
      %1612 = vmatpush1.msra.mxu0 %v1575
      %1613 = vmatprep.subr.mxu0 %v1580
      %1614 = vmatpush1.msra.mxu0 %v1579
      %1615 = vmatprep.subr.mxu0 0.0
      %1616 = vmatpush1.msra.mxu0 0.0
      %1617 = vmatprep.subr.mxu0 0.0
      %1618 = vmatpush1.msra.mxu0 0.0
      %1619 = vmatprep.subr.mxu0 0.0
      %1620 = vmatpush1.msra.mxu0 0.0
      %1621 = vmatprep.subr.mxu0 0.0
      %1622 = vmatpush1.msra.mxu0 0.0
      %1623 = vmatprep.subr.mxu0 0.0
      %1624 = vmatpush1.msra.mxu0 0.0
      %1625 = vmatprep.subr.mxu0 0.0
      %1626 = vmatpush1.msra.mxu0 0.0
      %1627 = vmatprep.subr.mxu0 0.0
      %1628 = vmatpush1.msra.mxu0 0.0
      %1629 = vmatprep.subr.mxu0 0.0
      %1630 = vmatpush1.msra.mxu0 0.0
      %1631 = vmatprep.subr.mxu0 0.0
      %1632 = vmatpush1.msra.mxu0 0.0
      %1633 = vmatprep.subr.mxu0 0.0
      %1634 = vmatpush1.msra.mxu0 0.0
      %1635 = vmatprep.subr.mxu0 0.0
      %1636 = vmatpush1.msra.mxu0 0.0
      %1637 = vmatprep.subr.mxu0 0.0
      %1638 = vmatpush1.msra.mxu0 0.0
      %1639 = vmatprep.subr.mxu0 0.0
      %1640 = vmatpush1.msra.mxu0 0.0
      %1641 = vmatprep.subr.mxu0 0.0
      %1642 = vmatpush1.msra.mxu0 0.0
      %1643 = vmatprep.subr.mxu0 0.0
      %1644 = vmatpush1.msra.mxu0 0.0
      %1645 = vmatprep.subr.mxu0 0.0
      %1646 = vmatpush1.msra.mxu0 0.0
      %1647 = vmatprep.mubr.f32.mxu0 0.0
      %1648 = vmatmul.mubr.f32.gmra.mrb[0].mxu0 %v1509
      %v1649 = vpop.f32.mrb[0].mxu0
      %v1650 = vadd.f32 0.0, %v1649
      %v1651 = vpop.f32.mrb[0].mxu0
      %v1652 = vadd.f32 0.0, %v1651
      %1653 = vdwg.mxu0
      %1654 = vmatprep.subr.mxu0 %v1522
      %1655 = vmatpush1.msra.mxu0 %v1521
      %1656 = vmatprep.subr.mxu0 %v1526
      %1657 = vmatpush1.msra.mxu0 %v1525
      %1658 = vmatprep.subr.mxu0 %v1530
      %1659 = vmatpush1.msra.mxu0 %v1529
      %1660 = vmatprep.subr.mxu0 %v1534
      %1661 = vmatpush1.msra.mxu0 %v1533
      %1662 = vmatprep.subr.mxu0 %v1538
      %1663 = vmatpush1.msra.mxu0 %v1537
      %1664 = vmatprep.subr.mxu0 %v1542
      %1665 = vmatpush1.msra.mxu0 %v1541
      %1666 = vmatprep.subr.mxu0 %v1546
      %1667 = vmatpush1.msra.mxu0 %v1545
      %1668 = vmatprep.subr.mxu0 %v1550
      %1669 = vmatpush1.msra.mxu0 %v1549
      %1670 = vmatprep.subr.mxu0 %v1554
      %1671 = vmatpush1.msra.mxu0 %v1553
      %1672 = vmatprep.subr.mxu0 %v1558
      %1673 = vmatpush1.msra.mxu0 %v1557
      %1674 = vmatprep.subr.mxu0 %v1562
      %1675 = vmatpush1.msra.mxu0 %v1561
      %1676 = vmatprep.subr.mxu0 %v1566
      %1677 = vmatpush1.msra.mxu0 %v1565
      %1678 = vmatprep.subr.mxu0 %v1570
      %1679 = vmatpush1.msra.mxu0 %v1569
      %1680 = vmatprep.subr.mxu0 %v1574
      %1681 = vmatpush1.msra.mxu0 %v1573
      %1682 = vmatprep.subr.mxu0 %v1578
      %1683 = vmatpush1.msra.mxu0 %v1577
      %1684 = vmatprep.subr.mxu0 %v1582
      %1685 = vmatpush1.msra.mxu0 %v1581
      %1686 = vmatprep.subr.mxu0 0.0
      %1687 = vmatpush1.msra.mxu0 0.0
      %1688 = vmatprep.subr.mxu0 0.0
      %1689 = vmatpush1.msra.mxu0 0.0
      %1690 = vmatprep.subr.mxu0 0.0
      %1691 = vmatpush1.msra.mxu0 0.0
      %1692 = vmatprep.subr.mxu0 0.0
      %1693 = vmatpush1.msra.mxu0 0.0
      %1694 = vmatprep.subr.mxu0 0.0
      %1695 = vmatpush1.msra.mxu0 0.0
      %1696 = vmatprep.subr.mxu0 0.0
      %1697 = vmatpush1.msra.mxu0 0.0
      %1698 = vmatprep.subr.mxu0 0.0
      %1699 = vmatpush1.msra.mxu0 0.0
      %1700 = vmatprep.subr.mxu0 0.0
      %1701 = vmatpush1.msra.mxu0 0.0
      %1702 = vmatprep.subr.mxu0 0.0
      %1703 = vmatpush1.msra.mxu0 0.0
      %1704 = vmatprep.subr.mxu0 0.0
      %1705 = vmatpush1.msra.mxu0 0.0
      %1706 = vmatprep.subr.mxu0 0.0
      %1707 = vmatpush1.msra.mxu0 0.0
      %1708 = vmatprep.subr.mxu0 0.0
      %1709 = vmatpush1.msra.mxu0 0.0
      %1710 = vmatprep.subr.mxu0 0.0
      %1711 = vmatpush1.msra.mxu0 0.0
      %1712 = vmatprep.subr.mxu0 0.0
      %1713 = vmatpush1.msra.mxu0 0.0
      %1714 = vmatprep.subr.mxu0 0.0
      %1715 = vmatpush1.msra.mxu0 0.0
      %1716 = vmatprep.subr.mxu0 0.0
      %1717 = vmatpush1.msra.mxu0 0.0
      %1718 = vmatprep.mubr.f32.mxu0 0.0
      %1719 = vmatmul.mubr.f32.gmra.mrb[0].mxu0 %v1509
      %v1720 = vpop.f32.mrb[0].mxu0
      %v1721 = vadd.f32 0.0, %v1720
      %v1722 = vpop.f32.mrb[0].mxu0
      %v1723 = vadd.f32 0.0, %v1722
      %1724 = vdwg.mxu0
      %v1725 = vadd.f32 %v1515, %v1650
      %v1726 = vadd.f32 %v1516, %v1652
      %v1727 = vadd.f32 %v1517, %v1721
      %v1728 = vadd.f32 %v1518, %v1723
      %v1729 = vxor.u32 %v1725, 2147483648
      %v1730 = vmul.f32 %v1729, 1.442695
      %v1731 = vpow.pop %v1730
      %v1732 = vadd.f32 %v1731, 1.0
      %v1733 = vrcp.pop %v1732
      %v1734 = vmul.f32 1.0, %v1733
      %v1735 = vxor.u32 %v1726, 2147483648
      %v1736 = vmul.f32 %v1735, 1.442695
      %v1737 = vpow.pop %v1736
      %v1738 = vadd.f32 %v1737, 1.0
      %v1739 = vrcp.pop %v1738
      %v1740 = vmul.f32 1.0, %v1739
      %v1741 = vtanh.pop %v1727
      %v1742 = vxor.u32 %v1728, 2147483648
      %v1743 = vmul.f32 %v1742, 1.442695
      %v1744 = vpow.pop %v1743
      %v1745 = vadd.f32 %v1744, 1.0
      %v1746 = vrcp.pop %v1745
      %v1747 = vmul.f32 1.0, %v1746
      %v1748 = vmul.f32 %v1740, %v1507
      %v1749 = vmul.f32 %v1734, %v1741
      %v1750 = vadd.f32 %v1748, %v1749
      %v1751 = vtanh.pop %v1750
      %v1752 = vmul.f32 %v1747, %v1751
      %s1753 = scalar_lea.vmem %s147, 24
      %1754 = vst [vmem:[%s1753] sm:$0xff] %v1752
      %1755 = vst [vmem:[#allocation4] sm:$0xff] %v1752
      %1756 = vst [vmem:[#allocation5] sm:$0xff] %v1750
      %s1757 = smul.u32 4, %s15
      %p1758 = scmp.lt.s32.totalorder %s1757, 7
      %s1759 = scalar_select %p1758, %s1757, 7
      %s1760 = smul.addr %s1759, 8
      %s1761 = scalar_lea.vmem %s4, %s1760
      // Predicated region
      $region101: #{language_model_forward.6} parent=27 // pred_check
        %p1762 = pneg %p80
      $region102: #{language_model_forward.6} parent=27 // pred_check_branch
        %1764 = sbr.rel (%p1762) target = $region104
      $region103: #{language_model_forward.6} parent=27 // pred_region
        %s1765 = smul.u32 4, %s15
      $region104: #{language_model_forward.6} parent=27 // pred_fallthru
        _
    $region28: #{language_model_forward.6} parent=5 // pred_fallthru
      _
    %p1766 = scmp.le.s32.totalorder 2, %s10
    // Predicated region
    $region105: #{language_model_forward.6} parent=5 // pred_check
      %p1767 = pneg %p1766
    $region106: #{language_model_forward.6} parent=5 // pred_check_branch
      %1769 = sbr.rel (%p1767) target = $region108
    $region107: #{language_model_forward.6} parent=5 // pred_region
      %s1770 = ssub.s32 %s10, 2
      // Predicated region
      $region109: #{language_model_forward.6} parent=107 // pred_check
        %p1771 = pneg %p86
      $region110: #{language_model_forward.6} parent=107 // pred_check_branch
        %1773 = sbr.rel (%p1771) target = $region112
      $region111: #{language_model_forward.6} parent=107 // pred_region
        %s1774 = smul.u32 4, %s16
        %p1775 = scmp.lt.s32.totalorder %s1774, 7
        %s1776 = scalar_select %p1775, %s1774, 7
        %s1777 = smul.addr %s1776, 8
        %s1778 = scalar_lea.vmem %s4, %s1777
      $region112: #{language_model_forward.6} parent=107 // pred_fallthru
        _
    $region108: #{language_model_forward.6} parent=5 // pred_fallthru
      _
  $region6: #{language_model_forward.6} parent=0 // loop_footer
    %s14 = sadd.s32 1, %s10
  $region7: #{language_model_forward.6} parent=0 // loop_footer_branch
    %9 = sbr.rel target = $region3
  $region8: #{language_model_forward.6} parent=0 // loop_exit
    _
  %1779 = vsyncmov [#allocation7]
  %s1780 = vpop.sfrf %1779
  %p1781 = scmp.eq.s32.totalorder %s1780, 0
  %p1782 = pneg %p1781
  %1784 = shalt.err (%p1782)
  %s1785 = scalar_lea.sflag [#allocation7], 1
  %1786 = vsyncmov %s1785
  %s1787 = vpop.sfrf %1786
  %p1788 = scmp.eq.s32.totalorder %s1787, 0
  %p1789 = pneg %p1788
  %1791 = shalt.err (%p1789)

// kernel: language_model_forward.5
$region0: #{language_model_forward.5}
  #allocation0 [shape = 'u32[]', space=smem, size = 0x4, offset = 0x4, fixed_abs, tag = 'smem constant byte address 0x4 - core index']
  #allocation1 [shape = 'u32[144,128]{1,0:T(1,128)}', space=vmem, size = 0x12000, scoped, tag = 'internal scratch']
  #allocation2 [shape = 'f32[128,512]{1,0:T(8,128)}', space=vmem, size = 0x40000, scoped, tag = 'scratch operand']
  #allocation3 [shape = 'f32[128,512]{1,0:T(8,128)}', space=vmem, size = 0x40000, scoped, tag = 'scratch operand']
  #allocation4 [shape = 'f32[8,128]{1,0:T(8,128)}', space=vmem, size = 0x1000, scoped, tag = 'scratch operand']
  #allocation5 [shape = 'f32[8,128]{1,0:T(8,128)}', space=vmem, size = 0x1000, scoped, tag = 'scratch operand']
  #allocation6 [shape = 'f32[32,512]{1,0:T(8,128)}', space=vmem, size = 0x10000, scoped, tag = 'scratch operand']
  #allocation7 [shape = 's32[2]{0}', space=sflag, size = 0x8, scoped, tag = 'scratch operand']
  #allocation8 [shape = 's32[]', space=sflag, size = 0x4, offset = 0, fixed_abs, tag = 'sflag constant byte address 0x0 - dummy sync flag']
  #allocation9 [shape = 's32[]', space=sflag, size = 0x4, offset = 0, fixed_abs, tag = 'sflag constant byte address 0x0 - dummy sync flag']
  #allocation10 [shape = 'u32[]', space=smem, size = 0x4, offset = 0x44, fixed_abs, tag = 'smem constant byte address 0x44 - assertion arg 0']
  #allocation11 [shape = 'u32[]', space=smem, size = 0x4, offset = 0x48, fixed_abs, tag = 'smem constant byte address 0x48 - assertion arg 1']
  #allocation12 [shape = 's32[]', space=sflag, size = 0x4, offset = 0, fixed_abs, tag = 'sflag constant byte address 0x0 - dummy sync flag']
  #allocation13 [shape = 's32[]', space=sflag, size = 0x4, offset = 0, fixed_abs, tag = 'sflag constant byte address 0x0 - dummy sync flag']
  %s0 = inlined_call_operand.vmem [shape: f32[64,128], index: 0, kind: input, shape index: {}]
  %s1 = inlined_call_operand.hbm [shape: f32[128,512], index: 1, kind: input, shape index: {}]
  %s2 = inlined_call_operand.hbm [shape: f32[128,512], index: 2, kind: input, shape index: {}]
  %s3 = inlined_call_operand.vmem [shape: f32[1,512], index: 3, kind: input, shape index: {}]
  %s4 = inlined_call_operand.vmem [shape: f32[64,128], index: 4, kind: output, shape index: {}]
  %s5 = sld [smem:[#allocation0]]
  $region53: #{language_model_forward.5} parent=0
    _
  %s7 = ssub.s32 1, %s5
  %s8 = scalar_select 0, %s7, %s5
  loop: start=0, step=1, limit=4
  $region2: #{language_model_forward.5} parent=0 // loop_pre_header
    _
  $region3: #{language_model_forward.5} parent=0 // loop_header
    %s10 = sphi 0, %s14
    %p11 = scmp.ge.s32.totalorder %s10, 4
    %s20 = sphi 0, %s22
    %s23 = sphi 0, %s20
    %s24 = sphi 0, %s23
    %s40 = sphi 0, %s24
    %s44 = sphi 0, %s44
    %s46 = sphi 0, %s44
    %s47 = sphi 0, %s46
    %s61 = sphi 0, %s47
    %s67 = sphi 0, %s69
    %s70 = sphi 0, %s67
    %s71 = sphi 0, %s70
    %s87 = sphi 0, %s71
  $region4: #{language_model_forward.5} parent=0 // loop_header_branch
    %13 = sbr.rel (%p11) target = $region8
  $region5: #{language_model_forward.5} parent=0 // loop_body
    %s15 = ssub.s32 %s10, 1
    %s16 = ssub.s32 %s10, 2
    %s17 = sadd.s32 %s10, 1
    %s18 = ssub.s32 %s10, %s17
    %p19 = scmp.eq.s32.totalorder %s18, 0
    %s21 = sadd.s32 %s20, 1
    %s22 = scalar_select %p19, %s20, %s21
    %p25 = pneg %p19
    %p26 = scmp.eq.s32.totalorder %s10, 1
    %p27 = por %p25, %p26
    %p28 = scmp.ne.s32.totalorder %s20, %s23
    %p29 = scmp.eq.s32.totalorder %s10, 0
    %p30 = por %p28, %p29
    %p31 = scmp.ne.s32.totalorder %s20, %s23
    %p32 = scmp.eq.s32.totalorder %s15, 1
    %p33 = por %p31, %p32
    %p34 = scmp.ne.s32.totalorder %s23, %s24
    %p35 = scmp.eq.s32.totalorder %s15, 0
    %p36 = por %p34, %p35
    %p37 = scmp.ne.s32.totalorder %s23, %s24
    %p38 = scmp.eq.s32.totalorder %s16, 1
    %p39 = por %p37, %p38
    %p41 = scmp.ne.s32.totalorder %s24, %s40
    %p42 = scmp.eq.s32.totalorder %s16, 0
    %p43 = por %p41, %p42
    %s45 = sadd.s32 %s44, 1
    %p48 = scmp.eq.s32.totalorder %s10, 1
    %p49 = scmp.ne.s32.totalorder %s44, %s46
    %p50 = scmp.eq.s32.totalorder %s10, 0
    %p51 = por %p49, %p50
    %p52 = scmp.ne.s32.totalorder %s44, %s46
    %p53 = scmp.eq.s32.totalorder %s15, 1
    %p54 = por %p52, %p53
    %p55 = scmp.ne.s32.totalorder %s46, %s47
    %p56 = scmp.eq.s32.totalorder %s15, 0
    %p57 = por %p55, %p56
    %p58 = scmp.ne.s32.totalorder %s46, %s47
    %p59 = scmp.eq.s32.totalorder %s16, 1
    %p60 = por %p58, %p59
    %p62 = scmp.ne.s32.totalorder %s47, %s61
    %p63 = scmp.eq.s32.totalorder %s16, 0
    %p64 = por %p62, %p63
    %s65 = ssub.s32 %s10, %s17
    %p66 = scmp.eq.s32.totalorder %s65, 0
    %s68 = sadd.s32 %s67, 1
    %s69 = scalar_select %p66, %s67, %s68
    %p72 = pneg %p66
    %p73 = scmp.eq.s32.totalorder %s10, 1
    %p74 = por %p72, %p73
    %p75 = scmp.ne.s32.totalorder %s67, %s70
    %p76 = scmp.eq.s32.totalorder %s10, 0
    %p77 = por %p75, %p76
    %p78 = scmp.ne.s32.totalorder %s67, %s70
    %p79 = scmp.eq.s32.totalorder %s15, 1
    %p80 = por %p78, %p79
    %p81 = scmp.ne.s32.totalorder %s70, %s71
    %p82 = scmp.eq.s32.totalorder %s15, 0
    %p83 = por %p81, %p82
    %p84 = scmp.ne.s32.totalorder %s70, %s71
    %p85 = scmp.eq.s32.totalorder %s16, 1
    %p86 = por %p84, %p85
    %p88 = scmp.ne.s32.totalorder %s71, %s87
    %p89 = scmp.eq.s32.totalorder %s16, 0
    %p90 = por %p88, %p89
    %p91 = scmp.le.s32.totalorder 1, %s10
    %p92 = scmp.lt.s32.totalorder %s10, 3
    %p93 = pnand %p91, %p92
    %p94 = pneg %p93
    // Predicated region
    $region9: #{language_model_forward.5} parent=5 // pred_check
      _
    $region10: #{language_model_forward.5} parent=5 // pred_check_branch
      %96 = sbr.rel (%p93) target = $region12
    $region11: #{language_model_forward.5} parent=5 // pred_region
      %s97 = ssub.s32 %s10, 1
      // Predicated region
      $region13: #{language_model_forward.5} parent=11 // pred_check
        %p98 = pneg %p57
      $region14: #{language_model_forward.5} parent=11 // pred_check_branch
        %100 = sbr.rel (%p98) target = $region16
      $region15: #{language_model_forward.5} parent=11 // pred_region
        _
      $region16: #{language_model_forward.5} parent=11 // pred_fallthru
        _
    $region12: #{language_model_forward.5} parent=5 // pred_fallthru
      _
    %p101 = scmp.lt.s32.totalorder %s10, 2
    // Predicated region
    $region17: #{language_model_forward.5} parent=5 // pred_check
      %p102 = pneg %p101
    $region18: #{language_model_forward.5} parent=5 // pred_check_branch
      %104 = sbr.rel (%p102) target = $region20
    $region19: #{language_model_forward.5} parent=5 // pred_region
      // Predicated region
      $region21: #{language_model_forward.5} parent=19 // pred_check
        %p105 = pneg %p30
      $region22: #{language_model_forward.5} parent=19 // pred_check_branch
        %107 = sbr.rel (%p105) target = $region24
      $region23: #{language_model_forward.5} parent=19 // pred_region
        %s108 = smul.u32 4, %s10
        %p109 = scmp.lt.s32.totalorder %s108, 7
        %s110 = scalar_select %p109, %s108, 7
        %s111 = smul.addr %s110, 8
        %s112 = scalar_lea.vmem %s0, %s111
        %s113 = smul.u32 4, %s10
      $region24: #{language_model_forward.5} parent=19 // pred_fallthru
        _
    $region20: #{language_model_forward.5} parent=5 // pred_fallthru
      _
    %p114 = scmp.le.s32.totalorder 1, %s10
    %p115 = scmp.lt.s32.totalorder %s10, 3
    %p116 = pnand %p114, %p115
    %p117 = pneg %p116
    // Predicated region
    $region25: #{language_model_forward.5} parent=5 // pred_check
      _
    $region26: #{language_model_forward.5} parent=5 // pred_check_branch
      %119 = sbr.rel (%p116) target = $region28
    $region27: #{language_model_forward.5} parent=5 // pred_region
      %s120 = ssub.s32 %s10, 1
      %s121 = smul.u32 4, %s15
      %p122 = scmp.lt.s32.totalorder %s121, 7
      %s123 = scalar_select %p122, %s121, 7
      %s124 = smul.addr %s123, 8
      %s125 = scalar_lea.vmem %s0, %s124
      %p126 = pneg %p36
      %p127 = pneg %p33
      %p128 = pneg %p57
      %p129 = pneg %p54
      %p130 = pneg %p83
      %p131 = pneg %p80
      %s132 = smul.u32 4, %s15
      %p133 = scmp.lt.s32.totalorder %s132, 7
      %s134 = scalar_select %p133, %s132, 7
      %s135 = smul.addr %s134, 8
      %s136 = scalar_lea.vmem %s4, %s135
      %s137 = smul.u32 4, %s15
      %p138 = scmp.lt.s32.totalorder %s137, 7
      %s139 = scalar_select %p138, %s137, 7
      %s140 = smul.addr %s139, 8
      %s141 = scalar_lea.vmem %s0, %s140
      %s142 = smul.u32 4, %s15
      %s143 = smul.u32 4, %s15
      %p144 = scmp.lt.s32.totalorder %s143, 7
      %s145 = scalar_select %p144, %s143, 7
      %s146 = smul.addr %s145, 8
      %s147 = scalar_lea.vmem %s4, %s146
      %s148 = smul.u32 4, %s15
      %p149 = scmp.eq.s32.totalorder %s15, 0
      // Predicated region
      $region29: #{language_model_forward.5} parent=27 // pred_check
        %p150 = pneg %p149
      $region30: #{language_model_forward.5} parent=27 // pred_check_branch
        %152 = sbr.rel (%p150) target = $region32
      $region31: #{language_model_forward.5} parent=27 // pred_region
        %153 = vst [vmem:[#allocation4] sm:$0xff] 0.0
        %154 = vst [vmem:[#allocation5] sm:$0xff] 0.0
        // Predicated region
        $region33: #{language_model_forward.5} parent=31 // pred_check
          _
        $region34: #{language_model_forward.5} parent=31 // pred_check_branch
          %156 = sbr.rel target = $region36
        $region35: #{language_model_forward.5} parent=31 // pred_region
          %157 = sst [smem:[#allocation10]] [#allocation9]
          %158 = sst [smem:[#allocation11]] [#allocation8]
        $region36: #{language_model_forward.5} parent=31 // pred_fallthru
          _
        %160 = shalt.err (0)
        %s162 = sshll.u32 [#allocation2], 4
        %s163 = int_to_ptr.vmem [resolvable:$true] %s162
        %165 = dma.hbm_to_vmem [thread:$0]  %s1, 8192, %s163, [#allocation7]
        %s166 = scalar_lea.sflag [#allocation7], 1
        // Predicated region
        $region37: #{language_model_forward.5} parent=31 // pred_check
          _
        $region38: #{language_model_forward.5} parent=31 // pred_check_branch
          %168 = sbr.rel target = $region40
        $region39: #{language_model_forward.5} parent=31 // pred_region
          %169 = sst [smem:[#allocation10]] [#allocation13]
          %170 = sst [smem:[#allocation11]] [#allocation12]
        $region40: #{language_model_forward.5} parent=31 // pred_fallthru
          _
        %172 = shalt.err (0)
        %s174 = sshll.u32 [#allocation3], 4
        %s175 = int_to_ptr.vmem [resolvable:$true] %s174
        %177 = dma.hbm_to_vmem [thread:$0]  %s2, 8192, %s175, %s166
        %s178 = smul.u32 8, 16
        %s179 = smul.u32 %s178, 4
        %s180 = sshll.u32 %s179, 4
        %181 = dma.done [#allocation7], %s180
        %s182 = sshll.u32 %s179, 4
        %183 = dma.done %s166, %s182
      $region32: #{language_model_forward.5} parent=27 // pred_fallthru
        _
      %v184 = vld [vmem:[%s141] sm:$0xff]
      %v185 = vld [vmem:[%s141 + $0x8] sm:$0xff]
      %v186 = vld [vmem:[%s141 + $0x10] sm:$0xff]
      %v187 = vld [vmem:[%s141 + $0x18] sm:$0xff]
      %v188 = vld [vmem:[#allocation2] sm:$0xff]
      %v189 = vld [vmem:[#allocation2 + $0x8] sm:$0xff]
      %v190 = vld [vmem:[#allocation2 + $0x10] sm:$0xff]
      %v191 = vld [vmem:[#allocation2 + $0x18] sm:$0xff]
      %v192 = vld [vmem:[#allocation2 + $0x20] sm:$0xff]
      %v193 = vld [vmem:[#allocation2 + $0x28] sm:$0xff]
      %v194 = vld [vmem:[#allocation2 + $0x30] sm:$0xff]
      %v195 = vld [vmem:[#allocation2 + $0x38] sm:$0xff]
      %v196 = vld [vmem:[#allocation2 + $0x40] sm:$0xff]
      %v197 = vld [vmem:[#allocation2 + $0x48] sm:$0xff]
      %v198 = vld [vmem:[#allocation2 + $0x50] sm:$0xff]
      %v199 = vld [vmem:[#allocation2 + $0x58] sm:$0xff]
      %v200 = vld [vmem:[#allocation2 + $0x60] sm:$0xff]
      %v201 = vld [vmem:[#allocation2 + $0x68] sm:$0xff]
      %v202 = vld [vmem:[#allocation2 + $0x70] sm:$0xff]
      %v203 = vld [vmem:[#allocation2 + $0x78] sm:$0xff]
      %v204 = vld [vmem:[#allocation2 + $0x80] sm:$0xff]
      %v205 = vld [vmem:[#allocation2 + $0x88] sm:$0xff]
      %v206 = vld [vmem:[#allocation2 + $0x90] sm:$0xff]
      %v207 = vld [vmem:[#allocation2 + $0x98] sm:$0xff]
      %v208 = vld [vmem:[#allocation2 + $0xa0] sm:$0xff]
      %v209 = vld [vmem:[#allocation2 + $0xa8] sm:$0xff]
      %v210 = vld [vmem:[#allocation2 + $0xb0] sm:$0xff]
      %v211 = vld [vmem:[#allocation2 + $0xb8] sm:$0xff]
      %v212 = vld [vmem:[#allocation2 + $0xc0] sm:$0xff]
      %v213 = vld [vmem:[#allocation2 + $0xc8] sm:$0xff]
      %v214 = vld [vmem:[#allocation2 + $0xd0] sm:$0xff]
      %v215 = vld [vmem:[#allocation2 + $0xd8] sm:$0xff]
      %v216 = vld [vmem:[#allocation2 + $0xe0] sm:$0xff]
      %v217 = vld [vmem:[#allocation2 + $0xe8] sm:$0xff]
      %v218 = vld [vmem:[#allocation2 + $0xf0] sm:$0xff]
      %v219 = vld [vmem:[#allocation2 + $0xf8] sm:$0xff]
      %v220 = vld [vmem:[#allocation2 + $0x100] sm:$0xff]
      %v221 = vld [vmem:[#allocation2 + $0x108] sm:$0xff]
      %v222 = vld [vmem:[#allocation2 + $0x110] sm:$0xff]
      %v223 = vld [vmem:[#allocation2 + $0x118] sm:$0xff]
      %v224 = vld [vmem:[#allocation2 + $0x120] sm:$0xff]
      %v225 = vld [vmem:[#allocation2 + $0x128] sm:$0xff]
      %v226 = vld [vmem:[#allocation2 + $0x130] sm:$0xff]
      %v227 = vld [vmem:[#allocation2 + $0x138] sm:$0xff]
      %v228 = vld [vmem:[#allocation2 + $0x140] sm:$0xff]
      %v229 = vld [vmem:[#allocation2 + $0x148] sm:$0xff]
      %v230 = vld [vmem:[#allocation2 + $0x150] sm:$0xff]
      %v231 = vld [vmem:[#allocation2 + $0x158] sm:$0xff]
      %v232 = vld [vmem:[#allocation2 + $0x160] sm:$0xff]
      %v233 = vld [vmem:[#allocation2 + $0x168] sm:$0xff]
      %v234 = vld [vmem:[#allocation2 + $0x170] sm:$0xff]
      %v235 = vld [vmem:[#allocation2 + $0x178] sm:$0xff]
      %v236 = vld [vmem:[#allocation2 + $0x180] sm:$0xff]
      %v237 = vld [vmem:[#allocation2 + $0x188] sm:$0xff]
      %v238 = vld [vmem:[#allocation2 + $0x190] sm:$0xff]
      %v239 = vld [vmem:[#allocation2 + $0x198] sm:$0xff]
      %v240 = vld [vmem:[#allocation2 + $0x1a0] sm:$0xff]
      %v241 = vld [vmem:[#allocation2 + $0x1a8] sm:$0xff]
      %v242 = vld [vmem:[#allocation2 + $0x1b0] sm:$0xff]
      %v243 = vld [vmem:[#allocation2 + $0x1b8] sm:$0xff]
      %v244 = vld [vmem:[#allocation2 + $0x1c0] sm:$0xff]
      %v245 = vld [vmem:[#allocation2 + $0x1c8] sm:$0xff]
      %v246 = vld [vmem:[#allocation2 + $0x1d0] sm:$0xff]
      %v247 = vld [vmem:[#allocation2 + $0x1d8] sm:$0xff]
      %v248 = vld [vmem:[#allocation2 + $0x1e0] sm:$0xff]
      %v249 = vld [vmem:[#allocation2 + $0x1e8] sm:$0xff]
      %v250 = vld [vmem:[#allocation2 + $0x1f0] sm:$0xff]
      %v251 = vld [vmem:[#allocation2 + $0x1f8] sm:$0xff]
      %v252 = vld [vmem:[%s3] sm:$0xf]
      %v254 = vlaneseq
      %v255 = vshrl.u32 %v254, 7
      %v256 = vsub.s32 0, %v255
      %v257 = vrot.slane %v252, %v256
      %v258 = vlaneseq
      %v259 = vshrl.u32 %v258, 7
      %v260 = vsub.s32 1, %v259
      %v261 = vrot.slane %v252, %v260
      %v262 = vlaneseq
      %v263 = vshrl.u32 %v262, 7
      %v264 = vsub.s32 2, %v263
      %v265 = vrot.slane %v252, %v264
      %v266 = vlaneseq
      %v267 = vshrl.u32 %v266, 7
      %v268 = vsub.s32 3, %v267
      %v269 = vrot.slane %v252, %v268
      %274 = vmatprep.subr.mxu0 %v189
      %275 = vmatpush1.msra.mxu0 %v188
      %276 = vmatprep.subr.mxu0 %v193
      %277 = vmatpush1.msra.mxu0 %v192
      %278 = vmatprep.subr.mxu0 %v197
      %279 = vmatpush1.msra.mxu0 %v196
      %280 = vmatprep.subr.mxu0 %v201
      %281 = vmatpush1.msra.mxu0 %v200
      %282 = vmatprep.subr.mxu0 %v205
      %283 = vmatpush1.msra.mxu0 %v204
      %284 = vmatprep.subr.mxu0 %v209
      %285 = vmatpush1.msra.mxu0 %v208
      %286 = vmatprep.subr.mxu0 %v213
      %287 = vmatpush1.msra.mxu0 %v212
      %288 = vmatprep.subr.mxu0 %v217
      %289 = vmatpush1.msra.mxu0 %v216
      %290 = vmatprep.subr.mxu0 %v221
      %291 = vmatpush1.msra.mxu0 %v220
      %292 = vmatprep.subr.mxu0 %v225
      %293 = vmatpush1.msra.mxu0 %v224
      %294 = vmatprep.subr.mxu0 %v229
      %295 = vmatpush1.msra.mxu0 %v228
      %296 = vmatprep.subr.mxu0 %v233
      %297 = vmatpush1.msra.mxu0 %v232
      %298 = vmatprep.subr.mxu0 %v237
      %299 = vmatpush1.msra.mxu0 %v236
      %300 = vmatprep.subr.mxu0 %v241
      %301 = vmatpush1.msra.mxu0 %v240
      %302 = vmatprep.subr.mxu0 %v245
      %303 = vmatpush1.msra.mxu0 %v244
      %304 = vmatprep.subr.mxu0 %v249
      %305 = vmatpush1.msra.mxu0 %v248
      %306 = vmatprep.subr.mxu0 0.0
      %307 = vmatpush1.msra.mxu0 0.0
      %308 = vmatprep.subr.mxu0 0.0
      %309 = vmatpush1.msra.mxu0 0.0
      %310 = vmatprep.subr.mxu0 0.0
      %311 = vmatpush1.msra.mxu0 0.0
      %312 = vmatprep.subr.mxu0 0.0
      %313 = vmatpush1.msra.mxu0 0.0
      %314 = vmatprep.subr.mxu0 0.0
      %315 = vmatpush1.msra.mxu0 0.0
      %316 = vmatprep.subr.mxu0 0.0
      %317 = vmatpush1.msra.mxu0 0.0
      %318 = vmatprep.subr.mxu0 0.0
      %319 = vmatpush1.msra.mxu0 0.0
      %320 = vmatprep.subr.mxu0 0.0
      %321 = vmatpush1.msra.mxu0 0.0
      %322 = vmatprep.subr.mxu0 0.0
      %323 = vmatpush1.msra.mxu0 0.0
      %324 = vmatprep.subr.mxu0 0.0
      %325 = vmatpush1.msra.mxu0 0.0
      %326 = vmatprep.subr.mxu0 0.0
      %327 = vmatpush1.msra.mxu0 0.0
      %328 = vmatprep.subr.mxu0 0.0
      %329 = vmatpush1.msra.mxu0 0.0
      %330 = vmatprep.subr.mxu0 0.0
      %331 = vmatpush1.msra.mxu0 0.0
      %332 = vmatprep.subr.mxu0 0.0
      %333 = vmatpush1.msra.mxu0 0.0
      %334 = vmatprep.subr.mxu0 0.0
      %335 = vmatpush1.msra.mxu0 0.0
      %336 = vmatprep.subr.mxu0 0.0
      %337 = vmatpush1.msra.mxu0 0.0
      %338 = vmatprep.mubr.f32.mxu0 0.0
      %339 = vmatmul.mubr.f32.gmra.mrb[0].mxu0 %v184
      %v340 = vpop.f32.mrb[0].mxu0
      %v341 = vadd.f32 %v257, %v340
      %v342 = vpop.f32.mrb[0].mxu0
      %v343 = vadd.f32 %v261, %v342
      %344 = vmatprep.mubr.f32.mxu0 0.0
      %345 = vmatmul.mubr.f32.gmra.mrb[0].mxu0 %v185
      %v346 = vpop.f32.mrb[0].mxu0
      %v347 = vadd.f32 %v257, %v346
      %v348 = vpop.f32.mrb[0].mxu0
      %v349 = vadd.f32 %v261, %v348
      %350 = vmatprep.mubr.f32.mxu0 0.0
      %351 = vmatmul.mubr.f32.gmra.mrb[0].mxu0 %v186
      %v352 = vpop.f32.mrb[0].mxu0
      %v353 = vadd.f32 %v257, %v352
      %v354 = vpop.f32.mrb[0].mxu0
      %v355 = vadd.f32 %v261, %v354
      %356 = vmatprep.mubr.f32.mxu0 0.0
      %357 = vmatmul.mubr.f32.gmra.mrb[0].mxu0 %v187
      %v358 = vpop.f32.mrb[0].mxu0
      %v359 = vadd.f32 %v257, %v358
      %v360 = vpop.f32.mrb[0].mxu0
      %v361 = vadd.f32 %v261, %v360
      %362 = vdwg.mxu0
      %363 = vmatprep.subr.mxu0 %v191
      %364 = vmatpush1.msra.mxu0 %v190
      %365 = vmatprep.subr.mxu0 %v195
      %366 = vmatpush1.msra.mxu0 %v194
      %367 = vmatprep.subr.mxu0 %v199
      %368 = vmatpush1.msra.mxu0 %v198
      %369 = vmatprep.subr.mxu0 %v203
      %370 = vmatpush1.msra.mxu0 %v202
      %371 = vmatprep.subr.mxu0 %v207
      %372 = vmatpush1.msra.mxu0 %v206
      %373 = vmatprep.subr.mxu0 %v211
      %374 = vmatpush1.msra.mxu0 %v210
      %375 = vmatprep.subr.mxu0 %v215
      %376 = vmatpush1.msra.mxu0 %v214
      %377 = vmatprep.subr.mxu0 %v219
      %378 = vmatpush1.msra.mxu0 %v218
      %379 = vmatprep.subr.mxu0 %v223
      %380 = vmatpush1.msra.mxu0 %v222
      %381 = vmatprep.subr.mxu0 %v227
      %382 = vmatpush1.msra.mxu0 %v226
      %383 = vmatprep.subr.mxu0 %v231
      %384 = vmatpush1.msra.mxu0 %v230
      %385 = vmatprep.subr.mxu0 %v235
      %386 = vmatpush1.msra.mxu0 %v234
      %387 = vmatprep.subr.mxu0 %v239
      %388 = vmatpush1.msra.mxu0 %v238
      %389 = vmatprep.subr.mxu0 %v243
      %390 = vmatpush1.msra.mxu0 %v242
      %391 = vmatprep.subr.mxu0 %v247
      %392 = vmatpush1.msra.mxu0 %v246
      %393 = vmatprep.subr.mxu0 %v251
      %394 = vmatpush1.msra.mxu0 %v250
      %395 = vmatprep.subr.mxu0 0.0
      %396 = vmatpush1.msra.mxu0 0.0
      %397 = vmatprep.subr.mxu0 0.0
      %398 = vmatpush1.msra.mxu0 0.0
      %399 = vmatprep.subr.mxu0 0.0
      %400 = vmatpush1.msra.mxu0 0.0
      %401 = vmatprep.subr.mxu0 0.0
      %402 = vmatpush1.msra.mxu0 0.0
      %403 = vmatprep.subr.mxu0 0.0
      %404 = vmatpush1.msra.mxu0 0.0
      %405 = vmatprep.subr.mxu0 0.0
      %406 = vmatpush1.msra.mxu0 0.0
      %407 = vmatprep.subr.mxu0 0.0
      %408 = vmatpush1.msra.mxu0 0.0
      %409 = vmatprep.subr.mxu0 0.0
      %410 = vmatpush1.msra.mxu0 0.0
      %411 = vmatprep.subr.mxu0 0.0
      %412 = vmatpush1.msra.mxu0 0.0
      %413 = vmatprep.subr.mxu0 0.0
      %414 = vmatpush1.msra.mxu0 0.0
      %415 = vmatprep.subr.mxu0 0.0
      %416 = vmatpush1.msra.mxu0 0.0
      %417 = vmatprep.subr.mxu0 0.0
      %418 = vmatpush1.msra.mxu0 0.0
      %419 = vmatprep.subr.mxu0 0.0
      %420 = vmatpush1.msra.mxu0 0.0
      %421 = vmatprep.subr.mxu0 0.0
      %422 = vmatpush1.msra.mxu0 0.0
      %423 = vmatprep.subr.mxu0 0.0
      %424 = vmatpush1.msra.mxu0 0.0
      %425 = vmatprep.subr.mxu0 0.0
      %426 = vmatpush1.msra.mxu0 0.0
      %427 = vmatprep.mubr.f32.mxu0 0.0
      %428 = vmatmul.mubr.f32.gmra.mrb[0].mxu0 %v184
      %v429 = vpop.f32.mrb[0].mxu0
      %v430 = vadd.f32 %v265, %v429
      %v431 = vpop.f32.mrb[0].mxu0
      %v432 = vadd.f32 %v269, %v431
      %433 = vmatprep.mubr.f32.mxu0 0.0
      %434 = vmatmul.mubr.f32.gmra.mrb[0].mxu0 %v185
      %v435 = vpop.f32.mrb[0].mxu0
      %v436 = vadd.f32 %v265, %v435
      %v437 = vpop.f32.mrb[0].mxu0
      %v438 = vadd.f32 %v269, %v437
      %439 = vmatprep.mubr.f32.mxu0 0.0
      %440 = vmatmul.mubr.f32.gmra.mrb[0].mxu0 %v186
      %v441 = vpop.f32.mrb[0].mxu0
      %v442 = vadd.f32 %v265, %v441
      %v443 = vpop.f32.mrb[0].mxu0
      %v444 = vadd.f32 %v269, %v443
      %445 = vmatprep.mubr.f32.mxu0 0.0
      %446 = vmatmul.mubr.f32.gmra.mrb[0].mxu0 %v187
      %v447 = vpop.f32.mrb[0].mxu0
      %v448 = vadd.f32 %v265, %v447
      %v449 = vpop.f32.mrb[0].mxu0
      %v450 = vadd.f32 %v269, %v449
      %451 = vdwg.mxu0
      %452 = vst [vmem:[#allocation6] sm:$0xff] %v341
      %453 = vst [vmem:[#allocation6 + $0x8] sm:$0xff] %v343
      %454 = vst [vmem:[#allocation6 + $0x10] sm:$0xff] %v430
      %455 = vst [vmem:[#allocation6 + $0x18] sm:$0xff] %v432
      %456 = vst [vmem:[#allocation6 + $0x20] sm:$0xff] %v347
      %457 = vst [vmem:[#allocation6 + $0x28] sm:$0xff] %v349
      %458 = vst [vmem:[#allocation6 + $0x30] sm:$0xff] %v436
      %459 = vst [vmem:[#allocation6 + $0x38] sm:$0xff] %v438
      %460 = vst [vmem:[#allocation6 + $0x40] sm:$0xff] %v353
      %461 = vst [vmem:[#allocation6 + $0x48] sm:$0xff] %v355
      %462 = vst [vmem:[#allocation6 + $0x50] sm:$0xff] %v442
      %463 = vst [vmem:[#allocation6 + $0x58] sm:$0xff] %v444
      %464 = vst [vmem:[#allocation6 + $0x60] sm:$0xff] %v359
      %465 = vst [vmem:[#allocation6 + $0x68] sm:$0xff] %v361
      %466 = vst [vmem:[#allocation6 + $0x70] sm:$0xff] %v448
      %467 = vst [vmem:[#allocation6 + $0x78] sm:$0xff] %v450
      %v468 = vld [vmem:[#allocation4] sm:$0xff]
      %v469 = vld [vmem:[#allocation5] sm:$0xff]
      %s470 = smul.u32 0, 4
      %s471 = smul.addr %s470, 8
      %s472 = scalar_lea.vmem [#allocation6], %s471
      %v473 = vld [vmem:[%s472] sm:$0xff]
      %v474 = vld [vmem:[%s472 + $0x8] sm:$0xff]
      %v475 = vld [vmem:[%s472 + $0x10] sm:$0xff]
      %v476 = vld [vmem:[%s472 + $0x18] sm:$0xff]
      %v477 = vld [vmem:[#allocation3] sm:$0xff]
      %v478 = vld [vmem:[#allocation3 + $0x8] sm:$0xff]
      %v479 = vld [vmem:[#allocation3 + $0x10] sm:$0xff]
      %v480 = vld [vmem:[#allocation3 + $0x18] sm:$0xff]
      %v481 = vld [vmem:[#allocation3 + $0x20] sm:$0xff]
      %v482 = vld [vmem:[#allocation3 + $0x28] sm:$0xff]
      %v483 = vld [vmem:[#allocation3 + $0x30] sm:$0xff]
      %v484 = vld [vmem:[#allocation3 + $0x38] sm:$0xff]
      %v485 = vld [vmem:[#allocation3 + $0x40] sm:$0xff]
      %v486 = vld [vmem:[#allocation3 + $0x48] sm:$0xff]
      %v487 = vld [vmem:[#allocation3 + $0x50] sm:$0xff]
      %v488 = vld [vmem:[#allocation3 + $0x58] sm:$0xff]
      %v489 = vld [vmem:[#allocation3 + $0x60] sm:$0xff]
      %v490 = vld [vmem:[#allocation3 + $0x68] sm:$0xff]
      %v491 = vld [vmem:[#allocation3 + $0x70] sm:$0xff]
      %v492 = vld [vmem:[#allocation3 + $0x78] sm:$0xff]
      %v493 = vld [vmem:[#allocation3 + $0x80] sm:$0xff]
      %v494 = vld [vmem:[#allocation3 + $0x88] sm:$0xff]
      %v495 = vld [vmem:[#allocation3 + $0x90] sm:$0xff]
      %v496 = vld [vmem:[#allocation3 + $0x98] sm:$0xff]
      %v497 = vld [vmem:[#allocation3 + $0xa0] sm:$0xff]
      %v498 = vld [vmem:[#allocation3 + $0xa8] sm:$0xff]
      %v499 = vld [vmem:[#allocation3 + $0xb0] sm:$0xff]
      %v500 = vld [vmem:[#allocation3 + $0xb8] sm:$0xff]
      %v501 = vld [vmem:[#allocation3 + $0xc0] sm:$0xff]
      %v502 = vld [vmem:[#allocation3 + $0xc8] sm:$0xff]
      %v503 = vld [vmem:[#allocation3 + $0xd0] sm:$0xff]
      %v504 = vld [vmem:[#allocation3 + $0xd8] sm:$0xff]
      %v505 = vld [vmem:[#allocation3 + $0xe0] sm:$0xff]
      %v506 = vld [vmem:[#allocation3 + $0xe8] sm:$0xff]
      %v507 = vld [vmem:[#allocation3 + $0xf0] sm:$0xff]
      %v508 = vld [vmem:[#allocation3 + $0xf8] sm:$0xff]
      %v509 = vld [vmem:[#allocation3 + $0x100] sm:$0xff]
      %v510 = vld [vmem:[#allocation3 + $0x108] sm:$0xff]
      %v511 = vld [vmem:[#allocation3 + $0x110] sm:$0xff]
      %v512 = vld [vmem:[#allocation3 + $0x118] sm:$0xff]
      %v513 = vld [vmem:[#allocation3 + $0x120] sm:$0xff]
      %v514 = vld [vmem:[#allocation3 + $0x128] sm:$0xff]
      %v515 = vld [vmem:[#allocation3 + $0x130] sm:$0xff]
      %v516 = vld [vmem:[#allocation3 + $0x138] sm:$0xff]
      %v517 = vld [vmem:[#allocation3 + $0x140] sm:$0xff]
      %v518 = vld [vmem:[#allocation3 + $0x148] sm:$0xff]
      %v519 = vld [vmem:[#allocation3 + $0x150] sm:$0xff]
      %v520 = vld [vmem:[#allocation3 + $0x158] sm:$0xff]
      %v521 = vld [vmem:[#allocation3 + $0x160] sm:$0xff]
      %v522 = vld [vmem:[#allocation3 + $0x168] sm:$0xff]
      %v523 = vld [vmem:[#allocation3 + $0x170] sm:$0xff]
      %v524 = vld [vmem:[#allocation3 + $0x178] sm:$0xff]
      %v525 = vld [vmem:[#allocation3 + $0x180] sm:$0xff]
      %v526 = vld [vmem:[#allocation3 + $0x188] sm:$0xff]
      %v527 = vld [vmem:[#allocation3 + $0x190] sm:$0xff]
      %v528 = vld [vmem:[#allocation3 + $0x198] sm:$0xff]
      %v529 = vld [vmem:[#allocation3 + $0x1a0] sm:$0xff]
      %v530 = vld [vmem:[#allocation3 + $0x1a8] sm:$0xff]
      %v531 = vld [vmem:[#allocation3 + $0x1b0] sm:$0xff]
      %v532 = vld [vmem:[#allocation3 + $0x1b8] sm:$0xff]
      %v533 = vld [vmem:[#allocation3 + $0x1c0] sm:$0xff]
      %v534 = vld [vmem:[#allocation3 + $0x1c8] sm:$0xff]
      %v535 = vld [vmem:[#allocation3 + $0x1d0] sm:$0xff]
      %v536 = vld [vmem:[#allocation3 + $0x1d8] sm:$0xff]
      %v537 = vld [vmem:[#allocation3 + $0x1e0] sm:$0xff]
      %v538 = vld [vmem:[#allocation3 + $0x1e8] sm:$0xff]
      %v539 = vld [vmem:[#allocation3 + $0x1f0] sm:$0xff]
      %v540 = vld [vmem:[#allocation3 + $0x1f8] sm:$0xff]
      %541 = vmatprep.subr.mxu0 %v478
      %542 = vmatpush1.msra.mxu0 %v477
      %543 = vmatprep.subr.mxu0 %v482
      %544 = vmatpush1.msra.mxu0 %v481
      %545 = vmatprep.subr.mxu0 %v486
      %546 = vmatpush1.msra.mxu0 %v485
      %547 = vmatprep.subr.mxu0 %v490
      %548 = vmatpush1.msra.mxu0 %v489
      %549 = vmatprep.subr.mxu0 %v494
      %550 = vmatpush1.msra.mxu0 %v493
      %551 = vmatprep.subr.mxu0 %v498
      %552 = vmatpush1.msra.mxu0 %v497
      %553 = vmatprep.subr.mxu0 %v502
      %554 = vmatpush1.msra.mxu0 %v501
      %555 = vmatprep.subr.mxu0 %v506
      %556 = vmatpush1.msra.mxu0 %v505
      %557 = vmatprep.subr.mxu0 %v510
      %558 = vmatpush1.msra.mxu0 %v509
      %559 = vmatprep.subr.mxu0 %v514
      %560 = vmatpush1.msra.mxu0 %v513
      %561 = vmatprep.subr.mxu0 %v518
      %562 = vmatpush1.msra.mxu0 %v517
      %563 = vmatprep.subr.mxu0 %v522
      %564 = vmatpush1.msra.mxu0 %v521
      %565 = vmatprep.subr.mxu0 %v526
      %566 = vmatpush1.msra.mxu0 %v525
      %567 = vmatprep.subr.mxu0 %v530
      %568 = vmatpush1.msra.mxu0 %v529
      %569 = vmatprep.subr.mxu0 %v534
      %570 = vmatpush1.msra.mxu0 %v533
      %571 = vmatprep.subr.mxu0 %v538
      %572 = vmatpush1.msra.mxu0 %v537
      %573 = vmatprep.subr.mxu0 0.0
      %574 = vmatpush1.msra.mxu0 0.0
      %575 = vmatprep.subr.mxu0 0.0
      %576 = vmatpush1.msra.mxu0 0.0
      %577 = vmatprep.subr.mxu0 0.0
      %578 = vmatpush1.msra.mxu0 0.0
      %579 = vmatprep.subr.mxu0 0.0
      %580 = vmatpush1.msra.mxu0 0.0
      %581 = vmatprep.subr.mxu0 0.0
      %582 = vmatpush1.msra.mxu0 0.0
      %583 = vmatprep.subr.mxu0 0.0
      %584 = vmatpush1.msra.mxu0 0.0
      %585 = vmatprep.subr.mxu0 0.0
      %586 = vmatpush1.msra.mxu0 0.0
      %587 = vmatprep.subr.mxu0 0.0
      %588 = vmatpush1.msra.mxu0 0.0
      %589 = vmatprep.subr.mxu0 0.0
      %590 = vmatpush1.msra.mxu0 0.0
      %591 = vmatprep.subr.mxu0 0.0
      %592 = vmatpush1.msra.mxu0 0.0
      %593 = vmatprep.subr.mxu0 0.0
      %594 = vmatpush1.msra.mxu0 0.0
      %595 = vmatprep.subr.mxu0 0.0
      %596 = vmatpush1.msra.mxu0 0.0
      %597 = vmatprep.subr.mxu0 0.0
      %598 = vmatpush1.msra.mxu0 0.0
      %599 = vmatprep.subr.mxu0 0.0
      %600 = vmatpush1.msra.mxu0 0.0
      %601 = vmatprep.subr.mxu0 0.0
      %602 = vmatpush1.msra.mxu0 0.0
      %603 = vmatprep.subr.mxu0 0.0
      %604 = vmatpush1.msra.mxu0 0.0
      %605 = vmatprep.mubr.f32.mxu0 0.0
      %606 = vmatmul.mubr.f32.gmra.mrb[0].mxu0 %v468
      %v607 = vpop.f32.mrb[0].mxu0
      %v608 = vadd.f32 0.0, %v607
      %v609 = vpop.f32.mrb[0].mxu0
      %v610 = vadd.f32 0.0, %v609
      %611 = vdwg.mxu0
      %612 = vmatprep.subr.mxu0 %v480
      %613 = vmatpush1.msra.mxu0 %v479
      %614 = vmatprep.subr.mxu0 %v484
      %615 = vmatpush1.msra.mxu0 %v483
      %616 = vmatprep.subr.mxu0 %v488
      %617 = vmatpush1.msra.mxu0 %v487
      %618 = vmatprep.subr.mxu0 %v492
      %619 = vmatpush1.msra.mxu0 %v491
      %620 = vmatprep.subr.mxu0 %v496
      %621 = vmatpush1.msra.mxu0 %v495
      %622 = vmatprep.subr.mxu0 %v500
      %623 = vmatpush1.msra.mxu0 %v499
      %624 = vmatprep.subr.mxu0 %v504
      %625 = vmatpush1.msra.mxu0 %v503
      %626 = vmatprep.subr.mxu0 %v508
      %627 = vmatpush1.msra.mxu0 %v507
      %628 = vmatprep.subr.mxu0 %v512
      %629 = vmatpush1.msra.mxu0 %v511
      %630 = vmatprep.subr.mxu0 %v516
      %631 = vmatpush1.msra.mxu0 %v515
      %632 = vmatprep.subr.mxu0 %v520
      %633 = vmatpush1.msra.mxu0 %v519
      %634 = vmatprep.subr.mxu0 %v524
      %635 = vmatpush1.msra.mxu0 %v523
      %636 = vmatprep.subr.mxu0 %v528
      %637 = vmatpush1.msra.mxu0 %v527
      %638 = vmatprep.subr.mxu0 %v532
      %639 = vmatpush1.msra.mxu0 %v531
      %640 = vmatprep.subr.mxu0 %v536
      %641 = vmatpush1.msra.mxu0 %v535
      %642 = vmatprep.subr.mxu0 %v540
      %643 = vmatpush1.msra.mxu0 %v539
      %644 = vmatprep.subr.mxu0 0.0
      %645 = vmatpush1.msra.mxu0 0.0
      %646 = vmatprep.subr.mxu0 0.0
      %647 = vmatpush1.msra.mxu0 0.0
      %648 = vmatprep.subr.mxu0 0.0
      %649 = vmatpush1.msra.mxu0 0.0
      %650 = vmatprep.subr.mxu0 0.0
      %651 = vmatpush1.msra.mxu0 0.0
      %652 = vmatprep.subr.mxu0 0.0
      %653 = vmatpush1.msra.mxu0 0.0
      %654 = vmatprep.subr.mxu0 0.0
      %655 = vmatpush1.msra.mxu0 0.0
      %656 = vmatprep.subr.mxu0 0.0
      %657 = vmatpush1.msra.mxu0 0.0
      %658 = vmatprep.subr.mxu0 0.0
      %659 = vmatpush1.msra.mxu0 0.0
      %660 = vmatprep.subr.mxu0 0.0
      %661 = vmatpush1.msra.mxu0 0.0
      %662 = vmatprep.subr.mxu0 0.0
      %663 = vmatpush1.msra.mxu0 0.0
      %664 = vmatprep.subr.mxu0 0.0
      %665 = vmatpush1.msra.mxu0 0.0
      %666 = vmatprep.subr.mxu0 0.0
      %667 = vmatpush1.msra.mxu0 0.0
      %668 = vmatprep.subr.mxu0 0.0
      %669 = vmatpush1.msra.mxu0 0.0
      %670 = vmatprep.subr.mxu0 0.0
      %671 = vmatpush1.msra.mxu0 0.0
      %672 = vmatprep.subr.mxu0 0.0
      %673 = vmatpush1.msra.mxu0 0.0
      %674 = vmatprep.subr.mxu0 0.0
      %675 = vmatpush1.msra.mxu0 0.0
      %676 = vmatprep.mubr.f32.mxu0 0.0
      %677 = vmatmul.mubr.f32.gmra.mrb[0].mxu0 %v468
      %v678 = vpop.f32.mrb[0].mxu0
      %v679 = vadd.f32 0.0, %v678
      %v680 = vpop.f32.mrb[0].mxu0
      %v681 = vadd.f32 0.0, %v680
      %682 = vdwg.mxu0
      %v683 = vadd.f32 %v473, %v608
      %v684 = vadd.f32 %v474, %v610
      %v685 = vadd.f32 %v475, %v679
      %v686 = vadd.f32 %v476, %v681
      %v687 = vxor.u32 %v683, 2147483648
      %v688 = vmul.f32 %v687, 1.442695
      %v689 = vpow.pop %v688
      %v690 = vadd.f32 %v689, 1.0
      %v691 = vrcp.pop %v690
      %v692 = vmul.f32 1.0, %v691
      %v693 = vxor.u32 %v684, 2147483648
      %v694 = vmul.f32 %v693, 1.442695
      %v695 = vpow.pop %v694
      %v696 = vadd.f32 %v695, 1.0
      %v697 = vrcp.pop %v696
      %v698 = vmul.f32 1.0, %v697
      %v699 = vtanh.pop %v685
      %v700 = vxor.u32 %v686, 2147483648
      %v701 = vmul.f32 %v700, 1.442695
      %v702 = vpow.pop %v701
      %v703 = vadd.f32 %v702, 1.0
      %v704 = vrcp.pop %v703
      %v705 = vmul.f32 1.0, %v704
      %v706 = vmul.f32 %v698, %v469
      %v707 = vmul.f32 %v692, %v699
      %v708 = vadd.f32 %v706, %v707
      %v709 = vtanh.pop %v708
      %v710 = vmul.f32 %v705, %v709
      %711 = vst [vmem:[%s147] sm:$0xff] %v710
      %s712 = smul.u32 1, 4
      %s713 = smul.addr %s712, 8
      %s714 = scalar_lea.vmem [#allocation6], %s713
      %v715 = vld [vmem:[%s714] sm:$0xff]
      %v716 = vld [vmem:[%s714 + $0x8] sm:$0xff]
      %v717 = vld [vmem:[%s714 + $0x10] sm:$0xff]
      %v718 = vld [vmem:[%s714 + $0x18] sm:$0xff]
      %v719 = vld [vmem:[#allocation3] sm:$0xff]
      %v720 = vld [vmem:[#allocation3 + $0x8] sm:$0xff]
      %v721 = vld [vmem:[#allocation3 + $0x10] sm:$0xff]
      %v722 = vld [vmem:[#allocation3 + $0x18] sm:$0xff]
      %v723 = vld [vmem:[#allocation3 + $0x20] sm:$0xff]
      %v724 = vld [vmem:[#allocation3 + $0x28] sm:$0xff]
      %v725 = vld [vmem:[#allocation3 + $0x30] sm:$0xff]
      %v726 = vld [vmem:[#allocation3 + $0x38] sm:$0xff]
      %v727 = vld [vmem:[#allocation3 + $0x40] sm:$0xff]
      %v728 = vld [vmem:[#allocation3 + $0x48] sm:$0xff]
      %v729 = vld [vmem:[#allocation3 + $0x50] sm:$0xff]
      %v730 = vld [vmem:[#allocation3 + $0x58] sm:$0xff]
      %v731 = vld [vmem:[#allocation3 + $0x60] sm:$0xff]
      %v732 = vld [vmem:[#allocation3 + $0x68] sm:$0xff]
      %v733 = vld [vmem:[#allocation3 + $0x70] sm:$0xff]
      %v734 = vld [vmem:[#allocation3 + $0x78] sm:$0xff]
      %v735 = vld [vmem:[#allocation3 + $0x80] sm:$0xff]
      %v736 = vld [vmem:[#allocation3 + $0x88] sm:$0xff]
      %v737 = vld [vmem:[#allocation3 + $0x90] sm:$0xff]
      %v738 = vld [vmem:[#allocation3 + $0x98] sm:$0xff]
      %v739 = vld [vmem:[#allocation3 + $0xa0] sm:$0xff]
      %v740 = vld [vmem:[#allocation3 + $0xa8] sm:$0xff]
      %v741 = vld [vmem:[#allocation3 + $0xb0] sm:$0xff]
      %v742 = vld [vmem:[#allocation3 + $0xb8] sm:$0xff]
      %v743 = vld [vmem:[#allocation3 + $0xc0] sm:$0xff]
      %v744 = vld [vmem:[#allocation3 + $0xc8] sm:$0xff]
      %v745 = vld [vmem:[#allocation3 + $0xd0] sm:$0xff]
      %v746 = vld [vmem:[#allocation3 + $0xd8] sm:$0xff]
      %v747 = vld [vmem:[#allocation3 + $0xe0] sm:$0xff]
      %v748 = vld [vmem:[#allocation3 + $0xe8] sm:$0xff]
      %v749 = vld [vmem:[#allocation3 + $0xf0] sm:$0xff]
      %v750 = vld [vmem:[#allocation3 + $0xf8] sm:$0xff]
      %v751 = vld [vmem:[#allocation3 + $0x100] sm:$0xff]
      %v752 = vld [vmem:[#allocation3 + $0x108] sm:$0xff]
      %v753 = vld [vmem:[#allocation3 + $0x110] sm:$0xff]
      %v754 = vld [vmem:[#allocation3 + $0x118] sm:$0xff]
      %v755 = vld [vmem:[#allocation3 + $0x120] sm:$0xff]
      %v756 = vld [vmem:[#allocation3 + $0x128] sm:$0xff]
      %v757 = vld [vmem:[#allocation3 + $0x130] sm:$0xff]
      %v758 = vld [vmem:[#allocation3 + $0x138] sm:$0xff]
      %v759 = vld [vmem:[#allocation3 + $0x140] sm:$0xff]
      %v760 = vld [vmem:[#allocation3 + $0x148] sm:$0xff]
      %v761 = vld [vmem:[#allocation3 + $0x150] sm:$0xff]
      %v762 = vld [vmem:[#allocation3 + $0x158] sm:$0xff]
      %v763 = vld [vmem:[#allocation3 + $0x160] sm:$0xff]
      %v764 = vld [vmem:[#allocation3 + $0x168] sm:$0xff]
      %v765 = vld [vmem:[#allocation3 + $0x170] sm:$0xff]
      %v766 = vld [vmem:[#allocation3 + $0x178] sm:$0xff]
      %v767 = vld [vmem:[#allocation3 + $0x180] sm:$0xff]
      %v768 = vld [vmem:[#allocation3 + $0x188] sm:$0xff]
      %v769 = vld [vmem:[#allocation3 + $0x190] sm:$0xff]
      %v770 = vld [vmem:[#allocation3 + $0x198] sm:$0xff]
      %v771 = vld [vmem:[#allocation3 + $0x1a0] sm:$0xff]
      %v772 = vld [vmem:[#allocation3 + $0x1a8] sm:$0xff]
      %v773 = vld [vmem:[#allocation3 + $0x1b0] sm:$0xff]
      %v774 = vld [vmem:[#allocation3 + $0x1b8] sm:$0xff]
      %v775 = vld [vmem:[#allocation3 + $0x1c0] sm:$0xff]
      %v776 = vld [vmem:[#allocation3 + $0x1c8] sm:$0xff]
      %v777 = vld [vmem:[#allocation3 + $0x1d0] sm:$0xff]
      %v778 = vld [vmem:[#allocation3 + $0x1d8] sm:$0xff]
      %v779 = vld [vmem:[#allocation3 + $0x1e0] sm:$0xff]
      %v780 = vld [vmem:[#allocation3 + $0x1e8] sm:$0xff]
      %v781 = vld [vmem:[#allocation3 + $0x1f0] sm:$0xff]
      %v782 = vld [vmem:[#allocation3 + $0x1f8] sm:$0xff]
      %783 = vmatprep.subr.mxu0 %v720
      %784 = vmatpush1.msra.mxu0 %v719
      %785 = vmatprep.subr.mxu0 %v724
      %786 = vmatpush1.msra.mxu0 %v723
      %787 = vmatprep.subr.mxu0 %v728
      %788 = vmatpush1.msra.mxu0 %v727
      %789 = vmatprep.subr.mxu0 %v732
      %790 = vmatpush1.msra.mxu0 %v731
      %791 = vmatprep.subr.mxu0 %v736
      %792 = vmatpush1.msra.mxu0 %v735
      %793 = vmatprep.subr.mxu0 %v740
      %794 = vmatpush1.msra.mxu0 %v739
      %795 = vmatprep.subr.mxu0 %v744
      %796 = vmatpush1.msra.mxu0 %v743
      %797 = vmatprep.subr.mxu0 %v748
      %798 = vmatpush1.msra.mxu0 %v747
      %799 = vmatprep.subr.mxu0 %v752
      %800 = vmatpush1.msra.mxu0 %v751
      %801 = vmatprep.subr.mxu0 %v756
      %802 = vmatpush1.msra.mxu0 %v755
      %803 = vmatprep.subr.mxu0 %v760
      %804 = vmatpush1.msra.mxu0 %v759
      %805 = vmatprep.subr.mxu0 %v764
      %806 = vmatpush1.msra.mxu0 %v763
      %807 = vmatprep.subr.mxu0 %v768
      %808 = vmatpush1.msra.mxu0 %v767
      %809 = vmatprep.subr.mxu0 %v772
      %810 = vmatpush1.msra.mxu0 %v771
      %811 = vmatprep.subr.mxu0 %v776
      %812 = vmatpush1.msra.mxu0 %v775
      %813 = vmatprep.subr.mxu0 %v780
      %814 = vmatpush1.msra.mxu0 %v779
      %815 = vmatprep.subr.mxu0 0.0
      %816 = vmatpush1.msra.mxu0 0.0
      %817 = vmatprep.subr.mxu0 0.0
      %818 = vmatpush1.msra.mxu0 0.0
      %819 = vmatprep.subr.mxu0 0.0
      %820 = vmatpush1.msra.mxu0 0.0
      %821 = vmatprep.subr.mxu0 0.0
      %822 = vmatpush1.msra.mxu0 0.0
      %823 = vmatprep.subr.mxu0 0.0
      %824 = vmatpush1.msra.mxu0 0.0
      %825 = vmatprep.subr.mxu0 0.0
      %826 = vmatpush1.msra.mxu0 0.0
      %827 = vmatprep.subr.mxu0 0.0
      %828 = vmatpush1.msra.mxu0 0.0
      %829 = vmatprep.subr.mxu0 0.0
      %830 = vmatpush1.msra.mxu0 0.0
      %831 = vmatprep.subr.mxu0 0.0
      %832 = vmatpush1.msra.mxu0 0.0
      %833 = vmatprep.subr.mxu0 0.0
      %834 = vmatpush1.msra.mxu0 0.0
      %835 = vmatprep.subr.mxu0 0.0
      %836 = vmatpush1.msra.mxu0 0.0
      %837 = vmatprep.subr.mxu0 0.0
      %838 = vmatpush1.msra.mxu0 0.0
      %839 = vmatprep.subr.mxu0 0.0
      %840 = vmatpush1.msra.mxu0 0.0
      %841 = vmatprep.subr.mxu0 0.0
      %842 = vmatpush1.msra.mxu0 0.0
      %843 = vmatprep.subr.mxu0 0.0
      %844 = vmatpush1.msra.mxu0 0.0
      %845 = vmatprep.subr.mxu0 0.0
      %846 = vmatpush1.msra.mxu0 0.0
      %847 = vmatprep.mubr.f32.mxu0 0.0
      %848 = vmatmul.mubr.f32.gmra.mrb[0].mxu0 %v710
      %v849 = vpop.f32.mrb[0].mxu0
      %v850 = vadd.f32 0.0, %v849
      %v851 = vpop.f32.mrb[0].mxu0
      %v852 = vadd.f32 0.0, %v851
      %853 = vdwg.mxu0
      %854 = vmatprep.subr.mxu0 %v722
      %855 = vmatpush1.msra.mxu0 %v721
      %856 = vmatprep.subr.mxu0 %v726
      %857 = vmatpush1.msra.mxu0 %v725
      %858 = vmatprep.subr.mxu0 %v730
      %859 = vmatpush1.msra.mxu0 %v729
      %860 = vmatprep.subr.mxu0 %v734
      %861 = vmatpush1.msra.mxu0 %v733
      %862 = vmatprep.subr.mxu0 %v738
      %863 = vmatpush1.msra.mxu0 %v737
      %864 = vmatprep.subr.mxu0 %v742
      %865 = vmatpush1.msra.mxu0 %v741
      %866 = vmatprep.subr.mxu0 %v746
      %867 = vmatpush1.msra.mxu0 %v745
      %868 = vmatprep.subr.mxu0 %v750
      %869 = vmatpush1.msra.mxu0 %v749
      %870 = vmatprep.subr.mxu0 %v754
      %871 = vmatpush1.msra.mxu0 %v753
      %872 = vmatprep.subr.mxu0 %v758
      %873 = vmatpush1.msra.mxu0 %v757
      %874 = vmatprep.subr.mxu0 %v762
      %875 = vmatpush1.msra.mxu0 %v761
      %876 = vmatprep.subr.mxu0 %v766
      %877 = vmatpush1.msra.mxu0 %v765
      %878 = vmatprep.subr.mxu0 %v770
      %879 = vmatpush1.msra.mxu0 %v769
      %880 = vmatprep.subr.mxu0 %v774
      %881 = vmatpush1.msra.mxu0 %v773
      %882 = vmatprep.subr.mxu0 %v778
      %883 = vmatpush1.msra.mxu0 %v777
      %884 = vmatprep.subr.mxu0 %v782
      %885 = vmatpush1.msra.mxu0 %v781
      %886 = vmatprep.subr.mxu0 0.0
      %887 = vmatpush1.msra.mxu0 0.0
      %888 = vmatprep.subr.mxu0 0.0
      %889 = vmatpush1.msra.mxu0 0.0
      %890 = vmatprep.subr.mxu0 0.0
      %891 = vmatpush1.msra.mxu0 0.0
      %892 = vmatprep.subr.mxu0 0.0
      %893 = vmatpush1.msra.mxu0 0.0
      %894 = vmatprep.subr.mxu0 0.0
      %895 = vmatpush1.msra.mxu0 0.0
      %896 = vmatprep.subr.mxu0 0.0
      %897 = vmatpush1.msra.mxu0 0.0
      %898 = vmatprep.subr.mxu0 0.0
      %899 = vmatpush1.msra.mxu0 0.0
      %900 = vmatprep.subr.mxu0 0.0
      %901 = vmatpush1.msra.mxu0 0.0
      %902 = vmatprep.subr.mxu0 0.0
      %903 = vmatpush1.msra.mxu0 0.0
      %904 = vmatprep.subr.mxu0 0.0
      %905 = vmatpush1.msra.mxu0 0.0
      %906 = vmatprep.subr.mxu0 0.0
      %907 = vmatpush1.msra.mxu0 0.0
      %908 = vmatprep.subr.mxu0 0.0
      %909 = vmatpush1.msra.mxu0 0.0
      %910 = vmatprep.subr.mxu0 0.0
      %911 = vmatpush1.msra.mxu0 0.0
      %912 = vmatprep.subr.mxu0 0.0
      %913 = vmatpush1.msra.mxu0 0.0
      %914 = vmatprep.subr.mxu0 0.0
      %915 = vmatpush1.msra.mxu0 0.0
      %916 = vmatprep.subr.mxu0 0.0
      %917 = vmatpush1.msra.mxu0 0.0
      %918 = vmatprep.mubr.f32.mxu0 0.0
      %919 = vmatmul.mubr.f32.gmra.mrb[0].mxu0 %v710
      %v920 = vpop.f32.mrb[0].mxu0
      %v921 = vadd.f32 0.0, %v920
      %v922 = vpop.f32.mrb[0].mxu0
      %v923 = vadd.f32 0.0, %v922
      %924 = vdwg.mxu0
      %v925 = vadd.f32 %v715, %v850
      %v926 = vadd.f32 %v716, %v852
      %v927 = vadd.f32 %v717, %v921
      %v928 = vadd.f32 %v718, %v923
      %v929 = vxor.u32 %v925, 2147483648
      %v930 = vmul.f32 %v929, 1.442695
      %v931 = vpow.pop %v930
      %v932 = vadd.f32 %v931, 1.0
      %v933 = vrcp.pop %v932
      %v934 = vmul.f32 1.0, %v933
      %v935 = vxor.u32 %v926, 2147483648
      %v936 = vmul.f32 %v935, 1.442695
      %v937 = vpow.pop %v936
      %v938 = vadd.f32 %v937, 1.0
      %v939 = vrcp.pop %v938
      %v940 = vmul.f32 1.0, %v939
      %v941 = vtanh.pop %v927
      %v942 = vxor.u32 %v928, 2147483648
      %v943 = vmul.f32 %v942, 1.442695
      %v944 = vpow.pop %v943
      %v945 = vadd.f32 %v944, 1.0
      %v946 = vrcp.pop %v945
      %v947 = vmul.f32 1.0, %v946
      %v948 = vmul.f32 %v940, %v708
      %v949 = vmul.f32 %v934, %v941
      %v950 = vadd.f32 %v948, %v949
      %v951 = vtanh.pop %v950
      %v952 = vmul.f32 %v947, %v951
      %s953 = scalar_lea.vmem %s147, 8
      %954 = vst [vmem:[%s953] sm:$0xff] %v952
      %s955 = smul.u32 2, 4
      %s956 = smul.addr %s955, 8
      %s957 = scalar_lea.vmem [#allocation6], %s956
      %v958 = vld [vmem:[%s957] sm:$0xff]
      %v959 = vld [vmem:[%s957 + $0x8] sm:$0xff]
      %v960 = vld [vmem:[%s957 + $0x10] sm:$0xff]
      %v961 = vld [vmem:[%s957 + $0x18] sm:$0xff]
      %v962 = vld [vmem:[#allocation3] sm:$0xff]
      %v963 = vld [vmem:[#allocation3 + $0x8] sm:$0xff]
      %v964 = vld [vmem:[#allocation3 + $0x10] sm:$0xff]
      %v965 = vld [vmem:[#allocation3 + $0x18] sm:$0xff]
      %v966 = vld [vmem:[#allocation3 + $0x20] sm:$0xff]
      %v967 = vld [vmem:[#allocation3 + $0x28] sm:$0xff]
      %v968 = vld [vmem:[#allocation3 + $0x30] sm:$0xff]
      %v969 = vld [vmem:[#allocation3 + $0x38] sm:$0xff]
      %v970 = vld [vmem:[#allocation3 + $0x40] sm:$0xff]
      %v971 = vld [vmem:[#allocation3 + $0x48] sm:$0xff]
      %v972 = vld [vmem:[#allocation3 + $0x50] sm:$0xff]
      %v973 = vld [vmem:[#allocation3 + $0x58] sm:$0xff]
      %v974 = vld [vmem:[#allocation3 + $0x60] sm:$0xff]
      %v975 = vld [vmem:[#allocation3 + $0x68] sm:$0xff]
      %v976 = vld [vmem:[#allocation3 + $0x70] sm:$0xff]
      %v977 = vld [vmem:[#allocation3 + $0x78] sm:$0xff]
      %v978 = vld [vmem:[#allocation3 + $0x80] sm:$0xff]
      %v979 = vld [vmem:[#allocation3 + $0x88] sm:$0xff]
      %v980 = vld [vmem:[#allocation3 + $0x90] sm:$0xff]
      %v981 = vld [vmem:[#allocation3 + $0x98] sm:$0xff]
      %v982 = vld [vmem:[#allocation3 + $0xa0] sm:$0xff]
      %v983 = vld [vmem:[#allocation3 + $0xa8] sm:$0xff]
      %v984 = vld [vmem:[#allocation3 + $0xb0] sm:$0xff]
      %v985 = vld [vmem:[#allocation3 + $0xb8] sm:$0xff]
      %v986 = vld [vmem:[#allocation3 + $0xc0] sm:$0xff]
      %v987 = vld [vmem:[#allocation3 + $0xc8] sm:$0xff]
      %v988 = vld [vmem:[#allocation3 + $0xd0] sm:$0xff]
      %v989 = vld [vmem:[#allocation3 + $0xd8] sm:$0xff]
      %v990 = vld [vmem:[#allocation3 + $0xe0] sm:$0xff]
      %v991 = vld [vmem:[#allocation3 + $0xe8] sm:$0xff]
      %v992 = vld [vmem:[#allocation3 + $0xf0] sm:$0xff]
      %v993 = vld [vmem:[#allocation3 + $0xf8] sm:$0xff]
      %v994 = vld [vmem:[#allocation3 + $0x100] sm:$0xff]
      %v995 = vld [vmem:[#allocation3 + $0x108] sm:$0xff]
      %v996 = vld [vmem:[#allocation3 + $0x110] sm:$0xff]
      %v997 = vld [vmem:[#allocation3 + $0x118] sm:$0xff]
      %v998 = vld [vmem:[#allocation3 + $0x120] sm:$0xff]
      %v999 = vld [vmem:[#allocation3 + $0x128] sm:$0xff]
      %v1000 = vld [vmem:[#allocation3 + $0x130] sm:$0xff]
      %v1001 = vld [vmem:[#allocation3 + $0x138] sm:$0xff]
      %v1002 = vld [vmem:[#allocation3 + $0x140] sm:$0xff]
      %v1003 = vld [vmem:[#allocation3 + $0x148] sm:$0xff]
      %v1004 = vld [vmem:[#allocation3 + $0x150] sm:$0xff]
      %v1005 = vld [vmem:[#allocation3 + $0x158] sm:$0xff]
      %v1006 = vld [vmem:[#allocation3 + $0x160] sm:$0xff]
      %v1007 = vld [vmem:[#allocation3 + $0x168] sm:$0xff]
      %v1008 = vld [vmem:[#allocation3 + $0x170] sm:$0xff]
      %v1009 = vld [vmem:[#allocation3 + $0x178] sm:$0xff]
      %v1010 = vld [vmem:[#allocation3 + $0x180] sm:$0xff]
      %v1011 = vld [vmem:[#allocation3 + $0x188] sm:$0xff]
      %v1012 = vld [vmem:[#allocation3 + $0x190] sm:$0xff]
      %v1013 = vld [vmem:[#allocation3 + $0x198] sm:$0xff]
      %v1014 = vld [vmem:[#allocation3 + $0x1a0] sm:$0xff]
      %v1015 = vld [vmem:[#allocation3 + $0x1a8] sm:$0xff]
      %v1016 = vld [vmem:[#allocation3 + $0x1b0] sm:$0xff]
      %v1017 = vld [vmem:[#allocation3 + $0x1b8] sm:$0xff]
      %v1018 = vld [vmem:[#allocation3 + $0x1c0] sm:$0xff]
      %v1019 = vld [vmem:[#allocation3 + $0x1c8] sm:$0xff]
      %v1020 = vld [vmem:[#allocation3 + $0x1d0] sm:$0xff]
      %v1021 = vld [vmem:[#allocation3 + $0x1d8] sm:$0xff]
      %v1022 = vld [vmem:[#allocation3 + $0x1e0] sm:$0xff]
      %v1023 = vld [vmem:[#allocation3 + $0x1e8] sm:$0xff]
      %v1024 = vld [vmem:[#allocation3 + $0x1f0] sm:$0xff]
      %v1025 = vld [vmem:[#allocation3 + $0x1f8] sm:$0xff]
      %1026 = vmatprep.subr.mxu0 %v963
      %1027 = vmatpush1.msra.mxu0 %v962
      %1028 = vmatprep.subr.mxu0 %v967
      %1029 = vmatpush1.msra.mxu0 %v966
      %1030 = vmatprep.subr.mxu0 %v971
      %1031 = vmatpush1.msra.mxu0 %v970
      %1032 = vmatprep.subr.mxu0 %v975
      %1033 = vmatpush1.msra.mxu0 %v974
      %1034 = vmatprep.subr.mxu0 %v979
      %1035 = vmatpush1.msra.mxu0 %v978
      %1036 = vmatprep.subr.mxu0 %v983
      %1037 = vmatpush1.msra.mxu0 %v982
      %1038 = vmatprep.subr.mxu0 %v987
      %1039 = vmatpush1.msra.mxu0 %v986
      %1040 = vmatprep.subr.mxu0 %v991
      %1041 = vmatpush1.msra.mxu0 %v990
      %1042 = vmatprep.subr.mxu0 %v995
      %1043 = vmatpush1.msra.mxu0 %v994
      %1044 = vmatprep.subr.mxu0 %v999
      %1045 = vmatpush1.msra.mxu0 %v998
      %1046 = vmatprep.subr.mxu0 %v1003
      %1047 = vmatpush1.msra.mxu0 %v1002
      %1048 = vmatprep.subr.mxu0 %v1007
      %1049 = vmatpush1.msra.mxu0 %v1006
      %1050 = vmatprep.subr.mxu0 %v1011
      %1051 = vmatpush1.msra.mxu0 %v1010
      %1052 = vmatprep.subr.mxu0 %v1015
      %1053 = vmatpush1.msra.mxu0 %v1014
      %1054 = vmatprep.subr.mxu0 %v1019
      %1055 = vmatpush1.msra.mxu0 %v1018
      %1056 = vmatprep.subr.mxu0 %v1023
      %1057 = vmatpush1.msra.mxu0 %v1022
      %1058 = vmatprep.subr.mxu0 0.0
      %1059 = vmatpush1.msra.mxu0 0.0
      %1060 = vmatprep.subr.mxu0 0.0
      %1061 = vmatpush1.msra.mxu0 0.0
      %1062 = vmatprep.subr.mxu0 0.0
      %1063 = vmatpush1.msra.mxu0 0.0
      %1064 = vmatprep.subr.mxu0 0.0
      %1065 = vmatpush1.msra.mxu0 0.0
      %1066 = vmatprep.subr.mxu0 0.0
      %1067 = vmatpush1.msra.mxu0 0.0
      %1068 = vmatprep.subr.mxu0 0.0
      %1069 = vmatpush1.msra.mxu0 0.0
      %1070 = vmatprep.subr.mxu0 0.0
      %1071 = vmatpush1.msra.mxu0 0.0
      %1072 = vmatprep.subr.mxu0 0.0
      %1073 = vmatpush1.msra.mxu0 0.0
      %1074 = vmatprep.subr.mxu0 0.0
      %1075 = vmatpush1.msra.mxu0 0.0
      %1076 = vmatprep.subr.mxu0 0.0
      %1077 = vmatpush1.msra.mxu0 0.0
      %1078 = vmatprep.subr.mxu0 0.0
      %1079 = vmatpush1.msra.mxu0 0.0
      %1080 = vmatprep.subr.mxu0 0.0
      %1081 = vmatpush1.msra.mxu0 0.0
      %1082 = vmatprep.subr.mxu0 0.0
      %1083 = vmatpush1.msra.mxu0 0.0
      %1084 = vmatprep.subr.mxu0 0.0
      %1085 = vmatpush1.msra.mxu0 0.0
      %1086 = vmatprep.subr.mxu0 0.0
      %1087 = vmatpush1.msra.mxu0 0.0
      %1088 = vmatprep.subr.mxu0 0.0
      %1089 = vmatpush1.msra.mxu0 0.0
      %1090 = vmatprep.mubr.f32.mxu0 0.0
      %1091 = vmatmul.mubr.f32.gmra.mrb[0].mxu0 %v952
      %v1092 = vpop.f32.mrb[0].mxu0
      %v1093 = vadd.f32 0.0, %v1092
      %v1094 = vpop.f32.mrb[0].mxu0
      %v1095 = vadd.f32 0.0, %v1094
      %1096 = vdwg.mxu0
      %1097 = vmatprep.subr.mxu0 %v965
      %1098 = vmatpush1.msra.mxu0 %v964
      %1099 = vmatprep.subr.mxu0 %v969
      %1100 = vmatpush1.msra.mxu0 %v968
      %1101 = vmatprep.subr.mxu0 %v973
      %1102 = vmatpush1.msra.mxu0 %v972
      %1103 = vmatprep.subr.mxu0 %v977
      %1104 = vmatpush1.msra.mxu0 %v976
      %1105 = vmatprep.subr.mxu0 %v981
      %1106 = vmatpush1.msra.mxu0 %v980
      %1107 = vmatprep.subr.mxu0 %v985
      %1108 = vmatpush1.msra.mxu0 %v984
      %1109 = vmatprep.subr.mxu0 %v989
      %1110 = vmatpush1.msra.mxu0 %v988
      %1111 = vmatprep.subr.mxu0 %v993
      %1112 = vmatpush1.msra.mxu0 %v992
      %1113 = vmatprep.subr.mxu0 %v997
      %1114 = vmatpush1.msra.mxu0 %v996
      %1115 = vmatprep.subr.mxu0 %v1001
      %1116 = vmatpush1.msra.mxu0 %v1000
      %1117 = vmatprep.subr.mxu0 %v1005
      %1118 = vmatpush1.msra.mxu0 %v1004
      %1119 = vmatprep.subr.mxu0 %v1009
      %1120 = vmatpush1.msra.mxu0 %v1008
      %1121 = vmatprep.subr.mxu0 %v1013
      %1122 = vmatpush1.msra.mxu0 %v1012
      %1123 = vmatprep.subr.mxu0 %v1017
      %1124 = vmatpush1.msra.mxu0 %v1016
      %1125 = vmatprep.subr.mxu0 %v1021
      %1126 = vmatpush1.msra.mxu0 %v1020
      %1127 = vmatprep.subr.mxu0 %v1025
      %1128 = vmatpush1.msra.mxu0 %v1024
      %1129 = vmatprep.subr.mxu0 0.0
      %1130 = vmatpush1.msra.mxu0 0.0
      %1131 = vmatprep.subr.mxu0 0.0
      %1132 = vmatpush1.msra.mxu0 0.0
      %1133 = vmatprep.subr.mxu0 0.0
      %1134 = vmatpush1.msra.mxu0 0.0
      %1135 = vmatprep.subr.mxu0 0.0
      %1136 = vmatpush1.msra.mxu0 0.0
      %1137 = vmatprep.subr.mxu0 0.0
      %1138 = vmatpush1.msra.mxu0 0.0
      %1139 = vmatprep.subr.mxu0 0.0
      %1140 = vmatpush1.msra.mxu0 0.0
      %1141 = vmatprep.subr.mxu0 0.0
      %1142 = vmatpush1.msra.mxu0 0.0
      %1143 = vmatprep.subr.mxu0 0.0
      %1144 = vmatpush1.msra.mxu0 0.0
      %1145 = vmatprep.subr.mxu0 0.0
      %1146 = vmatpush1.msra.mxu0 0.0
      %1147 = vmatprep.subr.mxu0 0.0
      %1148 = vmatpush1.msra.mxu0 0.0
      %1149 = vmatprep.subr.mxu0 0.0
      %1150 = vmatpush1.msra.mxu0 0.0
      %1151 = vmatprep.subr.mxu0 0.0
      %1152 = vmatpush1.msra.mxu0 0.0
      %1153 = vmatprep.subr.mxu0 0.0
      %1154 = vmatpush1.msra.mxu0 0.0
      %1155 = vmatprep.subr.mxu0 0.0
      %1156 = vmatpush1.msra.mxu0 0.0
      %1157 = vmatprep.subr.mxu0 0.0
      %1158 = vmatpush1.msra.mxu0 0.0
      %1159 = vmatprep.subr.mxu0 0.0
      %1160 = vmatpush1.msra.mxu0 0.0
      %1161 = vmatprep.mubr.f32.mxu0 0.0
      %1162 = vmatmul.mubr.f32.gmra.mrb[0].mxu0 %v952
      %v1163 = vpop.f32.mrb[0].mxu0
      %v1164 = vadd.f32 0.0, %v1163
      %v1165 = vpop.f32.mrb[0].mxu0
      %v1166 = vadd.f32 0.0, %v1165
      %1167 = vdwg.mxu0
      %v1168 = vadd.f32 %v958, %v1093
      %v1169 = vadd.f32 %v959, %v1095
      %v1170 = vadd.f32 %v960, %v1164
      %v1171 = vadd.f32 %v961, %v1166
      %v1172 = vxor.u32 %v1168, 2147483648
      %v1173 = vmul.f32 %v1172, 1.442695
      %v1174 = vpow.pop %v1173
      %v1175 = vadd.f32 %v1174, 1.0
      %v1176 = vrcp.pop %v1175
      %v1177 = vmul.f32 1.0, %v1176
      %v1178 = vxor.u32 %v1169, 2147483648
      %v1179 = vmul.f32 %v1178, 1.442695
      %v1180 = vpow.pop %v1179
      %v1181 = vadd.f32 %v1180, 1.0
      %v1182 = vrcp.pop %v1181
      %v1183 = vmul.f32 1.0, %v1182
      %v1184 = vtanh.pop %v1170
      %v1185 = vxor.u32 %v1171, 2147483648
      %v1186 = vmul.f32 %v1185, 1.442695
      %v1187 = vpow.pop %v1186
      %v1188 = vadd.f32 %v1187, 1.0
      %v1189 = vrcp.pop %v1188
      %v1190 = vmul.f32 1.0, %v1189
      %v1191 = vmul.f32 %v1183, %v950
      %v1192 = vmul.f32 %v1177, %v1184
      %v1193 = vadd.f32 %v1191, %v1192
      %v1194 = vtanh.pop %v1193
      %v1195 = vmul.f32 %v1190, %v1194
      %s1196 = scalar_lea.vmem %s147, 16
      %1197 = vst [vmem:[%s1196] sm:$0xff] %v1195
      %s1198 = smul.u32 3, 4
      %s1199 = smul.addr %s1198, 8
      %s1200 = scalar_lea.vmem [#allocation6], %s1199
      %v1201 = vld [vmem:[%s1200] sm:$0xff]
      %v1202 = vld [vmem:[%s1200 + $0x8] sm:$0xff]
      %v1203 = vld [vmem:[%s1200 + $0x10] sm:$0xff]
      %v1204 = vld [vmem:[%s1200 + $0x18] sm:$0xff]
      %v1205 = vld [vmem:[#allocation3] sm:$0xff]
      %v1206 = vld [vmem:[#allocation3 + $0x8] sm:$0xff]
      %v1207 = vld [vmem:[#allocation3 + $0x10] sm:$0xff]
      %v1208 = vld [vmem:[#allocation3 + $0x18] sm:$0xff]
      %v1209 = vld [vmem:[#allocation3 + $0x20] sm:$0xff]
      %v1210 = vld [vmem:[#allocation3 + $0x28] sm:$0xff]
      %v1211 = vld [vmem:[#allocation3 + $0x30] sm:$0xff]
      %v1212 = vld [vmem:[#allocation3 + $0x38] sm:$0xff]
      %v1213 = vld [vmem:[#allocation3 + $0x40] sm:$0xff]
      %v1214 = vld [vmem:[#allocation3 + $0x48] sm:$0xff]
      %v1215 = vld [vmem:[#allocation3 + $0x50] sm:$0xff]
      %v1216 = vld [vmem:[#allocation3 + $0x58] sm:$0xff]
      %v1217 = vld [vmem:[#allocation3 + $0x60] sm:$0xff]
      %v1218 = vld [vmem:[#allocation3 + $0x68] sm:$0xff]
      %v1219 = vld [vmem:[#allocation3 + $0x70] sm:$0xff]
      %v1220 = vld [vmem:[#allocation3 + $0x78] sm:$0xff]
      %v1221 = vld [vmem:[#allocation3 + $0x80] sm:$0xff]
      %v1222 = vld [vmem:[#allocation3 + $0x88] sm:$0xff]
      %v1223 = vld [vmem:[#allocation3 + $0x90] sm:$0xff]
      %v1224 = vld [vmem:[#allocation3 + $0x98] sm:$0xff]
      %v1225 = vld [vmem:[#allocation3 + $0xa0] sm:$0xff]
      %v1226 = vld [vmem:[#allocation3 + $0xa8] sm:$0xff]
      %v1227 = vld [vmem:[#allocation3 + $0xb0] sm:$0xff]
      %v1228 = vld [vmem:[#allocation3 + $0xb8] sm:$0xff]
      %v1229 = vld [vmem:[#allocation3 + $0xc0] sm:$0xff]
      %v1230 = vld [vmem:[#allocation3 + $0xc8] sm:$0xff]
      %v1231 = vld [vmem:[#allocation3 + $0xd0] sm:$0xff]
      %v1232 = vld [vmem:[#allocation3 + $0xd8] sm:$0xff]
      %v1233 = vld [vmem:[#allocation3 + $0xe0] sm:$0xff]
      %v1234 = vld [vmem:[#allocation3 + $0xe8] sm:$0xff]
      %v1235 = vld [vmem:[#allocation3 + $0xf0] sm:$0xff]
      %v1236 = vld [vmem:[#allocation3 + $0xf8] sm:$0xff]
      %v1237 = vld [vmem:[#allocation3 + $0x100] sm:$0xff]
      %v1238 = vld [vmem:[#allocation3 + $0x108] sm:$0xff]
      %v1239 = vld [vmem:[#allocation3 + $0x110] sm:$0xff]
      %v1240 = vld [vmem:[#allocation3 + $0x118] sm:$0xff]
      %v1241 = vld [vmem:[#allocation3 + $0x120] sm:$0xff]
      %v1242 = vld [vmem:[#allocation3 + $0x128] sm:$0xff]
      %v1243 = vld [vmem:[#allocation3 + $0x130] sm:$0xff]
      %v1244 = vld [vmem:[#allocation3 + $0x138] sm:$0xff]
      %v1245 = vld [vmem:[#allocation3 + $0x140] sm:$0xff]
      %v1246 = vld [vmem:[#allocation3 + $0x148] sm:$0xff]
      %v1247 = vld [vmem:[#allocation3 + $0x150] sm:$0xff]
      %v1248 = vld [vmem:[#allocation3 + $0x158] sm:$0xff]
      %v1249 = vld [vmem:[#allocation3 + $0x160] sm:$0xff]
      %v1250 = vld [vmem:[#allocation3 + $0x168] sm:$0xff]
      %v1251 = vld [vmem:[#allocation3 + $0x170] sm:$0xff]
      %v1252 = vld [vmem:[#allocation3 + $0x178] sm:$0xff]
      %v1253 = vld [vmem:[#allocation3 + $0x180] sm:$0xff]
      %v1254 = vld [vmem:[#allocation3 + $0x188] sm:$0xff]
      %v1255 = vld [vmem:[#allocation3 + $0x190] sm:$0xff]
      %v1256 = vld [vmem:[#allocation3 + $0x198] sm:$0xff]
      %v1257 = vld [vmem:[#allocation3 + $0x1a0] sm:$0xff]
      %v1258 = vld [vmem:[#allocation3 + $0x1a8] sm:$0xff]
      %v1259 = vld [vmem:[#allocation3 + $0x1b0] sm:$0xff]
      %v1260 = vld [vmem:[#allocation3 + $0x1b8] sm:$0xff]
      %v1261 = vld [vmem:[#allocation3 + $0x1c0] sm:$0xff]
      %v1262 = vld [vmem:[#allocation3 + $0x1c8] sm:$0xff]
      %v1263 = vld [vmem:[#allocation3 + $0x1d0] sm:$0xff]
      %v1264 = vld [vmem:[#allocation3 + $0x1d8] sm:$0xff]
      %v1265 = vld [vmem:[#allocation3 + $0x1e0] sm:$0xff]
      %v1266 = vld [vmem:[#allocation3 + $0x1e8] sm:$0xff]
      %v1267 = vld [vmem:[#allocation3 + $0x1f0] sm:$0xff]
      %v1268 = vld [vmem:[#allocation3 + $0x1f8] sm:$0xff]
      %1269 = vmatprep.subr.mxu0 %v1206
      %1270 = vmatpush1.msra.mxu0 %v1205
      %1271 = vmatprep.subr.mxu0 %v1210
      %1272 = vmatpush1.msra.mxu0 %v1209
      %1273 = vmatprep.subr.mxu0 %v1214
      %1274 = vmatpush1.msra.mxu0 %v1213
      %1275 = vmatprep.subr.mxu0 %v1218
      %1276 = vmatpush1.msra.mxu0 %v1217
      %1277 = vmatprep.subr.mxu0 %v1222
      %1278 = vmatpush1.msra.mxu0 %v1221
      %1279 = vmatprep.subr.mxu0 %v1226
      %1280 = vmatpush1.msra.mxu0 %v1225
      %1281 = vmatprep.subr.mxu0 %v1230
      %1282 = vmatpush1.msra.mxu0 %v1229
      %1283 = vmatprep.subr.mxu0 %v1234
      %1284 = vmatpush1.msra.mxu0 %v1233
      %1285 = vmatprep.subr.mxu0 %v1238
      %1286 = vmatpush1.msra.mxu0 %v1237
      %1287 = vmatprep.subr.mxu0 %v1242
      %1288 = vmatpush1.msra.mxu0 %v1241
      %1289 = vmatprep.subr.mxu0 %v1246
      %1290 = vmatpush1.msra.mxu0 %v1245
      %1291 = vmatprep.subr.mxu0 %v1250
      %1292 = vmatpush1.msra.mxu0 %v1249
      %1293 = vmatprep.subr.mxu0 %v1254
      %1294 = vmatpush1.msra.mxu0 %v1253
      %1295 = vmatprep.subr.mxu0 %v1258
      %1296 = vmatpush1.msra.mxu0 %v1257
      %1297 = vmatprep.subr.mxu0 %v1262
      %1298 = vmatpush1.msra.mxu0 %v1261
      %1299 = vmatprep.subr.mxu0 %v1266
      %1300 = vmatpush1.msra.mxu0 %v1265
      %1301 = vmatprep.subr.mxu0 0.0
      %1302 = vmatpush1.msra.mxu0 0.0
      %1303 = vmatprep.subr.mxu0 0.0
      %1304 = vmatpush1.msra.mxu0 0.0
      %1305 = vmatprep.subr.mxu0 0.0
      %1306 = vmatpush1.msra.mxu0 0.0
      %1307 = vmatprep.subr.mxu0 0.0
      %1308 = vmatpush1.msra.mxu0 0.0
      %1309 = vmatprep.subr.mxu0 0.0
      %1310 = vmatpush1.msra.mxu0 0.0
      %1311 = vmatprep.subr.mxu0 0.0
      %1312 = vmatpush1.msra.mxu0 0.0
      %1313 = vmatprep.subr.mxu0 0.0
      %1314 = vmatpush1.msra.mxu0 0.0
      %1315 = vmatprep.subr.mxu0 0.0
      %1316 = vmatpush1.msra.mxu0 0.0
      %1317 = vmatprep.subr.mxu0 0.0
      %1318 = vmatpush1.msra.mxu0 0.0
      %1319 = vmatprep.subr.mxu0 0.0
      %1320 = vmatpush1.msra.mxu0 0.0
      %1321 = vmatprep.subr.mxu0 0.0
      %1322 = vmatpush1.msra.mxu0 0.0
      %1323 = vmatprep.subr.mxu0 0.0
      %1324 = vmatpush1.msra.mxu0 0.0
      %1325 = vmatprep.subr.mxu0 0.0
      %1326 = vmatpush1.msra.mxu0 0.0
      %1327 = vmatprep.subr.mxu0 0.0
      %1328 = vmatpush1.msra.mxu0 0.0
      %1329 = vmatprep.subr.mxu0 0.0
      %1330 = vmatpush1.msra.mxu0 0.0
      %1331 = vmatprep.subr.mxu0 0.0
      %1332 = vmatpush1.msra.mxu0 0.0
      %1333 = vmatprep.mubr.f32.mxu0 0.0
      %1334 = vmatmul.mubr.f32.gmra.mrb[0].mxu0 %v1195
      %v1335 = vpop.f32.mrb[0].mxu0
      %v1336 = vadd.f32 0.0, %v1335
      %v1337 = vpop.f32.mrb[0].mxu0
      %v1338 = vadd.f32 0.0, %v1337
      %1339 = vdwg.mxu0
      %1340 = vmatprep.subr.mxu0 %v1208
      %1341 = vmatpush1.msra.mxu0 %v1207
      %1342 = vmatprep.subr.mxu0 %v1212
      %1343 = vmatpush1.msra.mxu0 %v1211
      %1344 = vmatprep.subr.mxu0 %v1216
      %1345 = vmatpush1.msra.mxu0 %v1215
      %1346 = vmatprep.subr.mxu0 %v1220
      %1347 = vmatpush1.msra.mxu0 %v1219
      %1348 = vmatprep.subr.mxu0 %v1224
      %1349 = vmatpush1.msra.mxu0 %v1223
      %1350 = vmatprep.subr.mxu0 %v1228
      %1351 = vmatpush1.msra.mxu0 %v1227
      %1352 = vmatprep.subr.mxu0 %v1232
      %1353 = vmatpush1.msra.mxu0 %v1231
      %1354 = vmatprep.subr.mxu0 %v1236
      %1355 = vmatpush1.msra.mxu0 %v1235
      %1356 = vmatprep.subr.mxu0 %v1240
      %1357 = vmatpush1.msra.mxu0 %v1239
      %1358 = vmatprep.subr.mxu0 %v1244
      %1359 = vmatpush1.msra.mxu0 %v1243
      %1360 = vmatprep.subr.mxu0 %v1248
      %1361 = vmatpush1.msra.mxu0 %v1247
      %1362 = vmatprep.subr.mxu0 %v1252
      %1363 = vmatpush1.msra.mxu0 %v1251
      %1364 = vmatprep.subr.mxu0 %v1256
      %1365 = vmatpush1.msra.mxu0 %v1255
      %1366 = vmatprep.subr.mxu0 %v1260
      %1367 = vmatpush1.msra.mxu0 %v1259
      %1368 = vmatprep.subr.mxu0 %v1264
      %1369 = vmatpush1.msra.mxu0 %v1263
      %1370 = vmatprep.subr.mxu0 %v1268
      %1371 = vmatpush1.msra.mxu0 %v1267
      %1372 = vmatprep.subr.mxu0 0.0
      %1373 = vmatpush1.msra.mxu0 0.0
      %1374 = vmatprep.subr.mxu0 0.0
      %1375 = vmatpush1.msra.mxu0 0.0
      %1376 = vmatprep.subr.mxu0 0.0
      %1377 = vmatpush1.msra.mxu0 0.0
      %1378 = vmatprep.subr.mxu0 0.0
      %1379 = vmatpush1.msra.mxu0 0.0
      %1380 = vmatprep.subr.mxu0 0.0
      %1381 = vmatpush1.msra.mxu0 0.0
      %1382 = vmatprep.subr.mxu0 0.0
      %1383 = vmatpush1.msra.mxu0 0.0
      %1384 = vmatprep.subr.mxu0 0.0
      %1385 = vmatpush1.msra.mxu0 0.0
      %1386 = vmatprep.subr.mxu0 0.0
      %1387 = vmatpush1.msra.mxu0 0.0
      %1388 = vmatprep.subr.mxu0 0.0
      %1389 = vmatpush1.msra.mxu0 0.0
      %1390 = vmatprep.subr.mxu0 0.0
      %1391 = vmatpush1.msra.mxu0 0.0
      %1392 = vmatprep.subr.mxu0 0.0
      %1393 = vmatpush1.msra.mxu0 0.0
      %1394 = vmatprep.subr.mxu0 0.0
      %1395 = vmatpush1.msra.mxu0 0.0
      %1396 = vmatprep.subr.mxu0 0.0
      %1397 = vmatpush1.msra.mxu0 0.0
      %1398 = vmatprep.subr.mxu0 0.0
      %1399 = vmatpush1.msra.mxu0 0.0
      %1400 = vmatprep.subr.mxu0 0.0
      %1401 = vmatpush1.msra.mxu0 0.0
      %1402 = vmatprep.subr.mxu0 0.0
      %1403 = vmatpush1.msra.mxu0 0.0
      %1404 = vmatprep.mubr.f32.mxu0 0.0
      %1405 = vmatmul.mubr.f32.gmra.mrb[0].mxu0 %v1195
      %v1406 = vpop.f32.mrb[0].mxu0
      %v1407 = vadd.f32 0.0, %v1406
      %v1408 = vpop.f32.mrb[0].mxu0
      %v1409 = vadd.f32 0.0, %v1408
      %1410 = vdwg.mxu0
      %v1411 = vadd.f32 %v1201, %v1336
      %v1412 = vadd.f32 %v1202, %v1338
      %v1413 = vadd.f32 %v1203, %v1407
      %v1414 = vadd.f32 %v1204, %v1409
      %v1415 = vxor.u32 %v1411, 2147483648
      %v1416 = vmul.f32 %v1415, 1.442695
      %v1417 = vpow.pop %v1416
      %v1418 = vadd.f32 %v1417, 1.0
      %v1419 = vrcp.pop %v1418
      %v1420 = vmul.f32 1.0, %v1419
      %v1421 = vxor.u32 %v1412, 2147483648
      %v1422 = vmul.f32 %v1421, 1.442695
      %v1423 = vpow.pop %v1422
      %v1424 = vadd.f32 %v1423, 1.0
      %v1425 = vrcp.pop %v1424
      %v1426 = vmul.f32 1.0, %v1425
      %v1427 = vtanh.pop %v1413
      %v1428 = vxor.u32 %v1414, 2147483648
      %v1429 = vmul.f32 %v1428, 1.442695
      %v1430 = vpow.pop %v1429
      %v1431 = vadd.f32 %v1430, 1.0
      %v1432 = vrcp.pop %v1431
      %v1433 = vmul.f32 1.0, %v1432
      %v1434 = vmul.f32 %v1426, %v1193
      %v1435 = vmul.f32 %v1420, %v1427
      %v1436 = vadd.f32 %v1434, %v1435
      %v1437 = vtanh.pop %v1436
      %v1438 = vmul.f32 %v1433, %v1437
      %s1439 = scalar_lea.vmem %s147, 24
      %1440 = vst [vmem:[%s1439] sm:$0xff] %v1438
      %1441 = vst [vmem:[#allocation4] sm:$0xff] %v1438
      %1442 = vst [vmem:[#allocation5] sm:$0xff] %v1436
      %s1443 = smul.u32 4, %s15
      %p1444 = scmp.lt.s32.totalorder %s1443, 7
      %s1445 = scalar_select %p1444, %s1443, 7
      %s1446 = smul.addr %s1445, 8
      %s1447 = scalar_lea.vmem %s4, %s1446
      // Predicated region
      $region41: #{language_model_forward.5} parent=27 // pred_check
        %p1448 = pneg %p80
      $region42: #{language_model_forward.5} parent=27 // pred_check_branch
        %1450 = sbr.rel (%p1448) target = $region44
      $region43: #{language_model_forward.5} parent=27 // pred_region
        %s1451 = smul.u32 4, %s15
      $region44: #{language_model_forward.5} parent=27 // pred_fallthru
        _
    $region28: #{language_model_forward.5} parent=5 // pred_fallthru
      _
    %p1452 = scmp.le.s32.totalorder 2, %s10
    // Predicated region
    $region45: #{language_model_forward.5} parent=5 // pred_check
      %p1453 = pneg %p1452
    $region46: #{language_model_forward.5} parent=5 // pred_check_branch
      %1455 = sbr.rel (%p1453) target = $region48
    $region47: #{language_model_forward.5} parent=5 // pred_region
      %s1456 = ssub.s32 %s10, 2
      // Predicated region
      $region49: #{language_model_forward.5} parent=47 // pred_check
        %p1457 = pneg %p86
      $region50: #{language_model_forward.5} parent=47 // pred_check_branch
        %1459 = sbr.rel (%p1457) target = $region52
      $region51: #{language_model_forward.5} parent=47 // pred_region
        %s1460 = smul.u32 4, %s16
        %p1461 = scmp.lt.s32.totalorder %s1460, 7
        %s1462 = scalar_select %p1461, %s1460, 7
        %s1463 = smul.addr %s1462, 8
        %s1464 = scalar_lea.vmem %s4, %s1463
      $region52: #{language_model_forward.5} parent=47 // pred_fallthru
        _
    $region48: #{language_model_forward.5} parent=5 // pred_fallthru
      _
  $region6: #{language_model_forward.5} parent=0 // loop_footer
    %s14 = sadd.s32 1, %s10
  $region7: #{language_model_forward.5} parent=0 // loop_footer_branch
    %9 = sbr.rel target = $region3
  $region8: #{language_model_forward.5} parent=0 // loop_exit
    _
  %1465 = vsyncmov [#allocation7]
  %s1466 = vpop.sfrf %1465
  %p1467 = scmp.eq.s32.totalorder %s1466, 0
  %p1468 = pneg %p1467
  %1470 = shalt.err (%p1468)
  %s1471 = scalar_lea.sflag [#allocation7], 1
  %1472 = vsyncmov %s1471
  %s1473 = vpop.sfrf %1472
  %p1474 = scmp.eq.s32.totalorder %s1473, 0
  %p1475 = pneg %p1474
  %1477 = shalt.err (%p1475)

</llo_original>
